<compile_context>
chip_gen: v6e
topology: v6e:2x2x1
jax: 0.10.0
libtpu: 0.0.40
codegen_flags: <defaults>
</compile_context>

<pallas_src>
import functools

import jax
import jax.numpy as jnp
import numpy as np
from jax import lax
from jax.experimental import pallas as pl
from jax.experimental.pallas import tpu as pltpu

EPS = 1e-5     # PyTorch BatchNorm2d default eps
LANE = 128     # channel axis is padded to multiples of the TPU lane width


def _round_up(x, m):
    return (x + m - 1) // m * m


def _vmem_budgets():
    """(working-set budget, vmem_limit_bytes), conservative per TPU generation."""
    try:
        kind = jax.devices()[0].device_kind.lower()
    except Exception:
        kind = ""
    if "v7" in kind:                      # 64 MiB physical VMEM per TensorCore
        return 24 << 20, 48 << 20
    if "v5" in kind or "v6" in kind:      # 128 MiB physical VMEM
        return 48 << 20, 96 << 20
    return 24 << 20, 48 << 20             # unknown chip: stay conservative


def _conv_bn_kernel(top_ref, body_ref, bot_ref, w_ref, *rest,
                    fuse_input_bn, img_h, img_w):
    """One (batch, row-block) tile of Conv2d(3x3, pad=1).

    top_ref/bot_ref: (1, 1, Wp, Cin)   halo rows (zeroed in-kernel at image borders)
    body_ref:        (1, TH, Wp, Cin)  the tile's own rows; valid data in cols [0, W)
    w_ref:           (3, 3*Cin, Cout)  per-dy weight slabs, rows ordered (dx, cin)
    [sc_ref, sh_ref: (1, Cin)]         fused BN scale/shift of the previous conv (bf16)
    y_ref:           (1, TH, Wp, Cout) raw conv output, pad cols/rows stored as zeros
    stats_ref:       (1, 1, 2, Cout)   per-tile partial (sum, sum of squares)
    """
    if fuse_input_bn:
        sc_ref, sh_ref, y_ref, stats_ref = rest
    else:
        sc_ref = sh_ref = None
        y_ref, stats_ref = rest

    TH = body_ref.shape[1]
    Wp = body_ref.shape[2]
    Ci = body_ref.shape[3]
    Co = y_ref.shape[3]
    dt = body_ref.dtype
    j = pl.program_id(1)
    nj = pl.num_programs(1)
    ragged_h = (img_h % TH) != 0           # static: padded rows exist in the last tile

    # Validity mask of this tile's output pixels (pad columns / padded H rows).
    colmask = lax.broadcasted_iota(jnp.int32, (1, Wp, 1), 1) < img_w
    ok = colmask
    if ragged_h:
        row = lax.broadcasted_iota(jnp.int32, (TH, 1, 1), 0) + j * TH
        ok = jnp.logical_and(colmask, row < img_h)

    top = top_ref[0]          # (1, Wp, Ci)
    body = body_ref[0]        # (TH, Wp, Ci)
    bot = bot_ref[0]          # (1, Wp, Ci)

    if fuse_input_bn:
        # BatchNorm + ReLU of the previous conv applied on the fly, in bf16 (VPU).
        # The stored zero padding would become relu(shift) != 0, so the affine result
        # is re-masked with the same validity mask (restricted to the tile it needs).
        sc = sc_ref[0]
        sh = sh_ref[0]
        body = jnp.where(ok, jnp.maximum(body * sc + sh, 0), 0).astype(dt)
        top = jnp.where(colmask, jnp.maximum(top * sc + sh, 0), 0).astype(dt)
        bot = jnp.where(colmask, jnp.maximum(bot * sc + sh, 0), 0).astype(dt)

    # Halo rows: at the image borders the clamped index map re-reads an interior row,
    # so zero them there (this is the conv's H zero-padding).  One row each -> cheap.
    top = jnp.where(j > 0, top, jnp.zeros_like(top))
    bot = jnp.where(j + 1 < nj, bot, jnp.zeros_like(bot))

    # Haloed tile and its two W-shifted views (the dx = 0 / 2 taps).
    x = jnp.concatenate([top, body, bot], axis=0)                 # (TH+2, Wp, Ci)
    zcol = jnp.zeros((TH + 2, 1, Ci), dt)
    xl = jnp.concatenate([zcol, x[:, :Wp - 1, :]], axis=1)        # x[h, w-1]
    xr = jnp.concatenate([x[:, 1:, :], zcol], axis=1)             # x[h, w+1]
    x3 = jnp.concatenate([xl, x, xr], axis=-1)                    # (TH+2, Wp, 3*Ci)

    # 3 accumulated MXU matmuls (one per kernel row dy), K = 3*Cin, f32 accumulation.
    acc = None
    for dy in range(3):
        slab = x3[dy:dy + TH].reshape(TH * Wp, 3 * Ci)
        part = jnp.dot(slab, w_ref[dy], preferred_element_type=jnp.float32)
        acc = part if acc is None else acc + part
    acc = acc.reshape(TH, Wp, Co)

    # Zero the pad columns/rows (they pick up real data through the edge taps) so the
    # stored tensor is valid zero-padding for the next conv and the BN statistics
    # only count real pixels.
    acc = jnp.where(ok, acc, 0.0)

    s1 = jnp.sum(acc, axis=(0, 1))[None]
    s2 = jnp.sum(acc * acc, axis=(0, 1))[None]
    stats_ref[0, 0] = jnp.concatenate([s1, s2], axis=0)
    y_ref[0] = acc.astype(y_ref.dtype)


def _bn_relu_kernel(x_ref, sc_ref, sh_ref, o_ref):
    """Final BatchNorm + ReLU over one row tile (memory bound; full-width lane-dense IO)."""
    x = x_ref[...].astype(jnp.float32)
    o_ref[...] = jnp.maximum(x * sc_ref[0] + sh_ref[0], 0.0).astype(o_ref.dtype)


def _conv_stage(x, w_slab, tile_h, *, img_h, img_w, vmem_limit,
                in_scale=None, in_shift=None):
    """Tiled Conv2d(3x3, pad=1): masked raw conv output (bf16) + per-tile BN stats."""
    N, Hp, Wp, Ci = x.shape
    Co = w_slab.shape[2]
    HB = Hp // tile_h
    fuse = in_scale is not None

    in_specs = [
        pl.BlockSpec((1, 1, Wp, Ci),
                     lambda n, j: (n, jnp.maximum(j * tile_h - 1, 0), 0, 0)),
        pl.BlockSpec((1, tile_h, Wp, Ci), lambda n, j: (n, j, 0, 0)),
        pl.BlockSpec((1, 1, Wp, Ci),
                     lambda n, j: (n, jnp.minimum(j * tile_h + tile_h, Hp - 1), 0, 0)),
        # Constant-index weight slab: Pallas only DMAs it once.
        # TODO(synk): single-buffer it when 9*Cin*Cout*2 bytes is large vs. VMEM (v7x).
        pl.BlockSpec((3, 3 * Ci, Co), lambda n, j: (0, 0, 0)),
    ]
    args = [x, x, x, w_slab]
    if fuse:
        in_specs += [pl.BlockSpec((1, Ci), lambda n, j: (0, 0)),
                     pl.BlockSpec((1, Ci), lambda n, j: (0, 0))]
        args += [in_scale, in_shift]

    flops = 2 * N * Hp * Wp * (9 * Ci) * Co
    bytes_accessed = (x.size * x.dtype.itemsize + w_slab.size * 2
                      + N * Hp * Wp * Co * 2 + N * HB * 2 * Co * 4)

    return pl.pallas_call(
        functools.partial(_conv_bn_kernel, fuse_input_bn=fuse, img_h=img_h, img_w=img_w),
        grid=(N, HB),
        in_specs=in_specs,
        out_specs=(pl.BlockSpec((1, tile_h, Wp, Co), lambda n, j: (n, j, 0, 0)),
                   pl.BlockSpec((1, 1, 2, Co), lambda n, j: (n, j, 0, 0))),
        out_shape=(jax.ShapeDtypeStruct((N, Hp, Wp, Co), jnp.bfloat16),
                   jax.ShapeDtypeStruct((N, HB, 2, Co), jnp.float32)),
        compiler_params=pltpu.CompilerParams(
            dimension_semantics=("parallel", "parallel"),
            vmem_limit_bytes=vmem_limit),
        cost_estimate=pl.CostEstimate(flops=flops, transcendentals=0,
                                      bytes_accessed=bytes_accessed),
    )(*args)


def _bn_relu_stage(y, scale, shift, tile_h, out_dtype, vmem_limit):
    N, Hp, Wp, C = y.shape
    HB = Hp // tile_h
    out_bytes = N * Hp * Wp * C * np.dtype(out_dtype).itemsize
    return pl.pallas_call(
        _bn_relu_kernel,
        grid=(N, HB),
        in_specs=[pl.BlockSpec((1, tile_h, Wp, C), lambda n, j: (n, j, 0, 0)),
                  pl.BlockSpec((1, C), lambda n, j: (0, 0)),
                  pl.BlockSpec((1, C), lambda n, j: (0, 0))],
        out_specs=pl.BlockSpec((1, tile_h, Wp, C), lambda n, j: (n, j, 0, 0)),
        out_shape=jax.ShapeDtypeStruct((N, Hp, Wp, C), out_dtype),
        compiler_params=pltpu.CompilerParams(
            dimension_semantics=("parallel", "parallel"),
            vmem_limit_bytes=vmem_limit),
        cost_estimate=pl.CostEstimate(flops=3 * N * Hp * Wp * C, transcendentals=0,
                                      bytes_accessed=y.size * 2 + out_bytes),
    )(y, scale, shift)


def _pick_tile_h(H, Wp, ci, co, budget):
    """Largest row-tile height whose per-step working set fits the VMEM budget.

    Prefers an exact divisor of H (no padded rows) unless that would more than double
    the number of grid steps (e.g. H prime); otherwise H is padded to a tile multiple.
    Per-step overhead (~0.35us) and MXU M-dim (tile_h*Wp) both favour the largest tile.
    """
    def est(th):
        in_blk = th * Wp * ci * 2          # body input block (bf16)
        out_blk = th * Wp * co * 2         # output block (bf16)
        halo = (th + 2) * Wp * ci * 2      # haloed tile (bf16)
        acc = th * Wp * co * 4             # f32 accumulator
        w_blk = 9 * ci * co * 2            # weight slab (bf16)
        return (2 * in_blk + 2 * out_blk + 2 * w_blk   # double-buffered pipeline blocks
                + 6 * halo        # haloed tile + 2 shifted views + (TH+2, Wp, 3*Ci) slab
                + 1 * in_blk      # fused-BN activation temporary
                + 3 * acc)        # accumulator + mask/cast temporaries

    feasible = [th for th in range(1, H + 1) if est(th) <= budget]
    if not feasible:
        return 1
    th_max = feasible[-1]
    divs = [th for th in feasible if H % th == 0]
    if divs and pl.cdiv(H, divs[-1]) <= 2 * pl.cdiv(H, th_max):
        return divs[-1]
    return th_max


def _pack_weight(w_hwio, ci, co):
    """(3,3,Cin,Cout) HWIO -> zero-padded (3, 3*Ci, Co) bf16 slabs, rows ordered (dx, cin)."""
    kh, kw, cin, cout = w_hwio.shape
    w = jnp.pad(w_hwio, ((0, 0), (0, 0), (0, ci - cin), (0, co - cout)))
    return w.reshape(kh, kw * ci, co).astype(jnp.bfloat16)


def _bn_scale_shift(stats, gamma, beta, count):
    """Fold per-tile (sum, sumsq) partials into per-channel BN scale/shift (f32, (1, C)).

    One-pass E[x^2]-E[x]^2 in f32; conv outputs are near zero-mean so cancellation is
    benign here (a mean-shifted/Welford fold would be the robust alternative).
    """
    cpad = stats.shape[-1]
    tot = jnp.sum(stats, axis=(0, 1))                       # (2, Cpad)
    mean = tot[0] / count
    var = jnp.maximum(tot[1] / count - mean * mean, 0.0)    # biased variance (train mode)
    inv = lax.rsqrt(var + EPS)
    g = jnp.pad(gamma, (0, cpad - gamma.shape[0]), constant_values=1.0)
    b = jnp.pad(beta, (0, cpad - beta.shape[0]))
    scale = g * inv
    shift = b - mean * scale
    return scale.reshape(1, cpad), shift.reshape(1, cpad)


@functools.partial(jax.jit, static_argnames=("tile_h", "out_dtype"))
def double_conv(x_nchw, params, *, tile_h=None, out_dtype=jnp.float32):
    """Forward of DoubleConv.  Input/output are NCHW like the PyTorch module."""
    N, Cin, H, W = x_nchw.shape
    Cout = params["g1"].shape[0]
    ci = _round_up(Cin, LANE)
    co = _round_up(Cout, LANE)
    Wp = _round_up(W + 1, 8)        # >= one zero column on the right for the conv padding
    budget, vmem_limit = _vmem_budgets()
    if tile_h is None:
        tile_h = _pick_tile_h(H, Wp, max(ci, co), co, budget)
    Hp = _round_up(H, tile_h)

    # NCHW -> NHWC; pad H (tile multiple), W (conv pad + sublane alignment) and channels
    # (lane density) once on the host; cast to bf16 for the MXU.
    x = jnp.transpose(x_nchw, (0, 2, 3, 1))
    x = jnp.pad(x, ((0, 0), (0, Hp - H), (0, Wp - W), (0, ci - Cin))).astype(jnp.bfloat16)

    w1 = _pack_weight(params["w1"], ci, co)
    w2 = _pack_weight(params["w2"], co, co)
    count = N * H * W

    # Conv1 (conv bias omitted in-kernel: cancelled exactly by training-mode BatchNorm).
    y1, st1 = _conv_stage(x, w1, tile_h, img_h=H, img_w=W, vmem_limit=vmem_limit)
    sc1, sh1 = _bn_scale_shift(st1, params["g1"], params["be1"], count)
    # Conv2, with BN1 + ReLU fused (in bf16) into its input read.
    y2, st2 = _conv_stage(y1, w2, tile_h, img_h=H, img_w=W, vmem_limit=vmem_limit,
                          in_scale=sc1.astype(jnp.bfloat16),
                          in_shift=sh1.astype(jnp.bfloat16))
    sc2, sh2 = _bn_scale_shift(st2, params["g2"], params["be2"], count)
    # Final BN2 + ReLU epilogue (f32 math, configurable output dtype).
    out = _bn_relu_stage(y2, sc2, sh2, tile_h, out_dtype, vmem_limit)
    # Crop the padding and go back to NCHW (one fused XLA copy pass).
    return jnp.transpose(out[:, :H, :W, :Cout], (0, 3, 1, 2))


def init_params(key, in_channels, out_channels):
    k = jax.random.split(key, 6)
    w1 = jax.random.normal(k[0], (3, 3, in_channels, out_channels), jnp.float32) * 0.2
    b1 = jax.random.normal(k[1], (out_channels,), jnp.float32) * 0.1
    w2 = jax.random.normal(k[2], (3, 3, out_channels, out_channels), jnp.float32) * 0.2
    b2 = jax.random.normal(k[3], (out_channels,), jnp.float32) * 0.1
    # Non-trivial BN affine params so the scale/shift path is actually exercised.
    g1 = 1.0 + 0.1 * jax.random.normal(k[4], (out_channels,), jnp.float32)
    g2 = 1.0 + 0.1 * jax.random.normal(k[5], (out_channels,), jnp.float32)
    be1 = jnp.full((out_channels,), 0.05, jnp.float32)
    be2 = jnp.full((out_channels,), -0.05, jnp.float32)
    return dict(w1=w1, b1=b1, g1=g1, be1=be1, w2=w2, b2=b2, g2=g2, be2=be2)


def ref_double_conv(x_nchw, params):
    """Pure-JAX f32 reference (XLA conv).  Input/weights are bf16-quantized to match what
    the Pallas pipeline feeds the MXU; all of the math itself runs in f32."""
    def q(a):
        return a.astype(jnp.bfloat16).astype(jnp.float32)

    def conv(x, w_hwio, b):
        w_oihw = jnp.transpose(q(w_hwio), (3, 2, 0, 1))
        y = lax.conv_general_dilated(
            x, w_oihw, window_strides=(1, 1), padding="SAME",
            dimension_numbers=("NCHW", "OIHW", "NCHW"))
        return y + b.reshape(1, -1, 1, 1)     # bias kept here; train-mode BN cancels it

    def bn_relu(x, gamma, beta):
        mean = jnp.mean(x, axis=(0, 2, 3), keepdims=True)
        var = jnp.mean((x - mean) ** 2, axis=(0, 2, 3), keepdims=True)
        y = (x - mean) * lax.rsqrt(var + EPS)
        y = y * gamma.reshape(1, -1, 1, 1) + beta.reshape(1, -1, 1, 1)
        return jnp.maximum(y, 0.0)

    x = bn_relu(conv(q(x_nchw), params["w1"], params["b1"]), params["g1"], params["be1"])
    x = bn_relu(conv(x, params["w2"], params["b2"]), params["g2"], params["be2"])
    return x


if __name__ == "__main__":
    key = jax.random.PRNGKey(0)
    kx, kp = jax.random.split(key)

    N, Cin, Cout, S = 2, 4, 8, 16
    x = jax.random.normal(kx, (N, Cin, S, S), jnp.float32)      # NCHW like PyTorch
    params = init_params(kp, Cin, Cout)

    ref = jax.block_until_ready(ref_double_conv(x, params))

    # Auto tile (whole image per step), an exact-divisor multi-tile run (halo exchange +
    # cross-tile BN stats), and a non-divisor tile (padded H rows masked out of stats).
    for th in (None, 8, 6):
        out = jax.block_until_ready(double_conv(x, params, tile_h=th))
        assert out.shape == (N, Cout, S, S)
        # Conv runs in bf16 on the MXU and BN1+ReLU is fused in bf16, while the reference
        # keeps intermediate activations in f32 -> slightly loosened absolute tolerance.
        np.testing.assert_allclose(np.asarray(out), np.asarray(ref), rtol=2e-2, atol=3e-2)

    print("KERNEL_OK")
</pallas_src>

<mosaic_0001>
module attributes {stable_mosaic.version = 11 : i64} {
  func.func @_conv_bn_kernel(%arg0: i32, %arg1: i32, %arg2: memref<1x1x24x128xbf16, #tpu.memory_space<vmem>>, %arg3: memref<1x16x24x128xbf16, #tpu.memory_space<vmem>>, %arg4: memref<1x1x24x128xbf16, #tpu.memory_space<vmem>>, %arg5: memref<3x384x128xbf16, #tpu.memory_space<vmem>>, %arg6: memref<1x16x24x128xbf16, #tpu.memory_space<vmem>>, %arg7: memref<1x1x2x128xf32, #tpu.memory_space<vmem>>) attributes {dimension_semantics = [#tpu.dimension_semantics<parallel>, #tpu.dimension_semantics<parallel>], iteration_bounds = array<i64: 2, 1>, scalar_prefetch = 0 : i64, scratch_operands = 0 : i64, tpu.core_type = #tpu.core_type<tc>, window_params = [{transform_indices = @transform_0, window_bounds = array<i64: 1, 1, 24, 128>}, {transform_indices = @transform_1, window_bounds = array<i64: 1, 16, 24, 128>}, {transform_indices = @transform_2, window_bounds = array<i64: 1, 1, 24, 128>}, {pipeline_mode = #tpu.pipeline_mode<synchronous>, transform_indices = @transform_3, window_bounds = array<i64: 3, 384, 128>}, {transform_indices = @transform_4, window_bounds = array<i64: 1, 16, 24, 128>}, {transform_indices = @transform_5, window_bounds = array<i64: 1, 1, 2, 128>}]} {
    %0 = tpu.iota {dimensions = array<i32: 1>} : vector<1x24x1xi32>
    %c16_i32 = arith.constant 16 : i32
    %1 = vector.broadcast %c16_i32 : i32 to vector<1x24x1xi32>
    %2 = arith.cmpi slt, %0, %1 : vector<1x24x1xi32>
    %c0 = arith.constant 0 : index
    %c0_0 = arith.constant 0 : index
    %c0_1 = arith.constant 0 : index
    %c0_2 = arith.constant 0 : index
    %3 = vector.load %arg2[%c0, %c0_0, %c0_1, %c0_2] : memref<1x1x24x128xbf16, #tpu.memory_space<vmem>>, vector<1x1x24x128xbf16>
    %4 = vector.shape_cast %3 : vector<1x1x24x128xbf16> to vector<1x24x128xbf16>
    %c0_3 = arith.constant 0 : index
    %c0_4 = arith.constant 0 : index
    %c0_5 = arith.constant 0 : index
    %c0_6 = arith.constant 0 : index
    %5 = vector.load %arg3[%c0_3, %c0_4, %c0_5, %c0_6] : memref<1x16x24x128xbf16, #tpu.memory_space<vmem>>, vector<1x16x24x128xbf16>
    %6 = vector.shape_cast %5 : vector<1x16x24x128xbf16> to vector<16x24x128xbf16>
    %c0_7 = arith.constant 0 : index
    %c0_8 = arith.constant 0 : index
    %c0_9 = arith.constant 0 : index
    %c0_10 = arith.constant 0 : index
    %7 = vector.load %arg4[%c0_7, %c0_8, %c0_9, %c0_10] : memref<1x1x24x128xbf16, #tpu.memory_space<vmem>>, vector<1x1x24x128xbf16>
    %8 = vector.shape_cast %7 : vector<1x1x24x128xbf16> to vector<1x24x128xbf16>
    %c0_i32 = arith.constant 0 : i32
    %9 = arith.cmpi sgt, %arg1, %c0_i32 : i32
    %cst = arith.constant 0.000000e+00 : bf16
    %10 = vector.broadcast %cst : bf16 to vector<1x24x128xbf16>
    %11 = arith.select %9, %4, %10 : vector<1x24x128xbf16>
    %c1_i32 = arith.constant 1 : i32
    %12 = arith.addi %arg1, %c1_i32 : i32
    %c1_i32_11 = arith.constant 1 : i32
    %13 = arith.cmpi slt, %12, %c1_i32_11 : i32
    %cst_12 = arith.constant 0.000000e+00 : bf16
    %14 = vector.broadcast %cst_12 : bf16 to vector<1x24x128xbf16>
    %15 = arith.select %13, %8, %14 : vector<1x24x128xbf16>
    %16 = tpu.concatenate %11, %6, %15 in 0 : vector<1x24x128xbf16>, vector<16x24x128xbf16>, vector<1x24x128xbf16> -> vector<18x24x128xbf16>
    %cst_13 = arith.constant 0.000000e+00 : bf16
    %17 = vector.broadcast %cst_13 : bf16 to vector<18x1x128xbf16>
    %18 = vector.extract_strided_slice %16 {offsets = [0, 0, 0], sizes = [18, 23, 128], strides = [1, 1, 1]} : vector<18x24x128xbf16> to vector<18x23x128xbf16>
    %19 = tpu.concatenate %17, %18 in 1 : vector<18x1x128xbf16>, vector<18x23x128xbf16> -> vector<18x24x128xbf16>
    %20 = vector.extract_strided_slice %16 {offsets = [0, 1, 0], sizes = [18, 23, 128], strides = [1, 1, 1]} : vector<18x24x128xbf16> to vector<18x23x128xbf16>
    %21 = tpu.concatenate %20, %17 in 1 : vector<18x23x128xbf16>, vector<18x1x128xbf16> -> vector<18x24x128xbf16>
    %22 = tpu.concatenate %19, %16, %21 in 2 : vector<18x24x128xbf16>, vector<18x24x128xbf16>, vector<18x24x128xbf16> -> vector<18x24x384xbf16>
    %23 = vector.extract_strided_slice %22 {offsets = [0, 0, 0], sizes = [16, 24, 384], strides = [1, 1, 1]} : vector<18x24x384xbf16> to vector<16x24x384xbf16>
    %24 = vector.shape_cast %23 : vector<16x24x384xbf16> to vector<384x384xbf16>
    %c0_14 = arith.constant 0 : index
    %c0_15 = arith.constant 0 : index
    %c0_16 = arith.constant 0 : index
    %25 = vector.load %arg5[%c0_14, %c0_15, %c0_16] : memref<3x384x128xbf16, #tpu.memory_space<vmem>>, vector<1x384x128xbf16>
    %26 = vector.shape_cast %25 : vector<1x384x128xbf16> to vector<384x128xbf16>
    %cst_17 = arith.constant dense<0.000000e+00> : vector<384x128xf32>
    %27 = tpu.matmul %24, %26, %cst_17 {dimension_numbers = #tpu.dot_dimension_numbers<[1], [0], [0], [1], [0, 0, 1, 1], [], []>} : vector<384x384xbf16>, vector<384x128xbf16>, vector<384x128xf32> -> vector<384x128xf32>
    %28 = vector.extract_strided_slice %22 {offsets = [1, 0, 0], sizes = [16, 24, 384], strides = [1, 1, 1]} : vector<18x24x384xbf16> to vector<16x24x384xbf16>
    %29 = vector.shape_cast %28 : vector<16x24x384xbf16> to vector<384x384xbf16>
    %c1 = arith.constant 1 : index
    %c0_18 = arith.constant 0 : index
    %c0_19 = arith.constant 0 : index
    %30 = vector.load %arg5[%c1, %c0_18, %c0_19] : memref<3x384x128xbf16, #tpu.memory_space<vmem>>, vector<1x384x128xbf16>
    %31 = vector.shape_cast %30 : vector<1x384x128xbf16> to vector<384x128xbf16>
    %cst_20 = arith.constant dense<0.000000e+00> : vector<384x128xf32>
    %32 = tpu.matmul %29, %31, %cst_20 {dimension_numbers = #tpu.dot_dimension_numbers<[1], [0], [0], [1], [0, 0, 1, 1], [], []>} : vector<384x384xbf16>, vector<384x128xbf16>, vector<384x128xf32> -> vector<384x128xf32>
    %33 = arith.addf %27, %32 : vector<384x128xf32>
    %34 = vector.extract_strided_slice %22 {offsets = [2, 0, 0], sizes = [16, 24, 384], strides = [1, 1, 1]} : vector<18x24x384xbf16> to vector<16x24x384xbf16>
    %35 = vector.shape_cast %34 : vector<16x24x384xbf16> to vector<384x384xbf16>
    %c2 = arith.constant 2 : index
    %c0_21 = arith.constant 0 : index
    %c0_22 = arith.constant 0 : index
    %36 = vector.load %arg5[%c2, %c0_21, %c0_22] : memref<3x384x128xbf16, #tpu.memory_space<vmem>>, vector<1x384x128xbf16>
    %37 = vector.shape_cast %36 : vector<1x384x128xbf16> to vector<384x128xbf16>
    %cst_23 = arith.constant dense<0.000000e+00> : vector<384x128xf32>
    %38 = tpu.matmul %35, %37, %cst_23 {dimension_numbers = #tpu.dot_dimension_numbers<[1], [0], [0], [1], [0, 0, 1, 1], [], []>} : vector<384x384xbf16>, vector<384x128xbf16>, vector<384x128xf32> -> vector<384x128xf32>
    %39 = arith.addf %33, %38 : vector<384x128xf32>
    %40 = vector.shape_cast %39 : vector<384x128xf32> to vector<16x24x128xf32>
    %cst_24 = arith.constant 0.000000e+00 : f32
    %41 = vector.shape_cast %2 : vector<1x24x1xi1> to vector<1x24x1xi1>
    %42 = vector.broadcast %41 : vector<1x24x1xi1> to vector<16x24x128xi1>
    %43 = vector.broadcast %cst_24 : f32 to vector<16x24x128xf32>
    %44 = arith.select %42, %40, %43 : vector<16x24x128xi1>, vector<16x24x128xf32>
    %cst_25 = arith.constant dense<0.000000e+00> : vector<128xf32>
    %45 = vector.multi_reduction <add>, %44, %cst_25 [0, 1] : vector<16x24x128xf32> to vector<128xf32>
    %46 = vector.shape_cast %45 : vector<128xf32> to vector<1x128xf32>
    %47 = arith.mulf %44, %44 : vector<16x24x128xf32>
    %cst_26 = arith.constant dense<0.000000e+00> : vector<128xf32>
    %48 = vector.multi_reduction <add>, %47, %cst_26 [0, 1] : vector<16x24x128xf32> to vector<128xf32>
    %49 = vector.shape_cast %48 : vector<128xf32> to vector<1x128xf32>
    %50 = tpu.concatenate %46, %49 in 0 : vector<1x128xf32>, vector<1x128xf32> -> vector<2x128xf32>
    %c0_27 = arith.constant 0 : index
    %c0_28 = arith.constant 0 : index
    %c0_29 = arith.constant 0 : index
    %c0_30 = arith.constant 0 : index
    %51 = vector.load %arg7[%c0_27, %c0_28, %c0_29, %c0_30] : memref<1x1x2x128xf32, #tpu.memory_space<vmem>>, vector<1x1x2x128xf32>
    %52 = vector.shape_cast %51 : vector<1x1x2x128xf32> to vector<2x128xf32>
    %53 = vector.shape_cast %50 : vector<2x128xf32> to vector<1x1x2x128xf32>
    tpu.vector_store %arg7[%c0_27, %c0_28, %c0_29, %c0_30], %53 {strides = array<i32>} : memref<1x1x2x128xf32, #tpu.memory_space<vmem>>, vector<1x1x2x128xf32>,
    %54 = arith.truncf %44 : vector<16x24x128xf32> to vector<16x24x128xbf16>
    %c0_31 = arith.constant 0 : index
    %c0_32 = arith.constant 0 : index
    %c0_33 = arith.constant 0 : index
    %c0_34 = arith.constant 0 : index
    %55 = vector.load %arg6[%c0_31, %c0_32, %c0_33, %c0_34] : memref<1x16x24x128xbf16, #tpu.memory_space<vmem>>, vector<1x16x24x128xbf16>
    %56 = vector.shape_cast %55 : vector<1x16x24x128xbf16> to vector<16x24x128xbf16>
    %57 = vector.shape_cast %54 : vector<16x24x128xbf16> to vector<1x16x24x128xbf16>
    tpu.vector_store %arg6[%c0_31, %c0_32, %c0_33, %c0_34], %57 {strides = array<i32>} : memref<1x16x24x128xbf16, #tpu.memory_space<vmem>>, vector<1x16x24x128xbf16>,
    return
  }
  func.func @transform_0(%arg0: i32, %arg1: i32) -> (i32, i32, i32, i32) {
    %c16_i32 = arith.constant 16 : i32
    %0 = arith.muli %arg1, %c16_i32 : i32
    %c1_i32 = arith.constant 1 : i32
    %1 = arith.subi %0, %c1_i32 : i32
    %c0_i32 = arith.constant 0 : i32
    %2 = arith.maxsi %1, %c0_i32 : i32
    %c0_i32_0 = arith.constant 0 : i32
    %c0_i32_1 = arith.constant 0 : i32
    %c0_i32_2 = arith.constant 0 : i32
    return %arg0, %2, %c0_i32_0, %c0_i32_1 : i32, i32, i32, i32
  }
  func.func @transform_1(%arg0: i32, %arg1: i32) -> (i32, i32, i32, i32) {
    %c0_i32 = arith.constant 0 : i32
    %c0_i32_0 = arith.constant 0 : i32
    %c0_i32_1 = arith.constant 0 : i32
    return %arg0, %arg1, %c0_i32, %c0_i32_0 : i32, i32, i32, i32
  }
  func.func @transform_2(%arg0: i32, %arg1: i32) -> (i32, i32, i32, i32) {
    %c16_i32 = arith.constant 16 : i32
    %0 = arith.muli %arg1, %c16_i32 : i32
    %c16_i32_0 = arith.constant 16 : i32
    %1 = arith.addi %0, %c16_i32_0 : i32
    %c15_i32 = arith.constant 15 : i32
    %2 = arith.minsi %1, %c15_i32 : i32
    %c0_i32 = arith.constant 0 : i32
    %c0_i32_1 = arith.constant 0 : i32
    %c0_i32_2 = arith.constant 0 : i32
    return %arg0, %2, %c0_i32, %c0_i32_1 : i32, i32, i32, i32
  }
  func.func @transform_3(%arg0: i32, %arg1: i32) -> (i32, i32, i32) {
    %c0_i32 = arith.constant 0 : i32
    %c0_i32_0 = arith.constant 0 : i32
    %c0_i32_1 = arith.constant 0 : i32
    %c0_i32_2 = arith.constant 0 : i32
    return %c0_i32, %c0_i32_0, %c0_i32_1 : i32, i32, i32
  }
  func.func @transform_4(%arg0: i32, %arg1: i32) -> (i32, i32, i32, i32) {
    %c0_i32 = arith.constant 0 : i32
    %c0_i32_0 = arith.constant 0 : i32
    %c0_i32_1 = arith.constant 0 : i32
    return %arg0, %arg1, %c0_i32, %c0_i32_0 : i32, i32, i32, i32
  }
  func.func @transform_5(%arg0: i32, %arg1: i32) -> (i32, i32, i32, i32) {
    %c0_i32 = arith.constant 0 : i32
    %c0_i32_0 = arith.constant 0 : i32
    %c0_i32_1 = arith.constant 0 : i32
    return %arg0, %arg1, %c0_i32, %c0_i32_0 : i32, i32, i32, i32
  }
}

module attributes {stable_mosaic.version = 11 : i64} {
  func.func @_bn_relu_kernel(%arg0: i32, %arg1: i32, %arg2: memref<1x16x24x128xbf16, #tpu.memory_space<vmem>>, %arg3: memref<1x128xf32, #tpu.memory_space<vmem>>, %arg4: memref<1x128xf32, #tpu.memory_space<vmem>>, %arg5: memref<1x16x24x128xf32, #tpu.memory_space<vmem>>) attributes {dimension_semantics = [#tpu.dimension_semantics<parallel>, #tpu.dimension_semantics<parallel>], iteration_bounds = array<i64: 2, 1>, scalar_prefetch = 0 : i64, scratch_operands = 0 : i64, tpu.core_type = #tpu.core_type<tc>, window_params = [{transform_indices = @transform_0, window_bounds = array<i64: 1, 16, 24, 128>}, {pipeline_mode = #tpu.pipeline_mode<synchronous>, transform_indices = @transform_1, window_bounds = array<i64: 1, 128>}, {pipeline_mode = #tpu.pipeline_mode<synchronous>, transform_indices = @transform_2, window_bounds = array<i64: 1, 128>}, {transform_indices = @transform_3, window_bounds = array<i64: 1, 16, 24, 128>}]} {
    %c0 = arith.constant 0 : index
    %c0_0 = arith.constant 0 : index
    %c0_1 = arith.constant 0 : index
    %c0_2 = arith.constant 0 : index
    %0 = vector.load %arg2[%c0, %c0_0, %c0_1, %c0_2] : memref<1x16x24x128xbf16, #tpu.memory_space<vmem>>, vector<1x16x24x128xbf16>
    %1 = arith.extf %0 : vector<1x16x24x128xbf16> to vector<1x16x24x128xf32>
    %c0_3 = arith.constant 0 : index
    %c0_4 = arith.constant 0 : index
    %2 = vector.load %arg3[%c0_3, %c0_4] : memref<1x128xf32, #tpu.memory_space<vmem>>, vector<1x128xf32>
    %3 = vector.shape_cast %2 : vector<1x128xf32> to vector<128xf32>
    %4 = vector.shape_cast %3 : vector<128xf32> to vector<1x1x1x128xf32>
    %5 = vector.broadcast %4 : vector<1x1x1x128xf32> to vector<1x16x24x128xf32>
    %6 = arith.mulf %1, %5 : vector<1x16x24x128xf32>
    %c0_5 = arith.constant 0 : index
    %c0_6 = arith.constant 0 : index
    %7 = vector.load %arg4[%c0_5, %c0_6] : memref<1x128xf32, #tpu.memory_space<vmem>>, vector<1x128xf32>
    %8 = vector.shape_cast %7 : vector<1x128xf32> to vector<128xf32>
    %9 = vector.shape_cast %8 : vector<128xf32> to vector<1x1x1x128xf32>
    %10 = vector.broadcast %9 : vector<1x1x1x128xf32> to vector<1x16x24x128xf32>
    %11 = arith.addf %6, %10 : vector<1x16x24x128xf32>
    %cst = arith.constant 0.000000e+00 : f32
    %12 = vector.broadcast %cst : f32 to vector<1x16x24x128xf32>
    %13 = arith.maximumf %11, %12 : vector<1x16x24x128xf32>
    %c0_7 = arith.constant 0 : index
    %c0_8 = arith.constant 0 : index
    %c0_9 = arith.constant 0 : index
    %c0_10 = arith.constant 0 : index
    %14 = vector.load %arg5[%c0_7, %c0_8, %c0_9, %c0_10] : memref<1x16x24x128xf32, #tpu.memory_space<vmem>>, vector<1x16x24x128xf32>
    tpu.vector_store %arg5[%c0_7, %c0_8, %c0_9, %c0_10], %13 {strides = array<i32>} : memref<1x16x24x128xf32, #tpu.memory_space<vmem>>, vector<1x16x24x128xf32>,
    return
  }
  func.func @transform_0(%arg0: i32, %arg1: i32) -> (i32, i32, i32, i32) {
    %c0_i32 = arith.constant 0 : i32
    %c0_i32_0 = arith.constant 0 : i32
    %c0_i32_1 = arith.constant 0 : i32
    return %arg0, %arg1, %c0_i32, %c0_i32_0 : i32, i32, i32, i32
  }
  func.func @transform_1(%arg0: i32, %arg1: i32) -> (i32, i32) {
    %c0_i32 = arith.constant 0 : i32
    %c0_i32_0 = arith.constant 0 : i32
    %c0_i32_1 = arith.constant 0 : i32
    return %c0_i32, %c0_i32_0 : i32, i32
  }
  func.func @transform_2(%arg0: i32, %arg1: i32) -> (i32, i32) {
    %c0_i32 = arith.constant 0 : i32
    %c0_i32_0 = arith.constant 0 : i32
    %c0_i32_1 = arith.constant 0 : i32
    return %c0_i32, %c0_i32_0 : i32, i32
  }
  func.func @transform_3(%arg0: i32, %arg1: i32) -> (i32, i32, i32, i32) {
    %c0_i32 = arith.constant 0 : i32
    %c0_i32_0 = arith.constant 0 : i32
    %c0_i32_1 = arith.constant 0 : i32
    return %arg0, %arg1, %c0_i32, %c0_i32_0 : i32, i32, i32, i32
  }
}

module attributes {stable_mosaic.version = 11 : i64} {
  func.func @_conv_bn_kernel(%arg0: i32, %arg1: i32, %arg2: memref<1x1x24x128xbf16, #tpu.memory_space<vmem>>, %arg3: memref<1x16x24x128xbf16, #tpu.memory_space<vmem>>, %arg4: memref<1x1x24x128xbf16, #tpu.memory_space<vmem>>, %arg5: memref<3x384x128xbf16, #tpu.memory_space<vmem>>, %arg6: memref<1x128xbf16, #tpu.memory_space<vmem>>, %arg7: memref<1x128xbf16, #tpu.memory_space<vmem>>, %arg8: memref<1x16x24x128xbf16, #tpu.memory_space<vmem>>, %arg9: memref<1x1x2x128xf32, #tpu.memory_space<vmem>>) attributes {dimension_semantics = [#tpu.dimension_semantics<parallel>, #tpu.dimension_semantics<parallel>], iteration_bounds = array<i64: 2, 1>, scalar_prefetch = 0 : i64, scratch_operands = 0 : i64, tpu.core_type = #tpu.core_type<tc>, window_params = [{transform_indices = @transform_0, window_bounds = array<i64: 1, 1, 24, 128>}, {transform_indices = @transform_1, window_bounds = array<i64: 1, 16, 24, 128>}, {transform_indices = @transform_2, window_bounds = array<i64: 1, 1, 24, 128>}, {pipeline_mode = #tpu.pipeline_mode<synchronous>, transform_indices = @transform_3, window_bounds = array<i64: 3, 384, 128>}, {pipeline_mode = #tpu.pipeline_mode<synchronous>, transform_indices = @transform_4, window_bounds = array<i64: 1, 128>}, {pipeline_mode = #tpu.pipeline_mode<synchronous>, transform_indices = @transform_5, window_bounds = array<i64: 1, 128>}, {transform_indices = @transform_6, window_bounds = array<i64: 1, 16, 24, 128>}, {transform_indices = @transform_7, window_bounds = array<i64: 1, 1, 2, 128>}]} {
    %0 = tpu.iota {dimensions = array<i32: 1>} : vector<1x24x1xi32>
    %c16_i32 = arith.constant 16 : i32
    %1 = vector.broadcast %c16_i32 : i32 to vector<1x24x1xi32>
    %2 = arith.cmpi slt, %0, %1 : vector<1x24x1xi32>
    %c0 = arith.constant 0 : index
    %c0_0 = arith.constant 0 : index
    %c0_1 = arith.constant 0 : index
    %c0_2 = arith.constant 0 : index
    %3 = vector.load %arg2[%c0, %c0_0, %c0_1, %c0_2] : memref<1x1x24x128xbf16, #tpu.memory_space<vmem>>, vector<1x1x24x128xbf16>
    %4 = vector.shape_cast %3 : vector<1x1x24x128xbf16> to vector<1x24x128xbf16>
    %c0_3 = arith.constant 0 : index
    %c0_4 = arith.constant 0 : index
    %c0_5 = arith.constant 0 : index
    %c0_6 = arith.constant 0 : index
    %5 = vector.load %arg3[%c0_3, %c0_4, %c0_5, %c0_6] : memref<1x16x24x128xbf16, #tpu.memory_space<vmem>>, vector<1x16x24x128xbf16>
    %6 = vector.shape_cast %5 : vector<1x16x24x128xbf16> to vector<16x24x128xbf16>
    %c0_7 = arith.constant 0 : index
    %c0_8 = arith.constant 0 : index
    %c0_9 = arith.constant 0 : index
    %c0_10 = arith.constant 0 : index
    %7 = vector.load %arg4[%c0_7, %c0_8, %c0_9, %c0_10] : memref<1x1x24x128xbf16, #tpu.memory_space<vmem>>, vector<1x1x24x128xbf16>
    %8 = vector.shape_cast %7 : vector<1x1x24x128xbf16> to vector<1x24x128xbf16>
    %c0_11 = arith.constant 0 : index
    %c0_12 = arith.constant 0 : index
    %9 = vector.load %arg6[%c0_11, %c0_12] : memref<1x128xbf16, #tpu.memory_space<vmem>>, vector<1x128xbf16>
    %10 = vector.shape_cast %9 : vector<1x128xbf16> to vector<128xbf16>
    %c0_13 = arith.constant 0 : index
    %c0_14 = arith.constant 0 : index
    %11 = vector.load %arg7[%c0_13, %c0_14] : memref<1x128xbf16, #tpu.memory_space<vmem>>, vector<1x128xbf16>
    %12 = vector.shape_cast %11 : vector<1x128xbf16> to vector<128xbf16>
    %13 = vector.shape_cast %10 : vector<128xbf16> to vector<1x1x128xbf16>
    %14 = vector.broadcast %13 : vector<1x1x128xbf16> to vector<16x24x128xbf16>
    %15 = arith.mulf %6, %14 : vector<16x24x128xbf16>
    %16 = vector.shape_cast %12 : vector<128xbf16> to vector<1x1x128xbf16>
    %17 = vector.broadcast %16 : vector<1x1x128xbf16> to vector<16x24x128xbf16>
    %18 = arith.addf %15, %17 : vector<16x24x128xbf16>
    %cst = arith.constant 0.000000e+00 : bf16
    %19 = vector.broadcast %cst : bf16 to vector<16x24x128xbf16>
    %20 = arith.maximumf %18, %19 : vector<16x24x128xbf16>
    %c0_i32 = arith.constant 0 : i32
    %21 = arith.sitofp %c0_i32 : i32 to bf16
    %22 = vector.shape_cast %2 : vector<1x24x1xi1> to vector<1x24x1xi1>
    %23 = vector.broadcast %22 : vector<1x24x1xi1> to vector<16x24x128xi1>
    %24 = vector.broadcast %21 : bf16 to vector<16x24x128xbf16>
    %25 = arith.select %23, %20, %24 : vector<16x24x128xi1>, vector<16x24x128xbf16>
    %26 = vector.shape_cast %10 : vector<128xbf16> to vector<1x1x128xbf16>
    %27 = vector.broadcast %26 : vector<1x1x128xbf16> to vector<1x24x128xbf16>
    %28 = arith.mulf %4, %27 : vector<1x24x128xbf16>
    %29 = vector.shape_cast %12 : vector<128xbf16> to vector<1x1x128xbf16>
    %30 = vector.broadcast %29 : vector<1x1x128xbf16> to vector<1x24x128xbf16>
    %31 = arith.addf %28, %30 : vector<1x24x128xbf16>
    %cst_15 = arith.constant 0.000000e+00 : bf16
    %32 = vector.broadcast %cst_15 : bf16 to vector<1x24x128xbf16>
    %33 = arith.maximumf %31, %32 : vector<1x24x128xbf16>
    %c0_i32_16 = arith.constant 0 : i32
    %34 = arith.sitofp %c0_i32_16 : i32 to bf16
    %35 = vector.shape_cast %2 : vector<1x24x1xi1> to vector<1x24x1xi1>
    %36 = vector.broadcast %35 : vector<1x24x1xi1> to vector<1x24x128xi1>
    %37 = vector.broadcast %34 : bf16 to vector<1x24x128xbf16>
    %38 = arith.select %36, %33, %37 : vector<1x24x128xi1>, vector<1x24x128xbf16>
    %39 = vector.shape_cast %10 : vector<128xbf16> to vector<1x1x128xbf16>
    %40 = vector.broadcast %39 : vector<1x1x128xbf16> to vector<1x24x128xbf16>
    %41 = arith.mulf %8, %40 : vector<1x24x128xbf16>
    %42 = vector.shape_cast %12 : vector<128xbf16> to vector<1x1x128xbf16>
    %43 = vector.broadcast %42 : vector<1x1x128xbf16> to vector<1x24x128xbf16>
    %44 = arith.addf %41, %43 : vector<1x24x128xbf16>
    %cst_17 = arith.constant 0.000000e+00 : bf16
    %45 = vector.broadcast %cst_17 : bf16 to vector<1x24x128xbf16>
    %46 = arith.maximumf %44, %45 : vector<1x24x128xbf16>
    %c0_i32_18 = arith.constant 0 : i32
    %47 = arith.sitofp %c0_i32_18 : i32 to bf16
    %48 = vector.shape_cast %2 : vector<1x24x1xi1> to vector<1x24x1xi1>
    %49 = vector.broadcast %48 : vector<1x24x1xi1> to vector<1x24x128xi1>
    %50 = vector.broadcast %47 : bf16 to vector<1x24x128xbf16>
    %51 = arith.select %49, %46, %50 : vector<1x24x128xi1>, vector<1x24x128xbf16>
    %c0_i32_19 = arith.constant 0 : i32
    %52 = arith.cmpi sgt, %arg1, %c0_i32_19 : i32
    %cst_20 = arith.constant 0.000000e+00 : bf16
    %53 = vector.broadcast %cst_20 : bf16 to vector<1x24x128xbf16>
    %54 = arith.select %52, %38, %53 : vector<1x24x128xbf16>
    %c1_i32 = arith.constant 1 : i32
    %55 = arith.addi %arg1, %c1_i32 : i32
    %c1_i32_21 = arith.constant 1 : i32
    %56 = arith.cmpi slt, %55, %c1_i32_21 : i32
    %cst_22 = arith.constant 0.000000e+00 : bf16
    %57 = vector.broadcast %cst_22 : bf16 to vector<1x24x128xbf16>
    %58 = arith.select %56, %51, %57 : vector<1x24x128xbf16>
    %59 = tpu.concatenate %54, %25, %58 in 0 : vector<1x24x128xbf16>, vector<16x24x128xbf16>, vector<1x24x128xbf16> -> vector<18x24x128xbf16>
    %cst_23 = arith.constant 0.000000e+00 : bf16
    %60 = vector.broadcast %cst_23 : bf16 to vector<18x1x128xbf16>
    %61 = vector.extract_strided_slice %59 {offsets = [0, 0, 0], sizes = [18, 23, 128], strides = [1, 1, 1]} : vector<18x24x128xbf16> to vector<18x23x128xbf16>
    %62 = tpu.concatenate %60, %61 in 1 : vector<18x1x128xbf16>, vector<18x23x128xbf16> -> vector<18x24x128xbf16>
    %63 = vector.extract_strided_slice %59 {offsets = [0, 1, 0], sizes = [18, 23, 128], strides = [1, 1, 1]} : vector<18x24x128xbf16> to vector<18x23x128xbf16>
    %64 = tpu.concatenate %63, %60 in 1 : vector<18x23x128xbf16>, vector<18x1x128xbf16> -> vector<18x24x128xbf16>
    %65 = tpu.concatenate %62, %59, %64 in 2 : vector<18x24x128xbf16>, vector<18x24x128xbf16>, vector<18x24x128xbf16> -> vector<18x24x384xbf16>
    %66 = vector.extract_strided_slice %65 {offsets = [0, 0, 0], sizes = [16, 24, 384], strides = [1, 1, 1]} : vector<18x24x384xbf16> to vector<16x24x384xbf16>
    %67 = vector.shape_cast %66 : vector<16x24x384xbf16> to vector<384x384xbf16>
    %c0_24 = arith.constant 0 : index
    %c0_25 = arith.constant 0 : index
    %c0_26 = arith.constant 0 : index
    %68 = vector.load %arg5[%c0_24, %c0_25, %c0_26] : memref<3x384x128xbf16, #tpu.memory_space<vmem>>, vector<1x384x128xbf16>
    %69 = vector.shape_cast %68 : vector<1x384x128xbf16> to vector<384x128xbf16>
    %cst_27 = arith.constant dense<0.000000e+00> : vector<384x128xf32>
    %70 = tpu.matmul %67, %69, %cst_27 {dimension_numbers = #tpu.dot_dimension_numbers<[1], [0], [0], [1], [0, 0, 1, 1], [], []>} : vector<384x384xbf16>, vector<384x128xbf16>, vector<384x128xf32> -> vector<384x128xf32>
    %71 = vector.extract_strided_slice %65 {offsets = [1, 0, 0], sizes = [16, 24, 384], strides = [1, 1, 1]} : vector<18x24x384xbf16> to vector<16x24x384xbf16>
    %72 = vector.shape_cast %71 : vector<16x24x384xbf16> to vector<384x384xbf16>
    %c1 = arith.constant 1 : index
    %c0_28 = arith.constant 0 : index
    %c0_29 = arith.constant 0 : index
    %73 = vector.load %arg5[%c1, %c0_28, %c0_29] : memref<3x384x128xbf16, #tpu.memory_space<vmem>>, vector<1x384x128xbf16>
    %74 = vector.shape_cast %73 : vector<1x384x128xbf16> to vector<384x128xbf16>
    %cst_30 = arith.constant dense<0.000000e+00> : vector<384x128xf32>
    %75 = tpu.matmul %72, %74, %cst_30 {dimension_numbers = #tpu.dot_dimension_numbers<[1], [0], [0], [1], [0, 0, 1, 1], [], []>} : vector<384x384xbf16>, vector<384x128xbf16>, vector<384x128xf32> -> vector<384x128xf32>
    %76 = arith.addf %70, %75 : vector<384x128xf32>
    %77 = vector.extract_strided_slice %65 {offsets = [2, 0, 0], sizes = [16, 24, 384], strides = [1, 1, 1]} : vector<18x24x384xbf16> to vector<16x24x384xbf16>
    %78 = vector.shape_cast %77 : vector<16x24x384xbf16> to vector<384x384xbf16>
    %c2 = arith.constant 2 : index
    %c0_31 = arith.constant 0 : index
    %c0_32 = arith.constant 0 : index
    %79 = vector.load %arg5[%c2, %c0_31, %c0_32] : memref<3x384x128xbf16, #tpu.memory_space<vmem>>, vector<1x384x128xbf16>
    %80 = vector.shape_cast %79 : vector<1x384x128xbf16> to vector<384x128xbf16>
    %cst_33 = arith.constant dense<0.000000e+00> : vector<384x128xf32>
    %81 = tpu.matmul %78, %80, %cst_33 {dimension_numbers = #tpu.dot_dimension_numbers<[1], [0], [0], [1], [0, 0, 1, 1], [], []>} : vector<384x384xbf16>, vector<384x128xbf16>, vector<384x128xf32> -> vector<384x128xf32>
    %82 = arith.addf %76, %81 : vector<384x128xf32>
    %83 = vector.shape_cast %82 : vector<384x128xf32> to vector<16x24x128xf32>
    %cst_34 = arith.constant 0.000000e+00 : f32
    %84 = vector.shape_cast %2 : vector<1x24x1xi1> to vector<1x24x1xi1>
    %85 = vector.broadcast %84 : vector<1x24x1xi1> to vector<16x24x128xi1>
    %86 = vector.broadcast %cst_34 : f32 to vector<16x24x128xf32>
    %87 = arith.select %85, %83, %86 : vector<16x24x128xi1>, vector<16x24x128xf32>
    %cst_35 = arith.constant dense<0.000000e+00> : vector<128xf32>
    %88 = vector.multi_reduction <add>, %87, %cst_35 [0, 1] : vector<16x24x128xf32> to vector<128xf32>
    %89 = vector.shape_cast %88 : vector<128xf32> to vector<1x128xf32>
    %90 = arith.mulf %87, %87 : vector<16x24x128xf32>
    %cst_36 = arith.constant dense<0.000000e+00> : vector<128xf32>
    %91 = vector.multi_reduction <add>, %90, %cst_36 [0, 1] : vector<16x24x128xf32> to vector<128xf32>
    %92 = vector.shape_cast %91 : vector<128xf32> to vector<1x128xf32>
    %93 = tpu.concatenate %89, %92 in 0 : vector<1x128xf32>, vector<1x128xf32> -> vector<2x128xf32>
    %c0_37 = arith.constant 0 : index
    %c0_38 = arith.constant 0 : index
    %c0_39 = arith.constant 0 : index
    %c0_40 = arith.constant 0 : index
    %94 = vector.load %arg9[%c0_37, %c0_38, %c0_39, %c0_40] : memref<1x1x2x128xf32, #tpu.memory_space<vmem>>, vector<1x1x2x128xf32>
    %95 = vector.shape_cast %94 : vector<1x1x2x128xf32> to vector<2x128xf32>
    %96 = vector.shape_cast %93 : vector<2x128xf32> to vector<1x1x2x128xf32>
    tpu.vector_store %arg9[%c0_37, %c0_38, %c0_39, %c0_40], %96 {strides = array<i32>} : memref<1x1x2x128xf32, #tpu.memory_space<vmem>>, vector<1x1x2x128xf32>,
    %97 = arith.truncf %87 : vector<16x24x128xf32> to vector<16x24x128xbf16>
    %c0_41 = arith.constant 0 : index
    %c0_42 = arith.constant 0 : index
    %c0_43 = arith.constant 0 : index
    %c0_44 = arith.constant 0 : index
    %98 = vector.load %arg8[%c0_41, %c0_42, %c0_43, %c0_44] : memref<1x16x24x128xbf16, #tpu.memory_space<vmem>>, vector<1x16x24x128xbf16>
    %99 = vector.shape_cast %98 : vector<1x16x24x128xbf16> to vector<16x24x128xbf16>
    %100 = vector.shape_cast %97 : vector<16x24x128xbf16> to vector<1x16x24x128xbf16>
    tpu.vector_store %arg8[%c0_41, %c0_42, %c0_43, %c0_44], %100 {strides = array<i32>} : memref<1x16x24x128xbf16, #tpu.memory_space<vmem>>, vector<1x16x24x128xbf16>,
    return
  }
  func.func @transform_0(%arg0: i32, %arg1: i32) -> (i32, i32, i32, i32) {
    %c16_i32 = arith.constant 16 : i32
    %0 = arith.muli %arg1, %c16_i32 : i32
    %c1_i32 = arith.constant 1 : i32
    %1 = arith.subi %0, %c1_i32 : i32
    %c0_i32 = arith.constant 0 : i32
    %2 = arith.maxsi %1, %c0_i32 : i32
    %c0_i32_0 = arith.constant 0 : i32
    %c0_i32_1 = arith.constant 0 : i32
    %c0_i32_2 = arith.constant 0 : i32
    return %arg0, %2, %c0_i32_0, %c0_i32_1 : i32, i32, i32, i32
  }
  func.func @transform_1(%arg0: i32, %arg1: i32) -> (i32, i32, i32, i32) {
    %c0_i32 = arith.constant 0 : i32
    %c0_i32_0 = arith.constant 0 : i32
    %c0_i32_1 = arith.constant 0 : i32
    return %arg0, %arg1, %c0_i32, %c0_i32_0 : i32, i32, i32, i32
  }
  func.func @transform_2(%arg0: i32, %arg1: i32) -> (i32, i32, i32, i32) {
    %c16_i32 = arith.constant 16 : i32
    %0 = arith.muli %arg1, %c16_i32 : i32
    %c16_i32_0 = arith.constant 16 : i32
    %1 = arith.addi %0, %c16_i32_0 : i32
    %c15_i32 = arith.constant 15 : i32
    %2 = arith.minsi %1, %c15_i32 : i32
    %c0_i32 = arith.constant 0 : i32
    %c0_i32_1 = arith.constant 0 : i32
    %c0_i32_2 = arith.constant 0 : i32
    return %arg0, %2, %c0_i32, %c0_i32_1 : i32, i32, i32, i32
  }
  func.func @transform_3(%arg0: i32, %arg1: i32) -> (i32, i32, i32) {
    %c0_i32 = arith.constant 0 : i32
    %c0_i32_0 = arith.constant 0 : i32
    %c0_i32_1 = arith.constant 0 : i32
    %c0_i32_2 = arith.constant 0 : i32
    return %c0_i32, %c0_i32_0, %c0_i32_1 : i32, i32, i32
  }
  func.func @transform_4(%arg0: i32, %arg1: i32) -> (i32, i32) {
    %c0_i32 = arith.constant 0 : i32
    %c0_i32_0 = arith.constant 0 : i32
    %c0_i32_1 = arith.constant 0 : i32
    return %c0_i32, %c0_i32_0 : i32, i32
  }
  func.func @transform_5(%arg0: i32, %arg1: i32) -> (i32, i32) {
    %c0_i32 = arith.constant 0 : i32
    %c0_i32_0 = arith.constant 0 : i32
    %c0_i32_1 = arith.constant 0 : i32
    return %c0_i32, %c0_i32_0 : i32, i32
  }
  func.func @transform_6(%arg0: i32, %arg1: i32) -> (i32, i32, i32, i32) {
    %c0_i32 = arith.constant 0 : i32
    %c0_i32_0 = arith.constant 0 : i32
    %c0_i32_1 = arith.constant 0 : i32
    return %arg0, %arg1, %c0_i32, %c0_i32_0 : i32, i32, i32, i32
  }
  func.func @transform_7(%arg0: i32, %arg1: i32) -> (i32, i32, i32, i32) {
    %c0_i32 = arith.constant 0 : i32
    %c0_i32_0 = arith.constant 0 : i32
    %c0_i32_1 = arith.constant 0 : i32
    return %arg0, %arg1, %c0_i32, %c0_i32_0 : i32, i32, i32, i32
  }
}

</mosaic_0001>

<llo_original>
// kernel: double_conv.5
$region0: #{double_conv.5}
  #allocation0 [shape = 'u32[]', space=smem, size = 0x4, offset = 0x4, fixed_abs, tag = 'smem constant byte address 0x4 - core index']
  #allocation1 [shape = 'u32[144,128]{1,0:T(1,128)}', space=vmem, size = 0x12000, scoped, tag = 'internal scratch']
  %s0 = inlined_call_operand.vmem [shape: bf16[2,16,24,128], index: 0, kind: input, shape index: {}]
  %s1 = inlined_call_operand.vmem [shape: f32[1,128], index: 1, kind: input, shape index: {}]
  %s2 = inlined_call_operand.vmem [shape: f32[1,128], index: 2, kind: input, shape index: {}]
  %s3 = inlined_call_operand.vmem [shape: f32[2,16,24,128], index: 3, kind: output, shape index: {}]
  %s4 = sld [smem:[#allocation0]]
  $region45: #{double_conv.5} parent=0
    _
  %s6 = ssub.s32 1, %s4
  %s7 = scalar_select 0, %s6, %s4
  loop: start=0, step=1, limit=4
  $region2: #{double_conv.5} parent=0 // loop_pre_header
    _
  $region3: #{double_conv.5} parent=0 // loop_header
    %s9 = sphi 0, %s13
    %p10 = scmp.ge.s32.totalorder %s9, 4
    %s16 = sphi 0, %s28
    %s17 = sphi 0, %s24
    %s18 = sphi 0, %s16
    %s19 = sphi 0, %s17
    %s20 = sphi 0, %s18
    %s21 = sphi 0, %s19
    %s33 = sphi 0, %s35
    %s36 = sphi 0, %s33
    %s37 = sphi 0, %s36
    %s53 = sphi 0, %s37
    %s57 = sphi 0, %s57
    %s59 = sphi 0, %s57
    %s60 = sphi 0, %s59
    %s74 = sphi 0, %s60
    %s78 = sphi 0, %s78
    %s80 = sphi 0, %s78
    %s81 = sphi 0, %s80
    %s95 = sphi 0, %s81
    %s103 = sphi 0, %s105
    %s106 = sphi 0, %s103
    %s107 = sphi 0, %s106
    %s123 = sphi 0, %s107
  $region4: #{double_conv.5} parent=0 // loop_header_branch
    %12 = sbr.rel (%p10) target = $region8
  $region5: #{double_conv.5} parent=0 // loop_body
    %s14 = ssub.s32 %s9, 1
    %s15 = ssub.s32 %s9, 2
    %s22 = sadd.s32 1, %s17
    %p23 = scmp.ge.s32.totalorder %s22, 1
    %s24 = scalar_select %p23, 0, %s22
    %s25 = sadd.s32 1, %s16
    %s26 = scalar_select %p23, %s25, %s16
    %p27 = scmp.ge.s32.totalorder %s26, 2
    %s28 = scalar_select %p27, 0, %s26
    %s29 = ssub.s32 %s16, %s28
    %s30 = ssub.s32 %s17, %s24
    %s31 = sor.u32 %s29, %s30
    %p32 = scmp.eq.s32.totalorder %s31, 0
    %s34 = sadd.s32 %s33, 1
    %s35 = scalar_select %p32, %s33, %s34
    %p38 = pneg %p32
    %p39 = scmp.eq.s32.totalorder %s9, 1
    %p40 = por %p38, %p39
    %p41 = scmp.ne.s32.totalorder %s33, %s36
    %p42 = scmp.eq.s32.totalorder %s9, 0
    %p43 = por %p41, %p42
    %p44 = scmp.ne.s32.totalorder %s33, %s36
    %p45 = scmp.eq.s32.totalorder %s14, 1
    %p46 = por %p44, %p45
    %p47 = scmp.ne.s32.totalorder %s36, %s37
    %p48 = scmp.eq.s32.totalorder %s14, 0
    %p49 = por %p47, %p48
    %p50 = scmp.ne.s32.totalorder %s36, %s37
    %p51 = scmp.eq.s32.totalorder %s15, 1
    %p52 = por %p50, %p51
    %p54 = scmp.ne.s32.totalorder %s37, %s53
    %p55 = scmp.eq.s32.totalorder %s15, 0
    %p56 = por %p54, %p55
    %s58 = sadd.s32 %s57, 1
    %p61 = scmp.eq.s32.totalorder %s9, 1
    %p62 = scmp.ne.s32.totalorder %s57, %s59
    %p63 = scmp.eq.s32.totalorder %s9, 0
    %p64 = por %p62, %p63
    %p65 = scmp.ne.s32.totalorder %s57, %s59
    %p66 = scmp.eq.s32.totalorder %s14, 1
    %p67 = por %p65, %p66
    %p68 = scmp.ne.s32.totalorder %s59, %s60
    %p69 = scmp.eq.s32.totalorder %s14, 0
    %p70 = por %p68, %p69
    %p71 = scmp.ne.s32.totalorder %s59, %s60
    %p72 = scmp.eq.s32.totalorder %s15, 1
    %p73 = por %p71, %p72
    %p75 = scmp.ne.s32.totalorder %s60, %s74
    %p76 = scmp.eq.s32.totalorder %s15, 0
    %p77 = por %p75, %p76
    %s79 = sadd.s32 %s78, 1
    %p82 = scmp.eq.s32.totalorder %s9, 1
    %p83 = scmp.ne.s32.totalorder %s78, %s80
    %p84 = scmp.eq.s32.totalorder %s9, 0
    %p85 = por %p83, %p84
    %p86 = scmp.ne.s32.totalorder %s78, %s80
    %p87 = scmp.eq.s32.totalorder %s14, 1
    %p88 = por %p86, %p87
    %p89 = scmp.ne.s32.totalorder %s80, %s81
    %p90 = scmp.eq.s32.totalorder %s14, 0
    %p91 = por %p89, %p90
    %p92 = scmp.ne.s32.totalorder %s80, %s81
    %p93 = scmp.eq.s32.totalorder %s15, 1
    %p94 = por %p92, %p93
    %p96 = scmp.ne.s32.totalorder %s81, %s95
    %p97 = scmp.eq.s32.totalorder %s15, 0
    %p98 = por %p96, %p97
    %s99 = ssub.s32 %s16, %s28
    %s100 = ssub.s32 %s17, %s24
    %s101 = sor.u32 %s99, %s100
    %p102 = scmp.eq.s32.totalorder %s101, 0
    %s104 = sadd.s32 %s103, 1
    %s105 = scalar_select %p102, %s103, %s104
    %p108 = pneg %p102
    %p109 = scmp.eq.s32.totalorder %s9, 1
    %p110 = por %p108, %p109
    %p111 = scmp.ne.s32.totalorder %s103, %s106
    %p112 = scmp.eq.s32.totalorder %s9, 0
    %p113 = por %p111, %p112
    %p114 = scmp.ne.s32.totalorder %s103, %s106
    %p115 = scmp.eq.s32.totalorder %s14, 1
    %p116 = por %p114, %p115
    %p117 = scmp.ne.s32.totalorder %s106, %s107
    %p118 = scmp.eq.s32.totalorder %s14, 0
    %p119 = por %p117, %p118
    %p120 = scmp.ne.s32.totalorder %s106, %s107
    %p121 = scmp.eq.s32.totalorder %s15, 1
    %p122 = por %p120, %p121
    %p124 = scmp.ne.s32.totalorder %s107, %s123
    %p125 = scmp.eq.s32.totalorder %s15, 0
    %p126 = por %p124, %p125
    %p127 = scmp.le.s32.totalorder 1, %s9
    %p128 = scmp.lt.s32.totalorder %s9, 3
    %p129 = pnand %p127, %p128
    %p130 = pneg %p129
    // Predicated region
    $region9: #{double_conv.5} parent=5 // pred_check
      _
    $region10: #{double_conv.5} parent=5 // pred_check_branch
      %132 = sbr.rel (%p129) target = $region12
    $region11: #{double_conv.5} parent=5 // pred_region
      %s133 = ssub.s32 %s9, 1
      // Predicated region
      $region13: #{double_conv.5} parent=11 // pred_check
        %p134 = pneg %p70
      $region14: #{double_conv.5} parent=11 // pred_check_branch
        %136 = sbr.rel (%p134) target = $region16
      $region15: #{double_conv.5} parent=11 // pred_region
        _
      $region16: #{double_conv.5} parent=11 // pred_fallthru
        _
      // Predicated region
      $region17: #{double_conv.5} parent=11 // pred_check
        %p137 = pneg %p91
      $region18: #{double_conv.5} parent=11 // pred_check_branch
        %139 = sbr.rel (%p137) target = $region20
      $region19: #{double_conv.5} parent=11 // pred_region
        _
      $region20: #{double_conv.5} parent=11 // pred_fallthru
        _
    $region12: #{double_conv.5} parent=5 // pred_fallthru
      _
    %p140 = scmp.lt.s32.totalorder %s9, 2
    // Predicated region
    $region21: #{double_conv.5} parent=5 // pred_check
      %p141 = pneg %p140
    $region22: #{double_conv.5} parent=5 // pred_check_branch
      %143 = sbr.rel (%p141) target = $region24
    $region23: #{double_conv.5} parent=5 // pred_region
      // Predicated region
      $region25: #{double_conv.5} parent=23 // pred_check
        %p144 = pneg %p43
      $region26: #{double_conv.5} parent=23 // pred_check_branch
        %146 = sbr.rel (%p144) target = $region28
      $region27: #{double_conv.5} parent=23 // pred_region
        %s147 = smul.u32 16, %s17
        %p148 = scmp.lt.s32.totalorder %s16, 1
        %s149 = scalar_select %p148, %s16, 1
        %p150 = scmp.lt.s32.totalorder %s147, 15
        %s151 = scalar_select %p150, %s147, 15
        %s152 = smul.addr %s151, 3
        %s153 = smul.addr %s149, 48
        %s154 = sadd.s32 %s152, %s153
        %s155 = smul.addr %s154, 4
        %s156 = scalar_lea.vmem %s0, %s155
        %s157 = smul.u32 16, %s17
      $region28: #{double_conv.5} parent=23 // pred_fallthru
        _
    $region24: #{double_conv.5} parent=5 // pred_fallthru
      _
    %p158 = scmp.le.s32.totalorder 1, %s9
    %p159 = scmp.lt.s32.totalorder %s9, 3
    %p160 = pnand %p158, %p159
    %p161 = pneg %p160
    // Predicated region
    $region29: #{double_conv.5} parent=5 // pred_check
      _
    $region30: #{double_conv.5} parent=5 // pred_check_branch
      %163 = sbr.rel (%p160) target = $region32
    $region31: #{double_conv.5} parent=5 // pred_region
      %s164 = ssub.s32 %s9, 1
      %s165 = smul.u32 16, %s19
      %p166 = scmp.lt.s32.totalorder %s18, 1
      %s167 = scalar_select %p166, %s18, 1
      %p168 = scmp.lt.s32.totalorder %s165, 15
      %s169 = scalar_select %p168, %s165, 15
      %s170 = smul.addr %s169, 3
      %s171 = smul.addr %s167, 48
      %s172 = sadd.s32 %s170, %s171
      %s173 = smul.addr %s172, 4
      %s174 = scalar_lea.vmem %s0, %s173
      %p175 = pneg %p49
      %p176 = pneg %p46
      %p177 = pneg %p70
      %p178 = pneg %p67
      %p179 = pneg %p91
      %p180 = pneg %p88
      %p181 = pneg %p119
      %p182 = pneg %p116
      %s183 = smul.u32 16, %s19
      %p184 = scmp.lt.s32.totalorder %s18, 1
      %s185 = scalar_select %p184, %s18, 1
      %p186 = scmp.lt.s32.totalorder %s183, 15
      %s187 = scalar_select %p186, %s183, 15
      %s188 = smul.addr %s187, 3
      %s189 = smul.addr %s185, 48
      %s190 = sadd.s32 %s188, %s189
      %s191 = smul.addr %s190, 8
      %s192 = scalar_lea.vmem %s3, %s191
      %s193 = smul.u32 16, %s19
      %p194 = scmp.lt.s32.totalorder %s18, 1
      %s195 = scalar_select %p194, %s18, 1
      %p196 = scmp.lt.s32.totalorder %s193, 15
      %s197 = scalar_select %p196, %s193, 15
      %s198 = smul.addr %s197, 3
      %s199 = smul.addr %s195, 48
      %s200 = sadd.s32 %s198, %s199
      %s201 = smul.addr %s200, 4
      %s202 = scalar_lea.vmem %s0, %s201
      %s203 = smul.u32 16, %s19
      %s204 = smul.u32 16, %s19
      %p205 = scmp.lt.s32.totalorder %s18, 1
      %s206 = scalar_select %p205, %s18, 1
      %p207 = scmp.lt.s32.totalorder %s204, 15
      %s208 = scalar_select %p207, %s204, 15
      %s209 = smul.addr %s208, 3
      %s210 = smul.addr %s206, 48
      %s211 = sadd.s32 %s209, %s210
      %s212 = smul.addr %s211, 8
      %s213 = scalar_lea.vmem %s3, %s212
      %s214 = smul.u32 16, %s19
      %v215 = vld [vmem:[%s202] sm:$0xf]
      %v216 = vld [vmem:[%s202 + $0x4] sm:$0xf]
      %v217 = vld [vmem:[%s202 + $0x8] sm:$0xf]
      %v218 = vld [vmem:[%s202 + $0xc] sm:$0xf]
      %v219 = vld [vmem:[%s202 + $0x10] sm:$0xf]
      %v220 = vld [vmem:[%s202 + $0x14] sm:$0xf]
      %v221 = vld [vmem:[%s202 + $0x18] sm:$0xf]
      %v222 = vld [vmem:[%s202 + $0x1c] sm:$0xf]
      %v223 = vld [vmem:[%s202 + $0x20] sm:$0xf]
      %v224 = vld [vmem:[%s202 + $0x24] sm:$0xf]
      %v225 = vld [vmem:[%s202 + $0x28] sm:$0xf]
      %v226 = vld [vmem:[%s202 + $0x2c] sm:$0xf]
      %v227 = vld [vmem:[%s202 + $0x30] sm:$0xf]
      %v228 = vld [vmem:[%s202 + $0x34] sm:$0xf]
      %v229 = vld [vmem:[%s202 + $0x38] sm:$0xf]
      %v230 = vld [vmem:[%s202 + $0x3c] sm:$0xf]
      %v231 = vld [vmem:[%s202 + $0x40] sm:$0xf]
      %v232 = vld [vmem:[%s202 + $0x44] sm:$0xf]
      %v233 = vld [vmem:[%s202 + $0x48] sm:$0xf]
      %v234 = vld [vmem:[%s202 + $0x4c] sm:$0xf]
      %v235 = vld [vmem:[%s202 + $0x50] sm:$0xf]
      %v236 = vld [vmem:[%s202 + $0x54] sm:$0xf]
      %v237 = vld [vmem:[%s202 + $0x58] sm:$0xf]
      %v238 = vld [vmem:[%s202 + $0x5c] sm:$0xf]
      %v239 = vld [vmem:[%s202 + $0x60] sm:$0xf]
      %v240 = vld [vmem:[%s202 + $0x64] sm:$0xf]
      %v241 = vld [vmem:[%s202 + $0x68] sm:$0xf]
      %v242 = vld [vmem:[%s202 + $0x6c] sm:$0xf]
      %v243 = vld [vmem:[%s202 + $0x70] sm:$0xf]
      %v244 = vld [vmem:[%s202 + $0x74] sm:$0xf]
      %v245 = vld [vmem:[%s202 + $0x78] sm:$0xf]
      %v246 = vld [vmem:[%s202 + $0x7c] sm:$0xf]
      %v247 = vld [vmem:[%s202 + $0x80] sm:$0xf]
      %v248 = vld [vmem:[%s202 + $0x84] sm:$0xf]
      %v249 = vld [vmem:[%s202 + $0x88] sm:$0xf]
      %v250 = vld [vmem:[%s202 + $0x8c] sm:$0xf]
      %v251 = vld [vmem:[%s202 + $0x90] sm:$0xf]
      %v252 = vld [vmem:[%s202 + $0x94] sm:$0xf]
      %v253 = vld [vmem:[%s202 + $0x98] sm:$0xf]
      %v254 = vld [vmem:[%s202 + $0x9c] sm:$0xf]
      %v255 = vld [vmem:[%s202 + $0xa0] sm:$0xf]
      %v256 = vld [vmem:[%s202 + $0xa4] sm:$0xf]
      %v257 = vld [vmem:[%s202 + $0xa8] sm:$0xf]
      %v258 = vld [vmem:[%s202 + $0xac] sm:$0xf]
      %v259 = vld [vmem:[%s202 + $0xb0] sm:$0xf]
      %v260 = vld [vmem:[%s202 + $0xb4] sm:$0xf]
      %v261 = vld [vmem:[%s202 + $0xb8] sm:$0xf]
      %v262 = vld [vmem:[%s202 + $0xbc] sm:$0xf]
      %v263 = vunpack.c.l.bf16 %v215
      %v264 = vunpack.c.l.bf16 %v216
      %v265 = vunpack.c.l.bf16 %v217
      %v266 = vunpack.c.l.bf16 %v218
      %v267 = vunpack.c.l.bf16 %v219
      %v268 = vunpack.c.l.bf16 %v220
      %v269 = vunpack.c.l.bf16 %v221
      %v270 = vunpack.c.l.bf16 %v222
      %v271 = vunpack.c.l.bf16 %v223
      %v272 = vunpack.c.l.bf16 %v224
      %v273 = vunpack.c.l.bf16 %v225
      %v274 = vunpack.c.l.bf16 %v226
      %v275 = vunpack.c.l.bf16 %v227
      %v276 = vunpack.c.l.bf16 %v228
      %v277 = vunpack.c.l.bf16 %v229
      %v278 = vunpack.c.l.bf16 %v230
      %v279 = vunpack.c.l.bf16 %v231
      %v280 = vunpack.c.l.bf16 %v232
      %v281 = vunpack.c.l.bf16 %v233
      %v282 = vunpack.c.l.bf16 %v234
      %v283 = vunpack.c.l.bf16 %v235
      %v284 = vunpack.c.l.bf16 %v236
      %v285 = vunpack.c.l.bf16 %v237
      %v286 = vunpack.c.l.bf16 %v238
      %v287 = vunpack.c.l.bf16 %v239
      %v288 = vunpack.c.l.bf16 %v240
      %v289 = vunpack.c.l.bf16 %v241
      %v290 = vunpack.c.l.bf16 %v242
      %v291 = vunpack.c.l.bf16 %v243
      %v292 = vunpack.c.l.bf16 %v244
      %v293 = vunpack.c.l.bf16 %v245
      %v294 = vunpack.c.l.bf16 %v246
      %v295 = vunpack.c.l.bf16 %v247
      %v296 = vunpack.c.l.bf16 %v248
      %v297 = vunpack.c.l.bf16 %v249
      %v298 = vunpack.c.l.bf16 %v250
      %v299 = vunpack.c.l.bf16 %v251
      %v300 = vunpack.c.l.bf16 %v252
      %v301 = vunpack.c.l.bf16 %v253
      %v302 = vunpack.c.l.bf16 %v254
      %v303 = vunpack.c.l.bf16 %v255
      %v304 = vunpack.c.l.bf16 %v256
      %v305 = vunpack.c.l.bf16 %v257
      %v306 = vunpack.c.l.bf16 %v258
      %v307 = vunpack.c.l.bf16 %v259
      %v308 = vunpack.c.l.bf16 %v260
      %v309 = vunpack.c.l.bf16 %v261
      %v310 = vunpack.c.l.bf16 %v262
      %v311 = vld [vmem:[%s1] sm:$0x1]
      %v313 = vlaneseq
      %v314 = vshrl.u32 %v313, 7
      %v315 = vsub.s32 0, %v314
      %v316 = vrot.slane %v311, %v315
      %v318 = vmul.f32 %v263, %v316
      %v319 = vmul.f32 %v264, %v316
      %v320 = vmul.f32 %v265, %v316
      %v321 = vmul.f32 %v266, %v316
      %v322 = vmul.f32 %v267, %v316
      %v323 = vmul.f32 %v268, %v316
      %v324 = vmul.f32 %v269, %v316
      %v325 = vmul.f32 %v270, %v316
      %v326 = vmul.f32 %v271, %v316
      %v327 = vmul.f32 %v272, %v316
      %v328 = vmul.f32 %v273, %v316
      %v329 = vmul.f32 %v274, %v316
      %v330 = vmul.f32 %v275, %v316
      %v331 = vmul.f32 %v276, %v316
      %v332 = vmul.f32 %v277, %v316
      %v333 = vmul.f32 %v278, %v316
      %v334 = vmul.f32 %v279, %v316
      %v335 = vmul.f32 %v280, %v316
      %v336 = vmul.f32 %v281, %v316
      %v337 = vmul.f32 %v282, %v316
      %v338 = vmul.f32 %v283, %v316
      %v339 = vmul.f32 %v284, %v316
      %v340 = vmul.f32 %v285, %v316
      %v341 = vmul.f32 %v286, %v316
      %v342 = vmul.f32 %v287, %v316
      %v343 = vmul.f32 %v288, %v316
      %v344 = vmul.f32 %v289, %v316
      %v345 = vmul.f32 %v290, %v316
      %v346 = vmul.f32 %v291, %v316
      %v347 = vmul.f32 %v292, %v316
      %v348 = vmul.f32 %v293, %v316
      %v349 = vmul.f32 %v294, %v316
      %v350 = vmul.f32 %v295, %v316
      %v351 = vmul.f32 %v296, %v316
      %v352 = vmul.f32 %v297, %v316
      %v353 = vmul.f32 %v298, %v316
      %v354 = vmul.f32 %v299, %v316
      %v355 = vmul.f32 %v300, %v316
      %v356 = vmul.f32 %v301, %v316
      %v357 = vmul.f32 %v302, %v316
      %v358 = vmul.f32 %v303, %v316
      %v359 = vmul.f32 %v304, %v316
      %v360 = vmul.f32 %v305, %v316
      %v361 = vmul.f32 %v306, %v316
      %v362 = vmul.f32 %v307, %v316
      %v363 = vmul.f32 %v308, %v316
      %v364 = vmul.f32 %v309, %v316
      %v365 = vmul.f32 %v310, %v316
      %v366 = vld [vmem:[%s2] sm:$0x1]
      %v368 = vlaneseq
      %v369 = vshrl.u32 %v368, 7
      %v370 = vsub.s32 0, %v369
      %v371 = vrot.slane %v366, %v370
      %v373 = vadd.f32 %v318, %v371
      %v374 = vadd.f32 %v319, %v371
      %v375 = vadd.f32 %v320, %v371
      %v376 = vadd.f32 %v321, %v371
      %v377 = vadd.f32 %v322, %v371
      %v378 = vadd.f32 %v323, %v371
      %v379 = vadd.f32 %v324, %v371
      %v380 = vadd.f32 %v325, %v371
      %v381 = vadd.f32 %v326, %v371
      %v382 = vadd.f32 %v327, %v371
      %v383 = vadd.f32 %v328, %v371
      %v384 = vadd.f32 %v329, %v371
      %v385 = vadd.f32 %v330, %v371
      %v386 = vadd.f32 %v331, %v371
      %v387 = vadd.f32 %v332, %v371
      %v388 = vadd.f32 %v333, %v371
      %v389 = vadd.f32 %v334, %v371
      %v390 = vadd.f32 %v335, %v371
      %v391 = vadd.f32 %v336, %v371
      %v392 = vadd.f32 %v337, %v371
      %v393 = vadd.f32 %v338, %v371
      %v394 = vadd.f32 %v339, %v371
      %v395 = vadd.f32 %v340, %v371
      %v396 = vadd.f32 %v341, %v371
      %v397 = vadd.f32 %v342, %v371
      %v398 = vadd.f32 %v343, %v371
      %v399 = vadd.f32 %v344, %v371
      %v400 = vadd.f32 %v345, %v371
      %v401 = vadd.f32 %v346, %v371
      %v402 = vadd.f32 %v347, %v371
      %v403 = vadd.f32 %v348, %v371
      %v404 = vadd.f32 %v349, %v371
      %v405 = vadd.f32 %v350, %v371
      %v406 = vadd.f32 %v351, %v371
      %v407 = vadd.f32 %v352, %v371
      %v408 = vadd.f32 %v353, %v371
      %v409 = vadd.f32 %v354, %v371
      %v410 = vadd.f32 %v355, %v371
      %v411 = vadd.f32 %v356, %v371
      %v412 = vadd.f32 %v357, %v371
      %v413 = vadd.f32 %v358, %v371
      %v414 = vadd.f32 %v359, %v371
      %v415 = vadd.f32 %v360, %v371
      %v416 = vadd.f32 %v361, %v371
      %v417 = vadd.f32 %v362, %v371
      %v418 = vadd.f32 %v363, %v371
      %v419 = vadd.f32 %v364, %v371
      %v420 = vadd.f32 %v365, %v371
      %v421 = vmax.f32 %v373, 0.0
      %v422 = vmax.f32 %v374, 0.0
      %v423 = vmax.f32 %v375, 0.0
      %v424 = vmax.f32 %v376, 0.0
      %v425 = vmax.f32 %v377, 0.0
      %v426 = vmax.f32 %v378, 0.0
      %v427 = vmax.f32 %v379, 0.0
      %v428 = vmax.f32 %v380, 0.0
      %v429 = vmax.f32 %v381, 0.0
      %v430 = vmax.f32 %v382, 0.0
      %v431 = vmax.f32 %v383, 0.0
      %v432 = vmax.f32 %v384, 0.0
      %v433 = vmax.f32 %v385, 0.0
      %v434 = vmax.f32 %v386, 0.0
      %v435 = vmax.f32 %v387, 0.0
      %v436 = vmax.f32 %v388, 0.0
      %v437 = vmax.f32 %v389, 0.0
      %v438 = vmax.f32 %v390, 0.0
      %v439 = vmax.f32 %v391, 0.0
      %v440 = vmax.f32 %v392, 0.0
      %v441 = vmax.f32 %v393, 0.0
      %v442 = vmax.f32 %v394, 0.0
      %v443 = vmax.f32 %v395, 0.0
      %v444 = vmax.f32 %v396, 0.0
      %v445 = vmax.f32 %v397, 0.0
      %v446 = vmax.f32 %v398, 0.0
      %v447 = vmax.f32 %v399, 0.0
      %v448 = vmax.f32 %v400, 0.0
      %v449 = vmax.f32 %v401, 0.0
      %v450 = vmax.f32 %v402, 0.0
      %v451 = vmax.f32 %v403, 0.0
      %v452 = vmax.f32 %v404, 0.0
      %v453 = vmax.f32 %v405, 0.0
      %v454 = vmax.f32 %v406, 0.0
      %v455 = vmax.f32 %v407, 0.0
      %v456 = vmax.f32 %v408, 0.0
      %v457 = vmax.f32 %v409, 0.0
      %v458 = vmax.f32 %v410, 0.0
      %v459 = vmax.f32 %v411, 0.0
      %v460 = vmax.f32 %v412, 0.0
      %v461 = vmax.f32 %v413, 0.0
      %v462 = vmax.f32 %v414, 0.0
      %v463 = vmax.f32 %v415, 0.0
      %v464 = vmax.f32 %v416, 0.0
      %v465 = vmax.f32 %v417, 0.0
      %v466 = vmax.f32 %v418, 0.0
      %v467 = vmax.f32 %v419, 0.0
      %v468 = vmax.f32 %v420, 0.0
      %469 = vst [vmem:[%s213] sm:$0xff] %v421
      %470 = vst [vmem:[%s213 + $0x8] sm:$0xff] %v422
      %471 = vst [vmem:[%s213 + $0x10] sm:$0xff] %v423
      %472 = vst [vmem:[%s213 + $0x18] sm:$0xff] %v424
      %473 = vst [vmem:[%s213 + $0x20] sm:$0xff] %v425
      %474 = vst [vmem:[%s213 + $0x28] sm:$0xff] %v426
      %475 = vst [vmem:[%s213 + $0x30] sm:$0xff] %v427
      %476 = vst [vmem:[%s213 + $0x38] sm:$0xff] %v428
      %477 = vst [vmem:[%s213 + $0x40] sm:$0xff] %v429
      %478 = vst [vmem:[%s213 + $0x48] sm:$0xff] %v430
      %479 = vst [vmem:[%s213 + $0x50] sm:$0xff] %v431
      %480 = vst [vmem:[%s213 + $0x58] sm:$0xff] %v432
      %481 = vst [vmem:[%s213 + $0x60] sm:$0xff] %v433
      %482 = vst [vmem:[%s213 + $0x68] sm:$0xff] %v434
      %483 = vst [vmem:[%s213 + $0x70] sm:$0xff] %v435
      %484 = vst [vmem:[%s213 + $0x78] sm:$0xff] %v436
      %485 = vst [vmem:[%s213 + $0x80] sm:$0xff] %v437
      %486 = vst [vmem:[%s213 + $0x88] sm:$0xff] %v438
      %487 = vst [vmem:[%s213 + $0x90] sm:$0xff] %v439
      %488 = vst [vmem:[%s213 + $0x98] sm:$0xff] %v440
      %489 = vst [vmem:[%s213 + $0xa0] sm:$0xff] %v441
      %490 = vst [vmem:[%s213 + $0xa8] sm:$0xff] %v442
      %491 = vst [vmem:[%s213 + $0xb0] sm:$0xff] %v443
      %492 = vst [vmem:[%s213 + $0xb8] sm:$0xff] %v444
      %493 = vst [vmem:[%s213 + $0xc0] sm:$0xff] %v445
      %494 = vst [vmem:[%s213 + $0xc8] sm:$0xff] %v446
      %495 = vst [vmem:[%s213 + $0xd0] sm:$0xff] %v447
      %496 = vst [vmem:[%s213 + $0xd8] sm:$0xff] %v448
      %497 = vst [vmem:[%s213 + $0xe0] sm:$0xff] %v449
      %498 = vst [vmem:[%s213 + $0xe8] sm:$0xff] %v450
      %499 = vst [vmem:[%s213 + $0xf0] sm:$0xff] %v451
      %500 = vst [vmem:[%s213 + $0xf8] sm:$0xff] %v452
      %501 = vst [vmem:[%s213 + $0x100] sm:$0xff] %v453
      %502 = vst [vmem:[%s213 + $0x108] sm:$0xff] %v454
      %503 = vst [vmem:[%s213 + $0x110] sm:$0xff] %v455
      %504 = vst [vmem:[%s213 + $0x118] sm:$0xff] %v456
      %505 = vst [vmem:[%s213 + $0x120] sm:$0xff] %v457
      %506 = vst [vmem:[%s213 + $0x128] sm:$0xff] %v458
      %507 = vst [vmem:[%s213 + $0x130] sm:$0xff] %v459
      %508 = vst [vmem:[%s213 + $0x138] sm:$0xff] %v460
      %509 = vst [vmem:[%s213 + $0x140] sm:$0xff] %v461
      %510 = vst [vmem:[%s213 + $0x148] sm:$0xff] %v462
      %511 = vst [vmem:[%s213 + $0x150] sm:$0xff] %v463
      %512 = vst [vmem:[%s213 + $0x158] sm:$0xff] %v464
      %513 = vst [vmem:[%s213 + $0x160] sm:$0xff] %v465
      %514 = vst [vmem:[%s213 + $0x168] sm:$0xff] %v466
      %515 = vst [vmem:[%s213 + $0x170] sm:$0xff] %v467
      %516 = vst [vmem:[%s213 + $0x178] sm:$0xff] %v468
      %s517 = smul.u32 16, %s19
      %p518 = scmp.lt.s32.totalorder %s18, 1
      %s519 = scalar_select %p518, %s18, 1
      %p520 = scmp.lt.s32.totalorder %s517, 15
      %s521 = scalar_select %p520, %s517, 15
      %s522 = smul.addr %s521, 3
      %s523 = smul.addr %s519, 48
      %s524 = sadd.s32 %s522, %s523
      %s525 = smul.addr %s524, 8
      %s526 = scalar_lea.vmem %s3, %s525
      // Predicated region
      $region33: #{double_conv.5} parent=31 // pred_check
        %p527 = pneg %p116
      $region34: #{double_conv.5} parent=31 // pred_check_branch
        %529 = sbr.rel (%p527) target = $region36
      $region35: #{double_conv.5} parent=31 // pred_region
        %s530 = smul.u32 16, %s19
      $region36: #{double_conv.5} parent=31 // pred_fallthru
        _
    $region32: #{double_conv.5} parent=5 // pred_fallthru
      _
    %p531 = scmp.le.s32.totalorder 2, %s9
    // Predicated region
    $region37: #{double_conv.5} parent=5 // pred_check
      %p532 = pneg %p531
    $region38: #{double_conv.5} parent=5 // pred_check_branch
      %534 = sbr.rel (%p532) target = $region40
    $region39: #{double_conv.5} parent=5 // pred_region
      %s535 = ssub.s32 %s9, 2
      // Predicated region
      $region41: #{double_conv.5} parent=39 // pred_check
        %p536 = pneg %p122
      $region42: #{double_conv.5} parent=39 // pred_check_branch
        %538 = sbr.rel (%p536) target = $region44
      $region43: #{double_conv.5} parent=39 // pred_region
        %s539 = smul.u32 16, %s21
        %p540 = scmp.lt.s32.totalorder %s20, 1
        %s541 = scalar_select %p540, %s20, 1
        %p542 = scmp.lt.s32.totalorder %s539, 15
        %s543 = scalar_select %p542, %s539, 15
        %s544 = smul.addr %s543, 3
        %s545 = smul.addr %s541, 48
        %s546 = sadd.s32 %s544, %s545
        %s547 = smul.addr %s546, 8
        %s548 = scalar_lea.vmem %s3, %s547
      $region44: #{double_conv.5} parent=39 // pred_fallthru
        _
    $region40: #{double_conv.5} parent=5 // pred_fallthru
      _
  $region6: #{double_conv.5} parent=0 // loop_footer
    %s13 = sadd.s32 1, %s9
  $region7: #{double_conv.5} parent=0 // loop_footer_branch
    %8 = sbr.rel target = $region3
  $region8: #{double_conv.5} parent=0 // loop_exit
    _

// kernel: double_conv.3
$region0: #{double_conv.3}
  #allocation0 [shape = 'u32[]', space=smem, size = 0x4, offset = 0x4, fixed_abs, tag = 'smem constant byte address 0x4 - core index']
  #allocation1 [shape = 'u32[144,128]{1,0:T(1,128)}', space=vmem, size = 0x12000, scoped, tag = 'internal scratch']
  %s0 = inlined_call_operand.vmem [shape: bf16[2,16,24,128], index: 0, kind: input, shape index: {}, may-alias: {0,1,2}]
  %s1 = inlined_call_operand.vmem [shape: bf16[2,16,24,128], index: 1, kind: input, shape index: {}, may-alias: {0,1,2}]
  %s2 = inlined_call_operand.vmem [shape: bf16[2,16,24,128], index: 2, kind: input, shape index: {}, may-alias: {0,1,2}]
  %s3 = inlined_call_operand.vmem [shape: bf16[3,384,128], index: 3, kind: input, shape index: {}]
  %s4 = inlined_call_operand.vmem [shape: bf16[2,16,24,128], index: 4, kind: output, shape index: {0}]
  %s5 = inlined_call_operand.vmem [shape: f32[2,1,2,128], index: 5, kind: output, shape index: {1}]
  %6 = xla_tuple %s4, %s5
  %s7 = sld [smem:[#allocation0]]
  $region57: #{double_conv.3} parent=0
    _
  %s9 = ssub.s32 1, %s7
  %s10 = scalar_select 0, %s9, %s7
  loop: start=0, step=1, limit=4
  $region2: #{double_conv.3} parent=0 // loop_pre_header
    _
  $region3: #{double_conv.3} parent=0 // loop_header
    %s12 = sphi 0, %s16
    %p13 = scmp.ge.s32.totalorder %s12, 4
    %s19 = sphi 0, %s31
    %s20 = sphi 0, %s27
    %s21 = sphi 0, %s19
    %s22 = sphi 0, %s20
    %s23 = sphi 0, %s21
    %s24 = sphi 0, %s22
    %s44 = sphi 0, %s46
    %s47 = sphi 0, %s44
    %s48 = sphi 0, %s47
    %s64 = sphi 0, %s48
    %s72 = sphi 0, %s74
    %s75 = sphi 0, %s72
    %s76 = sphi 0, %s75
    %s92 = sphi 0, %s76
    %s108 = sphi 0, %s110
    %s111 = sphi 0, %s108
    %s112 = sphi 0, %s111
    %s128 = sphi 0, %s112
    %s132 = sphi 0, %s132
    %s134 = sphi 0, %s132
    %s135 = sphi 0, %s134
    %s149 = sphi 0, %s135
    %s157 = sphi 0, %s159
    %s160 = sphi 0, %s157
    %s161 = sphi 0, %s160
    %s177 = sphi 0, %s161
    %s185 = sphi 0, %s187
    %s188 = sphi 0, %s185
    %s189 = sphi 0, %s188
    %s205 = sphi 0, %s189
  $region4: #{double_conv.3} parent=0 // loop_header_branch
    %15 = sbr.rel (%p13) target = $region8
  $region5: #{double_conv.3} parent=0 // loop_body
    %s17 = ssub.s32 %s12, 1
    %s18 = ssub.s32 %s12, 2
    %s25 = sadd.s32 1, %s20
    %p26 = scmp.ge.s32.totalorder %s25, 1
    %s27 = scalar_select %p26, 0, %s25
    %s28 = sadd.s32 1, %s19
    %s29 = scalar_select %p26, %s28, %s19
    %p30 = scmp.ge.s32.totalorder %s29, 2
    %s31 = scalar_select %p30, 0, %s29
    %s32 = smul.u32 %s20, 16
    %s33 = ssub.s32 %s32, 1
    %p34 = scmp.gt.s32.totalorder %s33, 0
    %s35 = scalar_select %p34, %s33, 0
    %s36 = smul.u32 %s27, 16
    %s37 = ssub.s32 %s36, 1
    %p38 = scmp.gt.s32.totalorder %s37, 0
    %s39 = scalar_select %p38, %s37, 0
    %s40 = ssub.s32 %s19, %s31
    %s41 = ssub.s32 %s35, %s39
    %s42 = sor.u32 %s40, %s41
    %p43 = scmp.eq.s32.totalorder %s42, 0
    %s45 = sadd.s32 %s44, 1
    %s46 = scalar_select %p43, %s44, %s45
    %p49 = pneg %p43
    %p50 = scmp.eq.s32.totalorder %s12, 1
    %p51 = por %p49, %p50
    %p52 = scmp.ne.s32.totalorder %s44, %s47
    %p53 = scmp.eq.s32.totalorder %s12, 0
    %p54 = por %p52, %p53
    %p55 = scmp.ne.s32.totalorder %s44, %s47
    %p56 = scmp.eq.s32.totalorder %s17, 1
    %p57 = por %p55, %p56
    %p58 = scmp.ne.s32.totalorder %s47, %s48
    %p59 = scmp.eq.s32.totalorder %s17, 0
    %p60 = por %p58, %p59
    %p61 = scmp.ne.s32.totalorder %s47, %s48
    %p62 = scmp.eq.s32.totalorder %s18, 1
    %p63 = por %p61, %p62
    %p65 = scmp.ne.s32.totalorder %s48, %s64
    %p66 = scmp.eq.s32.totalorder %s18, 0
    %p67 = por %p65, %p66
    %s68 = ssub.s32 %s19, %s31
    %s69 = ssub.s32 %s20, %s27
    %s70 = sor.u32 %s68, %s69
    %p71 = scmp.eq.s32.totalorder %s70, 0
    %s73 = sadd.s32 %s72, 1
    %s74 = scalar_select %p71, %s72, %s73
    %p77 = pneg %p71
    %p78 = scmp.eq.s32.totalorder %s12, 1
    %p79 = por %p77, %p78
    %p80 = scmp.ne.s32.totalorder %s72, %s75
    %p81 = scmp.eq.s32.totalorder %s12, 0
    %p82 = por %p80, %p81
    %p83 = scmp.ne.s32.totalorder %s72, %s75
    %p84 = scmp.eq.s32.totalorder %s17, 1
    %p85 = por %p83, %p84
    %p86 = scmp.ne.s32.totalorder %s75, %s76
    %p87 = scmp.eq.s32.totalorder %s17, 0
    %p88 = por %p86, %p87
    %p89 = scmp.ne.s32.totalorder %s75, %s76
    %p90 = scmp.eq.s32.totalorder %s18, 1
    %p91 = por %p89, %p90
    %p93 = scmp.ne.s32.totalorder %s76, %s92
    %p94 = scmp.eq.s32.totalorder %s18, 0
    %p95 = por %p93, %p94
    %s96 = smul.u32 %s20, 16
    %s97 = sadd.s32 %s96, 16
    %p98 = scmp.lt.s32.totalorder %s97, 15
    %s99 = scalar_select %p98, %s97, 15
    %s100 = smul.u32 %s27, 16
    %s101 = sadd.s32 %s100, 16
    %p102 = scmp.lt.s32.totalorder %s101, 15
    %s103 = scalar_select %p102, %s101, 15
    %s104 = ssub.s32 %s19, %s31
    %s105 = ssub.s32 %s99, %s103
    %s106 = sor.u32 %s104, %s105
    %p107 = scmp.eq.s32.totalorder %s106, 0
    %s109 = sadd.s32 %s108, 1
    %s110 = scalar_select %p107, %s108, %s109
    %p113 = pneg %p107
    %p114 = scmp.eq.s32.totalorder %s12, 1
    %p115 = por %p113, %p114
    %p116 = scmp.ne.s32.totalorder %s108, %s111
    %p117 = scmp.eq.s32.totalorder %s12, 0
    %p118 = por %p116, %p117
    %p119 = scmp.ne.s32.totalorder %s108, %s111
    %p120 = scmp.eq.s32.totalorder %s17, 1
    %p121 = por %p119, %p120
    %p122 = scmp.ne.s32.totalorder %s111, %s112
    %p123 = scmp.eq.s32.totalorder %s17, 0
    %p124 = por %p122, %p123
    %p125 = scmp.ne.s32.totalorder %s111, %s112
    %p126 = scmp.eq.s32.totalorder %s18, 1
    %p127 = por %p125, %p126
    %p129 = scmp.ne.s32.totalorder %s112, %s128
    %p130 = scmp.eq.s32.totalorder %s18, 0
    %p131 = por %p129, %p130
    %s133 = sadd.s32 %s132, 1
    %p136 = scmp.eq.s32.totalorder %s12, 1
    %p137 = scmp.ne.s32.totalorder %s132, %s134
    %p138 = scmp.eq.s32.totalorder %s12, 0
    %p139 = por %p137, %p138
    %p140 = scmp.ne.s32.totalorder %s132, %s134
    %p141 = scmp.eq.s32.totalorder %s17, 1
    %p142 = por %p140, %p141
    %p143 = scmp.ne.s32.totalorder %s134, %s135
    %p144 = scmp.eq.s32.totalorder %s17, 0
    %p145 = por %p143, %p144
    %p146 = scmp.ne.s32.totalorder %s134, %s135
    %p147 = scmp.eq.s32.totalorder %s18, 1
    %p148 = por %p146, %p147
    %p150 = scmp.ne.s32.totalorder %s135, %s149
    %p151 = scmp.eq.s32.totalorder %s18, 0
    %p152 = por %p150, %p151
    %s153 = ssub.s32 %s19, %s31
    %s154 = ssub.s32 %s20, %s27
    %s155 = sor.u32 %s153, %s154
    %p156 = scmp.eq.s32.totalorder %s155, 0
    %s158 = sadd.s32 %s157, 1
    %s159 = scalar_select %p156, %s157, %s158
    %p162 = pneg %p156
    %p163 = scmp.eq.s32.totalorder %s12, 1
    %p164 = por %p162, %p163
    %p165 = scmp.ne.s32.totalorder %s157, %s160
    %p166 = scmp.eq.s32.totalorder %s12, 0
    %p167 = por %p165, %p166
    %p168 = scmp.ne.s32.totalorder %s157, %s160
    %p169 = scmp.eq.s32.totalorder %s17, 1
    %p170 = por %p168, %p169
    %p171 = scmp.ne.s32.totalorder %s160, %s161
    %p172 = scmp.eq.s32.totalorder %s17, 0
    %p173 = por %p171, %p172
    %p174 = scmp.ne.s32.totalorder %s160, %s161
    %p175 = scmp.eq.s32.totalorder %s18, 1
    %p176 = por %p174, %p175
    %p178 = scmp.ne.s32.totalorder %s161, %s177
    %p179 = scmp.eq.s32.totalorder %s18, 0
    %p180 = por %p178, %p179
    %s181 = ssub.s32 %s19, %s31
    %s182 = ssub.s32 %s20, %s27
    %s183 = sor.u32 %s181, %s182
    %p184 = scmp.eq.s32.totalorder %s183, 0
    %s186 = sadd.s32 %s185, 1
    %s187 = scalar_select %p184, %s185, %s186
    %p190 = pneg %p184
    %p191 = scmp.eq.s32.totalorder %s12, 1
    %p192 = por %p190, %p191
    %p193 = scmp.ne.s32.totalorder %s185, %s188
    %p194 = scmp.eq.s32.totalorder %s12, 0
    %p195 = por %p193, %p194
    %p196 = scmp.ne.s32.totalorder %s185, %s188
    %p197 = scmp.eq.s32.totalorder %s17, 1
    %p198 = por %p196, %p197
    %p199 = scmp.ne.s32.totalorder %s188, %s189
    %p200 = scmp.eq.s32.totalorder %s17, 0
    %p201 = por %p199, %p200
    %p202 = scmp.ne.s32.totalorder %s188, %s189
    %p203 = scmp.eq.s32.totalorder %s18, 1
    %p204 = por %p202, %p203
    %p206 = scmp.ne.s32.totalorder %s189, %s205
    %p207 = scmp.eq.s32.totalorder %s18, 0
    %p208 = por %p206, %p207
    %p209 = scmp.le.s32.totalorder 1, %s12
    %p210 = scmp.lt.s32.totalorder %s12, 3
    %p211 = pnand %p209, %p210
    %p212 = pneg %p211
    // Predicated region
    $region9: #{double_conv.3} parent=5 // pred_check
      _
    $region10: #{double_conv.3} parent=5 // pred_check_branch
      %214 = sbr.rel (%p211) target = $region12
    $region11: #{double_conv.3} parent=5 // pred_region
      %s215 = ssub.s32 %s12, 1
      // Predicated region
      $region13: #{double_conv.3} parent=11 // pred_check
        %p216 = pneg %p145
      $region14: #{double_conv.3} parent=11 // pred_check_branch
        %218 = sbr.rel (%p216) target = $region16
      $region15: #{double_conv.3} parent=11 // pred_region
        _
      $region16: #{double_conv.3} parent=11 // pred_fallthru
        _
    $region12: #{double_conv.3} parent=5 // pred_fallthru
      _
    %p219 = scmp.lt.s32.totalorder %s12, 2
    // Predicated region
    $region17: #{double_conv.3} parent=5 // pred_check
      %p220 = pneg %p219
    $region18: #{double_conv.3} parent=5 // pred_check_branch
      %222 = sbr.rel (%p220) target = $region20
    $region19: #{double_conv.3} parent=5 // pred_region
      // Predicated region
      $region21: #{double_conv.3} parent=19 // pred_check
        %p223 = pneg %p54
      $region22: #{double_conv.3} parent=19 // pred_check_branch
        %225 = sbr.rel (%p223) target = $region24
      $region23: #{double_conv.3} parent=19 // pred_region
        %s226 = smul.u32 %s20, 16
        %s227 = ssub.s32 %s226, 1
        %p228 = scmp.gt.s32.totalorder %s227, 0
        %s229 = scalar_select %p228, %s227, 0
        %p230 = scmp.lt.s32.totalorder %s19, 1
        %s231 = scalar_select %p230, %s19, 1
        %p232 = scmp.lt.s32.totalorder %s229, 15
        %s233 = scalar_select %p232, %s229, 15
        %s234 = smul.addr %s233, 3
        %s235 = smul.addr %s231, 48
        %s236 = sadd.s32 %s234, %s235
        %s237 = smul.addr %s236, 4
        %s238 = scalar_lea.vmem %s0, %s237
        %s239 = smul.u32 %s20, 16
        %s240 = ssub.s32 %s239, 1
        %p241 = scmp.gt.s32.totalorder %s240, 0
        %s242 = scalar_select %p241, %s240, 0
      $region24: #{double_conv.3} parent=19 // pred_fallthru
        _
      // Predicated region
      $region25: #{double_conv.3} parent=19 // pred_check
        %p243 = pneg %p82
      $region26: #{double_conv.3} parent=19 // pred_check_branch
        %245 = sbr.rel (%p243) target = $region28
      $region27: #{double_conv.3} parent=19 // pred_region
        %s246 = smul.u32 16, %s20
        %p247 = scmp.lt.s32.totalorder %s19, 1
        %s248 = scalar_select %p247, %s19, 1
        %p249 = scmp.lt.s32.totalorder %s246, 15
        %s250 = scalar_select %p249, %s246, 15
        %s251 = smul.addr %s250, 3
        %s252 = smul.addr %s248, 48
        %s253 = sadd.s32 %s251, %s252
        %s254 = smul.addr %s253, 4
        %s255 = scalar_lea.vmem %s1, %s254
        %s256 = smul.u32 16, %s20
      $region28: #{double_conv.3} parent=19 // pred_fallthru
        _
      // Predicated region
      $region29: #{double_conv.3} parent=19 // pred_check
        %p257 = pneg %p118
      $region30: #{double_conv.3} parent=19 // pred_check_branch
        %259 = sbr.rel (%p257) target = $region32
      $region31: #{double_conv.3} parent=19 // pred_region
        %s260 = smul.u32 %s20, 16
        %s261 = sadd.s32 %s260, 16
        %p262 = scmp.lt.s32.totalorder %s261, 15
        %s263 = scalar_select %p262, %s261, 15
        %p264 = scmp.lt.s32.totalorder %s19, 1
        %s265 = scalar_select %p264, %s19, 1
        %p266 = scmp.lt.s32.totalorder %s263, 15
        %s267 = scalar_select %p266, %s263, 15
        %s268 = smul.addr %s267, 3
        %s269 = smul.addr %s265, 48
        %s270 = sadd.s32 %s268, %s269
        %s271 = smul.addr %s270, 4
        %s272 = scalar_lea.vmem %s2, %s271
        %s273 = smul.u32 %s20, 16
        %s274 = sadd.s32 %s273, 16
        %p275 = scmp.lt.s32.totalorder %s274, 15
        %s276 = scalar_select %p275, %s274, 15
      $region32: #{double_conv.3} parent=19 // pred_fallthru
        _
    $region20: #{double_conv.3} parent=5 // pred_fallthru
      _
    %p277 = scmp.le.s32.totalorder 1, %s12
    %p278 = scmp.lt.s32.totalorder %s12, 3
    %p279 = pnand %p277, %p278
    %p280 = pneg %p279
    // Predicated region
    $region33: #{double_conv.3} parent=5 // pred_check
      _
    $region34: #{double_conv.3} parent=5 // pred_check_branch
      %282 = sbr.rel (%p279) target = $region36
    $region35: #{double_conv.3} parent=5 // pred_region
      %s283 = ssub.s32 %s12, 1
      %s284 = smul.u32 %s22, 16
      %s285 = ssub.s32 %s284, 1
      %p286 = scmp.gt.s32.totalorder %s285, 0
      %s287 = scalar_select %p286, %s285, 0
      %p288 = scmp.lt.s32.totalorder %s21, 1
      %s289 = scalar_select %p288, %s21, 1
      %p290 = scmp.lt.s32.totalorder %s287, 15
      %s291 = scalar_select %p290, %s287, 15
      %s292 = smul.addr %s291, 3
      %s293 = smul.addr %s289, 48
      %s294 = sadd.s32 %s292, %s293
      %s295 = smul.addr %s294, 4
      %s296 = scalar_lea.vmem %s0, %s295
      %p297 = pneg %p60
      %p298 = pneg %p57
      %s299 = smul.u32 16, %s22
      %p300 = scmp.lt.s32.totalorder %s21, 1
      %s301 = scalar_select %p300, %s21, 1
      %p302 = scmp.lt.s32.totalorder %s299, 15
      %s303 = scalar_select %p302, %s299, 15
      %s304 = smul.addr %s303, 3
      %s305 = smul.addr %s301, 48
      %s306 = sadd.s32 %s304, %s305
      %s307 = smul.addr %s306, 4
      %s308 = scalar_lea.vmem %s1, %s307
      %p309 = pneg %p88
      %p310 = pneg %p85
      %s311 = smul.u32 %s22, 16
      %s312 = sadd.s32 %s311, 16
      %p313 = scmp.lt.s32.totalorder %s312, 15
      %s314 = scalar_select %p313, %s312, 15
      %p315 = scmp.lt.s32.totalorder %s21, 1
      %s316 = scalar_select %p315, %s21, 1
      %p317 = scmp.lt.s32.totalorder %s314, 15
      %s318 = scalar_select %p317, %s314, 15
      %s319 = smul.addr %s318, 3
      %s320 = smul.addr %s316, 48
      %s321 = sadd.s32 %s319, %s320
      %s322 = smul.addr %s321, 4
      %s323 = scalar_lea.vmem %s2, %s322
      %p324 = pneg %p124
      %p325 = pneg %p121
      %p326 = pneg %p145
      %p327 = pneg %p142
      %p328 = pneg %p173
      %p329 = pneg %p170
      %s330 = smul.u32 16, %s22
      %p331 = scmp.lt.s32.totalorder %s21, 1
      %s332 = scalar_select %p331, %s21, 1
      %p333 = scmp.lt.s32.totalorder %s330, 15
      %s334 = scalar_select %p333, %s330, 15
      %s335 = smul.addr %s334, 3
      %s336 = smul.addr %s332, 48
      %s337 = sadd.s32 %s335, %s336
      %s338 = smul.addr %s337, 4
      %s339 = scalar_lea.vmem %s4, %s338
      %p340 = pneg %p201
      %p341 = pneg %p198
      %p342 = scmp.lt.s32.totalorder %s21, 1
      %s343 = scalar_select %p342, %s21, 1
      %p344 = scmp.lt.s32.totalorder %s22, 0
      %s345 = scalar_select %p344, %s22, 0
      %s346 = sadd.s32 %s345, %s343
      %s347 = smul.addr %s346, 2
      %s348 = scalar_lea.vmem %s5, %s347
      %s349 = smul.u32 %s22, 16
      %s350 = ssub.s32 %s349, 1
      %p351 = scmp.gt.s32.totalorder %s350, 0
      %s352 = scalar_select %p351, %s350, 0
      %p353 = scmp.lt.s32.totalorder %s21, 1
      %s354 = scalar_select %p353, %s21, 1
      %p355 = scmp.lt.s32.totalorder %s352, 15
      %s356 = scalar_select %p355, %s352, 15
      %s357 = smul.addr %s356, 3
      %s358 = smul.addr %s354, 48
      %s359 = sadd.s32 %s357, %s358
      %s360 = smul.addr %s359, 4
      %s361 = scalar_lea.vmem %s0, %s360
      %s362 = smul.u32 %s22, 16
      %s363 = ssub.s32 %s362, 1
      %p364 = scmp.gt.s32.totalorder %s363, 0
      %s365 = scalar_select %p364, %s363, 0
      %s366 = smul.u32 16, %s22
      %p367 = scmp.lt.s32.totalorder %s21, 1
      %s368 = scalar_select %p367, %s21, 1
      %p369 = scmp.lt.s32.totalorder %s366, 15
      %s370 = scalar_select %p369, %s366, 15
      %s371 = smul.addr %s370, 3
      %s372 = smul.addr %s368, 48
      %s373 = sadd.s32 %s371, %s372
      %s374 = smul.addr %s373, 4
      %s375 = scalar_lea.vmem %s1, %s374
      %s376 = smul.u32 16, %s22
      %s377 = smul.u32 %s22, 16
      %s378 = sadd.s32 %s377, 16
      %p379 = scmp.lt.s32.totalorder %s378, 15
      %s380 = scalar_select %p379, %s378, 15
      %p381 = scmp.lt.s32.totalorder %s21, 1
      %s382 = scalar_select %p381, %s21, 1
      %p383 = scmp.lt.s32.totalorder %s380, 15
      %s384 = scalar_select %p383, %s380, 15
      %s385 = smul.addr %s384, 3
      %s386 = smul.addr %s382, 48
      %s387 = sadd.s32 %s385, %s386
      %s388 = smul.addr %s387, 4
      %s389 = scalar_lea.vmem %s2, %s388
      %s390 = smul.u32 %s22, 16
      %s391 = sadd.s32 %s390, 16
      %p392 = scmp.lt.s32.totalorder %s391, 15
      %s393 = scalar_select %p392, %s391, 15
      %s394 = smul.u32 16, %s22
      %p395 = scmp.lt.s32.totalorder %s21, 1
      %s396 = scalar_select %p395, %s21, 1
      %p397 = scmp.lt.s32.totalorder %s394, 15
      %s398 = scalar_select %p397, %s394, 15
      %s399 = smul.addr %s398, 3
      %s400 = smul.addr %s396, 48
      %s401 = sadd.s32 %s399, %s400
      %s402 = smul.addr %s401, 4
      %s403 = scalar_lea.vmem %s4, %s402
      %s404 = smul.u32 16, %s22
      %p405 = scmp.lt.s32.totalorder %s21, 1
      %s406 = scalar_select %p405, %s21, 1
      %p407 = scmp.lt.s32.totalorder %s22, 0
      %s408 = scalar_select %p407, %s22, 0
      %s409 = sadd.s32 %s408, %s406
      %s410 = smul.addr %s409, 2
      %s411 = scalar_lea.vmem %s5, %s410
      %v413 = vlaneseq
      %v414 = vshrl.u32 %v413, 7
      %v415 = vadd.s32 %v414, 8
      %v416 = vadd.s32 %v414, 16
      %vm417 = vcmp.lt.s32.totalorder %v414, 16
      %vm418 = vcmp.lt.s32.totalorder %v415, 16
      %vm419 = vcmp.lt.s32.totalorder %v416, 16
      %v420 = vld [vmem:[%s361] sm:$0xf]
      %v421 = vld [vmem:[%s361 + $0x4] sm:$0xf]
      %v422 = vld [vmem:[%s361 + $0x8] sm:$0xf]
      %v423 = vld [vmem:[%s375] sm:$0xf]
      %v424 = vld [vmem:[%s375 + $0x4] sm:$0xf]
      %v425 = vld [vmem:[%s375 + $0x8] sm:$0xf]
      %v426 = vld [vmem:[%s375 + $0xc] sm:$0xf]
      %v427 = vld [vmem:[%s375 + $0x10] sm:$0xf]
      %v428 = vld [vmem:[%s375 + $0x14] sm:$0xf]
      %v429 = vld [vmem:[%s375 + $0x18] sm:$0xf]
      %v430 = vld [vmem:[%s375 + $0x1c] sm:$0xf]
      %v431 = vld [vmem:[%s375 + $0x20] sm:$0xf]
      %v432 = vld [vmem:[%s375 + $0x24] sm:$0xf]
      %v433 = vld [vmem:[%s375 + $0x28] sm:$0xf]
      %v434 = vld [vmem:[%s375 + $0x2c] sm:$0xf]
      %v435 = vld [vmem:[%s375 + $0x30] sm:$0xf]
      %v436 = vld [vmem:[%s375 + $0x34] sm:$0xf]
      %v437 = vld [vmem:[%s375 + $0x38] sm:$0xf]
      %v438 = vld [vmem:[%s375 + $0x3c] sm:$0xf]
      %v439 = vld [vmem:[%s375 + $0x40] sm:$0xf]
      %v440 = vld [vmem:[%s375 + $0x44] sm:$0xf]
      %v441 = vld [vmem:[%s375 + $0x48] sm:$0xf]
      %v442 = vld [vmem:[%s375 + $0x4c] sm:$0xf]
      %v443 = vld [vmem:[%s375 + $0x50] sm:$0xf]
      %v444 = vld [vmem:[%s375 + $0x54] sm:$0xf]
      %v445 = vld [vmem:[%s375 + $0x58] sm:$0xf]
      %v446 = vld [vmem:[%s375 + $0x5c] sm:$0xf]
      %v447 = vld [vmem:[%s375 + $0x60] sm:$0xf]
      %v448 = vld [vmem:[%s375 + $0x64] sm:$0xf]
      %v449 = vld [vmem:[%s375 + $0x68] sm:$0xf]
      %v450 = vld [vmem:[%s375 + $0x6c] sm:$0xf]
      %v451 = vld [vmem:[%s375 + $0x70] sm:$0xf]
      %v452 = vld [vmem:[%s375 + $0x74] sm:$0xf]
      %v453 = vld [vmem:[%s375 + $0x78] sm:$0xf]
      %v454 = vld [vmem:[%s375 + $0x7c] sm:$0xf]
      %v455 = vld [vmem:[%s375 + $0x80] sm:$0xf]
      %v456 = vld [vmem:[%s375 + $0x84] sm:$0xf]
      %v457 = vld [vmem:[%s375 + $0x88] sm:$0xf]
      %v458 = vld [vmem:[%s375 + $0x8c] sm:$0xf]
      %v459 = vld [vmem:[%s375 + $0x90] sm:$0xf]
      %v460 = vld [vmem:[%s375 + $0x94] sm:$0xf]
      %v461 = vld [vmem:[%s375 + $0x98] sm:$0xf]
      %v462 = vld [vmem:[%s375 + $0x9c] sm:$0xf]
      %v463 = vld [vmem:[%s375 + $0xa0] sm:$0xf]
      %v464 = vld [vmem:[%s375 + $0xa4] sm:$0xf]
      %v465 = vld [vmem:[%s375 + $0xa8] sm:$0xf]
      %v466 = vld [vmem:[%s375 + $0xac] sm:$0xf]
      %v467 = vld [vmem:[%s375 + $0xb0] sm:$0xf]
      %v468 = vld [vmem:[%s375 + $0xb4] sm:$0xf]
      %v469 = vld [vmem:[%s375 + $0xb8] sm:$0xf]
      %v470 = vld [vmem:[%s375 + $0xbc] sm:$0xf]
      %v471 = vld [vmem:[%s389] sm:$0xf]
      %v472 = vld [vmem:[%s389 + $0x4] sm:$0xf]
      %v473 = vld [vmem:[%s389 + $0x8] sm:$0xf]
      %p474 = scmp.gt.s32.totalorder %s22, 0
      %s475 = scalar_select %p474, 1, 0
      %v476 = vstv %s475
      %vm477 = vcmp.eq.s32.totalorder %v476, 1
      %v478 = vsel %vm477, %v420, 0
      %v479 = vsel %vm477, %v421, 0
      %v480 = vsel %vm477, %v422, 0
      %s481 = sadd.s32 %s22, 1
      %p482 = scmp.lt.s32.totalorder %s481, 1
      %s483 = scalar_select %p482, 1, 0
      %v484 = vstv %s483
      %vm485 = vcmp.eq.s32.totalorder %v484, 1
      %v486 = vsel %vm485, %v471, 0
      %v487 = vsel %vm485, %v472, 0
      %v488 = vsel %vm485, %v473, 0
      %v543 = vunpack.c.l.b16 %v478
      %v544 = vunpack.c.l.b16 %v479
      %v545 = vunpack.c.l.b16 %v480
      %v546 = vunpack.c.l.b16 %v423
      %v547 = vunpack.c.l.b16 %v424
      %v548 = vunpack.c.l.b16 %v425
      %v549 = vunpack.c.l.b16 %v426
      %v550 = vunpack.c.l.b16 %v427
      %v551 = vunpack.c.l.b16 %v428
      %v552 = vunpack.c.l.b16 %v429
      %v553 = vunpack.c.l.b16 %v430
      %v554 = vunpack.c.l.b16 %v431
      %v555 = vunpack.c.l.b16 %v432
      %v556 = vunpack.c.l.b16 %v433
      %v557 = vunpack.c.l.b16 %v434
      %v558 = vunpack.c.l.b16 %v435
      %v559 = vunpack.c.l.b16 %v436
      %v560 = vunpack.c.l.b16 %v437
      %v561 = vunpack.c.l.b16 %v438
      %v562 = vunpack.c.l.b16 %v439
      %v563 = vunpack.c.l.b16 %v440
      %v564 = vunpack.c.l.b16 %v441
      %v565 = vunpack.c.l.b16 %v442
      %v566 = vunpack.c.l.b16 %v443
      %v567 = vunpack.c.l.b16 %v444
      %v568 = vunpack.c.l.b16 %v445
      %v569 = vunpack.c.l.b16 %v446
      %v570 = vunpack.c.l.b16 %v447
      %v571 = vunpack.c.l.b16 %v448
      %v572 = vunpack.c.l.b16 %v449
      %v573 = vunpack.c.l.b16 %v450
      %v574 = vunpack.c.l.b16 %v451
      %v575 = vunpack.c.l.b16 %v452
      %v576 = vunpack.c.l.b16 %v453
      %v577 = vunpack.c.l.b16 %v454
      %v578 = vunpack.c.l.b16 %v455
      %v579 = vunpack.c.l.b16 %v456
      %v580 = vunpack.c.l.b16 %v457
      %v581 = vunpack.c.l.b16 %v458
      %v582 = vunpack.c.l.b16 %v459
      %v583 = vunpack.c.l.b16 %v460
      %v584 = vunpack.c.l.b16 %v461
      %v585 = vunpack.c.l.b16 %v462
      %v586 = vunpack.c.l.b16 %v463
      %v587 = vunpack.c.l.b16 %v464
      %v588 = vunpack.c.l.b16 %v465
      %v589 = vunpack.c.l.b16 %v466
      %v590 = vunpack.c.l.b16 %v467
      %v591 = vunpack.c.l.b16 %v468
      %v592 = vunpack.c.l.b16 %v469
      %v593 = vunpack.c.l.b16 %v470
      %v594 = vunpack.c.l.b16 %v486
      %v595 = vunpack.c.l.b16 %v487
      %v596 = vunpack.c.l.b16 %v488
      %v597 = vpack.c.b16 %v544, %v543
      %v598 = vpack.c.b16 %v545, %v545
      %v599 = vpack.c.b16 %v547, %v546
      %v600 = vpack.c.b16 %v548, %v548
      %v601 = vpack.c.b16 %v550, %v549
      %v602 = vpack.c.b16 %v551, %v551
      %v603 = vpack.c.b16 %v553, %v552
      %v604 = vpack.c.b16 %v554, %v554
      %v605 = vpack.c.b16 %v556, %v555
      %v606 = vpack.c.b16 %v557, %v557
      %v607 = vpack.c.b16 %v559, %v558
      %v608 = vpack.c.b16 %v560, %v560
      %v609 = vpack.c.b16 %v562, %v561
      %v610 = vpack.c.b16 %v563, %v563
      %v611 = vpack.c.b16 %v565, %v564
      %v612 = vpack.c.b16 %v566, %v566
      %v613 = vpack.c.b16 %v568, %v567
      %v614 = vpack.c.b16 %v569, %v569
      %v615 = vpack.c.b16 %v571, %v570
      %v616 = vpack.c.b16 %v572, %v572
      %v617 = vpack.c.b16 %v574, %v573
      %v618 = vpack.c.b16 %v575, %v575
      %v619 = vpack.c.b16 %v577, %v576
      %v620 = vpack.c.b16 %v578, %v578
      %v621 = vpack.c.b16 %v580, %v579
      %v622 = vpack.c.b16 %v581, %v581
      %v623 = vpack.c.b16 %v583, %v582
      %v624 = vpack.c.b16 %v584, %v584
      %v625 = vpack.c.b16 %v586, %v585
      %v626 = vpack.c.b16 %v587, %v587
      %v627 = vpack.c.b16 %v589, %v588
      %v628 = vpack.c.b16 %v590, %v590
      %v629 = vpack.c.b16 %v592, %v591
      %v630 = vpack.c.b16 %v593, %v593
      %v631 = vpack.c.b16 %v595, %v594
      %v632 = vpack.c.b16 %v596, %v596
      %vm633 = vsmask.f32 256
      %v635 = vshrl.u32 %v597, 16
      %v637 = vrot.slane %v635, 7
      %v638 = vshll.u32 %v597, 16
      %v640 = vor.u32 %v637, %v638
      %v642 = vshrl.u32 %v598, 16
      %v644 = vrot.slane %v642, 7
      %v645 = vshll.u32 %v598, 16
      %v647 = vor.u32 %v644, %v645
      %v648 = vsel %vm633, %v637, %v647
      %v650 = vshrl.u32 %v599, 16
      %v652 = vrot.slane %v650, 7
      %v653 = vshll.u32 %v599, 16
      %v655 = vor.u32 %v652, %v653
      %v657 = vshrl.u32 %v600, 16
      %v659 = vrot.slane %v657, 7
      %v660 = vshll.u32 %v600, 16
      %v662 = vor.u32 %v659, %v660
      %v663 = vsel %vm633, %v652, %v662
      %v665 = vshrl.u32 %v601, 16
      %v667 = vrot.slane %v665, 7
      %v668 = vshll.u32 %v601, 16
      %v670 = vor.u32 %v667, %v668
      %v672 = vshrl.u32 %v602, 16
      %v674 = vrot.slane %v672, 7
      %v675 = vshll.u32 %v602, 16
      %v677 = vor.u32 %v674, %v675
      %v678 = vsel %vm633, %v667, %v677
      %v680 = vshrl.u32 %v603, 16
      %v682 = vrot.slane %v680, 7
      %v683 = vshll.u32 %v603, 16
      %v685 = vor.u32 %v682, %v683
      %v687 = vshrl.u32 %v604, 16
      %v689 = vrot.slane %v687, 7
      %v690 = vshll.u32 %v604, 16
      %v692 = vor.u32 %v689, %v690
      %v693 = vsel %vm633, %v682, %v692
      %v695 = vshrl.u32 %v605, 16
      %v697 = vrot.slane %v695, 7
      %v698 = vshll.u32 %v605, 16
      %v700 = vor.u32 %v697, %v698
      %v702 = vshrl.u32 %v606, 16
      %v704 = vrot.slane %v702, 7
      %v705 = vshll.u32 %v606, 16
      %v707 = vor.u32 %v704, %v705
      %v708 = vsel %vm633, %v697, %v707
      %v710 = vshrl.u32 %v607, 16
      %v712 = vrot.slane %v710, 7
      %v713 = vshll.u32 %v607, 16
      %v715 = vor.u32 %v712, %v713
      %v717 = vshrl.u32 %v608, 16
      %v719 = vrot.slane %v717, 7
      %v720 = vshll.u32 %v608, 16
      %v722 = vor.u32 %v719, %v720
      %v723 = vsel %vm633, %v712, %v722
      %v725 = vshrl.u32 %v609, 16
      %v727 = vrot.slane %v725, 7
      %v728 = vshll.u32 %v609, 16
      %v730 = vor.u32 %v727, %v728
      %v732 = vshrl.u32 %v610, 16
      %v734 = vrot.slane %v732, 7
      %v735 = vshll.u32 %v610, 16
      %v737 = vor.u32 %v734, %v735
      %v738 = vsel %vm633, %v727, %v737
      %v740 = vshrl.u32 %v611, 16
      %v742 = vrot.slane %v740, 7
      %v743 = vshll.u32 %v611, 16
      %v745 = vor.u32 %v742, %v743
      %v747 = vshrl.u32 %v612, 16
      %v749 = vrot.slane %v747, 7
      %v750 = vshll.u32 %v612, 16
      %v752 = vor.u32 %v749, %v750
      %v753 = vsel %vm633, %v742, %v752
      %v755 = vshrl.u32 %v613, 16
      %v757 = vrot.slane %v755, 7
      %v758 = vshll.u32 %v613, 16
      %v760 = vor.u32 %v757, %v758
      %v762 = vshrl.u32 %v614, 16
      %v764 = vrot.slane %v762, 7
      %v765 = vshll.u32 %v614, 16
      %v767 = vor.u32 %v764, %v765
      %v768 = vsel %vm633, %v757, %v767
      %v770 = vshrl.u32 %v615, 16
      %v772 = vrot.slane %v770, 7
      %v773 = vshll.u32 %v615, 16
      %v775 = vor.u32 %v772, %v773
      %v777 = vshrl.u32 %v616, 16
      %v779 = vrot.slane %v777, 7
      %v780 = vshll.u32 %v616, 16
      %v782 = vor.u32 %v779, %v780
      %v783 = vsel %vm633, %v772, %v782
      %v785 = vshrl.u32 %v617, 16
      %v787 = vrot.slane %v785, 7
      %v788 = vshll.u32 %v617, 16
      %v790 = vor.u32 %v787, %v788
      %v792 = vshrl.u32 %v618, 16
      %v794 = vrot.slane %v792, 7
      %v795 = vshll.u32 %v618, 16
      %v797 = vor.u32 %v794, %v795
      %v798 = vsel %vm633, %v787, %v797
      %v800 = vshrl.u32 %v619, 16
      %v802 = vrot.slane %v800, 7
      %v803 = vshll.u32 %v619, 16
      %v805 = vor.u32 %v802, %v803
      %v807 = vshrl.u32 %v620, 16
      %v809 = vrot.slane %v807, 7
      %v810 = vshll.u32 %v620, 16
      %v812 = vor.u32 %v809, %v810
      %v813 = vsel %vm633, %v802, %v812
      %v815 = vshrl.u32 %v621, 16
      %v817 = vrot.slane %v815, 7
      %v818 = vshll.u32 %v621, 16
      %v820 = vor.u32 %v817, %v818
      %v822 = vshrl.u32 %v622, 16
      %v824 = vrot.slane %v822, 7
      %v825 = vshll.u32 %v622, 16
      %v827 = vor.u32 %v824, %v825
      %v828 = vsel %vm633, %v817, %v827
      %v830 = vshrl.u32 %v623, 16
      %v832 = vrot.slane %v830, 7
      %v833 = vshll.u32 %v623, 16
      %v835 = vor.u32 %v832, %v833
      %v837 = vshrl.u32 %v624, 16
      %v839 = vrot.slane %v837, 7
      %v840 = vshll.u32 %v624, 16
      %v842 = vor.u32 %v839, %v840
      %v843 = vsel %vm633, %v832, %v842
      %v845 = vshrl.u32 %v625, 16
      %v847 = vrot.slane %v845, 7
      %v848 = vshll.u32 %v625, 16
      %v850 = vor.u32 %v847, %v848
      %v852 = vshrl.u32 %v626, 16
      %v854 = vrot.slane %v852, 7
      %v855 = vshll.u32 %v626, 16
      %v857 = vor.u32 %v854, %v855
      %v858 = vsel %vm633, %v847, %v857
      %v860 = vshrl.u32 %v627, 16
      %v862 = vrot.slane %v860, 7
      %v863 = vshll.u32 %v627, 16
      %v865 = vor.u32 %v862, %v863
      %v867 = vshrl.u32 %v628, 16
      %v869 = vrot.slane %v867, 7
      %v870 = vshll.u32 %v628, 16
      %v872 = vor.u32 %v869, %v870
      %v873 = vsel %vm633, %v862, %v872
      %v875 = vshrl.u32 %v629, 16
      %v877 = vrot.slane %v875, 7
      %v878 = vshll.u32 %v629, 16
      %v880 = vor.u32 %v877, %v878
      %v882 = vshrl.u32 %v630, 16
      %v884 = vrot.slane %v882, 7
      %v885 = vshll.u32 %v630, 16
      %v887 = vor.u32 %v884, %v885
      %v888 = vsel %vm633, %v877, %v887
      %v890 = vshrl.u32 %v631, 16
      %v892 = vrot.slane %v890, 7
      %v893 = vshll.u32 %v631, 16
      %v895 = vor.u32 %v892, %v893
      %v897 = vshrl.u32 %v632, 16
      %v899 = vrot.slane %v897, 7
      %v900 = vshll.u32 %v632, 16
      %v902 = vor.u32 %v899, %v900
      %v903 = vsel %vm633, %v892, %v902
      %vm922 = vcmask 1040384
      %vm923 = vmand %vm922, %vm633
      %v924 = vsel %vm923, 0, %v640
      %v925 = vsel %vm923, 0, %v655
      %v926 = vsel %vm923, 0, %v670
      %v927 = vsel %vm923, 0, %v685
      %v928 = vsel %vm923, 0, %v700
      %v929 = vsel %vm923, 0, %v715
      %v930 = vsel %vm923, 0, %v730
      %v931 = vsel %vm923, 0, %v745
      %v932 = vsel %vm923, 0, %v760
      %v933 = vsel %vm923, 0, %v775
      %v934 = vsel %vm923, 0, %v790
      %v935 = vsel %vm923, 0, %v805
      %v936 = vsel %vm923, 0, %v820
      %v937 = vsel %vm923, 0, %v835
      %v938 = vsel %vm923, 0, %v850
      %v939 = vsel %vm923, 0, %v865
      %v940 = vsel %vm923, 0, %v880
      %v941 = vsel %vm923, 0, %v895
      %vm942 = vsmask.f32 7424
      %v943 = vrot.slane %v638, 1
      %v944 = vor.u32 %v635, %v943
      %v945 = vrot.slane %v645, 1
      %v946 = vsel %vm942, %v944, %v945
      %v947 = vor.u32 %v642, %v945
      %v948 = vrot.slane %v653, 1
      %v949 = vor.u32 %v650, %v948
      %v950 = vrot.slane %v660, 1
      %v951 = vsel %vm942, %v949, %v950
      %v952 = vor.u32 %v657, %v950
      %v953 = vrot.slane %v668, 1
      %v954 = vor.u32 %v665, %v953
      %v955 = vrot.slane %v675, 1
      %v956 = vsel %vm942, %v954, %v955
      %v957 = vor.u32 %v672, %v955
      %v958 = vrot.slane %v683, 1
      %v959 = vor.u32 %v680, %v958
      %v960 = vrot.slane %v690, 1
      %v961 = vsel %vm942, %v959, %v960
      %v962 = vor.u32 %v687, %v960
      %v963 = vrot.slane %v698, 1
      %v964 = vor.u32 %v695, %v963
      %v965 = vrot.slane %v705, 1
      %v966 = vsel %vm942, %v964, %v965
      %v967 = vor.u32 %v702, %v965
      %v968 = vrot.slane %v713, 1
      %v969 = vor.u32 %v710, %v968
      %v970 = vrot.slane %v720, 1
      %v971 = vsel %vm942, %v969, %v970
      %v972 = vor.u32 %v717, %v970
      %v973 = vrot.slane %v728, 1
      %v974 = vor.u32 %v725, %v973
      %v975 = vrot.slane %v735, 1
      %v976 = vsel %vm942, %v974, %v975
      %v977 = vor.u32 %v732, %v975
      %v978 = vrot.slane %v743, 1
      %v979 = vor.u32 %v740, %v978
      %v980 = vrot.slane %v750, 1
      %v981 = vsel %vm942, %v979, %v980
      %v982 = vor.u32 %v747, %v980
      %v983 = vrot.slane %v758, 1
      %v984 = vor.u32 %v755, %v983
      %v985 = vrot.slane %v765, 1
      %v986 = vsel %vm942, %v984, %v985
      %v987 = vor.u32 %v762, %v985
      %v988 = vrot.slane %v773, 1
      %v989 = vor.u32 %v770, %v988
      %v990 = vrot.slane %v780, 1
      %v991 = vsel %vm942, %v989, %v990
      %v992 = vor.u32 %v777, %v990
      %v993 = vrot.slane %v788, 1
      %v994 = vor.u32 %v785, %v993
      %v995 = vrot.slane %v795, 1
      %v996 = vsel %vm942, %v994, %v995
      %v997 = vor.u32 %v792, %v995
      %v998 = vrot.slane %v803, 1
      %v999 = vor.u32 %v800, %v998
      %v1000 = vrot.slane %v810, 1
      %v1001 = vsel %vm942, %v999, %v1000
      %v1002 = vor.u32 %v807, %v1000
      %v1003 = vrot.slane %v818, 1
      %v1004 = vor.u32 %v815, %v1003
      %v1005 = vrot.slane %v825, 1
      %v1006 = vsel %vm942, %v1004, %v1005
      %v1007 = vor.u32 %v822, %v1005
      %v1008 = vrot.slane %v833, 1
      %v1009 = vor.u32 %v830, %v1008
      %v1010 = vrot.slane %v840, 1
      %v1011 = vsel %vm942, %v1009, %v1010
      %v1012 = vor.u32 %v837, %v1010
      %v1013 = vrot.slane %v848, 1
      %v1014 = vor.u32 %v845, %v1013
      %v1015 = vrot.slane %v855, 1
      %v1016 = vsel %vm942, %v1014, %v1015
      %v1017 = vor.u32 %v852, %v1015
      %v1018 = vrot.slane %v863, 1
      %v1019 = vor.u32 %v860, %v1018
      %v1020 = vrot.slane %v870, 1
      %v1021 = vsel %vm942, %v1019, %v1020
      %v1022 = vor.u32 %v867, %v1020
      %v1023 = vrot.slane %v878, 1
      %v1024 = vor.u32 %v875, %v1023
      %v1025 = vrot.slane %v885, 1
      %v1026 = vsel %vm942, %v1024, %v1025
      %v1027 = vor.u32 %v882, %v1025
      %v1028 = vrot.slane %v893, 1
      %v1029 = vor.u32 %v890, %v1028
      %v1030 = vrot.slane %v900, 1
      %v1031 = vsel %vm942, %v1029, %v1030
      %v1032 = vor.u32 %v897, %v1030
      %vm1051 = vcmask 1043456
      %vm1052 = vsmask.f32 3328
      %vm1053 = vmand %vm1051, %vm1052
      %v1054 = vsel %vm1053, %v947, 0
      %v1055 = vsel %vm1053, %v952, 0
      %v1056 = vsel %vm1053, %v957, 0
      %v1057 = vsel %vm1053, %v962, 0
      %v1058 = vsel %vm1053, %v967, 0
      %v1059 = vsel %vm1053, %v972, 0
      %v1060 = vsel %vm1053, %v977, 0
      %v1061 = vsel %vm1053, %v982, 0
      %v1062 = vsel %vm1053, %v987, 0
      %v1063 = vsel %vm1053, %v992, 0
      %v1064 = vsel %vm1053, %v997, 0
      %v1065 = vsel %vm1053, %v1002, 0
      %v1066 = vsel %vm1053, %v1007, 0
      %v1067 = vsel %vm1053, %v1012, 0
      %v1068 = vsel %vm1053, %v1017, 0
      %v1069 = vsel %vm1053, %v1022, 0
      %v1070 = vsel %vm1053, %v1027, 0
      %v1071 = vsel %vm1053, %v1032, 0
      %v1104 = vunpack.c.l.b16 %v924
      %v1105 = vunpack.c.l.b16 %v946
      %v1106 = vunpack.c.h.b16 %v924
      %v1107 = vunpack.c.h.b16 %v946
      %v1108 = vunpack.c.l.b16 %v648
      %v1109 = vunpack.c.l.b16 %v1054
      %v1110 = vunpack.c.l.b16 %v925
      %v1111 = vunpack.c.l.b16 %v951
      %v1112 = vunpack.c.h.b16 %v925
      %v1113 = vunpack.c.h.b16 %v951
      %v1114 = vunpack.c.l.b16 %v663
      %v1115 = vunpack.c.l.b16 %v1055
      %v1116 = vunpack.c.l.b16 %v926
      %v1117 = vunpack.c.l.b16 %v956
      %v1118 = vunpack.c.h.b16 %v926
      %v1119 = vunpack.c.h.b16 %v956
      %v1120 = vunpack.c.l.b16 %v678
      %v1121 = vunpack.c.l.b16 %v1056
      %v1122 = vunpack.c.l.b16 %v927
      %v1123 = vunpack.c.l.b16 %v961
      %v1124 = vunpack.c.h.b16 %v927
      %v1125 = vunpack.c.h.b16 %v961
      %v1126 = vunpack.c.l.b16 %v693
      %v1127 = vunpack.c.l.b16 %v1057
      %v1128 = vunpack.c.l.b16 %v928
      %v1129 = vunpack.c.l.b16 %v966
      %v1130 = vunpack.c.h.b16 %v928
      %v1131 = vunpack.c.h.b16 %v966
      %v1132 = vunpack.c.l.b16 %v708
      %v1133 = vunpack.c.l.b16 %v1058
      %v1134 = vunpack.c.l.b16 %v929
      %v1135 = vunpack.c.l.b16 %v971
      %v1136 = vunpack.c.h.b16 %v929
      %v1137 = vunpack.c.h.b16 %v971
      %v1138 = vunpack.c.l.b16 %v723
      %v1139 = vunpack.c.l.b16 %v1059
      %v1140 = vunpack.c.l.b16 %v930
      %v1141 = vunpack.c.l.b16 %v976
      %v1142 = vunpack.c.h.b16 %v930
      %v1143 = vunpack.c.h.b16 %v976
      %v1144 = vunpack.c.l.b16 %v738
      %v1145 = vunpack.c.l.b16 %v1060
      %v1146 = vunpack.c.l.b16 %v931
      %v1147 = vunpack.c.l.b16 %v981
      %v1148 = vunpack.c.h.b16 %v931
      %v1149 = vunpack.c.h.b16 %v981
      %v1150 = vunpack.c.l.b16 %v753
      %v1151 = vunpack.c.l.b16 %v1061
      %v1152 = vunpack.c.l.b16 %v932
      %v1153 = vunpack.c.l.b16 %v986
      %v1154 = vunpack.c.h.b16 %v932
      %v1155 = vunpack.c.h.b16 %v986
      %v1156 = vunpack.c.l.b16 %v768
      %v1157 = vunpack.c.l.b16 %v1062
      %v1158 = vunpack.c.l.b16 %v933
      %v1159 = vunpack.c.l.b16 %v991
      %v1160 = vunpack.c.h.b16 %v933
      %v1161 = vunpack.c.h.b16 %v991
      %v1162 = vunpack.c.l.b16 %v783
      %v1163 = vunpack.c.l.b16 %v1063
      %v1164 = vunpack.c.l.b16 %v934
      %v1165 = vunpack.c.l.b16 %v996
      %v1166 = vunpack.c.h.b16 %v934
      %v1167 = vunpack.c.h.b16 %v996
      %v1168 = vunpack.c.l.b16 %v798
      %v1169 = vunpack.c.l.b16 %v1064
      %v1170 = vunpack.c.l.b16 %v935
      %v1171 = vunpack.c.l.b16 %v1001
      %v1172 = vunpack.c.h.b16 %v935
      %v1173 = vunpack.c.h.b16 %v1001
      %v1174 = vunpack.c.l.b16 %v813
      %v1175 = vunpack.c.l.b16 %v1065
      %v1176 = vunpack.c.l.b16 %v936
      %v1177 = vunpack.c.l.b16 %v1006
      %v1178 = vunpack.c.h.b16 %v936
      %v1179 = vunpack.c.h.b16 %v1006
      %v1180 = vunpack.c.l.b16 %v828
      %v1181 = vunpack.c.l.b16 %v1066
      %v1182 = vunpack.c.l.b16 %v937
      %v1183 = vunpack.c.l.b16 %v1011
      %v1184 = vunpack.c.h.b16 %v937
      %v1185 = vunpack.c.h.b16 %v1011
      %v1186 = vunpack.c.l.b16 %v843
      %v1187 = vunpack.c.l.b16 %v1067
      %v1188 = vunpack.c.l.b16 %v938
      %v1189 = vunpack.c.l.b16 %v1016
      %v1190 = vunpack.c.h.b16 %v938
      %v1191 = vunpack.c.h.b16 %v1016
      %v1192 = vunpack.c.l.b16 %v858
      %v1193 = vunpack.c.l.b16 %v1068
      %v1194 = vunpack.c.l.b16 %v939
      %v1195 = vunpack.c.l.b16 %v1021
      %v1196 = vunpack.c.h.b16 %v939
      %v1197 = vunpack.c.h.b16 %v1021
      %v1198 = vunpack.c.l.b16 %v873
      %v1199 = vunpack.c.l.b16 %v1069
      %v1200 = vld [vmem:[%s3] sm:$0xf]
      %v1201 = vld [vmem:[%s3 + $0x4] sm:$0xf]
      %v1202 = vld [vmem:[%s3 + $0x8] sm:$0xf]
      %v1203 = vld [vmem:[%s3 + $0xc] sm:$0xf]
      %v1204 = vld [vmem:[%s3 + $0x10] sm:$0xf]
      %v1205 = vld [vmem:[%s3 + $0x14] sm:$0xf]
      %v1206 = vld [vmem:[%s3 + $0x18] sm:$0xf]
      %v1207 = vld [vmem:[%s3 + $0x1c] sm:$0xf]
      %v1208 = vld [vmem:[%s3 + $0x20] sm:$0xf]
      %v1209 = vld [vmem:[%s3 + $0x24] sm:$0xf]
      %v1210 = vld [vmem:[%s3 + $0x28] sm:$0xf]
      %v1211 = vld [vmem:[%s3 + $0x2c] sm:$0xf]
      %v1212 = vld [vmem:[%s3 + $0x30] sm:$0xf]
      %v1213 = vld [vmem:[%s3 + $0x34] sm:$0xf]
      %v1214 = vld [vmem:[%s3 + $0x38] sm:$0xf]
      %v1215 = vld [vmem:[%s3 + $0x3c] sm:$0xf]
      %v1216 = vld [vmem:[%s3 + $0x40] sm:$0xf]
      %v1217 = vld [vmem:[%s3 + $0x44] sm:$0xf]
      %v1218 = vld [vmem:[%s3 + $0x48] sm:$0xf]
      %v1219 = vld [vmem:[%s3 + $0x4c] sm:$0xf]
      %v1220 = vld [vmem:[%s3 + $0x50] sm:$0xf]
      %v1221 = vld [vmem:[%s3 + $0x54] sm:$0xf]
      %v1222 = vld [vmem:[%s3 + $0x58] sm:$0xf]
      %v1223 = vld [vmem:[%s3 + $0x5c] sm:$0xf]
      %v1224 = vld [vmem:[%s3 + $0x60] sm:$0xf]
      %v1225 = vld [vmem:[%s3 + $0x64] sm:$0xf]
      %v1226 = vld [vmem:[%s3 + $0x68] sm:$0xf]
      %v1227 = vld [vmem:[%s3 + $0x6c] sm:$0xf]
      %v1228 = vld [vmem:[%s3 + $0x70] sm:$0xf]
      %v1229 = vld [vmem:[%s3 + $0x74] sm:$0xf]
      %v1230 = vld [vmem:[%s3 + $0x78] sm:$0xf]
      %v1231 = vld [vmem:[%s3 + $0x7c] sm:$0xf]
      %v1232 = vld [vmem:[%s3 + $0x80] sm:$0xf]
      %v1233 = vld [vmem:[%s3 + $0x84] sm:$0xf]
      %v1234 = vld [vmem:[%s3 + $0x88] sm:$0xf]
      %v1235 = vld [vmem:[%s3 + $0x8c] sm:$0xf]
      %v1236 = vld [vmem:[%s3 + $0x90] sm:$0xf]
      %v1237 = vld [vmem:[%s3 + $0x94] sm:$0xf]
      %v1238 = vld [vmem:[%s3 + $0x98] sm:$0xf]
      %v1239 = vld [vmem:[%s3 + $0x9c] sm:$0xf]
      %v1240 = vld [vmem:[%s3 + $0xa0] sm:$0xf]
      %v1241 = vld [vmem:[%s3 + $0xa4] sm:$0xf]
      %v1242 = vld [vmem:[%s3 + $0xa8] sm:$0xf]
      %v1243 = vld [vmem:[%s3 + $0xac] sm:$0xf]
      %v1244 = vld [vmem:[%s3 + $0xb0] sm:$0xf]
      %v1245 = vld [vmem:[%s3 + $0xb4] sm:$0xf]
      %v1246 = vld [vmem:[%s3 + $0xb8] sm:$0xf]
      %v1247 = vld [vmem:[%s3 + $0xbc] sm:$0xf]
      %v1250 = vunpack.c.l.b16 %v940
      %v1251 = vunpack.c.l.b16 %v1026
      %v1252 = vunpack.c.h.b16 %v940
      %v1253 = vunpack.c.h.b16 %v1026
      %v1254 = vunpack.c.l.b16 %v888
      %v1255 = vunpack.c.l.b16 %v1070
      %s1256 = scalar_lea.vmem %s3, 192
      %v1257 = vld [vmem:[%s1256] sm:$0xf]
      %v1258 = vld [vmem:[%s1256 + $0x4] sm:$0xf]
      %v1259 = vld [vmem:[%s1256 + $0x8] sm:$0xf]
      %v1260 = vld [vmem:[%s1256 + $0xc] sm:$0xf]
      %v1261 = vld [vmem:[%s1256 + $0x10] sm:$0xf]
      %v1262 = vld [vmem:[%s1256 + $0x14] sm:$0xf]
      %v1263 = vld [vmem:[%s1256 + $0x18] sm:$0xf]
      %v1264 = vld [vmem:[%s1256 + $0x1c] sm:$0xf]
      %v1265 = vld [vmem:[%s1256 + $0x20] sm:$0xf]
      %v1266 = vld [vmem:[%s1256 + $0x24] sm:$0xf]
      %v1267 = vld [vmem:[%s1256 + $0x28] sm:$0xf]
      %v1268 = vld [vmem:[%s1256 + $0x2c] sm:$0xf]
      %v1269 = vld [vmem:[%s1256 + $0x30] sm:$0xf]
      %v1270 = vld [vmem:[%s1256 + $0x34] sm:$0xf]
      %v1271 = vld [vmem:[%s1256 + $0x38] sm:$0xf]
      %v1272 = vld [vmem:[%s1256 + $0x3c] sm:$0xf]
      %v1273 = vld [vmem:[%s1256 + $0x40] sm:$0xf]
      %v1274 = vld [vmem:[%s1256 + $0x44] sm:$0xf]
      %v1275 = vld [vmem:[%s1256 + $0x48] sm:$0xf]
      %v1276 = vld [vmem:[%s1256 + $0x4c] sm:$0xf]
      %v1277 = vld [vmem:[%s1256 + $0x50] sm:$0xf]
      %v1278 = vld [vmem:[%s1256 + $0x54] sm:$0xf]
      %v1279 = vld [vmem:[%s1256 + $0x58] sm:$0xf]
      %v1280 = vld [vmem:[%s1256 + $0x5c] sm:$0xf]
      %v1281 = vld [vmem:[%s1256 + $0x60] sm:$0xf]
      %v1282 = vld [vmem:[%s1256 + $0x64] sm:$0xf]
      %v1283 = vld [vmem:[%s1256 + $0x68] sm:$0xf]
      %v1284 = vld [vmem:[%s1256 + $0x6c] sm:$0xf]
      %v1285 = vld [vmem:[%s1256 + $0x70] sm:$0xf]
      %v1286 = vld [vmem:[%s1256 + $0x74] sm:$0xf]
      %v1287 = vld [vmem:[%s1256 + $0x78] sm:$0xf]
      %v1288 = vld [vmem:[%s1256 + $0x7c] sm:$0xf]
      %v1289 = vld [vmem:[%s1256 + $0x80] sm:$0xf]
      %v1290 = vld [vmem:[%s1256 + $0x84] sm:$0xf]
      %v1291 = vld [vmem:[%s1256 + $0x88] sm:$0xf]
      %v1292 = vld [vmem:[%s1256 + $0x8c] sm:$0xf]
      %v1293 = vld [vmem:[%s1256 + $0x90] sm:$0xf]
      %v1294 = vld [vmem:[%s1256 + $0x94] sm:$0xf]
      %v1295 = vld [vmem:[%s1256 + $0x98] sm:$0xf]
      %v1296 = vld [vmem:[%s1256 + $0x9c] sm:$0xf]
      %v1297 = vld [vmem:[%s1256 + $0xa0] sm:$0xf]
      %v1298 = vld [vmem:[%s1256 + $0xa4] sm:$0xf]
      %v1299 = vld [vmem:[%s1256 + $0xa8] sm:$0xf]
      %v1300 = vld [vmem:[%s1256 + $0xac] sm:$0xf]
      %v1301 = vld [vmem:[%s1256 + $0xb0] sm:$0xf]
      %v1302 = vld [vmem:[%s1256 + $0xb4] sm:$0xf]
      %v1303 = vld [vmem:[%s1256 + $0xb8] sm:$0xf]
      %v1304 = vld [vmem:[%s1256 + $0xbc] sm:$0xf]
      %v1305 = vpack.c.b16 %v1112, %v1110
      %v1306 = vpack.c.b16 %v1113, %v1111
      %v1307 = vpack.c.b16 %v1116, %v1114
      %v1308 = vpack.c.b16 %v549, %v548
      %v1309 = vpack.c.b16 %v1117, %v1115
      %v1310 = vpack.c.b16 %v1120, %v1118
      %v1311 = vpack.c.b16 %v551, %v550
      %v1312 = vpack.c.b16 %v1121, %v1119
      %v1313 = vpack.c.b16 %v1124, %v1122
      %v1314 = vpack.c.b16 %v1125, %v1123
      %v1315 = vpack.c.b16 %v1128, %v1126
      %v1316 = vpack.c.b16 %v555, %v554
      %v1317 = vpack.c.b16 %v1129, %v1127
      %v1318 = vpack.c.b16 %v1132, %v1130
      %v1319 = vpack.c.b16 %v557, %v556
      %v1320 = vpack.c.b16 %v1133, %v1131
      %v1321 = vpack.c.b16 %v1136, %v1134
      %v1322 = vpack.c.b16 %v1137, %v1135
      %v1323 = vpack.c.b16 %v1140, %v1138
      %v1324 = vpack.c.b16 %v561, %v560
      %v1325 = vpack.c.b16 %v1141, %v1139
      %v1326 = vpack.c.b16 %v1144, %v1142
      %v1327 = vpack.c.b16 %v563, %v562
      %v1328 = vpack.c.b16 %v1145, %v1143
      %v1329 = vpack.c.b16 %v1148, %v1146
      %v1330 = vpack.c.b16 %v1149, %v1147
      %v1331 = vpack.c.b16 %v1152, %v1150
      %v1332 = vpack.c.b16 %v567, %v566
      %v1333 = vpack.c.b16 %v1153, %v1151
      %v1334 = vpack.c.b16 %v1156, %v1154
      %v1335 = vpack.c.b16 %v569, %v568
      %v1336 = vpack.c.b16 %v1157, %v1155
      %v1337 = vpack.c.b16 %v1160, %v1158
      %v1338 = vpack.c.b16 %v1161, %v1159
      %v1339 = vpack.c.b16 %v1164, %v1162
      %v1340 = vpack.c.b16 %v573, %v572
      %v1341 = vpack.c.b16 %v1165, %v1163
      %v1342 = vpack.c.b16 %v1168, %v1166
      %v1343 = vpack.c.b16 %v575, %v574
      %v1344 = vpack.c.b16 %v1169, %v1167
      %v1345 = vpack.c.b16 %v1172, %v1170
      %v1346 = vpack.c.b16 %v1173, %v1171
      %v1347 = vpack.c.b16 %v1176, %v1174
      %v1348 = vpack.c.b16 %v579, %v578
      %v1349 = vpack.c.b16 %v1177, %v1175
      %v1350 = vpack.c.b16 %v1180, %v1178
      %v1351 = vpack.c.b16 %v581, %v580
      %v1352 = vpack.c.b16 %v1181, %v1179
      %v1353 = vpack.c.b16 %v1184, %v1182
      %v1354 = vpack.c.b16 %v1185, %v1183
      %v1355 = vpack.c.b16 %v1188, %v1186
      %v1356 = vpack.c.b16 %v585, %v584
      %v1357 = vpack.c.b16 %v1189, %v1187
      %v1358 = vpack.c.b16 %v1192, %v1190
      %v1359 = vpack.c.b16 %v587, %v586
      %v1360 = vpack.c.b16 %v1193, %v1191
      %v1361 = vpack.c.b16 %v1196, %v1194
      %v1362 = vpack.c.b16 %v1197, %v1195
      %v1363 = vpack.c.b16 %v1250, %v1198
      %v1364 = vpack.c.b16 %v591, %v590
      %v1365 = vpack.c.b16 %v1251, %v1199
      %v1366 = vpack.c.b16 %v1254, %v1252
      %v1367 = vpack.c.b16 %v593, %v592
      %v1368 = vpack.c.b16 %v1255, %v1253
      %v1489 = vunpack.c.l.b16 %v1257
      %v1490 = vunpack.c.l.b16 %v1258
      %v1491 = vunpack.c.l.b16 %v1259
      %v1492 = vunpack.c.l.b16 %v1260
      %v1493 = vunpack.c.l.b16 %v1261
      %v1494 = vunpack.c.l.b16 %v1262
      %v1495 = vunpack.c.l.b16 %v1263
      %v1496 = vunpack.c.l.b16 %v1264
      %v1497 = vunpack.c.l.b16 %v1265
      %v1498 = vunpack.c.l.b16 %v1266
      %v1499 = vunpack.c.l.b16 %v1267
      %v1500 = vunpack.c.l.b16 %v1268
      %v1501 = vunpack.c.l.b16 %v1269
      %v1502 = vunpack.c.l.b16 %v1270
      %v1503 = vunpack.c.l.b16 %v1271
      %v1504 = vunpack.c.l.b16 %v1272
      %v1505 = vunpack.c.l.b16 %v1273
      %v1506 = vunpack.c.l.b16 %v1274
      %v1507 = vunpack.c.l.b16 %v1275
      %v1508 = vunpack.c.l.b16 %v1276
      %v1509 = vunpack.c.l.b16 %v1277
      %v1510 = vunpack.c.l.b16 %v1278
      %v1511 = vunpack.c.l.b16 %v1279
      %v1512 = vunpack.c.l.b16 %v1280
      %v1513 = vunpack.c.l.b16 %v1281
      %v1514 = vunpack.c.l.b16 %v1282
      %v1515 = vunpack.c.l.b16 %v1283
      %v1516 = vunpack.c.l.b16 %v1284
      %v1517 = vunpack.c.l.b16 %v1285
      %v1518 = vunpack.c.l.b16 %v1286
      %v1519 = vunpack.c.l.b16 %v1287
      %v1520 = vunpack.c.l.b16 %v1288
      %v1521 = vunpack.c.l.b16 %v1289
      %v1522 = vunpack.c.l.b16 %v1290
      %v1523 = vunpack.c.l.b16 %v1291
      %v1524 = vunpack.c.l.b16 %v1292
      %v1525 = vunpack.c.l.b16 %v1293
      %v1526 = vunpack.c.l.b16 %v1294
      %v1527 = vunpack.c.l.b16 %v1295
      %v1528 = vunpack.c.l.b16 %v1296
      %v1529 = vunpack.c.l.b16 %v1297
      %v1530 = vunpack.c.l.b16 %v1298
      %v1531 = vunpack.c.l.b16 %v1299
      %v1532 = vunpack.c.l.b16 %v1300
      %v1533 = vunpack.c.l.b16 %v1301
      %v1534 = vunpack.c.l.b16 %v1302
      %v1535 = vunpack.c.l.b16 %v1303
      %v1536 = vunpack.c.l.b16 %v1304
      %v1537 = vpack.c.b16 %v1490, %v1489
      %v1538 = vpack.c.b16 %v1492, %v1491
      %v1539 = vpack.c.b16 %v1494, %v1493
      %v1540 = vpack.c.b16 %v1496, %v1495
      %v1541 = vpack.c.b16 %v1498, %v1497
      %v1542 = vpack.c.b16 %v1500, %v1499
      %v1543 = vpack.c.b16 %v1502, %v1501
      %v1544 = vpack.c.b16 %v1504, %v1503
      %v1545 = vpack.c.b16 %v1506, %v1505
      %v1546 = vpack.c.b16 %v1508, %v1507
      %v1547 = vpack.c.b16 %v1510, %v1509
      %v1548 = vpack.c.b16 %v1512, %v1511
      %v1549 = vpack.c.b16 %v1514, %v1513
      %v1550 = vpack.c.b16 %v1516, %v1515
      %v1551 = vpack.c.b16 %v1518, %v1517
      %v1552 = vpack.c.b16 %v1520, %v1519
      %v1553 = vpack.c.b16 %v1522, %v1521
      %v1554 = vpack.c.b16 %v1524, %v1523
      %v1555 = vpack.c.b16 %v1526, %v1525
      %v1556 = vpack.c.b16 %v1528, %v1527
      %v1557 = vpack.c.b16 %v1530, %v1529
      %v1558 = vpack.c.b16 %v1532, %v1531
      %v1559 = vpack.c.b16 %v1534, %v1533
      %v1560 = vpack.c.b16 %v1536, %v1535
      %1585 = vmatprep.subr.bf16.mxu0 0
      %1586 = vmatpush1.bf16.msra.mxu0 %v1544
      %1587 = vmatprep.subr.bf16.mxu0 0
      %1588 = vmatpush1.bf16.msra.mxu0 %v1543
      %1589 = vmatprep.subr.bf16.mxu0 0
      %1590 = vmatpush1.bf16.msra.mxu0 %v1542
      %1591 = vmatprep.subr.bf16.mxu0 0
      %1592 = vmatpush1.bf16.msra.mxu0 %v1541
      %1593 = vmatprep.subr.bf16.mxu0 0
      %1594 = vmatpush1.bf16.msra.mxu0 %v1540
      %1595 = vmatprep.subr.bf16.mxu0 0
      %1596 = vmatpush1.bf16.msra.mxu0 %v1539
      %1597 = vmatprep.subr.bf16.mxu0 0
      %1598 = vmatpush1.bf16.msra.mxu0 %v1538
      %1599 = vmatprep.subr.bf16.mxu0 0
      %1600 = vmatpush1.bf16.msra.mxu0 %v1537
      %1601 = vmatprep.subr.bf16.mxu0 0
      %1602 = vmatpush2.bf16.msra.mxu0 %v1552
      %1603 = vmatprep.subr.bf16.mxu0 0
      %1604 = vmatpush2.bf16.msra.mxu0 %v1551
      %1605 = vmatprep.subr.bf16.mxu0 0
      %1606 = vmatpush2.bf16.msra.mxu0 %v1550
      %1607 = vmatprep.subr.bf16.mxu0 0
      %1608 = vmatpush2.bf16.msra.mxu0 %v1549
      %1609 = vmatprep.subr.bf16.mxu0 0
      %1610 = vmatpush2.bf16.msra.mxu0 %v1548
      %1611 = vmatprep.subr.bf16.mxu0 0
      %1612 = vmatpush2.bf16.msra.mxu0 %v1547
      %1613 = vmatprep.subr.bf16.mxu0 0
      %1614 = vmatpush2.bf16.msra.mxu0 %v1546
      %1615 = vmatprep.subr.bf16.mxu0 0
      %1616 = vmatpush2.bf16.msra.mxu0 %v1545
      %1617 = vmatprep.mubr.bf16.mxu0 %v599
      %1618 = vmatmul.mubr.bf16.gmra.mxu0 %v1305
      %v1619 = vpop.f32.mrf.mxu0
      %v1620 = vadd.f32 0.0, %v1619
      %v1621 = vpop.f32.mrf.mxu0
      %v1622 = vpop.f32.mrf.mxu0
      %v1623 = vadd.f32 0.0, %v1622
      %v1624 = vpop.f32.mrf.mxu0
      %1625 = vmatprep.mubr.bf16.mxu0 %v1308
      %1626 = vmatmul.mubr.bf16.gmra.mxu0 %v1307
      %v1627 = vpop.f32.mrf.mxu0
      %v1628 = vadd.f32 0.0, %v1627
      %v1629 = vpop.f32.mrf.mxu0
      %v1630 = vpop.f32.mrf.mxu0
      %v1631 = vadd.f32 0.0, %v1630
      %v1632 = vpop.f32.mrf.mxu0
      %1633 = vmatprep.mubr.bf16.mxu0 %v1311
      %1634 = vmatmul.mubr.bf16.gmra.mxu0 %v1310
      %v1635 = vpop.f32.mrf.mxu0
      %v1636 = vadd.f32 0.0, %v1635
      %v1637 = vpop.f32.mrf.mxu0
      %v1638 = vpop.f32.mrf.mxu0
      %v1639 = vadd.f32 0.0, %v1638
      %v1640 = vpop.f32.mrf.mxu0
      %1641 = vmatprep.mubr.bf16.mxu0 %v603
      %1642 = vmatmul.mubr.bf16.gmra.mxu0 %v1313
      %v1643 = vpop.f32.mrf.mxu0
      %v1644 = vadd.f32 0.0, %v1643
      %v1645 = vpop.f32.mrf.mxu0
      %v1646 = vpop.f32.mrf.mxu0
      %v1647 = vadd.f32 0.0, %v1646
      %v1648 = vpop.f32.mrf.mxu0
      %1649 = vmatprep.mubr.bf16.mxu0 %v1316
      %1650 = vmatmul.mubr.bf16.gmra.mxu0 %v1315
      %v1651 = vpop.f32.mrf.mxu0
      %v1652 = vadd.f32 0.0, %v1651
      %v1653 = vpop.f32.mrf.mxu0
      %v1654 = vpop.f32.mrf.mxu0
      %v1655 = vadd.f32 0.0, %v1654
      %v1656 = vpop.f32.mrf.mxu0
      %1657 = vmatprep.mubr.bf16.mxu0 %v1319
      %1658 = vmatmul.mubr.bf16.gmra.mxu0 %v1318
      %v1659 = vpop.f32.mrf.mxu0
      %v1660 = vadd.f32 0.0, %v1659
      %v1661 = vpop.f32.mrf.mxu0
      %v1662 = vpop.f32.mrf.mxu0
      %v1663 = vadd.f32 0.0, %v1662
      %v1664 = vpop.f32.mrf.mxu0
      %1665 = vmatprep.mubr.bf16.mxu0 %v607
      %1666 = vmatmul.mubr.bf16.gmra.mxu0 %v1321
      %v1667 = vpop.f32.mrf.mxu0
      %v1668 = vadd.f32 0.0, %v1667
      %v1669 = vpop.f32.mrf.mxu0
      %v1670 = vpop.f32.mrf.mxu0
      %v1671 = vadd.f32 0.0, %v1670
      %v1672 = vpop.f32.mrf.mxu0
      %1673 = vmatprep.mubr.bf16.mxu0 %v1324
      %1674 = vmatmul.mubr.bf16.gmra.mxu0 %v1323
      %v1675 = vpop.f32.mrf.mxu0
      %v1676 = vadd.f32 0.0, %v1675
      %v1677 = vpop.f32.mrf.mxu0
      %v1678 = vpop.f32.mrf.mxu0
      %v1679 = vadd.f32 0.0, %v1678
      %v1680 = vpop.f32.mrf.mxu0
      %1681 = vmatprep.mubr.bf16.mxu0 %v1327
      %1682 = vmatmul.mubr.bf16.gmra.mxu0 %v1326
      %v1683 = vpop.f32.mrf.mxu0
      %v1684 = vadd.f32 0.0, %v1683
      %v1685 = vpop.f32.mrf.mxu0
      %v1686 = vpop.f32.mrf.mxu0
      %v1687 = vadd.f32 0.0, %v1686
      %v1688 = vpop.f32.mrf.mxu0
      %1689 = vmatprep.mubr.bf16.mxu0 %v611
      %1690 = vmatmul.mubr.bf16.gmra.mxu0 %v1329
      %v1691 = vpop.f32.mrf.mxu0
      %v1692 = vadd.f32 0.0, %v1691
      %v1693 = vpop.f32.mrf.mxu0
      %v1694 = vpop.f32.mrf.mxu0
      %v1695 = vadd.f32 0.0, %v1694
      %v1696 = vpop.f32.mrf.mxu0
      %1697 = vmatprep.mubr.bf16.mxu0 %v1332
      %1698 = vmatmul.mubr.bf16.gmra.mxu0 %v1331
      %v1699 = vpop.f32.mrf.mxu0
      %v1700 = vadd.f32 0.0, %v1699
      %v1701 = vpop.f32.mrf.mxu0
      %v1702 = vpop.f32.mrf.mxu0
      %v1703 = vadd.f32 0.0, %v1702
      %v1704 = vpop.f32.mrf.mxu0
      %1705 = vmatprep.mubr.bf16.mxu0 %v1335
      %1706 = vmatmul.mubr.bf16.gmra.mxu0 %v1334
      %v1707 = vpop.f32.mrf.mxu0
      %v1708 = vadd.f32 0.0, %v1707
      %v1709 = vpop.f32.mrf.mxu0
      %v1710 = vpop.f32.mrf.mxu0
      %v1711 = vadd.f32 0.0, %v1710
      %v1712 = vpop.f32.mrf.mxu0
      %1713 = vmatprep.mubr.bf16.mxu0 %v615
      %1714 = vmatmul.mubr.bf16.gmra.mxu0 %v1337
      %v1715 = vpop.f32.mrf.mxu0
      %v1716 = vadd.f32 0.0, %v1715
      %v1717 = vpop.f32.mrf.mxu0
      %v1718 = vpop.f32.mrf.mxu0
      %v1719 = vadd.f32 0.0, %v1718
      %v1720 = vpop.f32.mrf.mxu0
      %1721 = vmatprep.mubr.bf16.mxu0 %v1340
      %1722 = vmatmul.mubr.bf16.gmra.mxu0 %v1339
      %v1723 = vpop.f32.mrf.mxu0
      %v1724 = vadd.f32 0.0, %v1723
      %v1725 = vpop.f32.mrf.mxu0
      %v1726 = vpop.f32.mrf.mxu0
      %v1727 = vadd.f32 0.0, %v1726
      %v1728 = vpop.f32.mrf.mxu0
      %1729 = vmatprep.mubr.bf16.mxu0 %v1343
      %1730 = vmatmul.mubr.bf16.gmra.mxu0 %v1342
      %v1731 = vpop.f32.mrf.mxu0
      %v1732 = vadd.f32 0.0, %v1731
      %v1733 = vpop.f32.mrf.mxu0
      %v1734 = vpop.f32.mrf.mxu0
      %v1735 = vadd.f32 0.0, %v1734
      %v1736 = vpop.f32.mrf.mxu0
      %1737 = vmatprep.mubr.bf16.mxu0 %v619
      %1738 = vmatmul.mubr.bf16.gmra.mxu0 %v1345
      %v1739 = vpop.f32.mrf.mxu0
      %v1740 = vadd.f32 0.0, %v1739
      %v1741 = vpop.f32.mrf.mxu0
      %v1742 = vpop.f32.mrf.mxu0
      %v1743 = vadd.f32 0.0, %v1742
      %v1744 = vpop.f32.mrf.mxu0
      %1745 = vmatprep.mubr.bf16.mxu0 %v1348
      %1746 = vmatmul.mubr.bf16.gmra.mxu0 %v1347
      %v1747 = vpop.f32.mrf.mxu0
      %v1748 = vadd.f32 0.0, %v1747
      %v1749 = vpop.f32.mrf.mxu0
      %v1750 = vpop.f32.mrf.mxu0
      %v1751 = vadd.f32 0.0, %v1750
      %v1752 = vpop.f32.mrf.mxu0
      %1753 = vmatprep.mubr.bf16.mxu0 %v1351
      %1754 = vmatmul.mubr.bf16.gmra.mxu0 %v1350
      %v1755 = vpop.f32.mrf.mxu0
      %v1756 = vadd.f32 0.0, %v1755
      %v1757 = vpop.f32.mrf.mxu0
      %v1758 = vpop.f32.mrf.mxu0
      %v1759 = vadd.f32 0.0, %v1758
      %v1760 = vpop.f32.mrf.mxu0
      %1761 = vmatprep.mubr.bf16.mxu0 %v623
      %1762 = vmatmul.mubr.bf16.gmra.mxu0 %v1353
      %v1763 = vpop.f32.mrf.mxu0
      %v1764 = vadd.f32 0.0, %v1763
      %v1765 = vpop.f32.mrf.mxu0
      %v1766 = vpop.f32.mrf.mxu0
      %v1767 = vadd.f32 0.0, %v1766
      %v1768 = vpop.f32.mrf.mxu0
      %1769 = vmatprep.mubr.bf16.mxu0 %v1356
      %1770 = vmatmul.mubr.bf16.gmra.mxu0 %v1355
      %v1771 = vpop.f32.mrf.mxu0
      %v1772 = vadd.f32 0.0, %v1771
      %v1773 = vpop.f32.mrf.mxu0
      %v1774 = vpop.f32.mrf.mxu0
      %v1775 = vadd.f32 0.0, %v1774
      %v1776 = vpop.f32.mrf.mxu0
      %1777 = vmatprep.mubr.bf16.mxu0 %v1359
      %1778 = vmatmul.mubr.bf16.gmra.mxu0 %v1358
      %v1779 = vpop.f32.mrf.mxu0
      %v1780 = vadd.f32 0.0, %v1779
      %v1781 = vpop.f32.mrf.mxu0
      %v1782 = vpop.f32.mrf.mxu0
      %v1783 = vadd.f32 0.0, %v1782
      %v1784 = vpop.f32.mrf.mxu0
      %1785 = vmatprep.mubr.bf16.mxu0 %v627
      %1786 = vmatmul.mubr.bf16.gmra.mxu0 %v1361
      %v1787 = vpop.f32.mrf.mxu0
      %v1788 = vadd.f32 0.0, %v1787
      %v1789 = vpop.f32.mrf.mxu0
      %v1790 = vpop.f32.mrf.mxu0
      %v1791 = vadd.f32 0.0, %v1790
      %v1792 = vpop.f32.mrf.mxu0
      %1793 = vmatprep.mubr.bf16.mxu0 %v1364
      %1794 = vmatmul.mubr.bf16.gmra.mxu0 %v1363
      %v1795 = vpop.f32.mrf.mxu0
      %v1796 = vadd.f32 0.0, %v1795
      %v1797 = vpop.f32.mrf.mxu0
      %v1798 = vpop.f32.mrf.mxu0
      %v1799 = vadd.f32 0.0, %v1798
      %v1800 = vpop.f32.mrf.mxu0
      %1801 = vmatprep.mubr.bf16.mxu0 %v1367
      %1802 = vmatmul.mubr.bf16.gmra.mxu0 %v1366
      %v1803 = vpop.f32.mrf.mxu0
      %v1804 = vadd.f32 0.0, %v1803
      %v1805 = vpop.f32.mrf.mxu0
      %v1806 = vpop.f32.mrf.mxu0
      %v1807 = vadd.f32 0.0, %v1806
      %v1808 = vpop.f32.mrf.mxu0
      %1809 = vdwg.mxu0
      %1810 = vmatprep.subr.bf16.mxu0 0
      %1811 = vmatpush1.bf16.msra.mxu0 %v1560
      %1812 = vmatprep.subr.bf16.mxu0 0
      %1813 = vmatpush1.bf16.msra.mxu0 %v1559
      %1814 = vmatprep.subr.bf16.mxu0 0
      %1815 = vmatpush1.bf16.msra.mxu0 %v1558
      %1816 = vmatprep.subr.bf16.mxu0 0
      %1817 = vmatpush1.bf16.msra.mxu0 %v1557
      %1818 = vmatprep.subr.bf16.mxu0 0
      %1819 = vmatpush1.bf16.msra.mxu0 %v1556
      %1820 = vmatprep.subr.bf16.mxu0 0
      %1821 = vmatpush1.bf16.msra.mxu0 %v1555
      %1822 = vmatprep.subr.bf16.mxu0 0
      %1823 = vmatpush1.bf16.msra.mxu0 %v1554
      %1824 = vmatprep.subr.bf16.mxu0 0
      %1825 = vmatpush1.bf16.msra.mxu0 %v1553
      %1826 = vmatprep.subr.bf16.mxu0 0
      %1827 = vmatpush2.bf16.msra.mxu0 0
      %1828 = vmatprep.subr.bf16.mxu0 0
      %1829 = vmatpush2.bf16.msra.mxu0 0
      %1830 = vmatprep.subr.bf16.mxu0 0
      %1831 = vmatpush2.bf16.msra.mxu0 0
      %1832 = vmatprep.subr.bf16.mxu0 0
      %1833 = vmatpush2.bf16.msra.mxu0 0
      %1834 = vmatprep.subr.bf16.mxu0 0
      %1835 = vmatpush2.bf16.msra.mxu0 0
      %1836 = vmatprep.subr.bf16.mxu0 0
      %1837 = vmatpush2.bf16.msra.mxu0 0
      %1838 = vmatprep.subr.bf16.mxu0 0
      %1839 = vmatpush2.bf16.msra.mxu0 0
      %1840 = vmatprep.subr.bf16.mxu0 0
      %1841 = vmatpush2.bf16.msra.mxu0 0
      %1842 = vmatprep.mubr.bf16.mxu0 0
      %1843 = vmatmul.mubr.bf16.gmra.mxu0 %v1306
      %v1844 = vpop.f32.mrf.mxu0
      %v1845 = vadd.f32 %v1620, %v1844
      %v1846 = vpop.f32.mrf.mxu0
      %v1847 = vpop.f32.mrf.mxu0
      %v1848 = vadd.f32 %v1623, %v1847
      %v1849 = vpop.f32.mrf.mxu0
      %1850 = vmatprep.mubr.bf16.mxu0 0
      %1851 = vmatmul.mubr.bf16.gmra.mxu0 %v1309
      %v1852 = vpop.f32.mrf.mxu0
      %v1853 = vadd.f32 %v1628, %v1852
      %v1854 = vpop.f32.mrf.mxu0
      %v1855 = vpop.f32.mrf.mxu0
      %v1856 = vadd.f32 %v1631, %v1855
      %v1857 = vpop.f32.mrf.mxu0
      %1858 = vmatprep.mubr.bf16.mxu0 0
      %1859 = vmatmul.mubr.bf16.gmra.mxu0 %v1312
      %v1860 = vpop.f32.mrf.mxu0
      %v1861 = vadd.f32 %v1636, %v1860
      %v1862 = vpop.f32.mrf.mxu0
      %v1863 = vpop.f32.mrf.mxu0
      %v1864 = vadd.f32 %v1639, %v1863
      %v1865 = vpop.f32.mrf.mxu0
      %1866 = vmatprep.mubr.bf16.mxu0 0
      %1867 = vmatmul.mubr.bf16.gmra.mxu0 %v1314
      %v1868 = vpop.f32.mrf.mxu0
      %v1869 = vadd.f32 %v1644, %v1868
      %v1870 = vpop.f32.mrf.mxu0
      %v1871 = vpop.f32.mrf.mxu0
      %v1872 = vadd.f32 %v1647, %v1871
      %v1873 = vpop.f32.mrf.mxu0
      %1874 = vmatprep.mubr.bf16.mxu0 0
      %1875 = vmatmul.mubr.bf16.gmra.mxu0 %v1317
      %v1876 = vpop.f32.mrf.mxu0
      %v1877 = vadd.f32 %v1652, %v1876
      %v1878 = vpop.f32.mrf.mxu0
      %v1879 = vpop.f32.mrf.mxu0
      %v1880 = vadd.f32 %v1655, %v1879
      %v1881 = vpop.f32.mrf.mxu0
      %1882 = vmatprep.mubr.bf16.mxu0 0
      %1883 = vmatmul.mubr.bf16.gmra.mxu0 %v1320
      %v1884 = vpop.f32.mrf.mxu0
      %v1885 = vadd.f32 %v1660, %v1884
      %v1886 = vpop.f32.mrf.mxu0
      %v1887 = vpop.f32.mrf.mxu0
      %v1888 = vadd.f32 %v1663, %v1887
      %v1889 = vpop.f32.mrf.mxu0
      %1890 = vmatprep.mubr.bf16.mxu0 0
      %1891 = vmatmul.mubr.bf16.gmra.mxu0 %v1322
      %v1892 = vpop.f32.mrf.mxu0
      %v1893 = vadd.f32 %v1668, %v1892
      %v1894 = vpop.f32.mrf.mxu0
      %v1895 = vpop.f32.mrf.mxu0
      %v1896 = vadd.f32 %v1671, %v1895
      %v1897 = vpop.f32.mrf.mxu0
      %1898 = vmatprep.mubr.bf16.mxu0 0
      %1899 = vmatmul.mubr.bf16.gmra.mxu0 %v1325
      %v1900 = vpop.f32.mrf.mxu0
      %v1901 = vadd.f32 %v1676, %v1900
      %v1902 = vpop.f32.mrf.mxu0
      %v1903 = vpop.f32.mrf.mxu0
      %v1904 = vadd.f32 %v1679, %v1903
      %v1905 = vpop.f32.mrf.mxu0
      %1906 = vmatprep.mubr.bf16.mxu0 0
      %1907 = vmatmul.mubr.bf16.gmra.mxu0 %v1328
      %v1908 = vpop.f32.mrf.mxu0
      %v1909 = vadd.f32 %v1684, %v1908
      %v1910 = vpop.f32.mrf.mxu0
      %v1911 = vpop.f32.mrf.mxu0
      %v1912 = vadd.f32 %v1687, %v1911
      %v1913 = vpop.f32.mrf.mxu0
      %1914 = vmatprep.mubr.bf16.mxu0 0
      %1915 = vmatmul.mubr.bf16.gmra.mxu0 %v1330
      %v1916 = vpop.f32.mrf.mxu0
      %v1917 = vadd.f32 %v1692, %v1916
      %v1918 = vpop.f32.mrf.mxu0
      %v1919 = vpop.f32.mrf.mxu0
      %v1920 = vadd.f32 %v1695, %v1919
      %v1921 = vpop.f32.mrf.mxu0
      %1922 = vmatprep.mubr.bf16.mxu0 0
      %1923 = vmatmul.mubr.bf16.gmra.mxu0 %v1333
      %v1924 = vpop.f32.mrf.mxu0
      %v1925 = vadd.f32 %v1700, %v1924
      %v1926 = vpop.f32.mrf.mxu0
      %v1927 = vpop.f32.mrf.mxu0
      %v1928 = vadd.f32 %v1703, %v1927
      %v1929 = vpop.f32.mrf.mxu0
      %1930 = vmatprep.mubr.bf16.mxu0 0
      %1931 = vmatmul.mubr.bf16.gmra.mxu0 %v1336
      %v1932 = vpop.f32.mrf.mxu0
      %v1933 = vadd.f32 %v1708, %v1932
      %v1934 = vpop.f32.mrf.mxu0
      %v1935 = vpop.f32.mrf.mxu0
      %v1936 = vadd.f32 %v1711, %v1935
      %v1937 = vpop.f32.mrf.mxu0
      %1938 = vmatprep.mubr.bf16.mxu0 0
      %1939 = vmatmul.mubr.bf16.gmra.mxu0 %v1338
      %v1940 = vpop.f32.mrf.mxu0
      %v1941 = vadd.f32 %v1716, %v1940
      %v1942 = vpop.f32.mrf.mxu0
      %v1943 = vpop.f32.mrf.mxu0
      %v1944 = vadd.f32 %v1719, %v1943
      %v1945 = vpop.f32.mrf.mxu0
      %1946 = vmatprep.mubr.bf16.mxu0 0
      %1947 = vmatmul.mubr.bf16.gmra.mxu0 %v1341
      %v1948 = vpop.f32.mrf.mxu0
      %v1949 = vadd.f32 %v1724, %v1948
      %v1950 = vpop.f32.mrf.mxu0
      %v1951 = vpop.f32.mrf.mxu0
      %v1952 = vadd.f32 %v1727, %v1951
      %v1953 = vpop.f32.mrf.mxu0
      %1954 = vmatprep.mubr.bf16.mxu0 0
      %1955 = vmatmul.mubr.bf16.gmra.mxu0 %v1344
      %v1956 = vpop.f32.mrf.mxu0
      %v1957 = vadd.f32 %v1732, %v1956
      %v1958 = vpop.f32.mrf.mxu0
      %v1959 = vpop.f32.mrf.mxu0
      %v1960 = vadd.f32 %v1735, %v1959
      %v1961 = vpop.f32.mrf.mxu0
      %1962 = vmatprep.mubr.bf16.mxu0 0
      %1963 = vmatmul.mubr.bf16.gmra.mxu0 %v1346
      %v1964 = vpop.f32.mrf.mxu0
      %v1965 = vadd.f32 %v1740, %v1964
      %v1966 = vpop.f32.mrf.mxu0
      %v1967 = vpop.f32.mrf.mxu0
      %v1968 = vadd.f32 %v1743, %v1967
      %v1969 = vpop.f32.mrf.mxu0
      %1970 = vmatprep.mubr.bf16.mxu0 0
      %1971 = vmatmul.mubr.bf16.gmra.mxu0 %v1349
      %v1972 = vpop.f32.mrf.mxu0
      %v1973 = vadd.f32 %v1748, %v1972
      %v1974 = vpop.f32.mrf.mxu0
      %v1975 = vpop.f32.mrf.mxu0
      %v1976 = vadd.f32 %v1751, %v1975
      %v1977 = vpop.f32.mrf.mxu0
      %1978 = vmatprep.mubr.bf16.mxu0 0
      %1979 = vmatmul.mubr.bf16.gmra.mxu0 %v1352
      %v1980 = vpop.f32.mrf.mxu0
      %v1981 = vadd.f32 %v1756, %v1980
      %v1982 = vpop.f32.mrf.mxu0
      %v1983 = vpop.f32.mrf.mxu0
      %v1984 = vadd.f32 %v1759, %v1983
      %v1985 = vpop.f32.mrf.mxu0
      %1986 = vmatprep.mubr.bf16.mxu0 0
      %1987 = vmatmul.mubr.bf16.gmra.mxu0 %v1354
      %v1988 = vpop.f32.mrf.mxu0
      %v1989 = vadd.f32 %v1764, %v1988
      %v1990 = vpop.f32.mrf.mxu0
      %v1991 = vpop.f32.mrf.mxu0
      %v1992 = vadd.f32 %v1767, %v1991
      %v1993 = vpop.f32.mrf.mxu0
      %1994 = vmatprep.mubr.bf16.mxu0 0
      %1995 = vmatmul.mubr.bf16.gmra.mxu0 %v1357
      %v1996 = vpop.f32.mrf.mxu0
      %v1997 = vadd.f32 %v1772, %v1996
      %v1998 = vpop.f32.mrf.mxu0
      %v1999 = vpop.f32.mrf.mxu0
      %v2000 = vadd.f32 %v1775, %v1999
      %v2001 = vpop.f32.mrf.mxu0
      %2002 = vmatprep.mubr.bf16.mxu0 0
      %2003 = vmatmul.mubr.bf16.gmra.mxu0 %v1360
      %v2004 = vpop.f32.mrf.mxu0
      %v2005 = vadd.f32 %v1780, %v2004
      %v2006 = vpop.f32.mrf.mxu0
      %v2007 = vpop.f32.mrf.mxu0
      %v2008 = vadd.f32 %v1783, %v2007
      %v2009 = vpop.f32.mrf.mxu0
      %2010 = vmatprep.mubr.bf16.mxu0 0
      %2011 = vmatmul.mubr.bf16.gmra.mxu0 %v1362
      %v2012 = vpop.f32.mrf.mxu0
      %v2013 = vadd.f32 %v1788, %v2012
      %v2014 = vpop.f32.mrf.mxu0
      %v2015 = vpop.f32.mrf.mxu0
      %v2016 = vadd.f32 %v1791, %v2015
      %v2017 = vpop.f32.mrf.mxu0
      %2018 = vmatprep.mubr.bf16.mxu0 0
      %2019 = vmatmul.mubr.bf16.gmra.mxu0 %v1365
      %v2020 = vpop.f32.mrf.mxu0
      %v2021 = vadd.f32 %v1796, %v2020
      %v2022 = vpop.f32.mrf.mxu0
      %v2023 = vpop.f32.mrf.mxu0
      %v2024 = vadd.f32 %v1799, %v2023
      %v2025 = vpop.f32.mrf.mxu0
      %2026 = vmatprep.mubr.bf16.mxu0 0
      %2027 = vmatmul.mubr.bf16.gmra.mxu0 %v1368
      %v2028 = vpop.f32.mrf.mxu0
      %v2029 = vadd.f32 %v1804, %v2028
      %v2030 = vpop.f32.mrf.mxu0
      %v2031 = vpop.f32.mrf.mxu0
      %v2032 = vadd.f32 %v1807, %v2031
      %v2033 = vpop.f32.mrf.mxu0
      %2034 = vdwg.mxu0
      %v2035 = vpack.c.b16 %v1106, %v1104
      %v2036 = vpack.c.b16 %v1107, %v1105
      %v2037 = vpack.c.b16 %v1110, %v1108
      %v2038 = vpack.c.b16 %v546, %v545
      %v2039 = vpack.c.b16 %v1111, %v1109
      %v2040 = vpack.c.b16 %v1114, %v1112
      %v2041 = vpack.c.b16 %v548, %v547
      %v2042 = vpack.c.b16 %v1115, %v1113
      %v2043 = vpack.c.b16 %v1118, %v1116
      %v2044 = vpack.c.b16 %v1119, %v1117
      %v2045 = vpack.c.b16 %v1122, %v1120
      %v2046 = vpack.c.b16 %v552, %v551
      %v2047 = vpack.c.b16 %v1123, %v1121
      %v2048 = vpack.c.b16 %v1126, %v1124
      %v2049 = vpack.c.b16 %v554, %v553
      %v2050 = vpack.c.b16 %v1127, %v1125
      %v2051 = vpack.c.b16 %v1130, %v1128
      %v2052 = vpack.c.b16 %v1131, %v1129
      %v2053 = vpack.c.b16 %v1134, %v1132
      %v2054 = vpack.c.b16 %v558, %v557
      %v2055 = vpack.c.b16 %v1135, %v1133
      %v2056 = vpack.c.b16 %v1138, %v1136
      %v2057 = vpack.c.b16 %v560, %v559
      %v2058 = vpack.c.b16 %v1139, %v1137
      %v2059 = vpack.c.b16 %v1142, %v1140
      %v2060 = vpack.c.b16 %v1143, %v1141
      %v2061 = vpack.c.b16 %v1146, %v1144
      %v2062 = vpack.c.b16 %v564, %v563
      %v2063 = vpack.c.b16 %v1147, %v1145
      %v2064 = vpack.c.b16 %v1150, %v1148
      %v2065 = vpack.c.b16 %v566, %v565
      %v2066 = vpack.c.b16 %v1151, %v1149
      %v2067 = vpack.c.b16 %v1154, %v1152
      %v2068 = vpack.c.b16 %v1155, %v1153
      %v2069 = vpack.c.b16 %v1158, %v1156
      %v2070 = vpack.c.b16 %v570, %v569
      %v2071 = vpack.c.b16 %v1159, %v1157
      %v2072 = vpack.c.b16 %v1162, %v1160
      %v2073 = vpack.c.b16 %v572, %v571
      %v2074 = vpack.c.b16 %v1163, %v1161
      %v2075 = vpack.c.b16 %v1166, %v1164
      %v2076 = vpack.c.b16 %v1167, %v1165
      %v2077 = vpack.c.b16 %v1170, %v1168
      %v2078 = vpack.c.b16 %v576, %v575
      %v2079 = vpack.c.b16 %v1171, %v1169
      %v2080 = vpack.c.b16 %v1174, %v1172
      %v2081 = vpack.c.b16 %v578, %v577
      %v2082 = vpack.c.b16 %v1175, %v1173
      %v2083 = vpack.c.b16 %v1178, %v1176
      %v2084 = vpack.c.b16 %v1179, %v1177
      %v2085 = vpack.c.b16 %v1182, %v1180
      %v2086 = vpack.c.b16 %v582, %v581
      %v2087 = vpack.c.b16 %v1183, %v1181
      %v2088 = vpack.c.b16 %v1186, %v1184
      %v2089 = vpack.c.b16 %v584, %v583
      %v2090 = vpack.c.b16 %v1187, %v1185
      %v2091 = vpack.c.b16 %v1190, %v1188
      %v2092 = vpack.c.b16 %v1191, %v1189
      %v2093 = vpack.c.b16 %v1194, %v1192
      %v2094 = vpack.c.b16 %v588, %v587
      %v2095 = vpack.c.b16 %v1195, %v1193
      %v2096 = vpack.c.b16 %v1198, %v1196
      %v2097 = vpack.c.b16 %v590, %v589
      %v2098 = vpack.c.b16 %v1199, %v1197
      %v2219 = vunpack.c.l.b16 %v1200
      %v2220 = vunpack.c.l.b16 %v1201
      %v2221 = vunpack.c.l.b16 %v1202
      %v2222 = vunpack.c.l.b16 %v1203
      %v2223 = vunpack.c.l.b16 %v1204
      %v2224 = vunpack.c.l.b16 %v1205
      %v2225 = vunpack.c.l.b16 %v1206
      %v2226 = vunpack.c.l.b16 %v1207
      %v2227 = vunpack.c.l.b16 %v1208
      %v2228 = vunpack.c.l.b16 %v1209
      %v2229 = vunpack.c.l.b16 %v1210
      %v2230 = vunpack.c.l.b16 %v1211
      %v2231 = vunpack.c.l.b16 %v1212
      %v2232 = vunpack.c.l.b16 %v1213
      %v2233 = vunpack.c.l.b16 %v1214
      %v2234 = vunpack.c.l.b16 %v1215
      %v2235 = vunpack.c.l.b16 %v1216
      %v2236 = vunpack.c.l.b16 %v1217
      %v2237 = vunpack.c.l.b16 %v1218
      %v2238 = vunpack.c.l.b16 %v1219
      %v2239 = vunpack.c.l.b16 %v1220
      %v2240 = vunpack.c.l.b16 %v1221
      %v2241 = vunpack.c.l.b16 %v1222
      %v2242 = vunpack.c.l.b16 %v1223
      %v2243 = vunpack.c.l.b16 %v1224
      %v2244 = vunpack.c.l.b16 %v1225
      %v2245 = vunpack.c.l.b16 %v1226
      %v2246 = vunpack.c.l.b16 %v1227
      %v2247 = vunpack.c.l.b16 %v1228
      %v2248 = vunpack.c.l.b16 %v1229
      %v2249 = vunpack.c.l.b16 %v1230
      %v2250 = vunpack.c.l.b16 %v1231
      %v2251 = vunpack.c.l.b16 %v1232
      %v2252 = vunpack.c.l.b16 %v1233
      %v2253 = vunpack.c.l.b16 %v1234
      %v2254 = vunpack.c.l.b16 %v1235
      %v2255 = vunpack.c.l.b16 %v1236
      %v2256 = vunpack.c.l.b16 %v1237
      %v2257 = vunpack.c.l.b16 %v1238
      %v2258 = vunpack.c.l.b16 %v1239
      %v2259 = vunpack.c.l.b16 %v1240
      %v2260 = vunpack.c.l.b16 %v1241
      %v2261 = vunpack.c.l.b16 %v1242
      %v2262 = vunpack.c.l.b16 %v1243
      %v2263 = vunpack.c.l.b16 %v1244
      %v2264 = vunpack.c.l.b16 %v1245
      %v2265 = vunpack.c.l.b16 %v1246
      %v2266 = vunpack.c.l.b16 %v1247
      %v2267 = vpack.c.b16 %v2220, %v2219
      %v2268 = vpack.c.b16 %v2222, %v2221
      %v2269 = vpack.c.b16 %v2224, %v2223
      %v2270 = vpack.c.b16 %v2226, %v2225
      %v2271 = vpack.c.b16 %v2228, %v2227
      %v2272 = vpack.c.b16 %v2230, %v2229
      %v2273 = vpack.c.b16 %v2232, %v2231
      %v2274 = vpack.c.b16 %v2234, %v2233
      %v2275 = vpack.c.b16 %v2236, %v2235
      %v2276 = vpack.c.b16 %v2238, %v2237
      %v2277 = vpack.c.b16 %v2240, %v2239
      %v2278 = vpack.c.b16 %v2242, %v2241
      %v2279 = vpack.c.b16 %v2244, %v2243
      %v2280 = vpack.c.b16 %v2246, %v2245
      %v2281 = vpack.c.b16 %v2248, %v2247
      %v2282 = vpack.c.b16 %v2250, %v2249
      %v2283 = vpack.c.b16 %v2252, %v2251
      %v2284 = vpack.c.b16 %v2254, %v2253
      %v2285 = vpack.c.b16 %v2256, %v2255
      %v2286 = vpack.c.b16 %v2258, %v2257
      %v2287 = vpack.c.b16 %v2260, %v2259
      %v2288 = vpack.c.b16 %v2262, %v2261
      %v2289 = vpack.c.b16 %v2264, %v2263
      %v2290 = vpack.c.b16 %v2266, %v2265
      %2315 = vmatprep.subr.bf16.mxu0 0
      %2316 = vmatpush1.bf16.msra.mxu0 %v2274
      %2317 = vmatprep.subr.bf16.mxu0 0
      %2318 = vmatpush1.bf16.msra.mxu0 %v2273
      %2319 = vmatprep.subr.bf16.mxu0 0
      %2320 = vmatpush1.bf16.msra.mxu0 %v2272
      %2321 = vmatprep.subr.bf16.mxu0 0
      %2322 = vmatpush1.bf16.msra.mxu0 %v2271
      %2323 = vmatprep.subr.bf16.mxu0 0
      %2324 = vmatpush1.bf16.msra.mxu0 %v2270
      %2325 = vmatprep.subr.bf16.mxu0 0
      %2326 = vmatpush1.bf16.msra.mxu0 %v2269
      %2327 = vmatprep.subr.bf16.mxu0 0
      %2328 = vmatpush1.bf16.msra.mxu0 %v2268
      %2329 = vmatprep.subr.bf16.mxu0 0
      %2330 = vmatpush1.bf16.msra.mxu0 %v2267
      %2331 = vmatprep.subr.bf16.mxu0 0
      %2332 = vmatpush2.bf16.msra.mxu0 %v2282
      %2333 = vmatprep.subr.bf16.mxu0 0
      %2334 = vmatpush2.bf16.msra.mxu0 %v2281
      %2335 = vmatprep.subr.bf16.mxu0 0
      %2336 = vmatpush2.bf16.msra.mxu0 %v2280
      %2337 = vmatprep.subr.bf16.mxu0 0
      %2338 = vmatpush2.bf16.msra.mxu0 %v2279
      %2339 = vmatprep.subr.bf16.mxu0 0
      %2340 = vmatpush2.bf16.msra.mxu0 %v2278
      %2341 = vmatprep.subr.bf16.mxu0 0
      %2342 = vmatpush2.bf16.msra.mxu0 %v2277
      %2343 = vmatprep.subr.bf16.mxu0 0
      %2344 = vmatpush2.bf16.msra.mxu0 %v2276
      %2345 = vmatprep.subr.bf16.mxu0 0
      %2346 = vmatpush2.bf16.msra.mxu0 %v2275
      %2347 = vmatprep.mubr.bf16.mxu0 %v597
      %2348 = vmatmul.mubr.bf16.gmra.mxu0 %v2035
      %v2349 = vpop.f32.mrf.mxu0
      %v2350 = vadd.f32 %v1845, %v2349
      %v2351 = vpop.f32.mrf.mxu0
      %v2352 = vpop.f32.mrf.mxu0
      %v2353 = vadd.f32 %v1848, %v2352
      %v2354 = vpop.f32.mrf.mxu0
      %2355 = vmatprep.mubr.bf16.mxu0 %v2038
      %2356 = vmatmul.mubr.bf16.gmra.mxu0 %v2037
      %v2357 = vpop.f32.mrf.mxu0
      %v2358 = vadd.f32 %v1853, %v2357
      %v2359 = vpop.f32.mrf.mxu0
      %v2360 = vpop.f32.mrf.mxu0
      %v2361 = vadd.f32 %v1856, %v2360
      %v2362 = vpop.f32.mrf.mxu0
      %2363 = vmatprep.mubr.bf16.mxu0 %v2041
      %2364 = vmatmul.mubr.bf16.gmra.mxu0 %v2040
      %v2365 = vpop.f32.mrf.mxu0
      %v2366 = vadd.f32 %v1861, %v2365
      %v2367 = vpop.f32.mrf.mxu0
      %v2368 = vpop.f32.mrf.mxu0
      %v2369 = vadd.f32 %v1864, %v2368
      %v2370 = vpop.f32.mrf.mxu0
      %2371 = vmatprep.mubr.bf16.mxu0 %v601
      %2372 = vmatmul.mubr.bf16.gmra.mxu0 %v2043
      %v2373 = vpop.f32.mrf.mxu0
      %v2374 = vadd.f32 %v1869, %v2373
      %v2375 = vpop.f32.mrf.mxu0
      %v2376 = vpop.f32.mrf.mxu0
      %v2377 = vadd.f32 %v1872, %v2376
      %v2378 = vpop.f32.mrf.mxu0
      %2379 = vmatprep.mubr.bf16.mxu0 %v2046
      %2380 = vmatmul.mubr.bf16.gmra.mxu0 %v2045
      %v2381 = vpop.f32.mrf.mxu0
      %v2382 = vadd.f32 %v1877, %v2381
      %v2383 = vpop.f32.mrf.mxu0
      %v2384 = vpop.f32.mrf.mxu0
      %v2385 = vadd.f32 %v1880, %v2384
      %v2386 = vpop.f32.mrf.mxu0
      %2387 = vmatprep.mubr.bf16.mxu0 %v2049
      %2388 = vmatmul.mubr.bf16.gmra.mxu0 %v2048
      %v2389 = vpop.f32.mrf.mxu0
      %v2390 = vadd.f32 %v1885, %v2389
      %v2391 = vpop.f32.mrf.mxu0
      %v2392 = vpop.f32.mrf.mxu0
      %v2393 = vadd.f32 %v1888, %v2392
      %v2394 = vpop.f32.mrf.mxu0
      %2395 = vmatprep.mubr.bf16.mxu0 %v605
      %2396 = vmatmul.mubr.bf16.gmra.mxu0 %v2051
      %v2397 = vpop.f32.mrf.mxu0
      %v2398 = vadd.f32 %v1893, %v2397
      %v2399 = vpop.f32.mrf.mxu0
      %v2400 = vpop.f32.mrf.mxu0
      %v2401 = vadd.f32 %v1896, %v2400
      %v2402 = vpop.f32.mrf.mxu0
      %2403 = vmatprep.mubr.bf16.mxu0 %v2054
      %2404 = vmatmul.mubr.bf16.gmra.mxu0 %v2053
      %v2405 = vpop.f32.mrf.mxu0
      %v2406 = vadd.f32 %v1901, %v2405
      %v2407 = vpop.f32.mrf.mxu0
      %v2408 = vpop.f32.mrf.mxu0
      %v2409 = vadd.f32 %v1904, %v2408
      %v2410 = vpop.f32.mrf.mxu0
      %2411 = vmatprep.mubr.bf16.mxu0 %v2057
      %2412 = vmatmul.mubr.bf16.gmra.mxu0 %v2056
      %v2413 = vpop.f32.mrf.mxu0
      %v2414 = vadd.f32 %v1909, %v2413
      %v2415 = vpop.f32.mrf.mxu0
      %v2416 = vpop.f32.mrf.mxu0
      %v2417 = vadd.f32 %v1912, %v2416
      %v2418 = vpop.f32.mrf.mxu0
      %2419 = vmatprep.mubr.bf16.mxu0 %v609
      %2420 = vmatmul.mubr.bf16.gmra.mxu0 %v2059
      %v2421 = vpop.f32.mrf.mxu0
      %v2422 = vadd.f32 %v1917, %v2421
      %v2423 = vpop.f32.mrf.mxu0
      %v2424 = vpop.f32.mrf.mxu0
      %v2425 = vadd.f32 %v1920, %v2424
      %v2426 = vpop.f32.mrf.mxu0
      %2427 = vmatprep.mubr.bf16.mxu0 %v2062
      %2428 = vmatmul.mubr.bf16.gmra.mxu0 %v2061
      %v2429 = vpop.f32.mrf.mxu0
      %v2430 = vadd.f32 %v1925, %v2429
      %v2431 = vpop.f32.mrf.mxu0
      %v2432 = vpop.f32.mrf.mxu0
      %v2433 = vadd.f32 %v1928, %v2432
      %v2434 = vpop.f32.mrf.mxu0
      %2435 = vmatprep.mubr.bf16.mxu0 %v2065
      %2436 = vmatmul.mubr.bf16.gmra.mxu0 %v2064
      %v2437 = vpop.f32.mrf.mxu0
      %v2438 = vadd.f32 %v1933, %v2437
      %v2439 = vpop.f32.mrf.mxu0
      %v2440 = vpop.f32.mrf.mxu0
      %v2441 = vadd.f32 %v1936, %v2440
      %v2442 = vpop.f32.mrf.mxu0
      %2443 = vmatprep.mubr.bf16.mxu0 %v613
      %2444 = vmatmul.mubr.bf16.gmra.mxu0 %v2067
      %v2445 = vpop.f32.mrf.mxu0
      %v2446 = vadd.f32 %v1941, %v2445
      %v2447 = vpop.f32.mrf.mxu0
      %v2448 = vpop.f32.mrf.mxu0
      %v2449 = vadd.f32 %v1944, %v2448
      %v2450 = vpop.f32.mrf.mxu0
      %2451 = vmatprep.mubr.bf16.mxu0 %v2070
      %2452 = vmatmul.mubr.bf16.gmra.mxu0 %v2069
      %v2453 = vpop.f32.mrf.mxu0
      %v2454 = vadd.f32 %v1949, %v2453
      %v2455 = vpop.f32.mrf.mxu0
      %v2456 = vpop.f32.mrf.mxu0
      %v2457 = vadd.f32 %v1952, %v2456
      %v2458 = vpop.f32.mrf.mxu0
      %2459 = vmatprep.mubr.bf16.mxu0 %v2073
      %2460 = vmatmul.mubr.bf16.gmra.mxu0 %v2072
      %v2461 = vpop.f32.mrf.mxu0
      %v2462 = vadd.f32 %v1957, %v2461
      %v2463 = vpop.f32.mrf.mxu0
      %v2464 = vpop.f32.mrf.mxu0
      %v2465 = vadd.f32 %v1960, %v2464
      %v2466 = vpop.f32.mrf.mxu0
      %2467 = vmatprep.mubr.bf16.mxu0 %v617
      %2468 = vmatmul.mubr.bf16.gmra.mxu0 %v2075
      %v2469 = vpop.f32.mrf.mxu0
      %v2470 = vadd.f32 %v1965, %v2469
      %v2471 = vpop.f32.mrf.mxu0
      %v2472 = vpop.f32.mrf.mxu0
      %v2473 = vadd.f32 %v1968, %v2472
      %v2474 = vpop.f32.mrf.mxu0
      %2475 = vmatprep.mubr.bf16.mxu0 %v2078
      %2476 = vmatmul.mubr.bf16.gmra.mxu0 %v2077
      %v2477 = vpop.f32.mrf.mxu0
      %v2478 = vadd.f32 %v1973, %v2477
      %v2479 = vpop.f32.mrf.mxu0
      %v2480 = vpop.f32.mrf.mxu0
      %v2481 = vadd.f32 %v1976, %v2480
      %v2482 = vpop.f32.mrf.mxu0
      %2483 = vmatprep.mubr.bf16.mxu0 %v2081
      %2484 = vmatmul.mubr.bf16.gmra.mxu0 %v2080
      %v2485 = vpop.f32.mrf.mxu0
      %v2486 = vadd.f32 %v1981, %v2485
      %v2487 = vpop.f32.mrf.mxu0
      %v2488 = vpop.f32.mrf.mxu0
      %v2489 = vadd.f32 %v1984, %v2488
      %v2490 = vpop.f32.mrf.mxu0
      %2491 = vmatprep.mubr.bf16.mxu0 %v621
      %2492 = vmatmul.mubr.bf16.gmra.mxu0 %v2083
      %v2493 = vpop.f32.mrf.mxu0
      %v2494 = vadd.f32 %v1989, %v2493
      %v2495 = vpop.f32.mrf.mxu0
      %v2496 = vpop.f32.mrf.mxu0
      %v2497 = vadd.f32 %v1992, %v2496
      %v2498 = vpop.f32.mrf.mxu0
      %2499 = vmatprep.mubr.bf16.mxu0 %v2086
      %2500 = vmatmul.mubr.bf16.gmra.mxu0 %v2085
      %v2501 = vpop.f32.mrf.mxu0
      %v2502 = vadd.f32 %v1997, %v2501
      %v2503 = vpop.f32.mrf.mxu0
      %v2504 = vpop.f32.mrf.mxu0
      %v2505 = vadd.f32 %v2000, %v2504
      %v2506 = vpop.f32.mrf.mxu0
      %2507 = vmatprep.mubr.bf16.mxu0 %v2089
      %2508 = vmatmul.mubr.bf16.gmra.mxu0 %v2088
      %v2509 = vpop.f32.mrf.mxu0
      %v2510 = vadd.f32 %v2005, %v2509
      %v2511 = vpop.f32.mrf.mxu0
      %v2512 = vpop.f32.mrf.mxu0
      %v2513 = vadd.f32 %v2008, %v2512
      %v2514 = vpop.f32.mrf.mxu0
      %2515 = vmatprep.mubr.bf16.mxu0 %v625
      %2516 = vmatmul.mubr.bf16.gmra.mxu0 %v2091
      %v2517 = vpop.f32.mrf.mxu0
      %v2518 = vadd.f32 %v2013, %v2517
      %v2519 = vpop.f32.mrf.mxu0
      %v2520 = vpop.f32.mrf.mxu0
      %v2521 = vadd.f32 %v2016, %v2520
      %v2522 = vpop.f32.mrf.mxu0
      %2523 = vmatprep.mubr.bf16.mxu0 %v2094
      %2524 = vmatmul.mubr.bf16.gmra.mxu0 %v2093
      %v2525 = vpop.f32.mrf.mxu0
      %v2526 = vadd.f32 %v2021, %v2525
      %v2527 = vpop.f32.mrf.mxu0
      %v2528 = vpop.f32.mrf.mxu0
      %v2529 = vadd.f32 %v2024, %v2528
      %v2530 = vpop.f32.mrf.mxu0
      %2531 = vmatprep.mubr.bf16.mxu0 %v2097
      %2532 = vmatmul.mubr.bf16.gmra.mxu0 %v2096
      %v2533 = vpop.f32.mrf.mxu0
      %v2534 = vadd.f32 %v2029, %v2533
      %v2535 = vpop.f32.mrf.mxu0
      %v2536 = vpop.f32.mrf.mxu0
      %v2537 = vadd.f32 %v2032, %v2536
      %v2538 = vpop.f32.mrf.mxu0
      %2539 = vdwg.mxu0
      %2540 = vmatprep.subr.bf16.mxu0 0
      %2541 = vmatpush1.bf16.msra.mxu0 %v2290
      %2542 = vmatprep.subr.bf16.mxu0 0
      %2543 = vmatpush1.bf16.msra.mxu0 %v2289
      %2544 = vmatprep.subr.bf16.mxu0 0
      %2545 = vmatpush1.bf16.msra.mxu0 %v2288
      %2546 = vmatprep.subr.bf16.mxu0 0
      %2547 = vmatpush1.bf16.msra.mxu0 %v2287
      %2548 = vmatprep.subr.bf16.mxu0 0
      %2549 = vmatpush1.bf16.msra.mxu0 %v2286
      %2550 = vmatprep.subr.bf16.mxu0 0
      %2551 = vmatpush1.bf16.msra.mxu0 %v2285
      %2552 = vmatprep.subr.bf16.mxu0 0
      %2553 = vmatpush1.bf16.msra.mxu0 %v2284
      %2554 = vmatprep.subr.bf16.mxu0 0
      %2555 = vmatpush1.bf16.msra.mxu0 %v2283
      %2556 = vmatprep.subr.bf16.mxu0 0
      %2557 = vmatpush2.bf16.msra.mxu0 0
      %2558 = vmatprep.subr.bf16.mxu0 0
      %2559 = vmatpush2.bf16.msra.mxu0 0
      %2560 = vmatprep.subr.bf16.mxu0 0
      %2561 = vmatpush2.bf16.msra.mxu0 0
      %2562 = vmatprep.subr.bf16.mxu0 0
      %2563 = vmatpush2.bf16.msra.mxu0 0
      %2564 = vmatprep.subr.bf16.mxu0 0
      %2565 = vmatpush2.bf16.msra.mxu0 0
      %2566 = vmatprep.subr.bf16.mxu0 0
      %2567 = vmatpush2.bf16.msra.mxu0 0
      %2568 = vmatprep.subr.bf16.mxu0 0
      %2569 = vmatpush2.bf16.msra.mxu0 0
      %2570 = vmatprep.subr.bf16.mxu0 0
      %2571 = vmatpush2.bf16.msra.mxu0 0
      %2572 = vmatprep.mubr.bf16.mxu0 0
      %2573 = vmatmul.mubr.bf16.gmra.mxu0 %v2036
      %v2574 = vpop.f32.mrf.mxu0
      %v2575 = vadd.f32 %v2350, %v2574
      %v2576 = vpop.f32.mrf.mxu0
      %v2577 = vpop.f32.mrf.mxu0
      %v2578 = vadd.f32 %v2353, %v2577
      %v2579 = vpop.f32.mrf.mxu0
      %2580 = vmatprep.mubr.bf16.mxu0 0
      %2581 = vmatmul.mubr.bf16.gmra.mxu0 %v2039
      %v2582 = vpop.f32.mrf.mxu0
      %v2583 = vadd.f32 %v2358, %v2582
      %v2584 = vpop.f32.mrf.mxu0
      %v2585 = vpop.f32.mrf.mxu0
      %v2586 = vadd.f32 %v2361, %v2585
      %v2587 = vpop.f32.mrf.mxu0
      %2588 = vmatprep.mubr.bf16.mxu0 0
      %2589 = vmatmul.mubr.bf16.gmra.mxu0 %v2042
      %v2590 = vpop.f32.mrf.mxu0
      %v2591 = vadd.f32 %v2366, %v2590
      %v2592 = vpop.f32.mrf.mxu0
      %v2593 = vpop.f32.mrf.mxu0
      %v2594 = vadd.f32 %v2369, %v2593
      %v2595 = vpop.f32.mrf.mxu0
      %2596 = vmatprep.mubr.bf16.mxu0 0
      %2597 = vmatmul.mubr.bf16.gmra.mxu0 %v2044
      %v2598 = vpop.f32.mrf.mxu0
      %v2599 = vadd.f32 %v2374, %v2598
      %v2600 = vpop.f32.mrf.mxu0
      %v2601 = vpop.f32.mrf.mxu0
      %v2602 = vadd.f32 %v2377, %v2601
      %v2603 = vpop.f32.mrf.mxu0
      %2604 = vmatprep.mubr.bf16.mxu0 0
      %2605 = vmatmul.mubr.bf16.gmra.mxu0 %v2047
      %v2606 = vpop.f32.mrf.mxu0
      %v2607 = vadd.f32 %v2382, %v2606
      %v2608 = vpop.f32.mrf.mxu0
      %v2609 = vpop.f32.mrf.mxu0
      %v2610 = vadd.f32 %v2385, %v2609
      %v2611 = vpop.f32.mrf.mxu0
      %2612 = vmatprep.mubr.bf16.mxu0 0
      %2613 = vmatmul.mubr.bf16.gmra.mxu0 %v2050
      %v2614 = vpop.f32.mrf.mxu0
      %v2615 = vadd.f32 %v2390, %v2614
      %v2616 = vpop.f32.mrf.mxu0
      %v2617 = vpop.f32.mrf.mxu0
      %v2618 = vadd.f32 %v2393, %v2617
      %v2619 = vpop.f32.mrf.mxu0
      %2620 = vmatprep.mubr.bf16.mxu0 0
      %2621 = vmatmul.mubr.bf16.gmra.mxu0 %v2052
      %v2622 = vpop.f32.mrf.mxu0
      %v2623 = vadd.f32 %v2398, %v2622
      %v2624 = vpop.f32.mrf.mxu0
      %v2625 = vpop.f32.mrf.mxu0
      %v2626 = vadd.f32 %v2401, %v2625
      %v2627 = vpop.f32.mrf.mxu0
      %2628 = vmatprep.mubr.bf16.mxu0 0
      %2629 = vmatmul.mubr.bf16.gmra.mxu0 %v2055
      %v2630 = vpop.f32.mrf.mxu0
      %v2631 = vadd.f32 %v2406, %v2630
      %v2632 = vpop.f32.mrf.mxu0
      %v2633 = vpop.f32.mrf.mxu0
      %v2634 = vadd.f32 %v2409, %v2633
      %v2635 = vpop.f32.mrf.mxu0
      %2636 = vmatprep.mubr.bf16.mxu0 0
      %2637 = vmatmul.mubr.bf16.gmra.mxu0 %v2058
      %v2638 = vpop.f32.mrf.mxu0
      %v2639 = vadd.f32 %v2414, %v2638
      %v2640 = vpop.f32.mrf.mxu0
      %v2641 = vpop.f32.mrf.mxu0
      %v2642 = vadd.f32 %v2417, %v2641
      %v2643 = vpop.f32.mrf.mxu0
      %2644 = vmatprep.mubr.bf16.mxu0 0
      %2645 = vmatmul.mubr.bf16.gmra.mxu0 %v2060
      %v2646 = vpop.f32.mrf.mxu0
      %v2647 = vadd.f32 %v2422, %v2646
      %v2648 = vpop.f32.mrf.mxu0
      %v2649 = vpop.f32.mrf.mxu0
      %v2650 = vadd.f32 %v2425, %v2649
      %v2651 = vpop.f32.mrf.mxu0
      %2652 = vmatprep.mubr.bf16.mxu0 0
      %2653 = vmatmul.mubr.bf16.gmra.mxu0 %v2063
      %v2654 = vpop.f32.mrf.mxu0
      %v2655 = vadd.f32 %v2430, %v2654
      %v2656 = vpop.f32.mrf.mxu0
      %v2657 = vpop.f32.mrf.mxu0
      %v2658 = vadd.f32 %v2433, %v2657
      %v2659 = vpop.f32.mrf.mxu0
      %2660 = vmatprep.mubr.bf16.mxu0 0
      %2661 = vmatmul.mubr.bf16.gmra.mxu0 %v2066
      %v2662 = vpop.f32.mrf.mxu0
      %v2663 = vadd.f32 %v2438, %v2662
      %v2664 = vpop.f32.mrf.mxu0
      %v2665 = vpop.f32.mrf.mxu0
      %v2666 = vadd.f32 %v2441, %v2665
      %v2667 = vpop.f32.mrf.mxu0
      %2668 = vmatprep.mubr.bf16.mxu0 0
      %2669 = vmatmul.mubr.bf16.gmra.mxu0 %v2068
      %v2670 = vpop.f32.mrf.mxu0
      %v2671 = vadd.f32 %v2446, %v2670
      %v2672 = vpop.f32.mrf.mxu0
      %v2673 = vpop.f32.mrf.mxu0
      %v2674 = vadd.f32 %v2449, %v2673
      %v2675 = vpop.f32.mrf.mxu0
      %2676 = vmatprep.mubr.bf16.mxu0 0
      %2677 = vmatmul.mubr.bf16.gmra.mxu0 %v2071
      %v2678 = vpop.f32.mrf.mxu0
      %v2679 = vadd.f32 %v2454, %v2678
      %v2680 = vpop.f32.mrf.mxu0
      %v2681 = vpop.f32.mrf.mxu0
      %v2682 = vadd.f32 %v2457, %v2681
      %v2683 = vpop.f32.mrf.mxu0
      %2684 = vmatprep.mubr.bf16.mxu0 0
      %2685 = vmatmul.mubr.bf16.gmra.mxu0 %v2074
      %v2686 = vpop.f32.mrf.mxu0
      %v2687 = vadd.f32 %v2462, %v2686
      %v2688 = vpop.f32.mrf.mxu0
      %v2689 = vpop.f32.mrf.mxu0
      %v2690 = vadd.f32 %v2465, %v2689
      %v2691 = vpop.f32.mrf.mxu0
      %2692 = vmatprep.mubr.bf16.mxu0 0
      %2693 = vmatmul.mubr.bf16.gmra.mxu0 %v2076
      %v2694 = vpop.f32.mrf.mxu0
      %v2695 = vadd.f32 %v2470, %v2694
      %v2696 = vpop.f32.mrf.mxu0
      %v2697 = vpop.f32.mrf.mxu0
      %v2698 = vadd.f32 %v2473, %v2697
      %v2699 = vpop.f32.mrf.mxu0
      %2700 = vmatprep.mubr.bf16.mxu0 0
      %2701 = vmatmul.mubr.bf16.gmra.mxu0 %v2079
      %v2702 = vpop.f32.mrf.mxu0
      %v2703 = vadd.f32 %v2478, %v2702
      %v2704 = vpop.f32.mrf.mxu0
      %v2705 = vpop.f32.mrf.mxu0
      %v2706 = vadd.f32 %v2481, %v2705
      %v2707 = vpop.f32.mrf.mxu0
      %2708 = vmatprep.mubr.bf16.mxu0 0
      %2709 = vmatmul.mubr.bf16.gmra.mxu0 %v2082
      %v2710 = vpop.f32.mrf.mxu0
      %v2711 = vadd.f32 %v2486, %v2710
      %v2712 = vpop.f32.mrf.mxu0
      %v2713 = vpop.f32.mrf.mxu0
      %v2714 = vadd.f32 %v2489, %v2713
      %v2715 = vpop.f32.mrf.mxu0
      %2716 = vmatprep.mubr.bf16.mxu0 0
      %2717 = vmatmul.mubr.bf16.gmra.mxu0 %v2084
      %v2718 = vpop.f32.mrf.mxu0
      %v2719 = vadd.f32 %v2494, %v2718
      %v2720 = vpop.f32.mrf.mxu0
      %v2721 = vpop.f32.mrf.mxu0
      %v2722 = vadd.f32 %v2497, %v2721
      %v2723 = vpop.f32.mrf.mxu0
      %2724 = vmatprep.mubr.bf16.mxu0 0
      %2725 = vmatmul.mubr.bf16.gmra.mxu0 %v2087
      %v2726 = vpop.f32.mrf.mxu0
      %v2727 = vadd.f32 %v2502, %v2726
      %v2728 = vpop.f32.mrf.mxu0
      %v2729 = vpop.f32.mrf.mxu0
      %v2730 = vadd.f32 %v2505, %v2729
      %v2731 = vpop.f32.mrf.mxu0
      %2732 = vmatprep.mubr.bf16.mxu0 0
      %2733 = vmatmul.mubr.bf16.gmra.mxu0 %v2090
      %v2734 = vpop.f32.mrf.mxu0
      %v2735 = vadd.f32 %v2510, %v2734
      %v2736 = vpop.f32.mrf.mxu0
      %v2737 = vpop.f32.mrf.mxu0
      %v2738 = vadd.f32 %v2513, %v2737
      %v2739 = vpop.f32.mrf.mxu0
      %2740 = vmatprep.mubr.bf16.mxu0 0
      %2741 = vmatmul.mubr.bf16.gmra.mxu0 %v2092
      %v2742 = vpop.f32.mrf.mxu0
      %v2743 = vadd.f32 %v2518, %v2742
      %v2744 = vpop.f32.mrf.mxu0
      %v2745 = vpop.f32.mrf.mxu0
      %v2746 = vadd.f32 %v2521, %v2745
      %v2747 = vpop.f32.mrf.mxu0
      %2748 = vmatprep.mubr.bf16.mxu0 0
      %2749 = vmatmul.mubr.bf16.gmra.mxu0 %v2095
      %v2750 = vpop.f32.mrf.mxu0
      %v2751 = vadd.f32 %v2526, %v2750
      %v2752 = vpop.f32.mrf.mxu0
      %v2753 = vpop.f32.mrf.mxu0
      %v2754 = vadd.f32 %v2529, %v2753
      %v2755 = vpop.f32.mrf.mxu0
      %2756 = vmatprep.mubr.bf16.mxu0 0
      %2757 = vmatmul.mubr.bf16.gmra.mxu0 %v2098
      %v2758 = vpop.f32.mrf.mxu0
      %v2759 = vadd.f32 %v2534, %v2758
      %v2760 = vpop.f32.mrf.mxu0
      %v2761 = vpop.f32.mrf.mxu0
      %v2762 = vadd.f32 %v2537, %v2761
      %v2763 = vpop.f32.mrf.mxu0
      %2764 = vdwg.mxu0
      %v2767 = vunpack.c.l.b16 %v941
      %v2768 = vunpack.c.l.b16 %v1031
      %v2769 = vunpack.c.h.b16 %v941
      %v2770 = vunpack.c.h.b16 %v1031
      %v2771 = vunpack.c.l.b16 %v903
      %v2772 = vunpack.c.l.b16 %v1071
      %s2773 = scalar_lea.vmem %s3, 384
      %v2774 = vld [vmem:[%s2773] sm:$0xf]
      %v2775 = vld [vmem:[%s2773 + $0x4] sm:$0xf]
      %v2776 = vld [vmem:[%s2773 + $0x8] sm:$0xf]
      %v2777 = vld [vmem:[%s2773 + $0xc] sm:$0xf]
      %v2778 = vld [vmem:[%s2773 + $0x10] sm:$0xf]
      %v2779 = vld [vmem:[%s2773 + $0x14] sm:$0xf]
      %v2780 = vld [vmem:[%s2773 + $0x18] sm:$0xf]
      %v2781 = vld [vmem:[%s2773 + $0x1c] sm:$0xf]
      %v2782 = vld [vmem:[%s2773 + $0x20] sm:$0xf]
      %v2783 = vld [vmem:[%s2773 + $0x24] sm:$0xf]
      %v2784 = vld [vmem:[%s2773 + $0x28] sm:$0xf]
      %v2785 = vld [vmem:[%s2773 + $0x2c] sm:$0xf]
      %v2786 = vld [vmem:[%s2773 + $0x30] sm:$0xf]
      %v2787 = vld [vmem:[%s2773 + $0x34] sm:$0xf]
      %v2788 = vld [vmem:[%s2773 + $0x38] sm:$0xf]
      %v2789 = vld [vmem:[%s2773 + $0x3c] sm:$0xf]
      %v2790 = vld [vmem:[%s2773 + $0x40] sm:$0xf]
      %v2791 = vld [vmem:[%s2773 + $0x44] sm:$0xf]
      %v2792 = vld [vmem:[%s2773 + $0x48] sm:$0xf]
      %v2793 = vld [vmem:[%s2773 + $0x4c] sm:$0xf]
      %v2794 = vld [vmem:[%s2773 + $0x50] sm:$0xf]
      %v2795 = vld [vmem:[%s2773 + $0x54] sm:$0xf]
      %v2796 = vld [vmem:[%s2773 + $0x58] sm:$0xf]
      %v2797 = vld [vmem:[%s2773 + $0x5c] sm:$0xf]
      %v2798 = vld [vmem:[%s2773 + $0x60] sm:$0xf]
      %v2799 = vld [vmem:[%s2773 + $0x64] sm:$0xf]
      %v2800 = vld [vmem:[%s2773 + $0x68] sm:$0xf]
      %v2801 = vld [vmem:[%s2773 + $0x6c] sm:$0xf]
      %v2802 = vld [vmem:[%s2773 + $0x70] sm:$0xf]
      %v2803 = vld [vmem:[%s2773 + $0x74] sm:$0xf]
      %v2804 = vld [vmem:[%s2773 + $0x78] sm:$0xf]
      %v2805 = vld [vmem:[%s2773 + $0x7c] sm:$0xf]
      %v2806 = vld [vmem:[%s2773 + $0x80] sm:$0xf]
      %v2807 = vld [vmem:[%s2773 + $0x84] sm:$0xf]
      %v2808 = vld [vmem:[%s2773 + $0x88] sm:$0xf]
      %v2809 = vld [vmem:[%s2773 + $0x8c] sm:$0xf]
      %v2810 = vld [vmem:[%s2773 + $0x90] sm:$0xf]
      %v2811 = vld [vmem:[%s2773 + $0x94] sm:$0xf]
      %v2812 = vld [vmem:[%s2773 + $0x98] sm:$0xf]
      %v2813 = vld [vmem:[%s2773 + $0x9c] sm:$0xf]
      %v2814 = vld [vmem:[%s2773 + $0xa0] sm:$0xf]
      %v2815 = vld [vmem:[%s2773 + $0xa4] sm:$0xf]
      %v2816 = vld [vmem:[%s2773 + $0xa8] sm:$0xf]
      %v2817 = vld [vmem:[%s2773 + $0xac] sm:$0xf]
      %v2818 = vld [vmem:[%s2773 + $0xb0] sm:$0xf]
      %v2819 = vld [vmem:[%s2773 + $0xb4] sm:$0xf]
      %v2820 = vld [vmem:[%s2773 + $0xb8] sm:$0xf]
      %v2821 = vld [vmem:[%s2773 + $0xbc] sm:$0xf]
      %v2822 = vpack.c.b16 %v1252, %v1250
      %v2823 = vpack.c.b16 %v1253, %v1251
      %v2824 = vpack.c.b16 %v2767, %v1254
      %v2825 = vpack.c.b16 %v594, %v593
      %v2826 = vpack.c.b16 %v2768, %v1255
      %v2827 = vpack.c.b16 %v2771, %v2769
      %v2828 = vpack.c.b16 %v596, %v595
      %v2829 = vpack.c.b16 %v2772, %v2770
      %v2887 = vunpack.c.l.b16 %v2774
      %v2888 = vunpack.c.l.b16 %v2775
      %v2889 = vunpack.c.l.b16 %v2776
      %v2890 = vunpack.c.l.b16 %v2777
      %v2891 = vunpack.c.l.b16 %v2778
      %v2892 = vunpack.c.l.b16 %v2779
      %v2893 = vunpack.c.l.b16 %v2780
      %v2894 = vunpack.c.l.b16 %v2781
      %v2895 = vunpack.c.l.b16 %v2782
      %v2896 = vunpack.c.l.b16 %v2783
      %v2897 = vunpack.c.l.b16 %v2784
      %v2898 = vunpack.c.l.b16 %v2785
      %v2899 = vunpack.c.l.b16 %v2786
      %v2900 = vunpack.c.l.b16 %v2787
      %v2901 = vunpack.c.l.b16 %v2788
      %v2902 = vunpack.c.l.b16 %v2789
      %v2903 = vunpack.c.l.b16 %v2790
      %v2904 = vunpack.c.l.b16 %v2791
      %v2905 = vunpack.c.l.b16 %v2792
      %v2906 = vunpack.c.l.b16 %v2793
      %v2907 = vunpack.c.l.b16 %v2794
      %v2908 = vunpack.c.l.b16 %v2795
      %v2909 = vunpack.c.l.b16 %v2796
      %v2910 = vunpack.c.l.b16 %v2797
      %v2911 = vunpack.c.l.b16 %v2798
      %v2912 = vunpack.c.l.b16 %v2799
      %v2913 = vunpack.c.l.b16 %v2800
      %v2914 = vunpack.c.l.b16 %v2801
      %v2915 = vunpack.c.l.b16 %v2802
      %v2916 = vunpack.c.l.b16 %v2803
      %v2917 = vunpack.c.l.b16 %v2804
      %v2918 = vunpack.c.l.b16 %v2805
      %v2919 = vunpack.c.l.b16 %v2806
      %v2920 = vunpack.c.l.b16 %v2807
      %v2921 = vunpack.c.l.b16 %v2808
      %v2922 = vunpack.c.l.b16 %v2809
      %v2923 = vunpack.c.l.b16 %v2810
      %v2924 = vunpack.c.l.b16 %v2811
      %v2925 = vunpack.c.l.b16 %v2812
      %v2926 = vunpack.c.l.b16 %v2813
      %v2927 = vunpack.c.l.b16 %v2814
      %v2928 = vunpack.c.l.b16 %v2815
      %v2929 = vunpack.c.l.b16 %v2816
      %v2930 = vunpack.c.l.b16 %v2817
      %v2931 = vunpack.c.l.b16 %v2818
      %v2932 = vunpack.c.l.b16 %v2819
      %v2933 = vunpack.c.l.b16 %v2820
      %v2934 = vunpack.c.l.b16 %v2821
      %v2935 = vpack.c.b16 %v2888, %v2887
      %v2936 = vpack.c.b16 %v2890, %v2889
      %v2937 = vpack.c.b16 %v2892, %v2891
      %v2938 = vpack.c.b16 %v2894, %v2893
      %v2939 = vpack.c.b16 %v2896, %v2895
      %v2940 = vpack.c.b16 %v2898, %v2897
      %v2941 = vpack.c.b16 %v2900, %v2899
      %v2942 = vpack.c.b16 %v2902, %v2901
      %v2943 = vpack.c.b16 %v2904, %v2903
      %v2944 = vpack.c.b16 %v2906, %v2905
      %v2945 = vpack.c.b16 %v2908, %v2907
      %v2946 = vpack.c.b16 %v2910, %v2909
      %v2947 = vpack.c.b16 %v2912, %v2911
      %v2948 = vpack.c.b16 %v2914, %v2913
      %v2949 = vpack.c.b16 %v2916, %v2915
      %v2950 = vpack.c.b16 %v2918, %v2917
      %v2951 = vpack.c.b16 %v2920, %v2919
      %v2952 = vpack.c.b16 %v2922, %v2921
      %v2953 = vpack.c.b16 %v2924, %v2923
      %v2954 = vpack.c.b16 %v2926, %v2925
      %v2955 = vpack.c.b16 %v2928, %v2927
      %v2956 = vpack.c.b16 %v2930, %v2929
      %v2957 = vpack.c.b16 %v2932, %v2931
      %v2958 = vpack.c.b16 %v2934, %v2933
      %2983 = vmatprep.subr.bf16.mxu0 0
      %2984 = vmatpush1.bf16.msra.mxu0 %v2942
      %2985 = vmatprep.subr.bf16.mxu0 0
      %2986 = vmatpush1.bf16.msra.mxu0 %v2941
      %2987 = vmatprep.subr.bf16.mxu0 0
      %2988 = vmatpush1.bf16.msra.mxu0 %v2940
      %2989 = vmatprep.subr.bf16.mxu0 0
      %2990 = vmatpush1.bf16.msra.mxu0 %v2939
      %2991 = vmatprep.subr.bf16.mxu0 0
      %2992 = vmatpush1.bf16.msra.mxu0 %v2938
      %2993 = vmatprep.subr.bf16.mxu0 0
      %2994 = vmatpush1.bf16.msra.mxu0 %v2937
      %2995 = vmatprep.subr.bf16.mxu0 0
      %2996 = vmatpush1.bf16.msra.mxu0 %v2936
      %2997 = vmatprep.subr.bf16.mxu0 0
      %2998 = vmatpush1.bf16.msra.mxu0 %v2935
      %2999 = vmatprep.subr.bf16.mxu0 0
      %3000 = vmatpush2.bf16.msra.mxu0 %v2950
      %3001 = vmatprep.subr.bf16.mxu0 0
      %3002 = vmatpush2.bf16.msra.mxu0 %v2949
      %3003 = vmatprep.subr.bf16.mxu0 0
      %3004 = vmatpush2.bf16.msra.mxu0 %v2948
      %3005 = vmatprep.subr.bf16.mxu0 0
      %3006 = vmatpush2.bf16.msra.mxu0 %v2947
      %3007 = vmatprep.subr.bf16.mxu0 0
      %3008 = vmatpush2.bf16.msra.mxu0 %v2946
      %3009 = vmatprep.subr.bf16.mxu0 0
      %3010 = vmatpush2.bf16.msra.mxu0 %v2945
      %3011 = vmatprep.subr.bf16.mxu0 0
      %3012 = vmatpush2.bf16.msra.mxu0 %v2944
      %3013 = vmatprep.subr.bf16.mxu0 0
      %3014 = vmatpush2.bf16.msra.mxu0 %v2943
      %3015 = vmatprep.mubr.bf16.mxu0 %v601
      %3016 = vmatmul.mubr.bf16.gmra.mxu0 %v2043
      %v3017 = vpop.f32.mrf.mxu0
      %v3018 = vadd.f32 0.0, %v3017
      %v3019 = vpop.f32.mrf.mxu0
      %v3020 = vpop.f32.mrf.mxu0
      %v3021 = vadd.f32 0.0, %v3020
      %v3022 = vpop.f32.mrf.mxu0
      %3023 = vmatprep.mubr.bf16.mxu0 %v2046
      %3024 = vmatmul.mubr.bf16.gmra.mxu0 %v2045
      %v3025 = vpop.f32.mrf.mxu0
      %v3026 = vadd.f32 0.0, %v3025
      %v3027 = vpop.f32.mrf.mxu0
      %v3028 = vpop.f32.mrf.mxu0
      %v3029 = vadd.f32 0.0, %v3028
      %v3030 = vpop.f32.mrf.mxu0
      %3031 = vmatprep.mubr.bf16.mxu0 %v2049
      %3032 = vmatmul.mubr.bf16.gmra.mxu0 %v2048
      %v3033 = vpop.f32.mrf.mxu0
      %v3034 = vadd.f32 0.0, %v3033
      %v3035 = vpop.f32.mrf.mxu0
      %v3036 = vpop.f32.mrf.mxu0
      %v3037 = vadd.f32 0.0, %v3036
      %v3038 = vpop.f32.mrf.mxu0
      %3039 = vmatprep.mubr.bf16.mxu0 %v605
      %3040 = vmatmul.mubr.bf16.gmra.mxu0 %v2051
      %v3041 = vpop.f32.mrf.mxu0
      %v3042 = vadd.f32 0.0, %v3041
      %v3043 = vpop.f32.mrf.mxu0
      %v3044 = vpop.f32.mrf.mxu0
      %v3045 = vadd.f32 0.0, %v3044
      %v3046 = vpop.f32.mrf.mxu0
      %3047 = vmatprep.mubr.bf16.mxu0 %v2054
      %3048 = vmatmul.mubr.bf16.gmra.mxu0 %v2053
      %v3049 = vpop.f32.mrf.mxu0
      %v3050 = vadd.f32 0.0, %v3049
      %v3051 = vpop.f32.mrf.mxu0
      %v3052 = vpop.f32.mrf.mxu0
      %v3053 = vadd.f32 0.0, %v3052
      %v3054 = vpop.f32.mrf.mxu0
      %3055 = vmatprep.mubr.bf16.mxu0 %v2057
      %3056 = vmatmul.mubr.bf16.gmra.mxu0 %v2056
      %v3057 = vpop.f32.mrf.mxu0
      %v3058 = vadd.f32 0.0, %v3057
      %v3059 = vpop.f32.mrf.mxu0
      %v3060 = vpop.f32.mrf.mxu0
      %v3061 = vadd.f32 0.0, %v3060
      %v3062 = vpop.f32.mrf.mxu0
      %3063 = vmatprep.mubr.bf16.mxu0 %v609
      %3064 = vmatmul.mubr.bf16.gmra.mxu0 %v2059
      %v3065 = vpop.f32.mrf.mxu0
      %v3066 = vadd.f32 0.0, %v3065
      %v3067 = vpop.f32.mrf.mxu0
      %v3068 = vpop.f32.mrf.mxu0
      %v3069 = vadd.f32 0.0, %v3068
      %v3070 = vpop.f32.mrf.mxu0
      %3071 = vmatprep.mubr.bf16.mxu0 %v2062
      %3072 = vmatmul.mubr.bf16.gmra.mxu0 %v2061
      %v3073 = vpop.f32.mrf.mxu0
      %v3074 = vadd.f32 0.0, %v3073
      %v3075 = vpop.f32.mrf.mxu0
      %v3076 = vpop.f32.mrf.mxu0
      %v3077 = vadd.f32 0.0, %v3076
      %v3078 = vpop.f32.mrf.mxu0
      %3079 = vmatprep.mubr.bf16.mxu0 %v2065
      %3080 = vmatmul.mubr.bf16.gmra.mxu0 %v2064
      %v3081 = vpop.f32.mrf.mxu0
      %v3082 = vadd.f32 0.0, %v3081
      %v3083 = vpop.f32.mrf.mxu0
      %v3084 = vpop.f32.mrf.mxu0
      %v3085 = vadd.f32 0.0, %v3084
      %v3086 = vpop.f32.mrf.mxu0
      %3087 = vmatprep.mubr.bf16.mxu0 %v613
      %3088 = vmatmul.mubr.bf16.gmra.mxu0 %v2067
      %v3089 = vpop.f32.mrf.mxu0
      %v3090 = vadd.f32 0.0, %v3089
      %v3091 = vpop.f32.mrf.mxu0
      %v3092 = vpop.f32.mrf.mxu0
      %v3093 = vadd.f32 0.0, %v3092
      %v3094 = vpop.f32.mrf.mxu0
      %3095 = vmatprep.mubr.bf16.mxu0 %v2070
      %3096 = vmatmul.mubr.bf16.gmra.mxu0 %v2069
      %v3097 = vpop.f32.mrf.mxu0
      %v3098 = vadd.f32 0.0, %v3097
      %v3099 = vpop.f32.mrf.mxu0
      %v3100 = vpop.f32.mrf.mxu0
      %v3101 = vadd.f32 0.0, %v3100
      %v3102 = vpop.f32.mrf.mxu0
      %3103 = vmatprep.mubr.bf16.mxu0 %v2073
      %3104 = vmatmul.mubr.bf16.gmra.mxu0 %v2072
      %v3105 = vpop.f32.mrf.mxu0
      %v3106 = vadd.f32 0.0, %v3105
      %v3107 = vpop.f32.mrf.mxu0
      %v3108 = vpop.f32.mrf.mxu0
      %v3109 = vadd.f32 0.0, %v3108
      %v3110 = vpop.f32.mrf.mxu0
      %3111 = vmatprep.mubr.bf16.mxu0 %v617
      %3112 = vmatmul.mubr.bf16.gmra.mxu0 %v2075
      %v3113 = vpop.f32.mrf.mxu0
      %v3114 = vadd.f32 0.0, %v3113
      %v3115 = vpop.f32.mrf.mxu0
      %v3116 = vpop.f32.mrf.mxu0
      %v3117 = vadd.f32 0.0, %v3116
      %v3118 = vpop.f32.mrf.mxu0
      %3119 = vmatprep.mubr.bf16.mxu0 %v2078
      %3120 = vmatmul.mubr.bf16.gmra.mxu0 %v2077
      %v3121 = vpop.f32.mrf.mxu0
      %v3122 = vadd.f32 0.0, %v3121
      %v3123 = vpop.f32.mrf.mxu0
      %v3124 = vpop.f32.mrf.mxu0
      %v3125 = vadd.f32 0.0, %v3124
      %v3126 = vpop.f32.mrf.mxu0
      %3127 = vmatprep.mubr.bf16.mxu0 %v2081
      %3128 = vmatmul.mubr.bf16.gmra.mxu0 %v2080
      %v3129 = vpop.f32.mrf.mxu0
      %v3130 = vadd.f32 0.0, %v3129
      %v3131 = vpop.f32.mrf.mxu0
      %v3132 = vpop.f32.mrf.mxu0
      %v3133 = vadd.f32 0.0, %v3132
      %v3134 = vpop.f32.mrf.mxu0
      %3135 = vmatprep.mubr.bf16.mxu0 %v621
      %3136 = vmatmul.mubr.bf16.gmra.mxu0 %v2083
      %v3137 = vpop.f32.mrf.mxu0
      %v3138 = vadd.f32 0.0, %v3137
      %v3139 = vpop.f32.mrf.mxu0
      %v3140 = vpop.f32.mrf.mxu0
      %v3141 = vadd.f32 0.0, %v3140
      %v3142 = vpop.f32.mrf.mxu0
      %3143 = vmatprep.mubr.bf16.mxu0 %v2086
      %3144 = vmatmul.mubr.bf16.gmra.mxu0 %v2085
      %v3145 = vpop.f32.mrf.mxu0
      %v3146 = vadd.f32 0.0, %v3145
      %v3147 = vpop.f32.mrf.mxu0
      %v3148 = vpop.f32.mrf.mxu0
      %v3149 = vadd.f32 0.0, %v3148
      %v3150 = vpop.f32.mrf.mxu0
      %3151 = vmatprep.mubr.bf16.mxu0 %v2089
      %3152 = vmatmul.mubr.bf16.gmra.mxu0 %v2088
      %v3153 = vpop.f32.mrf.mxu0
      %v3154 = vadd.f32 0.0, %v3153
      %v3155 = vpop.f32.mrf.mxu0
      %v3156 = vpop.f32.mrf.mxu0
      %v3157 = vadd.f32 0.0, %v3156
      %v3158 = vpop.f32.mrf.mxu0
      %3159 = vmatprep.mubr.bf16.mxu0 %v625
      %3160 = vmatmul.mubr.bf16.gmra.mxu0 %v2091
      %v3161 = vpop.f32.mrf.mxu0
      %v3162 = vadd.f32 0.0, %v3161
      %v3163 = vpop.f32.mrf.mxu0
      %v3164 = vpop.f32.mrf.mxu0
      %v3165 = vadd.f32 0.0, %v3164
      %v3166 = vpop.f32.mrf.mxu0
      %3167 = vmatprep.mubr.bf16.mxu0 %v2094
      %3168 = vmatmul.mubr.bf16.gmra.mxu0 %v2093
      %v3169 = vpop.f32.mrf.mxu0
      %v3170 = vadd.f32 0.0, %v3169
      %v3171 = vpop.f32.mrf.mxu0
      %v3172 = vpop.f32.mrf.mxu0
      %v3173 = vadd.f32 0.0, %v3172
      %v3174 = vpop.f32.mrf.mxu0
      %3175 = vmatprep.mubr.bf16.mxu0 %v2097
      %3176 = vmatmul.mubr.bf16.gmra.mxu0 %v2096
      %v3177 = vpop.f32.mrf.mxu0
      %v3178 = vadd.f32 0.0, %v3177
      %v3179 = vpop.f32.mrf.mxu0
      %v3180 = vpop.f32.mrf.mxu0
      %v3181 = vadd.f32 0.0, %v3180
      %v3182 = vpop.f32.mrf.mxu0
      %3183 = vmatprep.mubr.bf16.mxu0 %v629
      %3184 = vmatmul.mubr.bf16.gmra.mxu0 %v2822
      %v3185 = vpop.f32.mrf.mxu0
      %v3186 = vadd.f32 0.0, %v3185
      %v3187 = vpop.f32.mrf.mxu0
      %v3188 = vpop.f32.mrf.mxu0
      %v3189 = vadd.f32 0.0, %v3188
      %v3190 = vpop.f32.mrf.mxu0
      %3191 = vmatprep.mubr.bf16.mxu0 %v2825
      %3192 = vmatmul.mubr.bf16.gmra.mxu0 %v2824
      %v3193 = vpop.f32.mrf.mxu0
      %v3194 = vadd.f32 0.0, %v3193
      %v3195 = vpop.f32.mrf.mxu0
      %v3196 = vpop.f32.mrf.mxu0
      %v3197 = vadd.f32 0.0, %v3196
      %v3198 = vpop.f32.mrf.mxu0
      %3199 = vmatprep.mubr.bf16.mxu0 %v2828
      %3200 = vmatmul.mubr.bf16.gmra.mxu0 %v2827
      %v3201 = vpop.f32.mrf.mxu0
      %v3202 = vadd.f32 0.0, %v3201
      %v3203 = vpop.f32.mrf.mxu0
      %v3204 = vpop.f32.mrf.mxu0
      %v3205 = vadd.f32 0.0, %v3204
      %v3206 = vpop.f32.mrf.mxu0
      %3207 = vdwg.mxu0
      %3208 = vmatprep.subr.bf16.mxu0 0
      %3209 = vmatpush1.bf16.msra.mxu0 %v2958
      %3210 = vmatprep.subr.bf16.mxu0 0
      %3211 = vmatpush1.bf16.msra.mxu0 %v2957
      %3212 = vmatprep.subr.bf16.mxu0 0
      %3213 = vmatpush1.bf16.msra.mxu0 %v2956
      %3214 = vmatprep.subr.bf16.mxu0 0
      %3215 = vmatpush1.bf16.msra.mxu0 %v2955
      %3216 = vmatprep.subr.bf16.mxu0 0
      %3217 = vmatpush1.bf16.msra.mxu0 %v2954
      %3218 = vmatprep.subr.bf16.mxu0 0
      %3219 = vmatpush1.bf16.msra.mxu0 %v2953
      %3220 = vmatprep.subr.bf16.mxu0 0
      %3221 = vmatpush1.bf16.msra.mxu0 %v2952
      %3222 = vmatprep.subr.bf16.mxu0 0
      %3223 = vmatpush1.bf16.msra.mxu0 %v2951
      %3224 = vmatprep.subr.bf16.mxu0 0
      %3225 = vmatpush2.bf16.msra.mxu0 0
      %3226 = vmatprep.subr.bf16.mxu0 0
      %3227 = vmatpush2.bf16.msra.mxu0 0
      %3228 = vmatprep.subr.bf16.mxu0 0
      %3229 = vmatpush2.bf16.msra.mxu0 0
      %3230 = vmatprep.subr.bf16.mxu0 0
      %3231 = vmatpush2.bf16.msra.mxu0 0
      %3232 = vmatprep.subr.bf16.mxu0 0
      %3233 = vmatpush2.bf16.msra.mxu0 0
      %3234 = vmatprep.subr.bf16.mxu0 0
      %3235 = vmatpush2.bf16.msra.mxu0 0
      %3236 = vmatprep.subr.bf16.mxu0 0
      %3237 = vmatpush2.bf16.msra.mxu0 0
      %3238 = vmatprep.subr.bf16.mxu0 0
      %3239 = vmatpush2.bf16.msra.mxu0 0
      %3240 = vmatprep.mubr.bf16.mxu0 0
      %3241 = vmatmul.mubr.bf16.gmra.mxu0 %v2044
      %v3242 = vpop.f32.mrf.mxu0
      %v3243 = vadd.f32 %v3018, %v3242
      %v3244 = vpop.f32.mrf.mxu0
      %v3245 = vpop.f32.mrf.mxu0
      %v3246 = vadd.f32 %v3021, %v3245
      %v3247 = vpop.f32.mrf.mxu0
      %3248 = vmatprep.mubr.bf16.mxu0 0
      %3249 = vmatmul.mubr.bf16.gmra.mxu0 %v2047
      %v3250 = vpop.f32.mrf.mxu0
      %v3251 = vadd.f32 %v3026, %v3250
      %v3252 = vpop.f32.mrf.mxu0
      %v3253 = vpop.f32.mrf.mxu0
      %v3254 = vadd.f32 %v3029, %v3253
      %v3255 = vpop.f32.mrf.mxu0
      %3256 = vmatprep.mubr.bf16.mxu0 0
      %3257 = vmatmul.mubr.bf16.gmra.mxu0 %v2050
      %v3258 = vpop.f32.mrf.mxu0
      %v3259 = vadd.f32 %v3034, %v3258
      %v3260 = vpop.f32.mrf.mxu0
      %v3261 = vpop.f32.mrf.mxu0
      %v3262 = vadd.f32 %v3037, %v3261
      %v3263 = vpop.f32.mrf.mxu0
      %3264 = vmatprep.mubr.bf16.mxu0 0
      %3265 = vmatmul.mubr.bf16.gmra.mxu0 %v2052
      %v3266 = vpop.f32.mrf.mxu0
      %v3267 = vadd.f32 %v3042, %v3266
      %v3268 = vpop.f32.mrf.mxu0
      %v3269 = vpop.f32.mrf.mxu0
      %v3270 = vadd.f32 %v3045, %v3269
      %v3271 = vpop.f32.mrf.mxu0
      %3272 = vmatprep.mubr.bf16.mxu0 0
      %3273 = vmatmul.mubr.bf16.gmra.mxu0 %v2055
      %v3274 = vpop.f32.mrf.mxu0
      %v3275 = vadd.f32 %v3050, %v3274
      %v3276 = vpop.f32.mrf.mxu0
      %v3277 = vpop.f32.mrf.mxu0
      %v3278 = vadd.f32 %v3053, %v3277
      %v3279 = vpop.f32.mrf.mxu0
      %3280 = vmatprep.mubr.bf16.mxu0 0
      %3281 = vmatmul.mubr.bf16.gmra.mxu0 %v2058
      %v3282 = vpop.f32.mrf.mxu0
      %v3283 = vadd.f32 %v3058, %v3282
      %v3284 = vpop.f32.mrf.mxu0
      %v3285 = vpop.f32.mrf.mxu0
      %v3286 = vadd.f32 %v3061, %v3285
      %v3287 = vpop.f32.mrf.mxu0
      %3288 = vmatprep.mubr.bf16.mxu0 0
      %3289 = vmatmul.mubr.bf16.gmra.mxu0 %v2060
      %v3290 = vpop.f32.mrf.mxu0
      %v3291 = vadd.f32 %v3066, %v3290
      %v3292 = vpop.f32.mrf.mxu0
      %v3293 = vpop.f32.mrf.mxu0
      %v3294 = vadd.f32 %v3069, %v3293
      %v3295 = vpop.f32.mrf.mxu0
      %3296 = vmatprep.mubr.bf16.mxu0 0
      %3297 = vmatmul.mubr.bf16.gmra.mxu0 %v2063
      %v3298 = vpop.f32.mrf.mxu0
      %v3299 = vadd.f32 %v3074, %v3298
      %v3300 = vpop.f32.mrf.mxu0
      %v3301 = vpop.f32.mrf.mxu0
      %v3302 = vadd.f32 %v3077, %v3301
      %v3303 = vpop.f32.mrf.mxu0
      %3304 = vmatprep.mubr.bf16.mxu0 0
      %3305 = vmatmul.mubr.bf16.gmra.mxu0 %v2066
      %v3306 = vpop.f32.mrf.mxu0
      %v3307 = vadd.f32 %v3082, %v3306
      %v3308 = vpop.f32.mrf.mxu0
      %v3309 = vpop.f32.mrf.mxu0
      %v3310 = vadd.f32 %v3085, %v3309
      %v3311 = vpop.f32.mrf.mxu0
      %3312 = vmatprep.mubr.bf16.mxu0 0
      %3313 = vmatmul.mubr.bf16.gmra.mxu0 %v2068
      %v3314 = vpop.f32.mrf.mxu0
      %v3315 = vadd.f32 %v3090, %v3314
      %v3316 = vpop.f32.mrf.mxu0
      %v3317 = vpop.f32.mrf.mxu0
      %v3318 = vadd.f32 %v3093, %v3317
      %v3319 = vpop.f32.mrf.mxu0
      %3320 = vmatprep.mubr.bf16.mxu0 0
      %3321 = vmatmul.mubr.bf16.gmra.mxu0 %v2071
      %v3322 = vpop.f32.mrf.mxu0
      %v3323 = vadd.f32 %v3098, %v3322
      %v3324 = vpop.f32.mrf.mxu0
      %v3325 = vpop.f32.mrf.mxu0
      %v3326 = vadd.f32 %v3101, %v3325
      %v3327 = vpop.f32.mrf.mxu0
      %3328 = vmatprep.mubr.bf16.mxu0 0
      %3329 = vmatmul.mubr.bf16.gmra.mxu0 %v2074
      %v3330 = vpop.f32.mrf.mxu0
      %v3331 = vadd.f32 %v3106, %v3330
      %v3332 = vpop.f32.mrf.mxu0
      %v3333 = vpop.f32.mrf.mxu0
      %v3334 = vadd.f32 %v3109, %v3333
      %v3335 = vpop.f32.mrf.mxu0
      %3336 = vmatprep.mubr.bf16.mxu0 0
      %3337 = vmatmul.mubr.bf16.gmra.mxu0 %v2076
      %v3338 = vpop.f32.mrf.mxu0
      %v3339 = vadd.f32 %v3114, %v3338
      %v3340 = vpop.f32.mrf.mxu0
      %v3341 = vpop.f32.mrf.mxu0
      %v3342 = vadd.f32 %v3117, %v3341
      %v3343 = vpop.f32.mrf.mxu0
      %3344 = vmatprep.mubr.bf16.mxu0 0
      %3345 = vmatmul.mubr.bf16.gmra.mxu0 %v2079
      %v3346 = vpop.f32.mrf.mxu0
      %v3347 = vadd.f32 %v3122, %v3346
      %v3348 = vpop.f32.mrf.mxu0
      %v3349 = vpop.f32.mrf.mxu0
      %v3350 = vadd.f32 %v3125, %v3349
      %v3351 = vpop.f32.mrf.mxu0
      %3352 = vmatprep.mubr.bf16.mxu0 0
      %3353 = vmatmul.mubr.bf16.gmra.mxu0 %v2082
      %v3354 = vpop.f32.mrf.mxu0
      %v3355 = vadd.f32 %v3130, %v3354
      %v3356 = vpop.f32.mrf.mxu0
      %v3357 = vpop.f32.mrf.mxu0
      %v3358 = vadd.f32 %v3133, %v3357
      %v3359 = vpop.f32.mrf.mxu0
      %3360 = vmatprep.mubr.bf16.mxu0 0
      %3361 = vmatmul.mubr.bf16.gmra.mxu0 %v2084
      %v3362 = vpop.f32.mrf.mxu0
      %v3363 = vadd.f32 %v3138, %v3362
      %v3364 = vpop.f32.mrf.mxu0
      %v3365 = vpop.f32.mrf.mxu0
      %v3366 = vadd.f32 %v3141, %v3365
      %v3367 = vpop.f32.mrf.mxu0
      %3368 = vmatprep.mubr.bf16.mxu0 0
      %3369 = vmatmul.mubr.bf16.gmra.mxu0 %v2087
      %v3370 = vpop.f32.mrf.mxu0
      %v3371 = vadd.f32 %v3146, %v3370
      %v3372 = vpop.f32.mrf.mxu0
      %v3373 = vpop.f32.mrf.mxu0
      %v3374 = vadd.f32 %v3149, %v3373
      %v3375 = vpop.f32.mrf.mxu0
      %3376 = vmatprep.mubr.bf16.mxu0 0
      %3377 = vmatmul.mubr.bf16.gmra.mxu0 %v2090
      %v3378 = vpop.f32.mrf.mxu0
      %v3379 = vadd.f32 %v3154, %v3378
      %v3380 = vpop.f32.mrf.mxu0
      %v3381 = vpop.f32.mrf.mxu0
      %v3382 = vadd.f32 %v3157, %v3381
      %v3383 = vpop.f32.mrf.mxu0
      %3384 = vmatprep.mubr.bf16.mxu0 0
      %3385 = vmatmul.mubr.bf16.gmra.mxu0 %v2092
      %v3386 = vpop.f32.mrf.mxu0
      %v3387 = vadd.f32 %v3162, %v3386
      %v3388 = vpop.f32.mrf.mxu0
      %v3389 = vpop.f32.mrf.mxu0
      %v3390 = vadd.f32 %v3165, %v3389
      %v3391 = vpop.f32.mrf.mxu0
      %3392 = vmatprep.mubr.bf16.mxu0 0
      %3393 = vmatmul.mubr.bf16.gmra.mxu0 %v2095
      %v3394 = vpop.f32.mrf.mxu0
      %v3395 = vadd.f32 %v3170, %v3394
      %v3396 = vpop.f32.mrf.mxu0
      %v3397 = vpop.f32.mrf.mxu0
      %v3398 = vadd.f32 %v3173, %v3397
      %v3399 = vpop.f32.mrf.mxu0
      %3400 = vmatprep.mubr.bf16.mxu0 0
      %3401 = vmatmul.mubr.bf16.gmra.mxu0 %v2098
      %v3402 = vpop.f32.mrf.mxu0
      %v3403 = vadd.f32 %v3178, %v3402
      %v3404 = vpop.f32.mrf.mxu0
      %v3405 = vpop.f32.mrf.mxu0
      %v3406 = vadd.f32 %v3181, %v3405
      %v3407 = vpop.f32.mrf.mxu0
      %3408 = vmatprep.mubr.bf16.mxu0 0
      %3409 = vmatmul.mubr.bf16.gmra.mxu0 %v2823
      %v3410 = vpop.f32.mrf.mxu0
      %v3411 = vadd.f32 %v3186, %v3410
      %v3412 = vpop.f32.mrf.mxu0
      %v3413 = vpop.f32.mrf.mxu0
      %v3414 = vadd.f32 %v3189, %v3413
      %v3415 = vpop.f32.mrf.mxu0
      %3416 = vmatprep.mubr.bf16.mxu0 0
      %3417 = vmatmul.mubr.bf16.gmra.mxu0 %v2826
      %v3418 = vpop.f32.mrf.mxu0
      %v3419 = vadd.f32 %v3194, %v3418
      %v3420 = vpop.f32.mrf.mxu0
      %v3421 = vpop.f32.mrf.mxu0
      %v3422 = vadd.f32 %v3197, %v3421
      %v3423 = vpop.f32.mrf.mxu0
      %3424 = vmatprep.mubr.bf16.mxu0 0
      %3425 = vmatmul.mubr.bf16.gmra.mxu0 %v2829
      %v3426 = vpop.f32.mrf.mxu0
      %v3427 = vadd.f32 %v3202, %v3426
      %v3428 = vpop.f32.mrf.mxu0
      %v3429 = vpop.f32.mrf.mxu0
      %v3430 = vadd.f32 %v3205, %v3429
      %v3431 = vpop.f32.mrf.mxu0
      %3432 = vdwg.mxu0
      %v3433 = vadd.f32 %v2575, %v3243
      %v3434 = vadd.f32 %v2578, %v3246
      %v3435 = vadd.f32 %v2583, %v3251
      %v3436 = vadd.f32 %v2586, %v3254
      %v3437 = vadd.f32 %v2591, %v3259
      %v3438 = vadd.f32 %v2594, %v3262
      %v3439 = vadd.f32 %v2599, %v3267
      %v3440 = vadd.f32 %v2602, %v3270
      %v3441 = vadd.f32 %v2607, %v3275
      %v3442 = vadd.f32 %v2610, %v3278
      %v3443 = vadd.f32 %v2615, %v3283
      %v3444 = vadd.f32 %v2618, %v3286
      %v3445 = vadd.f32 %v2623, %v3291
      %v3446 = vadd.f32 %v2626, %v3294
      %v3447 = vadd.f32 %v2631, %v3299
      %v3448 = vadd.f32 %v2634, %v3302
      %v3449 = vadd.f32 %v2639, %v3307
      %v3450 = vadd.f32 %v2642, %v3310
      %v3451 = vadd.f32 %v2647, %v3315
      %v3452 = vadd.f32 %v2650, %v3318
      %v3453 = vadd.f32 %v2655, %v3323
      %v3454 = vadd.f32 %v2658, %v3326
      %v3455 = vadd.f32 %v2663, %v3331
      %v3456 = vadd.f32 %v2666, %v3334
      %v3457 = vadd.f32 %v2671, %v3339
      %v3458 = vadd.f32 %v2674, %v3342
      %v3459 = vadd.f32 %v2679, %v3347
      %v3460 = vadd.f32 %v2682, %v3350
      %v3461 = vadd.f32 %v2687, %v3355
      %v3462 = vadd.f32 %v2690, %v3358
      %v3463 = vadd.f32 %v2695, %v3363
      %v3464 = vadd.f32 %v2698, %v3366
      %v3465 = vadd.f32 %v2703, %v3371
      %v3466 = vadd.f32 %v2706, %v3374
      %v3467 = vadd.f32 %v2711, %v3379
      %v3468 = vadd.f32 %v2714, %v3382
      %v3469 = vadd.f32 %v2719, %v3387
      %v3470 = vadd.f32 %v2722, %v3390
      %v3471 = vadd.f32 %v2727, %v3395
      %v3472 = vadd.f32 %v2730, %v3398
      %v3473 = vadd.f32 %v2735, %v3403
      %v3474 = vadd.f32 %v2738, %v3406
      %v3475 = vadd.f32 %v2743, %v3411
      %v3476 = vadd.f32 %v2746, %v3414
      %v3477 = vadd.f32 %v2751, %v3419
      %v3478 = vadd.f32 %v2754, %v3422
      %v3479 = vadd.f32 %v2759, %v3427
      %v3480 = vadd.f32 %v2762, %v3430
      %v3481 = vsel %vm417, 1, 0
      %v3482 = vsel %vm418, 1, 0
      %v3483 = vsel %vm419, 1, 0
      %vm3484 = vcmp.eq.s32.totalorder %v3481, 1
      %vm3485 = vcmp.eq.s32.totalorder %v3482, 1
      %vm3486 = vcmp.eq.s32.totalorder %v3483, 1
      %v3487 = vsel %vm3484, %v3433, 0.0
      %v3488 = vsel %vm3485, %v3434, 0.0
      %v3489 = vsel %vm3486, %v3435, 0.0
      %v3490 = vsel %vm3484, %v3436, 0.0
      %v3491 = vsel %vm3485, %v3437, 0.0
      %v3492 = vsel %vm3486, %v3438, 0.0
      %v3493 = vsel %vm3484, %v3439, 0.0
      %v3494 = vsel %vm3485, %v3440, 0.0
      %v3495 = vsel %vm3486, %v3441, 0.0
      %v3496 = vsel %vm3484, %v3442, 0.0
      %v3497 = vsel %vm3485, %v3443, 0.0
      %v3498 = vsel %vm3486, %v3444, 0.0
      %v3499 = vsel %vm3484, %v3445, 0.0
      %v3500 = vsel %vm3485, %v3446, 0.0
      %v3501 = vsel %vm3486, %v3447, 0.0
      %v3502 = vsel %vm3484, %v3448, 0.0
      %v3503 = vsel %vm3485, %v3449, 0.0
      %v3504 = vsel %vm3486, %v3450, 0.0
      %v3505 = vsel %vm3484, %v3451, 0.0
      %v3506 = vsel %vm3485, %v3452, 0.0
      %v3507 = vsel %vm3486, %v3453, 0.0
      %v3508 = vsel %vm3484, %v3454, 0.0
      %v3509 = vsel %vm3485, %v3455, 0.0
      %v3510 = vsel %vm3486, %v3456, 0.0
      %v3511 = vsel %vm3484, %v3457, 0.0
      %v3512 = vsel %vm3485, %v3458, 0.0
      %v3513 = vsel %vm3486, %v3459, 0.0
      %v3514 = vsel %vm3484, %v3460, 0.0
      %v3515 = vsel %vm3485, %v3461, 0.0
      %v3516 = vsel %vm3486, %v3462, 0.0
      %v3517 = vsel %vm3484, %v3463, 0.0
      %v3518 = vsel %vm3485, %v3464, 0.0
      %v3519 = vsel %vm3486, %v3465, 0.0
      %v3520 = vsel %vm3484, %v3466, 0.0
      %v3521 = vsel %vm3485, %v3467, 0.0
      %v3522 = vsel %vm3486, %v3468, 0.0
      %v3523 = vsel %vm3484, %v3469, 0.0
      %v3524 = vsel %vm3485, %v3470, 0.0
      %v3525 = vsel %vm3486, %v3471, 0.0
      %v3526 = vsel %vm3484, %v3472, 0.0
      %v3527 = vsel %vm3485, %v3473, 0.0
      %v3528 = vsel %vm3486, %v3474, 0.0
      %v3529 = vsel %vm3484, %v3475, 0.0
      %v3530 = vsel %vm3485, %v3476, 0.0
      %v3531 = vsel %vm3486, %v3477, 0.0
      %v3532 = vsel %vm3484, %v3478, 0.0
      %v3533 = vsel %vm3485, %v3479, 0.0
      %v3534 = vsel %vm3486, %v3480, 0.0
      %v3535 = vadd.f32 %v3487, %v3488
      %v3536 = vadd.f32 %v3535, %v3489
      %v3537 = vadd.f32 %v3536, %v3490
      %v3538 = vadd.f32 %v3537, %v3491
      %v3539 = vadd.f32 %v3538, %v3492
      %v3540 = vadd.f32 %v3539, %v3493
      %v3541 = vadd.f32 %v3540, %v3494
      %v3542 = vadd.f32 %v3541, %v3495
      %v3543 = vadd.f32 %v3542, %v3496
      %v3544 = vadd.f32 %v3543, %v3497
      %v3545 = vadd.f32 %v3544, %v3498
      %v3546 = vadd.f32 %v3545, %v3499
      %v3547 = vadd.f32 %v3546, %v3500
      %v3548 = vadd.f32 %v3547, %v3501
      %v3549 = vadd.f32 %v3548, %v3502
      %v3550 = vadd.f32 %v3549, %v3503
      %v3551 = vadd.f32 %v3550, %v3504
      %v3552 = vadd.f32 %v3551, %v3505
      %v3553 = vadd.f32 %v3552, %v3506
      %v3554 = vadd.f32 %v3553, %v3507
      %v3555 = vadd.f32 %v3554, %v3508
      %v3556 = vadd.f32 %v3555, %v3509
      %v3557 = vadd.f32 %v3556, %v3510
      %v3558 = vadd.f32 %v3557, %v3511
      %v3559 = vadd.f32 %v3558, %v3512
      %v3560 = vadd.f32 %v3559, %v3513
      %v3561 = vadd.f32 %v3560, %v3514
      %v3562 = vadd.f32 %v3561, %v3515
      %v3563 = vadd.f32 %v3562, %v3516
      %v3564 = vadd.f32 %v3563, %v3517
      %v3565 = vadd.f32 %v3564, %v3518
      %v3566 = vadd.f32 %v3565, %v3519
      %v3567 = vadd.f32 %v3566, %v3520
      %v3568 = vadd.f32 %v3567, %v3521
      %v3569 = vadd.f32 %v3568, %v3522
      %v3570 = vadd.f32 %v3569, %v3523
      %v3571 = vadd.f32 %v3570, %v3524
      %v3572 = vadd.f32 %v3571, %v3525
      %v3573 = vadd.f32 %v3572, %v3526
      %v3574 = vadd.f32 %v3573, %v3527
      %v3575 = vadd.f32 %v3574, %v3528
      %v3576 = vadd.f32 %v3575, %v3529
      %v3577 = vadd.f32 %v3576, %v3530
      %v3578 = vadd.f32 %v3577, %v3531
      %v3579 = vadd.f32 %v3578, %v3532
      %v3580 = vadd.f32 %v3579, %v3533
      %v3581 = vadd.f32 %v3580, %v3534
      %v3582 = vrot.slane %v3581, 4
      %v3583 = vadd.f32 %v3581, %v3582
      %v3584 = vrot.slane %v3583, 2
      %v3585 = vadd.f32 %v3583, %v3584
      %v3586 = vrot.slane %v3585, 1
      %v3587 = vadd.f32 %v3585, %v3586
      %v3588 = vmul.f32 %v3487, %v3487
      %v3589 = vmul.f32 %v3488, %v3488
      %v3590 = vmul.f32 %v3489, %v3489
      %v3591 = vmul.f32 %v3490, %v3490
      %v3592 = vmul.f32 %v3491, %v3491
      %v3593 = vmul.f32 %v3492, %v3492
      %v3594 = vmul.f32 %v3493, %v3493
      %v3595 = vmul.f32 %v3494, %v3494
      %v3596 = vmul.f32 %v3495, %v3495
      %v3597 = vmul.f32 %v3496, %v3496
      %v3598 = vmul.f32 %v3497, %v3497
      %v3599 = vmul.f32 %v3498, %v3498
      %v3600 = vmul.f32 %v3499, %v3499
      %v3601 = vmul.f32 %v3500, %v3500
      %v3602 = vmul.f32 %v3501, %v3501
      %v3603 = vmul.f32 %v3502, %v3502
      %v3604 = vmul.f32 %v3503, %v3503
      %v3605 = vmul.f32 %v3504, %v3504
      %v3606 = vmul.f32 %v3505, %v3505
      %v3607 = vmul.f32 %v3506, %v3506
      %v3608 = vmul.f32 %v3507, %v3507
      %v3609 = vmul.f32 %v3508, %v3508
      %v3610 = vmul.f32 %v3509, %v3509
      %v3611 = vmul.f32 %v3510, %v3510
      %v3612 = vmul.f32 %v3511, %v3511
      %v3613 = vmul.f32 %v3512, %v3512
      %v3614 = vmul.f32 %v3513, %v3513
      %v3615 = vmul.f32 %v3514, %v3514
      %v3616 = vmul.f32 %v3515, %v3515
      %v3617 = vmul.f32 %v3516, %v3516
      %v3618 = vmul.f32 %v3517, %v3517
      %v3619 = vmul.f32 %v3518, %v3518
      %v3620 = vmul.f32 %v3519, %v3519
      %v3621 = vmul.f32 %v3520, %v3520
      %v3622 = vmul.f32 %v3521, %v3521
      %v3623 = vmul.f32 %v3522, %v3522
      %v3624 = vmul.f32 %v3523, %v3523
      %v3625 = vmul.f32 %v3524, %v3524
      %v3626 = vmul.f32 %v3525, %v3525
      %v3627 = vmul.f32 %v3526, %v3526
      %v3628 = vmul.f32 %v3527, %v3527
      %v3629 = vmul.f32 %v3528, %v3528
      %v3630 = vmul.f32 %v3529, %v3529
      %v3631 = vmul.f32 %v3530, %v3530
      %v3632 = vmul.f32 %v3531, %v3531
      %v3633 = vmul.f32 %v3532, %v3532
      %v3634 = vmul.f32 %v3533, %v3533
      %v3635 = vmul.f32 %v3534, %v3534
      %v3636 = vadd.f32 %v3588, %v3589
      %v3637 = vadd.f32 %v3636, %v3590
      %v3638 = vadd.f32 %v3637, %v3591
      %v3639 = vadd.f32 %v3638, %v3592
      %v3640 = vadd.f32 %v3639, %v3593
      %v3641 = vadd.f32 %v3640, %v3594
      %v3642 = vadd.f32 %v3641, %v3595
      %v3643 = vadd.f32 %v3642, %v3596
      %v3644 = vadd.f32 %v3643, %v3597
      %v3645 = vadd.f32 %v3644, %v3598
      %v3646 = vadd.f32 %v3645, %v3599
      %v3647 = vadd.f32 %v3646, %v3600
      %v3648 = vadd.f32 %v3647, %v3601
      %v3649 = vadd.f32 %v3648, %v3602
      %v3650 = vadd.f32 %v3649, %v3603
      %v3651 = vadd.f32 %v3650, %v3604
      %v3652 = vadd.f32 %v3651, %v3605
      %v3653 = vadd.f32 %v3652, %v3606
      %v3654 = vadd.f32 %v3653, %v3607
      %v3655 = vadd.f32 %v3654, %v3608
      %v3656 = vadd.f32 %v3655, %v3609
      %v3657 = vadd.f32 %v3656, %v3610
      %v3658 = vadd.f32 %v3657, %v3611
      %v3659 = vadd.f32 %v3658, %v3612
      %v3660 = vadd.f32 %v3659, %v3613
      %v3661 = vadd.f32 %v3660, %v3614
      %v3662 = vadd.f32 %v3661, %v3615
      %v3663 = vadd.f32 %v3662, %v3616
      %v3664 = vadd.f32 %v3663, %v3617
      %v3665 = vadd.f32 %v3664, %v3618
      %v3666 = vadd.f32 %v3665, %v3619
      %v3667 = vadd.f32 %v3666, %v3620
      %v3668 = vadd.f32 %v3667, %v3621
      %v3669 = vadd.f32 %v3668, %v3622
      %v3670 = vadd.f32 %v3669, %v3623
      %v3671 = vadd.f32 %v3670, %v3624
      %v3672 = vadd.f32 %v3671, %v3625
      %v3673 = vadd.f32 %v3672, %v3626
      %v3674 = vadd.f32 %v3673, %v3627
      %v3675 = vadd.f32 %v3674, %v3628
      %v3676 = vadd.f32 %v3675, %v3629
      %v3677 = vadd.f32 %v3676, %v3630
      %v3678 = vadd.f32 %v3677, %v3631
      %v3679 = vadd.f32 %v3678, %v3632
      %v3680 = vadd.f32 %v3679, %v3633
      %v3681 = vadd.f32 %v3680, %v3634
      %v3682 = vadd.f32 %v3681, %v3635
      %v3683 = vrot.slane %v3682, 4
      %v3684 = vadd.f32 %v3682, %v3683
      %v3685 = vrot.slane %v3684, 2
      %v3686 = vadd.f32 %v3684, %v3685
      %v3687 = vrot.slane %v3686, 1
      %v3688 = vadd.f32 %v3686, %v3687
      %vm3689 = vcmask 1040384
      %v3690 = vsel %vm3689, %v3587, %v3688
      %3691 = vst [vmem:[%s411] sm:$0x3] %v3690
      %v3692 = vpack.c.bf16 %v3488, %v3487
      %v3693 = vpack.c.bf16 %v3489, %v3489
      %v3694 = vpack.c.bf16 %v3491, %v3490
      %v3695 = vpack.c.bf16 %v3492, %v3492
      %v3696 = vpack.c.bf16 %v3494, %v3493
      %v3697 = vpack.c.bf16 %v3495, %v3495
      %v3698 = vpack.c.bf16 %v3497, %v3496
      %v3699 = vpack.c.bf16 %v3498, %v3498
      %v3700 = vpack.c.bf16 %v3500, %v3499
      %v3701 = vpack.c.bf16 %v3501, %v3501
      %v3702 = vpack.c.bf16 %v3503, %v3502
      %v3703 = vpack.c.bf16 %v3504, %v3504
      %v3704 = vpack.c.bf16 %v3506, %v3505
      %v3705 = vpack.c.bf16 %v3507, %v3507
      %v3706 = vpack.c.bf16 %v3509, %v3508
      %v3707 = vpack.c.bf16 %v3510, %v3510
      %v3708 = vpack.c.bf16 %v3512, %v3511
      %v3709 = vpack.c.bf16 %v3513, %v3513
      %v3710 = vpack.c.bf16 %v3515, %v3514
      %v3711 = vpack.c.bf16 %v3516, %v3516
      %v3712 = vpack.c.bf16 %v3518, %v3517
      %v3713 = vpack.c.bf16 %v3519, %v3519
      %v3714 = vpack.c.bf16 %v3521, %v3520
      %v3715 = vpack.c.bf16 %v3522, %v3522
      %v3716 = vpack.c.bf16 %v3524, %v3523
      %v3717 = vpack.c.bf16 %v3525, %v3525
      %v3718 = vpack.c.bf16 %v3527, %v3526
      %v3719 = vpack.c.bf16 %v3528, %v3528
      %v3720 = vpack.c.bf16 %v3530, %v3529
      %v3721 = vpack.c.bf16 %v3531, %v3531
      %v3722 = vpack.c.bf16 %v3533, %v3532
      %v3723 = vpack.c.bf16 %v3534, %v3534
      %v3756 = vunpack.c.l.b16 %v3692
      %v3757 = vunpack.c.h.b16 %v3692
      %v3758 = vunpack.c.l.b16 %v3693
      %v3759 = vunpack.c.l.b16 %v3694
      %v3760 = vunpack.c.h.b16 %v3694
      %v3761 = vunpack.c.l.b16 %v3695
      %v3762 = vunpack.c.l.b16 %v3696
      %v3763 = vunpack.c.h.b16 %v3696
      %v3764 = vunpack.c.l.b16 %v3697
      %v3765 = vunpack.c.l.b16 %v3698
      %v3766 = vunpack.c.h.b16 %v3698
      %v3767 = vunpack.c.l.b16 %v3699
      %v3768 = vunpack.c.l.b16 %v3700
      %v3769 = vunpack.c.h.b16 %v3700
      %v3770 = vunpack.c.l.b16 %v3701
      %v3771 = vunpack.c.l.b16 %v3702
      %v3772 = vunpack.c.h.b16 %v3702
      %v3773 = vunpack.c.l.b16 %v3703
      %v3774 = vunpack.c.l.b16 %v3704
      %v3775 = vunpack.c.h.b16 %v3704
      %v3776 = vunpack.c.l.b16 %v3705
      %v3777 = vunpack.c.l.b16 %v3706
      %v3778 = vunpack.c.h.b16 %v3706
      %v3779 = vunpack.c.l.b16 %v3707
      %v3780 = vunpack.c.l.b16 %v3708
      %v3781 = vunpack.c.h.b16 %v3708
      %v3782 = vunpack.c.l.b16 %v3709
      %v3783 = vunpack.c.l.b16 %v3710
      %v3784 = vunpack.c.h.b16 %v3710
      %v3785 = vunpack.c.l.b16 %v3711
      %v3786 = vunpack.c.l.b16 %v3712
      %v3787 = vunpack.c.h.b16 %v3712
      %v3788 = vunpack.c.l.b16 %v3713
      %v3789 = vunpack.c.l.b16 %v3714
      %v3790 = vunpack.c.h.b16 %v3714
      %v3791 = vunpack.c.l.b16 %v3715
      %v3792 = vunpack.c.l.b16 %v3716
      %v3793 = vunpack.c.h.b16 %v3716
      %v3794 = vunpack.c.l.b16 %v3717
      %v3795 = vunpack.c.l.b16 %v3718
      %v3796 = vunpack.c.h.b16 %v3718
      %v3797 = vunpack.c.l.b16 %v3719
      %v3798 = vunpack.c.l.b16 %v3720
      %v3799 = vunpack.c.h.b16 %v3720
      %v3800 = vunpack.c.l.b16 %v3721
      %v3801 = vunpack.c.l.b16 %v3722
      %v3802 = vunpack.c.h.b16 %v3722
      %v3803 = vunpack.c.l.b16 %v3723
      %v3804 = vpack.c.b16 %v3756, %v3756
      %v3805 = vpack.c.b16 %v3757, %v3757
      %v3806 = vpack.c.b16 %v3758, %v3758
      %v3807 = vpack.c.b16 %v3759, %v3759
      %v3808 = vpack.c.b16 %v3760, %v3760
      %v3809 = vpack.c.b16 %v3761, %v3761
      %v3810 = vpack.c.b16 %v3762, %v3762
      %v3811 = vpack.c.b16 %v3763, %v3763
      %v3812 = vpack.c.b16 %v3764, %v3764
      %v3813 = vpack.c.b16 %v3765, %v3765
      %v3814 = vpack.c.b16 %v3766, %v3766
      %v3815 = vpack.c.b16 %v3767, %v3767
      %v3816 = vpack.c.b16 %v3768, %v3768
      %v3817 = vpack.c.b16 %v3769, %v3769
      %v3818 = vpack.c.b16 %v3770, %v3770
      %v3819 = vpack.c.b16 %v3771, %v3771
      %v3820 = vpack.c.b16 %v3772, %v3772
      %v3821 = vpack.c.b16 %v3773, %v3773
      %v3822 = vpack.c.b16 %v3774, %v3774
      %v3823 = vpack.c.b16 %v3775, %v3775
      %v3824 = vpack.c.b16 %v3776, %v3776
      %v3825 = vpack.c.b16 %v3777, %v3777
      %v3826 = vpack.c.b16 %v3778, %v3778
      %v3827 = vpack.c.b16 %v3779, %v3779
      %v3828 = vpack.c.b16 %v3780, %v3780
      %v3829 = vpack.c.b16 %v3781, %v3781
      %v3830 = vpack.c.b16 %v3782, %v3782
      %v3831 = vpack.c.b16 %v3783, %v3783
      %v3832 = vpack.c.b16 %v3784, %v3784
      %v3833 = vpack.c.b16 %v3785, %v3785
      %v3834 = vpack.c.b16 %v3786, %v3786
      %v3835 = vpack.c.b16 %v3787, %v3787
      %v3836 = vpack.c.b16 %v3788, %v3788
      %v3837 = vpack.c.b16 %v3789, %v3789
      %v3838 = vpack.c.b16 %v3790, %v3790
      %v3839 = vpack.c.b16 %v3791, %v3791
      %v3840 = vpack.c.b16 %v3792, %v3792
      %v3841 = vpack.c.b16 %v3793, %v3793
      %v3842 = vpack.c.b16 %v3794, %v3794
      %v3843 = vpack.c.b16 %v3795, %v3795
      %v3844 = vpack.c.b16 %v3796, %v3796
      %v3845 = vpack.c.b16 %v3797, %v3797
      %v3846 = vpack.c.b16 %v3798, %v3798
      %v3847 = vpack.c.b16 %v3799, %v3799
      %v3848 = vpack.c.b16 %v3800, %v3800
      %v3849 = vpack.c.b16 %v3801, %v3801
      %v3850 = vpack.c.b16 %v3802, %v3802
      %v3851 = vpack.c.b16 %v3803, %v3803
      %3900 = vst [vmem:[%s403] sm:$0xf] %v3804
      %3901 = vst [vmem:[%s403 + $0x4] sm:$0xf] %v3805
      %3902 = vst [vmem:[%s403 + $0x8] sm:$0xf] %v3806
      %3903 = vst [vmem:[%s403 + $0xc] sm:$0xf] %v3807
      %3904 = vst [vmem:[%s403 + $0x10] sm:$0xf] %v3808
      %3905 = vst [vmem:[%s403 + $0x14] sm:$0xf] %v3809
      %3906 = vst [vmem:[%s403 + $0x18] sm:$0xf] %v3810
      %3907 = vst [vmem:[%s403 + $0x1c] sm:$0xf] %v3811
      %3908 = vst [vmem:[%s403 + $0x20] sm:$0xf] %v3812
      %3909 = vst [vmem:[%s403 + $0x24] sm:$0xf] %v3813
      %3910 = vst [vmem:[%s403 + $0x28] sm:$0xf] %v3814
      %3911 = vst [vmem:[%s403 + $0x2c] sm:$0xf] %v3815
      %3912 = vst [vmem:[%s403 + $0x30] sm:$0xf] %v3816
      %3913 = vst [vmem:[%s403 + $0x34] sm:$0xf] %v3817
      %3914 = vst [vmem:[%s403 + $0x38] sm:$0xf] %v3818
      %3915 = vst [vmem:[%s403 + $0x3c] sm:$0xf] %v3819
      %3916 = vst [vmem:[%s403 + $0x40] sm:$0xf] %v3820
      %3917 = vst [vmem:[%s403 + $0x44] sm:$0xf] %v3821
      %3918 = vst [vmem:[%s403 + $0x48] sm:$0xf] %v3822
      %3919 = vst [vmem:[%s403 + $0x4c] sm:$0xf] %v3823
      %3920 = vst [vmem:[%s403 + $0x50] sm:$0xf] %v3824
      %3921 = vst [vmem:[%s403 + $0x54] sm:$0xf] %v3825
      %3922 = vst [vmem:[%s403 + $0x58] sm:$0xf] %v3826
      %3923 = vst [vmem:[%s403 + $0x5c] sm:$0xf] %v3827
      %3924 = vst [vmem:[%s403 + $0x60] sm:$0xf] %v3828
      %3925 = vst [vmem:[%s403 + $0x64] sm:$0xf] %v3829
      %3926 = vst [vmem:[%s403 + $0x68] sm:$0xf] %v3830
      %3927 = vst [vmem:[%s403 + $0x6c] sm:$0xf] %v3831
      %3928 = vst [vmem:[%s403 + $0x70] sm:$0xf] %v3832
      %3929 = vst [vmem:[%s403 + $0x74] sm:$0xf] %v3833
      %3930 = vst [vmem:[%s403 + $0x78] sm:$0xf] %v3834
      %3931 = vst [vmem:[%s403 + $0x7c] sm:$0xf] %v3835
      %3932 = vst [vmem:[%s403 + $0x80] sm:$0xf] %v3836
      %3933 = vst [vmem:[%s403 + $0x84] sm:$0xf] %v3837
      %3934 = vst [vmem:[%s403 + $0x88] sm:$0xf] %v3838
      %3935 = vst [vmem:[%s403 + $0x8c] sm:$0xf] %v3839
      %3936 = vst [vmem:[%s403 + $0x90] sm:$0xf] %v3840
      %3937 = vst [vmem:[%s403 + $0x94] sm:$0xf] %v3841
      %3938 = vst [vmem:[%s403 + $0x98] sm:$0xf] %v3842
      %3939 = vst [vmem:[%s403 + $0x9c] sm:$0xf] %v3843
      %3940 = vst [vmem:[%s403 + $0xa0] sm:$0xf] %v3844
      %3941 = vst [vmem:[%s403 + $0xa4] sm:$0xf] %v3845
      %3942 = vst [vmem:[%s403 + $0xa8] sm:$0xf] %v3846
      %3943 = vst [vmem:[%s403 + $0xac] sm:$0xf] %v3847
      %3944 = vst [vmem:[%s403 + $0xb0] sm:$0xf] %v3848
      %3945 = vst [vmem:[%s403 + $0xb4] sm:$0xf] %v3849
      %3946 = vst [vmem:[%s403 + $0xb8] sm:$0xf] %v3850
      %3947 = vst [vmem:[%s403 + $0xbc] sm:$0xf] %v3851
      %s3948 = smul.u32 16, %s22
      %p3949 = scmp.lt.s32.totalorder %s21, 1
      %s3950 = scalar_select %p3949, %s21, 1
      %p3951 = scmp.lt.s32.totalorder %s3948, 15
      %s3952 = scalar_select %p3951, %s3948, 15
      %s3953 = smul.addr %s3952, 3
      %s3954 = smul.addr %s3950, 48
      %s3955 = sadd.s32 %s3953, %s3954
      %s3956 = smul.addr %s3955, 4
      %s3957 = scalar_lea.vmem %s4, %s3956
      %p3958 = scmp.lt.s32.totalorder %s21, 1
      %s3959 = scalar_select %p3958, %s21, 1
      %p3960 = scmp.lt.s32.totalorder %s22, 0
      %s3961 = scalar_select %p3960, %s22, 0
      %s3962 = sadd.s32 %s3961, %s3959
      %s3963 = smul.addr %s3962, 2
      %s3964 = scalar_lea.vmem %s5, %s3963
      // Predicated region
      $region37: #{double_conv.3} parent=35 // pred_check
        %p3965 = pneg %p170
      $region38: #{double_conv.3} parent=35 // pred_check_branch
        %3967 = sbr.rel (%p3965) target = $region40
      $region39: #{double_conv.3} parent=35 // pred_region
        %s3968 = smul.u32 16, %s22
      $region40: #{double_conv.3} parent=35 // pred_fallthru
        _
      // Predicated region
      $region41: #{double_conv.3} parent=35 // pred_check
        %p3969 = pneg %p198
      $region42: #{double_conv.3} parent=35 // pred_check_branch
        %3971 = sbr.rel (%p3969) target = $region44
      $region43: #{double_conv.3} parent=35 // pred_region
        _
      $region44: #{double_conv.3} parent=35 // pred_fallthru
        _
    $region36: #{double_conv.3} parent=5 // pred_fallthru
      _
    %p3972 = scmp.le.s32.totalorder 2, %s12
    // Predicated region
    $region45: #{double_conv.3} parent=5 // pred_check
      %p3973 = pneg %p3972
    $region46: #{double_conv.3} parent=5 // pred_check_branch
      %3975 = sbr.rel (%p3973) target = $region48
    $region47: #{double_conv.3} parent=5 // pred_region
      %s3976 = ssub.s32 %s12, 2
      // Predicated region
      $region49: #{double_conv.3} parent=47 // pred_check
        %p3977 = pneg %p176
      $region50: #{double_conv.3} parent=47 // pred_check_branch
        %3979 = sbr.rel (%p3977) target = $region52
      $region51: #{double_conv.3} parent=47 // pred_region
        %s3980 = smul.u32 16, %s24
        %p3981 = scmp.lt.s32.totalorder %s23, 1
        %s3982 = scalar_select %p3981, %s23, 1
        %p3983 = scmp.lt.s32.totalorder %s3980, 15
        %s3984 = scalar_select %p3983, %s3980, 15
        %s3985 = smul.addr %s3984, 3
        %s3986 = smul.addr %s3982, 48
        %s3987 = sadd.s32 %s3985, %s3986
        %s3988 = smul.addr %s3987, 4
        %s3989 = scalar_lea.vmem %s4, %s3988
      $region52: #{double_conv.3} parent=47 // pred_fallthru
        _
      // Predicated region
      $region53: #{double_conv.3} parent=47 // pred_check
        %p3990 = pneg %p204
      $region54: #{double_conv.3} parent=47 // pred_check_branch
        %3992 = sbr.rel (%p3990) target = $region56
      $region55: #{double_conv.3} parent=47 // pred_region
        %p3993 = scmp.lt.s32.totalorder %s23, 1
        %s3994 = scalar_select %p3993, %s23, 1
        %p3995 = scmp.lt.s32.totalorder %s24, 0
        %s3996 = scalar_select %p3995, %s24, 0
        %s3997 = sadd.s32 %s3996, %s3994
        %s3998 = smul.addr %s3997, 2
        %s3999 = scalar_lea.vmem %s5, %s3998
      $region56: #{double_conv.3} parent=47 // pred_fallthru
        _
    $region48: #{double_conv.3} parent=5 // pred_fallthru
      _
  $region6: #{double_conv.3} parent=0 // loop_footer
    %s16 = sadd.s32 1, %s12
  $region7: #{double_conv.3} parent=0 // loop_footer_branch
    %11 = sbr.rel target = $region3
  $region8: #{double_conv.3} parent=0 // loop_exit
    _

// kernel: double_conv.4
$region0: #{double_conv.4}
  #allocation0 [shape = 'u32[]', space=smem, size = 0x4, offset = 0x4, fixed_abs, tag = 'smem constant byte address 0x4 - core index']
  #allocation1 [shape = 'u32[144,128]{1,0:T(1,128)}', space=vmem, size = 0x12000, scoped, tag = 'internal scratch']
  %s0 = inlined_call_operand.vmem [shape: bf16[2,16,24,128], index: 0, kind: input, shape index: {}, may-alias: {0,1,2}]
  %s1 = inlined_call_operand.vmem [shape: bf16[2,16,24,128], index: 1, kind: input, shape index: {}, may-alias: {0,1,2}]
  %s2 = inlined_call_operand.vmem [shape: bf16[2,16,24,128], index: 2, kind: input, shape index: {}, may-alias: {0,1,2}]
  %s3 = inlined_call_operand.vmem [shape: bf16[3,384,128], index: 3, kind: input, shape index: {}]
  %s4 = inlined_call_operand.vmem [shape: bf16[1,128], index: 4, kind: input, shape index: {}]
  %s5 = inlined_call_operand.vmem [shape: bf16[1,128], index: 5, kind: input, shape index: {}]
  %s6 = inlined_call_operand.vmem [shape: bf16[2,16,24,128], index: 6, kind: output, shape index: {0}]
  %s7 = inlined_call_operand.vmem [shape: f32[2,1,2,128], index: 7, kind: output, shape index: {1}]
  %8 = xla_tuple %s6, %s7
  %s9 = sld [smem:[#allocation0]]
  $region65: #{double_conv.4} parent=0
    _
  %s11 = ssub.s32 1, %s9
  %s12 = scalar_select 0, %s11, %s9
  loop: start=0, step=1, limit=4
  $region2: #{double_conv.4} parent=0 // loop_pre_header
    _
  $region3: #{double_conv.4} parent=0 // loop_header
    %s14 = sphi 0, %s18
    %p15 = scmp.ge.s32.totalorder %s14, 4
    %s21 = sphi 0, %s33
    %s22 = sphi 0, %s29
    %s23 = sphi 0, %s21
    %s24 = sphi 0, %s22
    %s25 = sphi 0, %s23
    %s26 = sphi 0, %s24
    %s46 = sphi 0, %s48
    %s49 = sphi 0, %s46
    %s50 = sphi 0, %s49
    %s66 = sphi 0, %s50
    %s74 = sphi 0, %s76
    %s77 = sphi 0, %s74
    %s78 = sphi 0, %s77
    %s94 = sphi 0, %s78
    %s110 = sphi 0, %s112
    %s113 = sphi 0, %s110
    %s114 = sphi 0, %s113
    %s130 = sphi 0, %s114
    %s134 = sphi 0, %s134
    %s136 = sphi 0, %s134
    %s137 = sphi 0, %s136
    %s151 = sphi 0, %s137
    %s155 = sphi 0, %s155
    %s157 = sphi 0, %s155
    %s158 = sphi 0, %s157
    %s172 = sphi 0, %s158
    %s176 = sphi 0, %s176
    %s178 = sphi 0, %s176
    %s179 = sphi 0, %s178
    %s193 = sphi 0, %s179
    %s201 = sphi 0, %s203
    %s204 = sphi 0, %s201
    %s205 = sphi 0, %s204
    %s221 = sphi 0, %s205
    %s229 = sphi 0, %s231
    %s232 = sphi 0, %s229
    %s233 = sphi 0, %s232
    %s249 = sphi 0, %s233
  $region4: #{double_conv.4} parent=0 // loop_header_branch
    %17 = sbr.rel (%p15) target = $region8
  $region5: #{double_conv.4} parent=0 // loop_body
    %s19 = ssub.s32 %s14, 1
    %s20 = ssub.s32 %s14, 2
    %s27 = sadd.s32 1, %s22
    %p28 = scmp.ge.s32.totalorder %s27, 1
    %s29 = scalar_select %p28, 0, %s27
    %s30 = sadd.s32 1, %s21
    %s31 = scalar_select %p28, %s30, %s21
    %p32 = scmp.ge.s32.totalorder %s31, 2
    %s33 = scalar_select %p32, 0, %s31
    %s34 = smul.u32 %s22, 16
    %s35 = ssub.s32 %s34, 1
    %p36 = scmp.gt.s32.totalorder %s35, 0
    %s37 = scalar_select %p36, %s35, 0
    %s38 = smul.u32 %s29, 16
    %s39 = ssub.s32 %s38, 1
    %p40 = scmp.gt.s32.totalorder %s39, 0
    %s41 = scalar_select %p40, %s39, 0
    %s42 = ssub.s32 %s21, %s33
    %s43 = ssub.s32 %s37, %s41
    %s44 = sor.u32 %s42, %s43
    %p45 = scmp.eq.s32.totalorder %s44, 0
    %s47 = sadd.s32 %s46, 1
    %s48 = scalar_select %p45, %s46, %s47
    %p51 = pneg %p45
    %p52 = scmp.eq.s32.totalorder %s14, 1
    %p53 = por %p51, %p52
    %p54 = scmp.ne.s32.totalorder %s46, %s49
    %p55 = scmp.eq.s32.totalorder %s14, 0
    %p56 = por %p54, %p55
    %p57 = scmp.ne.s32.totalorder %s46, %s49
    %p58 = scmp.eq.s32.totalorder %s19, 1
    %p59 = por %p57, %p58
    %p60 = scmp.ne.s32.totalorder %s49, %s50
    %p61 = scmp.eq.s32.totalorder %s19, 0
    %p62 = por %p60, %p61
    %p63 = scmp.ne.s32.totalorder %s49, %s50
    %p64 = scmp.eq.s32.totalorder %s20, 1
    %p65 = por %p63, %p64
    %p67 = scmp.ne.s32.totalorder %s50, %s66
    %p68 = scmp.eq.s32.totalorder %s20, 0
    %p69 = por %p67, %p68
    %s70 = ssub.s32 %s21, %s33
    %s71 = ssub.s32 %s22, %s29
    %s72 = sor.u32 %s70, %s71
    %p73 = scmp.eq.s32.totalorder %s72, 0
    %s75 = sadd.s32 %s74, 1
    %s76 = scalar_select %p73, %s74, %s75
    %p79 = pneg %p73
    %p80 = scmp.eq.s32.totalorder %s14, 1
    %p81 = por %p79, %p80
    %p82 = scmp.ne.s32.totalorder %s74, %s77
    %p83 = scmp.eq.s32.totalorder %s14, 0
    %p84 = por %p82, %p83
    %p85 = scmp.ne.s32.totalorder %s74, %s77
    %p86 = scmp.eq.s32.totalorder %s19, 1
    %p87 = por %p85, %p86
    %p88 = scmp.ne.s32.totalorder %s77, %s78
    %p89 = scmp.eq.s32.totalorder %s19, 0
    %p90 = por %p88, %p89
    %p91 = scmp.ne.s32.totalorder %s77, %s78
    %p92 = scmp.eq.s32.totalorder %s20, 1
    %p93 = por %p91, %p92
    %p95 = scmp.ne.s32.totalorder %s78, %s94
    %p96 = scmp.eq.s32.totalorder %s20, 0
    %p97 = por %p95, %p96
    %s98 = smul.u32 %s22, 16
    %s99 = sadd.s32 %s98, 16
    %p100 = scmp.lt.s32.totalorder %s99, 15
    %s101 = scalar_select %p100, %s99, 15
    %s102 = smul.u32 %s29, 16
    %s103 = sadd.s32 %s102, 16
    %p104 = scmp.lt.s32.totalorder %s103, 15
    %s105 = scalar_select %p104, %s103, 15
    %s106 = ssub.s32 %s21, %s33
    %s107 = ssub.s32 %s101, %s105
    %s108 = sor.u32 %s106, %s107
    %p109 = scmp.eq.s32.totalorder %s108, 0
    %s111 = sadd.s32 %s110, 1
    %s112 = scalar_select %p109, %s110, %s111
    %p115 = pneg %p109
    %p116 = scmp.eq.s32.totalorder %s14, 1
    %p117 = por %p115, %p116
    %p118 = scmp.ne.s32.totalorder %s110, %s113
    %p119 = scmp.eq.s32.totalorder %s14, 0
    %p120 = por %p118, %p119
    %p121 = scmp.ne.s32.totalorder %s110, %s113
    %p122 = scmp.eq.s32.totalorder %s19, 1
    %p123 = por %p121, %p122
    %p124 = scmp.ne.s32.totalorder %s113, %s114
    %p125 = scmp.eq.s32.totalorder %s19, 0
    %p126 = por %p124, %p125
    %p127 = scmp.ne.s32.totalorder %s113, %s114
    %p128 = scmp.eq.s32.totalorder %s20, 1
    %p129 = por %p127, %p128
    %p131 = scmp.ne.s32.totalorder %s114, %s130
    %p132 = scmp.eq.s32.totalorder %s20, 0
    %p133 = por %p131, %p132
    %s135 = sadd.s32 %s134, 1
    %p138 = scmp.eq.s32.totalorder %s14, 1
    %p139 = scmp.ne.s32.totalorder %s134, %s136
    %p140 = scmp.eq.s32.totalorder %s14, 0
    %p141 = por %p139, %p140
    %p142 = scmp.ne.s32.totalorder %s134, %s136
    %p143 = scmp.eq.s32.totalorder %s19, 1
    %p144 = por %p142, %p143
    %p145 = scmp.ne.s32.totalorder %s136, %s137
    %p146 = scmp.eq.s32.totalorder %s19, 0
    %p147 = por %p145, %p146
    %p148 = scmp.ne.s32.totalorder %s136, %s137
    %p149 = scmp.eq.s32.totalorder %s20, 1
    %p150 = por %p148, %p149
    %p152 = scmp.ne.s32.totalorder %s137, %s151
    %p153 = scmp.eq.s32.totalorder %s20, 0
    %p154 = por %p152, %p153
    %s156 = sadd.s32 %s155, 1
    %p159 = scmp.eq.s32.totalorder %s14, 1
    %p160 = scmp.ne.s32.totalorder %s155, %s157
    %p161 = scmp.eq.s32.totalorder %s14, 0
    %p162 = por %p160, %p161
    %p163 = scmp.ne.s32.totalorder %s155, %s157
    %p164 = scmp.eq.s32.totalorder %s19, 1
    %p165 = por %p163, %p164
    %p166 = scmp.ne.s32.totalorder %s157, %s158
    %p167 = scmp.eq.s32.totalorder %s19, 0
    %p168 = por %p166, %p167
    %p169 = scmp.ne.s32.totalorder %s157, %s158
    %p170 = scmp.eq.s32.totalorder %s20, 1
    %p171 = por %p169, %p170
    %p173 = scmp.ne.s32.totalorder %s158, %s172
    %p174 = scmp.eq.s32.totalorder %s20, 0
    %p175 = por %p173, %p174
    %s177 = sadd.s32 %s176, 1
    %p180 = scmp.eq.s32.totalorder %s14, 1
    %p181 = scmp.ne.s32.totalorder %s176, %s178
    %p182 = scmp.eq.s32.totalorder %s14, 0
    %p183 = por %p181, %p182
    %p184 = scmp.ne.s32.totalorder %s176, %s178
    %p185 = scmp.eq.s32.totalorder %s19, 1
    %p186 = por %p184, %p185
    %p187 = scmp.ne.s32.totalorder %s178, %s179
    %p188 = scmp.eq.s32.totalorder %s19, 0
    %p189 = por %p187, %p188
    %p190 = scmp.ne.s32.totalorder %s178, %s179
    %p191 = scmp.eq.s32.totalorder %s20, 1
    %p192 = por %p190, %p191
    %p194 = scmp.ne.s32.totalorder %s179, %s193
    %p195 = scmp.eq.s32.totalorder %s20, 0
    %p196 = por %p194, %p195
    %s197 = ssub.s32 %s21, %s33
    %s198 = ssub.s32 %s22, %s29
    %s199 = sor.u32 %s197, %s198
    %p200 = scmp.eq.s32.totalorder %s199, 0
    %s202 = sadd.s32 %s201, 1
    %s203 = scalar_select %p200, %s201, %s202
    %p206 = pneg %p200
    %p207 = scmp.eq.s32.totalorder %s14, 1
    %p208 = por %p206, %p207
    %p209 = scmp.ne.s32.totalorder %s201, %s204
    %p210 = scmp.eq.s32.totalorder %s14, 0
    %p211 = por %p209, %p210
    %p212 = scmp.ne.s32.totalorder %s201, %s204
    %p213 = scmp.eq.s32.totalorder %s19, 1
    %p214 = por %p212, %p213
    %p215 = scmp.ne.s32.totalorder %s204, %s205
    %p216 = scmp.eq.s32.totalorder %s19, 0
    %p217 = por %p215, %p216
    %p218 = scmp.ne.s32.totalorder %s204, %s205
    %p219 = scmp.eq.s32.totalorder %s20, 1
    %p220 = por %p218, %p219
    %p222 = scmp.ne.s32.totalorder %s205, %s221
    %p223 = scmp.eq.s32.totalorder %s20, 0
    %p224 = por %p222, %p223
    %s225 = ssub.s32 %s21, %s33
    %s226 = ssub.s32 %s22, %s29
    %s227 = sor.u32 %s225, %s226
    %p228 = scmp.eq.s32.totalorder %s227, 0
    %s230 = sadd.s32 %s229, 1
    %s231 = scalar_select %p228, %s229, %s230
    %p234 = pneg %p228
    %p235 = scmp.eq.s32.totalorder %s14, 1
    %p236 = por %p234, %p235
    %p237 = scmp.ne.s32.totalorder %s229, %s232
    %p238 = scmp.eq.s32.totalorder %s14, 0
    %p239 = por %p237, %p238
    %p240 = scmp.ne.s32.totalorder %s229, %s232
    %p241 = scmp.eq.s32.totalorder %s19, 1
    %p242 = por %p240, %p241
    %p243 = scmp.ne.s32.totalorder %s232, %s233
    %p244 = scmp.eq.s32.totalorder %s19, 0
    %p245 = por %p243, %p244
    %p246 = scmp.ne.s32.totalorder %s232, %s233
    %p247 = scmp.eq.s32.totalorder %s20, 1
    %p248 = por %p246, %p247
    %p250 = scmp.ne.s32.totalorder %s233, %s249
    %p251 = scmp.eq.s32.totalorder %s20, 0
    %p252 = por %p250, %p251
    %p253 = scmp.le.s32.totalorder 1, %s14
    %p254 = scmp.lt.s32.totalorder %s14, 3
    %p255 = pnand %p253, %p254
    %p256 = pneg %p255
    // Predicated region
    $region9: #{double_conv.4} parent=5 // pred_check
      _
    $region10: #{double_conv.4} parent=5 // pred_check_branch
      %258 = sbr.rel (%p255) target = $region12
    $region11: #{double_conv.4} parent=5 // pred_region
      %s259 = ssub.s32 %s14, 1
      // Predicated region
      $region13: #{double_conv.4} parent=11 // pred_check
        %p260 = pneg %p147
      $region14: #{double_conv.4} parent=11 // pred_check_branch
        %262 = sbr.rel (%p260) target = $region16
      $region15: #{double_conv.4} parent=11 // pred_region
        _
      $region16: #{double_conv.4} parent=11 // pred_fallthru
        _
      // Predicated region
      $region17: #{double_conv.4} parent=11 // pred_check
        %p263 = pneg %p168
      $region18: #{double_conv.4} parent=11 // pred_check_branch
        %265 = sbr.rel (%p263) target = $region20
      $region19: #{double_conv.4} parent=11 // pred_region
        _
      $region20: #{double_conv.4} parent=11 // pred_fallthru
        _
      // Predicated region
      $region21: #{double_conv.4} parent=11 // pred_check
        %p266 = pneg %p189
      $region22: #{double_conv.4} parent=11 // pred_check_branch
        %268 = sbr.rel (%p266) target = $region24
      $region23: #{double_conv.4} parent=11 // pred_region
        _
      $region24: #{double_conv.4} parent=11 // pred_fallthru
        _
    $region12: #{double_conv.4} parent=5 // pred_fallthru
      _
    %p269 = scmp.lt.s32.totalorder %s14, 2
    // Predicated region
    $region25: #{double_conv.4} parent=5 // pred_check
      %p270 = pneg %p269
    $region26: #{double_conv.4} parent=5 // pred_check_branch
      %272 = sbr.rel (%p270) target = $region28
    $region27: #{double_conv.4} parent=5 // pred_region
      // Predicated region
      $region29: #{double_conv.4} parent=27 // pred_check
        %p273 = pneg %p56
      $region30: #{double_conv.4} parent=27 // pred_check_branch
        %275 = sbr.rel (%p273) target = $region32
      $region31: #{double_conv.4} parent=27 // pred_region
        %s276 = smul.u32 %s22, 16
        %s277 = ssub.s32 %s276, 1
        %p278 = scmp.gt.s32.totalorder %s277, 0
        %s279 = scalar_select %p278, %s277, 0
        %p280 = scmp.lt.s32.totalorder %s21, 1
        %s281 = scalar_select %p280, %s21, 1
        %p282 = scmp.lt.s32.totalorder %s279, 15
        %s283 = scalar_select %p282, %s279, 15
        %s284 = smul.addr %s283, 3
        %s285 = smul.addr %s281, 48
        %s286 = sadd.s32 %s284, %s285
        %s287 = smul.addr %s286, 4
        %s288 = scalar_lea.vmem %s0, %s287
        %s289 = smul.u32 %s22, 16
        %s290 = ssub.s32 %s289, 1
        %p291 = scmp.gt.s32.totalorder %s290, 0
        %s292 = scalar_select %p291, %s290, 0
      $region32: #{double_conv.4} parent=27 // pred_fallthru
        _
      // Predicated region
      $region33: #{double_conv.4} parent=27 // pred_check
        %p293 = pneg %p84
      $region34: #{double_conv.4} parent=27 // pred_check_branch
        %295 = sbr.rel (%p293) target = $region36
      $region35: #{double_conv.4} parent=27 // pred_region
        %s296 = smul.u32 16, %s22
        %p297 = scmp.lt.s32.totalorder %s21, 1
        %s298 = scalar_select %p297, %s21, 1
        %p299 = scmp.lt.s32.totalorder %s296, 15
        %s300 = scalar_select %p299, %s296, 15
        %s301 = smul.addr %s300, 3
        %s302 = smul.addr %s298, 48
        %s303 = sadd.s32 %s301, %s302
        %s304 = smul.addr %s303, 4
        %s305 = scalar_lea.vmem %s1, %s304
        %s306 = smul.u32 16, %s22
      $region36: #{double_conv.4} parent=27 // pred_fallthru
        _
      // Predicated region
      $region37: #{double_conv.4} parent=27 // pred_check
        %p307 = pneg %p120
      $region38: #{double_conv.4} parent=27 // pred_check_branch
        %309 = sbr.rel (%p307) target = $region40
      $region39: #{double_conv.4} parent=27 // pred_region
        %s310 = smul.u32 %s22, 16
        %s311 = sadd.s32 %s310, 16
        %p312 = scmp.lt.s32.totalorder %s311, 15
        %s313 = scalar_select %p312, %s311, 15
        %p314 = scmp.lt.s32.totalorder %s21, 1
        %s315 = scalar_select %p314, %s21, 1
        %p316 = scmp.lt.s32.totalorder %s313, 15
        %s317 = scalar_select %p316, %s313, 15
        %s318 = smul.addr %s317, 3
        %s319 = smul.addr %s315, 48
        %s320 = sadd.s32 %s318, %s319
        %s321 = smul.addr %s320, 4
        %s322 = scalar_lea.vmem %s2, %s321
        %s323 = smul.u32 %s22, 16
        %s324 = sadd.s32 %s323, 16
        %p325 = scmp.lt.s32.totalorder %s324, 15
        %s326 = scalar_select %p325, %s324, 15
      $region40: #{double_conv.4} parent=27 // pred_fallthru
        _
    $region28: #{double_conv.4} parent=5 // pred_fallthru
      _
    %p327 = scmp.le.s32.totalorder 1, %s14
    %p328 = scmp.lt.s32.totalorder %s14, 3
    %p329 = pnand %p327, %p328
    %p330 = pneg %p329
    // Predicated region
    $region41: #{double_conv.4} parent=5 // pred_check
      _
    $region42: #{double_conv.4} parent=5 // pred_check_branch
      %332 = sbr.rel (%p329) target = $region44
    $region43: #{double_conv.4} parent=5 // pred_region
      %s333 = ssub.s32 %s14, 1
      %s334 = smul.u32 %s24, 16
      %s335 = ssub.s32 %s334, 1
      %p336 = scmp.gt.s32.totalorder %s335, 0
      %s337 = scalar_select %p336, %s335, 0
      %p338 = scmp.lt.s32.totalorder %s23, 1
      %s339 = scalar_select %p338, %s23, 1
      %p340 = scmp.lt.s32.totalorder %s337, 15
      %s341 = scalar_select %p340, %s337, 15
      %s342 = smul.addr %s341, 3
      %s343 = smul.addr %s339, 48
      %s344 = sadd.s32 %s342, %s343
      %s345 = smul.addr %s344, 4
      %s346 = scalar_lea.vmem %s0, %s345
      %p347 = pneg %p62
      %p348 = pneg %p59
      %s349 = smul.u32 16, %s24
      %p350 = scmp.lt.s32.totalorder %s23, 1
      %s351 = scalar_select %p350, %s23, 1
      %p352 = scmp.lt.s32.totalorder %s349, 15
      %s353 = scalar_select %p352, %s349, 15
      %s354 = smul.addr %s353, 3
      %s355 = smul.addr %s351, 48
      %s356 = sadd.s32 %s354, %s355
      %s357 = smul.addr %s356, 4
      %s358 = scalar_lea.vmem %s1, %s357
      %p359 = pneg %p90
      %p360 = pneg %p87
      %s361 = smul.u32 %s24, 16
      %s362 = sadd.s32 %s361, 16
      %p363 = scmp.lt.s32.totalorder %s362, 15
      %s364 = scalar_select %p363, %s362, 15
      %p365 = scmp.lt.s32.totalorder %s23, 1
      %s366 = scalar_select %p365, %s23, 1
      %p367 = scmp.lt.s32.totalorder %s364, 15
      %s368 = scalar_select %p367, %s364, 15
      %s369 = smul.addr %s368, 3
      %s370 = smul.addr %s366, 48
      %s371 = sadd.s32 %s369, %s370
      %s372 = smul.addr %s371, 4
      %s373 = scalar_lea.vmem %s2, %s372
      %p374 = pneg %p126
      %p375 = pneg %p123
      %p376 = pneg %p147
      %p377 = pneg %p144
      %p378 = pneg %p168
      %p379 = pneg %p165
      %p380 = pneg %p189
      %p381 = pneg %p186
      %p382 = pneg %p217
      %p383 = pneg %p214
      %s384 = smul.u32 16, %s24
      %p385 = scmp.lt.s32.totalorder %s23, 1
      %s386 = scalar_select %p385, %s23, 1
      %p387 = scmp.lt.s32.totalorder %s384, 15
      %s388 = scalar_select %p387, %s384, 15
      %s389 = smul.addr %s388, 3
      %s390 = smul.addr %s386, 48
      %s391 = sadd.s32 %s389, %s390
      %s392 = smul.addr %s391, 4
      %s393 = scalar_lea.vmem %s6, %s392
      %p394 = pneg %p245
      %p395 = pneg %p242
      %p396 = scmp.lt.s32.totalorder %s23, 1
      %s397 = scalar_select %p396, %s23, 1
      %p398 = scmp.lt.s32.totalorder %s24, 0
      %s399 = scalar_select %p398, %s24, 0
      %s400 = sadd.s32 %s399, %s397
      %s401 = smul.addr %s400, 2
      %s402 = scalar_lea.vmem %s7, %s401
      %s403 = smul.u32 %s24, 16
      %s404 = ssub.s32 %s403, 1
      %p405 = scmp.gt.s32.totalorder %s404, 0
      %s406 = scalar_select %p405, %s404, 0
      %p407 = scmp.lt.s32.totalorder %s23, 1
      %s408 = scalar_select %p407, %s23, 1
      %p409 = scmp.lt.s32.totalorder %s406, 15
      %s410 = scalar_select %p409, %s406, 15
      %s411 = smul.addr %s410, 3
      %s412 = smul.addr %s408, 48
      %s413 = sadd.s32 %s411, %s412
      %s414 = smul.addr %s413, 4
      %s415 = scalar_lea.vmem %s0, %s414
      %s416 = smul.u32 %s24, 16
      %s417 = ssub.s32 %s416, 1
      %p418 = scmp.gt.s32.totalorder %s417, 0
      %s419 = scalar_select %p418, %s417, 0
      %s420 = smul.u32 16, %s24
      %p421 = scmp.lt.s32.totalorder %s23, 1
      %s422 = scalar_select %p421, %s23, 1
      %p423 = scmp.lt.s32.totalorder %s420, 15
      %s424 = scalar_select %p423, %s420, 15
      %s425 = smul.addr %s424, 3
      %s426 = smul.addr %s422, 48
      %s427 = sadd.s32 %s425, %s426
      %s428 = smul.addr %s427, 4
      %s429 = scalar_lea.vmem %s1, %s428
      %s430 = smul.u32 16, %s24
      %s431 = smul.u32 %s24, 16
      %s432 = sadd.s32 %s431, 16
      %p433 = scmp.lt.s32.totalorder %s432, 15
      %s434 = scalar_select %p433, %s432, 15
      %p435 = scmp.lt.s32.totalorder %s23, 1
      %s436 = scalar_select %p435, %s23, 1
      %p437 = scmp.lt.s32.totalorder %s434, 15
      %s438 = scalar_select %p437, %s434, 15
      %s439 = smul.addr %s438, 3
      %s440 = smul.addr %s436, 48
      %s441 = sadd.s32 %s439, %s440
      %s442 = smul.addr %s441, 4
      %s443 = scalar_lea.vmem %s2, %s442
      %s444 = smul.u32 %s24, 16
      %s445 = sadd.s32 %s444, 16
      %p446 = scmp.lt.s32.totalorder %s445, 15
      %s447 = scalar_select %p446, %s445, 15
      %s448 = smul.u32 16, %s24
      %p449 = scmp.lt.s32.totalorder %s23, 1
      %s450 = scalar_select %p449, %s23, 1
      %p451 = scmp.lt.s32.totalorder %s448, 15
      %s452 = scalar_select %p451, %s448, 15
      %s453 = smul.addr %s452, 3
      %s454 = smul.addr %s450, 48
      %s455 = sadd.s32 %s453, %s454
      %s456 = smul.addr %s455, 4
      %s457 = scalar_lea.vmem %s6, %s456
      %s458 = smul.u32 16, %s24
      %p459 = scmp.lt.s32.totalorder %s23, 1
      %s460 = scalar_select %p459, %s23, 1
      %p461 = scmp.lt.s32.totalorder %s24, 0
      %s462 = scalar_select %p461, %s24, 0
      %s463 = sadd.s32 %s462, %s460
      %s464 = smul.addr %s463, 2
      %s465 = scalar_lea.vmem %s7, %s464
      %v467 = vlaneseq
      %v468 = vshrl.u32 %v467, 7
      %v469 = vadd.s32 %v468, 8
      %v470 = vadd.s32 %v468, 16
      %vm471 = vcmp.lt.s32.totalorder %v468, 16
      %vm472 = vcmp.lt.s32.totalorder %v469, 16
      %vm473 = vcmp.lt.s32.totalorder %v470, 16
      %v474 = vld [vmem:[%s415] sm:$0xf]
      %v475 = vld [vmem:[%s415 + $0x4] sm:$0xf]
      %v476 = vld [vmem:[%s415 + $0x8] sm:$0xf]
      %v477 = vld [vmem:[%s429] sm:$0xf]
      %v478 = vld [vmem:[%s429 + $0x4] sm:$0xf]
      %v479 = vld [vmem:[%s429 + $0x8] sm:$0xf]
      %v480 = vld [vmem:[%s429 + $0xc] sm:$0xf]
      %v481 = vld [vmem:[%s429 + $0x10] sm:$0xf]
      %v482 = vld [vmem:[%s429 + $0x14] sm:$0xf]
      %v483 = vld [vmem:[%s429 + $0x18] sm:$0xf]
      %v484 = vld [vmem:[%s429 + $0x1c] sm:$0xf]
      %v485 = vld [vmem:[%s429 + $0x20] sm:$0xf]
      %v486 = vld [vmem:[%s429 + $0x24] sm:$0xf]
      %v487 = vld [vmem:[%s429 + $0x28] sm:$0xf]
      %v488 = vld [vmem:[%s429 + $0x2c] sm:$0xf]
      %v489 = vld [vmem:[%s429 + $0x30] sm:$0xf]
      %v490 = vld [vmem:[%s429 + $0x34] sm:$0xf]
      %v491 = vld [vmem:[%s429 + $0x38] sm:$0xf]
      %v492 = vld [vmem:[%s429 + $0x3c] sm:$0xf]
      %v493 = vld [vmem:[%s429 + $0x40] sm:$0xf]
      %v494 = vld [vmem:[%s429 + $0x44] sm:$0xf]
      %v495 = vld [vmem:[%s429 + $0x48] sm:$0xf]
      %v496 = vld [vmem:[%s429 + $0x4c] sm:$0xf]
      %v497 = vld [vmem:[%s429 + $0x50] sm:$0xf]
      %v498 = vld [vmem:[%s429 + $0x54] sm:$0xf]
      %v499 = vld [vmem:[%s429 + $0x58] sm:$0xf]
      %v500 = vld [vmem:[%s429 + $0x5c] sm:$0xf]
      %v501 = vld [vmem:[%s429 + $0x60] sm:$0xf]
      %v502 = vld [vmem:[%s429 + $0x64] sm:$0xf]
      %v503 = vld [vmem:[%s429 + $0x68] sm:$0xf]
      %v504 = vld [vmem:[%s429 + $0x6c] sm:$0xf]
      %v505 = vld [vmem:[%s429 + $0x70] sm:$0xf]
      %v506 = vld [vmem:[%s429 + $0x74] sm:$0xf]
      %v507 = vld [vmem:[%s429 + $0x78] sm:$0xf]
      %v508 = vld [vmem:[%s429 + $0x7c] sm:$0xf]
      %v509 = vld [vmem:[%s429 + $0x80] sm:$0xf]
      %v510 = vld [vmem:[%s429 + $0x84] sm:$0xf]
      %v511 = vld [vmem:[%s429 + $0x88] sm:$0xf]
      %v512 = vld [vmem:[%s429 + $0x8c] sm:$0xf]
      %v513 = vld [vmem:[%s429 + $0x90] sm:$0xf]
      %v514 = vld [vmem:[%s429 + $0x94] sm:$0xf]
      %v515 = vld [vmem:[%s429 + $0x98] sm:$0xf]
      %v516 = vld [vmem:[%s429 + $0x9c] sm:$0xf]
      %v517 = vld [vmem:[%s429 + $0xa0] sm:$0xf]
      %v518 = vld [vmem:[%s429 + $0xa4] sm:$0xf]
      %v519 = vld [vmem:[%s429 + $0xa8] sm:$0xf]
      %v520 = vld [vmem:[%s429 + $0xac] sm:$0xf]
      %v521 = vld [vmem:[%s429 + $0xb0] sm:$0xf]
      %v522 = vld [vmem:[%s429 + $0xb4] sm:$0xf]
      %v523 = vld [vmem:[%s429 + $0xb8] sm:$0xf]
      %v524 = vld [vmem:[%s429 + $0xbc] sm:$0xf]
      %v525 = vld [vmem:[%s443] sm:$0xf]
      %v526 = vld [vmem:[%s443 + $0x4] sm:$0xf]
      %v527 = vld [vmem:[%s443 + $0x8] sm:$0xf]
      %v528 = vld [vmem:[%s4] sm:$0x1]
      %v529 = vld [vmem:[%s5] sm:$0x1]
      %v531 = vpack.i.b16 %v528, %v528
      %v533 = vlaneseq
      %v534 = vshrl.u32 %v533, 7
      %v535 = vsub.s32 0, %v534
      %v536 = vrot.slane %v531, %v535
      %v538 = vunpack.c.l.b16 %v536
      %v539 = vpack.c.b16 %v538, %v538
      %v541 = vmul.bf16 %v477, %v539
      %v542 = vmul.bf16 %v478, %v539
      %v543 = vmul.bf16 %v479, %v539
      %v544 = vmul.bf16 %v480, %v539
      %v545 = vmul.bf16 %v481, %v539
      %v546 = vmul.bf16 %v482, %v539
      %v547 = vmul.bf16 %v483, %v539
      %v548 = vmul.bf16 %v484, %v539
      %v549 = vmul.bf16 %v485, %v539
      %v550 = vmul.bf16 %v486, %v539
      %v551 = vmul.bf16 %v487, %v539
      %v552 = vmul.bf16 %v488, %v539
      %v553 = vmul.bf16 %v489, %v539
      %v554 = vmul.bf16 %v490, %v539
      %v555 = vmul.bf16 %v491, %v539
      %v556 = vmul.bf16 %v492, %v539
      %v557 = vmul.bf16 %v493, %v539
      %v558 = vmul.bf16 %v494, %v539
      %v559 = vmul.bf16 %v495, %v539
      %v560 = vmul.bf16 %v496, %v539
      %v561 = vmul.bf16 %v497, %v539
      %v562 = vmul.bf16 %v498, %v539
      %v563 = vmul.bf16 %v499, %v539
      %v564 = vmul.bf16 %v500, %v539
      %v565 = vmul.bf16 %v501, %v539
      %v566 = vmul.bf16 %v502, %v539
      %v567 = vmul.bf16 %v503, %v539
      %v568 = vmul.bf16 %v504, %v539
      %v569 = vmul.bf16 %v505, %v539
      %v570 = vmul.bf16 %v506, %v539
      %v571 = vmul.bf16 %v507, %v539
      %v572 = vmul.bf16 %v508, %v539
      %v573 = vmul.bf16 %v509, %v539
      %v574 = vmul.bf16 %v510, %v539
      %v575 = vmul.bf16 %v511, %v539
      %v576 = vmul.bf16 %v512, %v539
      %v577 = vmul.bf16 %v513, %v539
      %v578 = vmul.bf16 %v514, %v539
      %v579 = vmul.bf16 %v515, %v539
      %v580 = vmul.bf16 %v516, %v539
      %v581 = vmul.bf16 %v517, %v539
      %v582 = vmul.bf16 %v518, %v539
      %v583 = vmul.bf16 %v519, %v539
      %v584 = vmul.bf16 %v520, %v539
      %v585 = vmul.bf16 %v521, %v539
      %v586 = vmul.bf16 %v522, %v539
      %v587 = vmul.bf16 %v523, %v539
      %v588 = vmul.bf16 %v524, %v539
      %v590 = vpack.i.b16 %v529, %v529
      %v592 = vlaneseq
      %v593 = vshrl.u32 %v592, 7
      %v594 = vsub.s32 0, %v593
      %v595 = vrot.slane %v590, %v594
      %v597 = vunpack.c.l.b16 %v595
      %v598 = vpack.c.b16 %v597, %v597
      %v600 = vadd.bf16 %v541, %v598
      %v601 = vadd.bf16 %v542, %v598
      %v602 = vadd.bf16 %v543, %v598
      %v603 = vadd.bf16 %v544, %v598
      %v604 = vadd.bf16 %v545, %v598
      %v605 = vadd.bf16 %v546, %v598
      %v606 = vadd.bf16 %v547, %v598
      %v607 = vadd.bf16 %v548, %v598
      %v608 = vadd.bf16 %v549, %v598
      %v609 = vadd.bf16 %v550, %v598
      %v610 = vadd.bf16 %v551, %v598
      %v611 = vadd.bf16 %v552, %v598
      %v612 = vadd.bf16 %v553, %v598
      %v613 = vadd.bf16 %v554, %v598
      %v614 = vadd.bf16 %v555, %v598
      %v615 = vadd.bf16 %v556, %v598
      %v616 = vadd.bf16 %v557, %v598
      %v617 = vadd.bf16 %v558, %v598
      %v618 = vadd.bf16 %v559, %v598
      %v619 = vadd.bf16 %v560, %v598
      %v620 = vadd.bf16 %v561, %v598
      %v621 = vadd.bf16 %v562, %v598
      %v622 = vadd.bf16 %v563, %v598
      %v623 = vadd.bf16 %v564, %v598
      %v624 = vadd.bf16 %v565, %v598
      %v625 = vadd.bf16 %v566, %v598
      %v626 = vadd.bf16 %v567, %v598
      %v627 = vadd.bf16 %v568, %v598
      %v628 = vadd.bf16 %v569, %v598
      %v629 = vadd.bf16 %v570, %v598
      %v630 = vadd.bf16 %v571, %v598
      %v631 = vadd.bf16 %v572, %v598
      %v632 = vadd.bf16 %v573, %v598
      %v633 = vadd.bf16 %v574, %v598
      %v634 = vadd.bf16 %v575, %v598
      %v635 = vadd.bf16 %v576, %v598
      %v636 = vadd.bf16 %v577, %v598
      %v637 = vadd.bf16 %v578, %v598
      %v638 = vadd.bf16 %v579, %v598
      %v639 = vadd.bf16 %v580, %v598
      %v640 = vadd.bf16 %v581, %v598
      %v641 = vadd.bf16 %v582, %v598
      %v642 = vadd.bf16 %v583, %v598
      %v643 = vadd.bf16 %v584, %v598
      %v644 = vadd.bf16 %v585, %v598
      %v645 = vadd.bf16 %v586, %v598
      %v646 = vadd.bf16 %v587, %v598
      %v647 = vadd.bf16 %v588, %v598
      %v648 = vmax.bf16 %v600, 0
      %v649 = vmax.bf16 %v601, 0
      %v650 = vmax.bf16 %v602, 0
      %v651 = vmax.bf16 %v603, 0
      %v652 = vmax.bf16 %v604, 0
      %v653 = vmax.bf16 %v605, 0
      %v654 = vmax.bf16 %v606, 0
      %v655 = vmax.bf16 %v607, 0
      %v656 = vmax.bf16 %v608, 0
      %v657 = vmax.bf16 %v609, 0
      %v658 = vmax.bf16 %v610, 0
      %v659 = vmax.bf16 %v611, 0
      %v660 = vmax.bf16 %v612, 0
      %v661 = vmax.bf16 %v613, 0
      %v662 = vmax.bf16 %v614, 0
      %v663 = vmax.bf16 %v615, 0
      %v664 = vmax.bf16 %v616, 0
      %v665 = vmax.bf16 %v617, 0
      %v666 = vmax.bf16 %v618, 0
      %v667 = vmax.bf16 %v619, 0
      %v668 = vmax.bf16 %v620, 0
      %v669 = vmax.bf16 %v621, 0
      %v670 = vmax.bf16 %v622, 0
      %v671 = vmax.bf16 %v623, 0
      %v672 = vmax.bf16 %v624, 0
      %v673 = vmax.bf16 %v625, 0
      %v674 = vmax.bf16 %v626, 0
      %v675 = vmax.bf16 %v627, 0
      %v676 = vmax.bf16 %v628, 0
      %v677 = vmax.bf16 %v629, 0
      %v678 = vmax.bf16 %v630, 0
      %v679 = vmax.bf16 %v631, 0
      %v680 = vmax.bf16 %v632, 0
      %v681 = vmax.bf16 %v633, 0
      %v682 = vmax.bf16 %v634, 0
      %v683 = vmax.bf16 %v635, 0
      %v684 = vmax.bf16 %v636, 0
      %v685 = vmax.bf16 %v637, 0
      %v686 = vmax.bf16 %v638, 0
      %v687 = vmax.bf16 %v639, 0
      %v688 = vmax.bf16 %v640, 0
      %v689 = vmax.bf16 %v641, 0
      %v690 = vmax.bf16 %v642, 0
      %v691 = vmax.bf16 %v643, 0
      %v692 = vmax.bf16 %v644, 0
      %v693 = vmax.bf16 %v645, 0
      %v694 = vmax.bf16 %v646, 0
      %v695 = vmax.bf16 %v647, 0
      %v696 = vsel %vm471, 1, 0
      %v697 = vsel %vm472, 1, 0
      %v698 = vsel %vm473, 1, 0
      %vm699 = vcmp.eq.s32.totalorder %v696, 1
      %vm700 = vcmp.eq.s32.totalorder %v697, 1
      %vm701 = vcmp.eq.s32.totalorder %v698, 1
      %vm702 = vmpackc.low %vm699, %vm699
      %vm703 = vmpackc.low %vm700, %vm700
      %vm704 = vmpackc.low %vm701, %vm701
      %v705 = vsel %vm702, %v648, 0
      %v706 = vsel %vm703, %v649, 0
      %v707 = vsel %vm704, %v650, 0
      %v708 = vsel %vm702, %v651, 0
      %v709 = vsel %vm703, %v652, 0
      %v710 = vsel %vm704, %v653, 0
      %v711 = vsel %vm702, %v654, 0
      %v712 = vsel %vm703, %v655, 0
      %v713 = vsel %vm704, %v656, 0
      %v714 = vsel %vm702, %v657, 0
      %v715 = vsel %vm703, %v658, 0
      %v716 = vsel %vm704, %v659, 0
      %v717 = vsel %vm702, %v660, 0
      %v718 = vsel %vm703, %v661, 0
      %v719 = vsel %vm704, %v662, 0
      %v720 = vsel %vm702, %v663, 0
      %v721 = vsel %vm703, %v664, 0
      %v722 = vsel %vm704, %v665, 0
      %v723 = vsel %vm702, %v666, 0
      %v724 = vsel %vm703, %v667, 0
      %v725 = vsel %vm704, %v668, 0
      %v726 = vsel %vm702, %v669, 0
      %v727 = vsel %vm703, %v670, 0
      %v728 = vsel %vm704, %v671, 0
      %v729 = vsel %vm702, %v672, 0
      %v730 = vsel %vm703, %v673, 0
      %v731 = vsel %vm704, %v674, 0
      %v732 = vsel %vm702, %v675, 0
      %v733 = vsel %vm703, %v676, 0
      %v734 = vsel %vm704, %v677, 0
      %v735 = vsel %vm702, %v678, 0
      %v736 = vsel %vm703, %v679, 0
      %v737 = vsel %vm704, %v680, 0
      %v738 = vsel %vm702, %v681, 0
      %v739 = vsel %vm703, %v682, 0
      %v740 = vsel %vm704, %v683, 0
      %v741 = vsel %vm702, %v684, 0
      %v742 = vsel %vm703, %v685, 0
      %v743 = vsel %vm704, %v686, 0
      %v744 = vsel %vm702, %v687, 0
      %v745 = vsel %vm703, %v688, 0
      %v746 = vsel %vm704, %v689, 0
      %v747 = vsel %vm702, %v690, 0
      %v748 = vsel %vm703, %v691, 0
      %v749 = vsel %vm704, %v692, 0
      %v750 = vsel %vm702, %v693, 0
      %v751 = vsel %vm703, %v694, 0
      %v752 = vsel %vm704, %v695, 0
      %v753 = vmul.bf16 %v474, %v539
      %v754 = vmul.bf16 %v475, %v539
      %v755 = vmul.bf16 %v476, %v539
      %v756 = vadd.bf16 %v753, %v598
      %v757 = vadd.bf16 %v754, %v598
      %v758 = vadd.bf16 %v755, %v598
      %v759 = vmax.bf16 %v756, 0
      %v760 = vmax.bf16 %v757, 0
      %v761 = vmax.bf16 %v758, 0
      %v762 = vsel %vm702, %v759, 0
      %v763 = vsel %vm703, %v760, 0
      %v764 = vsel %vm704, %v761, 0
      %v765 = vmul.bf16 %v525, %v539
      %v766 = vmul.bf16 %v526, %v539
      %v767 = vmul.bf16 %v527, %v539
      %v768 = vadd.bf16 %v765, %v598
      %v769 = vadd.bf16 %v766, %v598
      %v770 = vadd.bf16 %v767, %v598
      %v771 = vmax.bf16 %v768, 0
      %v772 = vmax.bf16 %v769, 0
      %v773 = vmax.bf16 %v770, 0
      %v774 = vsel %vm702, %v771, 0
      %v775 = vsel %vm703, %v772, 0
      %v776 = vsel %vm704, %v773, 0
      %p777 = scmp.gt.s32.totalorder %s24, 0
      %s778 = scalar_select %p777, 1, 0
      %v779 = vstv %s778
      %vm780 = vcmp.eq.s32.totalorder %v779, 1
      %v781 = vsel %vm780, %v762, 0
      %v782 = vsel %vm780, %v763, 0
      %v783 = vsel %vm780, %v764, 0
      %s784 = sadd.s32 %s24, 1
      %p785 = scmp.lt.s32.totalorder %s784, 1
      %s786 = scalar_select %p785, 1, 0
      %v787 = vstv %s786
      %vm788 = vcmp.eq.s32.totalorder %v787, 1
      %v789 = vsel %vm788, %v774, 0
      %v790 = vsel %vm788, %v775, 0
      %v791 = vsel %vm788, %v776, 0
      %v846 = vunpack.c.l.b16 %v781
      %v847 = vunpack.c.l.b16 %v782
      %v848 = vunpack.c.l.b16 %v783
      %v849 = vunpack.c.l.b16 %v705
      %v850 = vunpack.c.l.b16 %v706
      %v851 = vunpack.c.l.b16 %v707
      %v852 = vunpack.c.l.b16 %v708
      %v853 = vunpack.c.l.b16 %v709
      %v854 = vunpack.c.l.b16 %v710
      %v855 = vunpack.c.l.b16 %v711
      %v856 = vunpack.c.l.b16 %v712
      %v857 = vunpack.c.l.b16 %v713
      %v858 = vunpack.c.l.b16 %v714
      %v859 = vunpack.c.l.b16 %v715
      %v860 = vunpack.c.l.b16 %v716
      %v861 = vunpack.c.l.b16 %v717
      %v862 = vunpack.c.l.b16 %v718
      %v863 = vunpack.c.l.b16 %v719
      %v864 = vunpack.c.l.b16 %v720
      %v865 = vunpack.c.l.b16 %v721
      %v866 = vunpack.c.l.b16 %v722
      %v867 = vunpack.c.l.b16 %v723
      %v868 = vunpack.c.l.b16 %v724
      %v869 = vunpack.c.l.b16 %v725
      %v870 = vunpack.c.l.b16 %v726
      %v871 = vunpack.c.l.b16 %v727
      %v872 = vunpack.c.l.b16 %v728
      %v873 = vunpack.c.l.b16 %v729
      %v874 = vunpack.c.l.b16 %v730
      %v875 = vunpack.c.l.b16 %v731
      %v876 = vunpack.c.l.b16 %v732
      %v877 = vunpack.c.l.b16 %v733
      %v878 = vunpack.c.l.b16 %v734
      %v879 = vunpack.c.l.b16 %v735
      %v880 = vunpack.c.l.b16 %v736
      %v881 = vunpack.c.l.b16 %v737
      %v882 = vunpack.c.l.b16 %v738
      %v883 = vunpack.c.l.b16 %v739
      %v884 = vunpack.c.l.b16 %v740
      %v885 = vunpack.c.l.b16 %v741
      %v886 = vunpack.c.l.b16 %v742
      %v887 = vunpack.c.l.b16 %v743
      %v888 = vunpack.c.l.b16 %v744
      %v889 = vunpack.c.l.b16 %v745
      %v890 = vunpack.c.l.b16 %v746
      %v891 = vunpack.c.l.b16 %v747
      %v892 = vunpack.c.l.b16 %v748
      %v893 = vunpack.c.l.b16 %v749
      %v894 = vunpack.c.l.b16 %v750
      %v895 = vunpack.c.l.b16 %v751
      %v896 = vunpack.c.l.b16 %v752
      %v897 = vunpack.c.l.b16 %v789
      %v898 = vunpack.c.l.b16 %v790
      %v899 = vunpack.c.l.b16 %v791
      %v900 = vpack.c.b16 %v847, %v846
      %v901 = vpack.c.b16 %v848, %v848
      %v902 = vpack.c.b16 %v850, %v849
      %v903 = vpack.c.b16 %v851, %v851
      %v904 = vpack.c.b16 %v853, %v852
      %v905 = vpack.c.b16 %v854, %v854
      %v906 = vpack.c.b16 %v856, %v855
      %v907 = vpack.c.b16 %v857, %v857
      %v908 = vpack.c.b16 %v859, %v858
      %v909 = vpack.c.b16 %v860, %v860
      %v910 = vpack.c.b16 %v862, %v861
      %v911 = vpack.c.b16 %v863, %v863
      %v912 = vpack.c.b16 %v865, %v864
      %v913 = vpack.c.b16 %v866, %v866
      %v914 = vpack.c.b16 %v868, %v867
      %v915 = vpack.c.b16 %v869, %v869
      %v916 = vpack.c.b16 %v871, %v870
      %v917 = vpack.c.b16 %v872, %v872
      %v918 = vpack.c.b16 %v874, %v873
      %v919 = vpack.c.b16 %v875, %v875
      %v920 = vpack.c.b16 %v877, %v876
      %v921 = vpack.c.b16 %v878, %v878
      %v922 = vpack.c.b16 %v880, %v879
      %v923 = vpack.c.b16 %v881, %v881
      %v924 = vpack.c.b16 %v883, %v882
      %v925 = vpack.c.b16 %v884, %v884
      %v926 = vpack.c.b16 %v886, %v885
      %v927 = vpack.c.b16 %v887, %v887
      %v928 = vpack.c.b16 %v889, %v888
      %v929 = vpack.c.b16 %v890, %v890
      %v930 = vpack.c.b16 %v892, %v891
      %v931 = vpack.c.b16 %v893, %v893
      %v932 = vpack.c.b16 %v895, %v894
      %v933 = vpack.c.b16 %v896, %v896
      %v934 = vpack.c.b16 %v898, %v897
      %v935 = vpack.c.b16 %v899, %v899
      %vm936 = vsmask.f32 256
      %v938 = vshrl.u32 %v900, 16
      %v940 = vrot.slane %v938, 7
      %v941 = vshll.u32 %v900, 16
      %v943 = vor.u32 %v940, %v941
      %v945 = vshrl.u32 %v901, 16
      %v947 = vrot.slane %v945, 7
      %v948 = vshll.u32 %v901, 16
      %v950 = vor.u32 %v947, %v948
      %v951 = vsel %vm936, %v940, %v950
      %v953 = vshrl.u32 %v902, 16
      %v955 = vrot.slane %v953, 7
      %v956 = vshll.u32 %v902, 16
      %v958 = vor.u32 %v955, %v956
      %v960 = vshrl.u32 %v903, 16
      %v962 = vrot.slane %v960, 7
      %v963 = vshll.u32 %v903, 16
      %v965 = vor.u32 %v962, %v963
      %v966 = vsel %vm936, %v955, %v965
      %v968 = vshrl.u32 %v904, 16
      %v970 = vrot.slane %v968, 7
      %v971 = vshll.u32 %v904, 16
      %v973 = vor.u32 %v970, %v971
      %v975 = vshrl.u32 %v905, 16
      %v977 = vrot.slane %v975, 7
      %v978 = vshll.u32 %v905, 16
      %v980 = vor.u32 %v977, %v978
      %v981 = vsel %vm936, %v970, %v980
      %v983 = vshrl.u32 %v906, 16
      %v985 = vrot.slane %v983, 7
      %v986 = vshll.u32 %v906, 16
      %v988 = vor.u32 %v985, %v986
      %v990 = vshrl.u32 %v907, 16
      %v992 = vrot.slane %v990, 7
      %v993 = vshll.u32 %v907, 16
      %v995 = vor.u32 %v992, %v993
      %v996 = vsel %vm936, %v985, %v995
      %v998 = vshrl.u32 %v908, 16
      %v1000 = vrot.slane %v998, 7
      %v1001 = vshll.u32 %v908, 16
      %v1003 = vor.u32 %v1000, %v1001
      %v1005 = vshrl.u32 %v909, 16
      %v1007 = vrot.slane %v1005, 7
      %v1008 = vshll.u32 %v909, 16
      %v1010 = vor.u32 %v1007, %v1008
      %v1011 = vsel %vm936, %v1000, %v1010
      %v1013 = vshrl.u32 %v910, 16
      %v1015 = vrot.slane %v1013, 7
      %v1016 = vshll.u32 %v910, 16
      %v1018 = vor.u32 %v1015, %v1016
      %v1020 = vshrl.u32 %v911, 16
      %v1022 = vrot.slane %v1020, 7
      %v1023 = vshll.u32 %v911, 16
      %v1025 = vor.u32 %v1022, %v1023
      %v1026 = vsel %vm936, %v1015, %v1025
      %v1028 = vshrl.u32 %v912, 16
      %v1030 = vrot.slane %v1028, 7
      %v1031 = vshll.u32 %v912, 16
      %v1033 = vor.u32 %v1030, %v1031
      %v1035 = vshrl.u32 %v913, 16
      %v1037 = vrot.slane %v1035, 7
      %v1038 = vshll.u32 %v913, 16
      %v1040 = vor.u32 %v1037, %v1038
      %v1041 = vsel %vm936, %v1030, %v1040
      %v1043 = vshrl.u32 %v914, 16
      %v1045 = vrot.slane %v1043, 7
      %v1046 = vshll.u32 %v914, 16
      %v1048 = vor.u32 %v1045, %v1046
      %v1050 = vshrl.u32 %v915, 16
      %v1052 = vrot.slane %v1050, 7
      %v1053 = vshll.u32 %v915, 16
      %v1055 = vor.u32 %v1052, %v1053
      %v1056 = vsel %vm936, %v1045, %v1055
      %v1058 = vshrl.u32 %v916, 16
      %v1060 = vrot.slane %v1058, 7
      %v1061 = vshll.u32 %v916, 16
      %v1063 = vor.u32 %v1060, %v1061
      %v1065 = vshrl.u32 %v917, 16
      %v1067 = vrot.slane %v1065, 7
      %v1068 = vshll.u32 %v917, 16
      %v1070 = vor.u32 %v1067, %v1068
      %v1071 = vsel %vm936, %v1060, %v1070
      %v1073 = vshrl.u32 %v918, 16
      %v1075 = vrot.slane %v1073, 7
      %v1076 = vshll.u32 %v918, 16
      %v1078 = vor.u32 %v1075, %v1076
      %v1080 = vshrl.u32 %v919, 16
      %v1082 = vrot.slane %v1080, 7
      %v1083 = vshll.u32 %v919, 16
      %v1085 = vor.u32 %v1082, %v1083
      %v1086 = vsel %vm936, %v1075, %v1085
      %v1088 = vshrl.u32 %v920, 16
      %v1090 = vrot.slane %v1088, 7
      %v1091 = vshll.u32 %v920, 16
      %v1093 = vor.u32 %v1090, %v1091
      %v1095 = vshrl.u32 %v921, 16
      %v1097 = vrot.slane %v1095, 7
      %v1098 = vshll.u32 %v921, 16
      %v1100 = vor.u32 %v1097, %v1098
      %v1101 = vsel %vm936, %v1090, %v1100
      %v1103 = vshrl.u32 %v922, 16
      %v1105 = vrot.slane %v1103, 7
      %v1106 = vshll.u32 %v922, 16
      %v1108 = vor.u32 %v1105, %v1106
      %v1110 = vshrl.u32 %v923, 16
      %v1112 = vrot.slane %v1110, 7
      %v1113 = vshll.u32 %v923, 16
      %v1115 = vor.u32 %v1112, %v1113
      %v1116 = vsel %vm936, %v1105, %v1115
      %v1118 = vshrl.u32 %v924, 16
      %v1120 = vrot.slane %v1118, 7
      %v1121 = vshll.u32 %v924, 16
      %v1123 = vor.u32 %v1120, %v1121
      %v1125 = vshrl.u32 %v925, 16
      %v1127 = vrot.slane %v1125, 7
      %v1128 = vshll.u32 %v925, 16
      %v1130 = vor.u32 %v1127, %v1128
      %v1131 = vsel %vm936, %v1120, %v1130
      %v1133 = vshrl.u32 %v926, 16
      %v1135 = vrot.slane %v1133, 7
      %v1136 = vshll.u32 %v926, 16
      %v1138 = vor.u32 %v1135, %v1136
      %v1140 = vshrl.u32 %v927, 16
      %v1142 = vrot.slane %v1140, 7
      %v1143 = vshll.u32 %v927, 16
      %v1145 = vor.u32 %v1142, %v1143
      %v1146 = vsel %vm936, %v1135, %v1145
      %v1148 = vshrl.u32 %v928, 16
      %v1150 = vrot.slane %v1148, 7
      %v1151 = vshll.u32 %v928, 16
      %v1153 = vor.u32 %v1150, %v1151
      %v1155 = vshrl.u32 %v929, 16
      %v1157 = vrot.slane %v1155, 7
      %v1158 = vshll.u32 %v929, 16
      %v1160 = vor.u32 %v1157, %v1158
      %v1161 = vsel %vm936, %v1150, %v1160
      %v1163 = vshrl.u32 %v930, 16
      %v1165 = vrot.slane %v1163, 7
      %v1166 = vshll.u32 %v930, 16
      %v1168 = vor.u32 %v1165, %v1166
      %v1170 = vshrl.u32 %v931, 16
      %v1172 = vrot.slane %v1170, 7
      %v1173 = vshll.u32 %v931, 16
      %v1175 = vor.u32 %v1172, %v1173
      %v1176 = vsel %vm936, %v1165, %v1175
      %v1178 = vshrl.u32 %v932, 16
      %v1180 = vrot.slane %v1178, 7
      %v1181 = vshll.u32 %v932, 16
      %v1183 = vor.u32 %v1180, %v1181
      %v1185 = vshrl.u32 %v933, 16
      %v1187 = vrot.slane %v1185, 7
      %v1188 = vshll.u32 %v933, 16
      %v1190 = vor.u32 %v1187, %v1188
      %v1191 = vsel %vm936, %v1180, %v1190
      %v1193 = vshrl.u32 %v934, 16
      %v1195 = vrot.slane %v1193, 7
      %v1196 = vshll.u32 %v934, 16
      %v1198 = vor.u32 %v1195, %v1196
      %v1200 = vshrl.u32 %v935, 16
      %v1202 = vrot.slane %v1200, 7
      %v1203 = vshll.u32 %v935, 16
      %v1205 = vor.u32 %v1202, %v1203
      %v1206 = vsel %vm936, %v1195, %v1205
      %vm1225 = vcmask 1040384
      %vm1226 = vmand %vm1225, %vm936
      %v1227 = vsel %vm1226, 0, %v943
      %v1228 = vsel %vm1226, 0, %v958
      %v1229 = vsel %vm1226, 0, %v973
      %v1230 = vsel %vm1226, 0, %v988
      %v1231 = vsel %vm1226, 0, %v1003
      %v1232 = vsel %vm1226, 0, %v1018
      %v1233 = vsel %vm1226, 0, %v1033
      %v1234 = vsel %vm1226, 0, %v1048
      %v1235 = vsel %vm1226, 0, %v1063
      %v1236 = vsel %vm1226, 0, %v1078
      %v1237 = vsel %vm1226, 0, %v1093
      %v1238 = vsel %vm1226, 0, %v1108
      %v1239 = vsel %vm1226, 0, %v1123
      %v1240 = vsel %vm1226, 0, %v1138
      %v1241 = vsel %vm1226, 0, %v1153
      %v1242 = vsel %vm1226, 0, %v1168
      %v1243 = vsel %vm1226, 0, %v1183
      %v1244 = vsel %vm1226, 0, %v1198
      %vm1245 = vsmask.f32 7424
      %v1246 = vrot.slane %v941, 1
      %v1247 = vor.u32 %v938, %v1246
      %v1248 = vrot.slane %v948, 1
      %v1249 = vsel %vm1245, %v1247, %v1248
      %v1250 = vor.u32 %v945, %v1248
      %v1251 = vrot.slane %v956, 1
      %v1252 = vor.u32 %v953, %v1251
      %v1253 = vrot.slane %v963, 1
      %v1254 = vsel %vm1245, %v1252, %v1253
      %v1255 = vor.u32 %v960, %v1253
      %v1256 = vrot.slane %v971, 1
      %v1257 = vor.u32 %v968, %v1256
      %v1258 = vrot.slane %v978, 1
      %v1259 = vsel %vm1245, %v1257, %v1258
      %v1260 = vor.u32 %v975, %v1258
      %v1261 = vrot.slane %v986, 1
      %v1262 = vor.u32 %v983, %v1261
      %v1263 = vrot.slane %v993, 1
      %v1264 = vsel %vm1245, %v1262, %v1263
      %v1265 = vor.u32 %v990, %v1263
      %v1266 = vrot.slane %v1001, 1
      %v1267 = vor.u32 %v998, %v1266
      %v1268 = vrot.slane %v1008, 1
      %v1269 = vsel %vm1245, %v1267, %v1268
      %v1270 = vor.u32 %v1005, %v1268
      %v1271 = vrot.slane %v1016, 1
      %v1272 = vor.u32 %v1013, %v1271
      %v1273 = vrot.slane %v1023, 1
      %v1274 = vsel %vm1245, %v1272, %v1273
      %v1275 = vor.u32 %v1020, %v1273
      %v1276 = vrot.slane %v1031, 1
      %v1277 = vor.u32 %v1028, %v1276
      %v1278 = vrot.slane %v1038, 1
      %v1279 = vsel %vm1245, %v1277, %v1278
      %v1280 = vor.u32 %v1035, %v1278
      %v1281 = vrot.slane %v1046, 1
      %v1282 = vor.u32 %v1043, %v1281
      %v1283 = vrot.slane %v1053, 1
      %v1284 = vsel %vm1245, %v1282, %v1283
      %v1285 = vor.u32 %v1050, %v1283
      %v1286 = vrot.slane %v1061, 1
      %v1287 = vor.u32 %v1058, %v1286
      %v1288 = vrot.slane %v1068, 1
      %v1289 = vsel %vm1245, %v1287, %v1288
      %v1290 = vor.u32 %v1065, %v1288
      %v1291 = vrot.slane %v1076, 1
      %v1292 = vor.u32 %v1073, %v1291
      %v1293 = vrot.slane %v1083, 1
      %v1294 = vsel %vm1245, %v1292, %v1293
      %v1295 = vor.u32 %v1080, %v1293
      %v1296 = vrot.slane %v1091, 1
      %v1297 = vor.u32 %v1088, %v1296
      %v1298 = vrot.slane %v1098, 1
      %v1299 = vsel %vm1245, %v1297, %v1298
      %v1300 = vor.u32 %v1095, %v1298
      %v1301 = vrot.slane %v1106, 1
      %v1302 = vor.u32 %v1103, %v1301
      %v1303 = vrot.slane %v1113, 1
      %v1304 = vsel %vm1245, %v1302, %v1303
      %v1305 = vor.u32 %v1110, %v1303
      %v1306 = vrot.slane %v1121, 1
      %v1307 = vor.u32 %v1118, %v1306
      %v1308 = vrot.slane %v1128, 1
      %v1309 = vsel %vm1245, %v1307, %v1308
      %v1310 = vor.u32 %v1125, %v1308
      %v1311 = vrot.slane %v1136, 1
      %v1312 = vor.u32 %v1133, %v1311
      %v1313 = vrot.slane %v1143, 1
      %v1314 = vsel %vm1245, %v1312, %v1313
      %v1315 = vor.u32 %v1140, %v1313
      %v1316 = vrot.slane %v1151, 1
      %v1317 = vor.u32 %v1148, %v1316
      %v1318 = vrot.slane %v1158, 1
      %v1319 = vsel %vm1245, %v1317, %v1318
      %v1320 = vor.u32 %v1155, %v1318
      %v1321 = vrot.slane %v1166, 1
      %v1322 = vor.u32 %v1163, %v1321
      %v1323 = vrot.slane %v1173, 1
      %v1324 = vsel %vm1245, %v1322, %v1323
      %v1325 = vor.u32 %v1170, %v1323
      %v1326 = vrot.slane %v1181, 1
      %v1327 = vor.u32 %v1178, %v1326
      %v1328 = vrot.slane %v1188, 1
      %v1329 = vsel %vm1245, %v1327, %v1328
      %v1330 = vor.u32 %v1185, %v1328
      %v1331 = vrot.slane %v1196, 1
      %v1332 = vor.u32 %v1193, %v1331
      %v1333 = vrot.slane %v1203, 1
      %v1334 = vsel %vm1245, %v1332, %v1333
      %v1335 = vor.u32 %v1200, %v1333
      %vm1354 = vcmask 1043456
      %vm1355 = vsmask.f32 3328
      %vm1356 = vmand %vm1354, %vm1355
      %v1357 = vsel %vm1356, %v1250, 0
      %v1358 = vsel %vm1356, %v1255, 0
      %v1359 = vsel %vm1356, %v1260, 0
      %v1360 = vsel %vm1356, %v1265, 0
      %v1361 = vsel %vm1356, %v1270, 0
      %v1362 = vsel %vm1356, %v1275, 0
      %v1363 = vsel %vm1356, %v1280, 0
      %v1364 = vsel %vm1356, %v1285, 0
      %v1365 = vsel %vm1356, %v1290, 0
      %v1366 = vsel %vm1356, %v1295, 0
      %v1367 = vsel %vm1356, %v1300, 0
      %v1368 = vsel %vm1356, %v1305, 0
      %v1369 = vsel %vm1356, %v1310, 0
      %v1370 = vsel %vm1356, %v1315, 0
      %v1371 = vsel %vm1356, %v1320, 0
      %v1372 = vsel %vm1356, %v1325, 0
      %v1373 = vsel %vm1356, %v1330, 0
      %v1374 = vsel %vm1356, %v1335, 0
      %v1407 = vunpack.c.l.b16 %v1227
      %v1408 = vunpack.c.l.b16 %v1249
      %v1409 = vunpack.c.h.b16 %v1227
      %v1410 = vunpack.c.h.b16 %v1249
      %v1411 = vunpack.c.l.b16 %v951
      %v1412 = vunpack.c.l.b16 %v1357
      %v1413 = vunpack.c.l.b16 %v1228
      %v1414 = vunpack.c.l.b16 %v1254
      %v1415 = vunpack.c.h.b16 %v1228
      %v1416 = vunpack.c.h.b16 %v1254
      %v1417 = vunpack.c.l.b16 %v966
      %v1418 = vunpack.c.l.b16 %v1358
      %v1419 = vunpack.c.l.b16 %v1229
      %v1420 = vunpack.c.l.b16 %v1259
      %v1421 = vunpack.c.h.b16 %v1229
      %v1422 = vunpack.c.h.b16 %v1259
      %v1423 = vunpack.c.l.b16 %v981
      %v1424 = vunpack.c.l.b16 %v1359
      %v1425 = vunpack.c.l.b16 %v1230
      %v1426 = vunpack.c.l.b16 %v1264
      %v1427 = vunpack.c.h.b16 %v1230
      %v1428 = vunpack.c.h.b16 %v1264
      %v1429 = vunpack.c.l.b16 %v996
      %v1430 = vunpack.c.l.b16 %v1360
      %v1431 = vunpack.c.l.b16 %v1231
      %v1432 = vunpack.c.l.b16 %v1269
      %v1433 = vunpack.c.h.b16 %v1231
      %v1434 = vunpack.c.h.b16 %v1269
      %v1435 = vunpack.c.l.b16 %v1011
      %v1436 = vunpack.c.l.b16 %v1361
      %v1437 = vunpack.c.l.b16 %v1232
      %v1438 = vunpack.c.l.b16 %v1274
      %v1439 = vunpack.c.h.b16 %v1232
      %v1440 = vunpack.c.h.b16 %v1274
      %v1441 = vunpack.c.l.b16 %v1026
      %v1442 = vunpack.c.l.b16 %v1362
      %v1443 = vunpack.c.l.b16 %v1233
      %v1444 = vunpack.c.l.b16 %v1279
      %v1445 = vunpack.c.h.b16 %v1233
      %v1446 = vunpack.c.h.b16 %v1279
      %v1447 = vunpack.c.l.b16 %v1041
      %v1448 = vunpack.c.l.b16 %v1363
      %v1449 = vunpack.c.l.b16 %v1234
      %v1450 = vunpack.c.l.b16 %v1284
      %v1451 = vunpack.c.h.b16 %v1234
      %v1452 = vunpack.c.h.b16 %v1284
      %v1453 = vunpack.c.l.b16 %v1056
      %v1454 = vunpack.c.l.b16 %v1364
      %v1455 = vunpack.c.l.b16 %v1235
      %v1456 = vunpack.c.l.b16 %v1289
      %v1457 = vunpack.c.h.b16 %v1235
      %v1458 = vunpack.c.h.b16 %v1289
      %v1459 = vunpack.c.l.b16 %v1071
      %v1460 = vunpack.c.l.b16 %v1365
      %v1461 = vunpack.c.l.b16 %v1236
      %v1462 = vunpack.c.l.b16 %v1294
      %v1463 = vunpack.c.h.b16 %v1236
      %v1464 = vunpack.c.h.b16 %v1294
      %v1465 = vunpack.c.l.b16 %v1086
      %v1466 = vunpack.c.l.b16 %v1366
      %v1467 = vunpack.c.l.b16 %v1237
      %v1468 = vunpack.c.l.b16 %v1299
      %v1469 = vunpack.c.h.b16 %v1237
      %v1470 = vunpack.c.h.b16 %v1299
      %v1471 = vunpack.c.l.b16 %v1101
      %v1472 = vunpack.c.l.b16 %v1367
      %v1473 = vunpack.c.l.b16 %v1238
      %v1474 = vunpack.c.l.b16 %v1304
      %v1475 = vunpack.c.h.b16 %v1238
      %v1476 = vunpack.c.h.b16 %v1304
      %v1477 = vunpack.c.l.b16 %v1116
      %v1478 = vunpack.c.l.b16 %v1368
      %v1479 = vunpack.c.l.b16 %v1239
      %v1480 = vunpack.c.l.b16 %v1309
      %v1481 = vunpack.c.h.b16 %v1239
      %v1482 = vunpack.c.h.b16 %v1309
      %v1483 = vunpack.c.l.b16 %v1131
      %v1484 = vunpack.c.l.b16 %v1369
      %v1485 = vunpack.c.l.b16 %v1240
      %v1486 = vunpack.c.l.b16 %v1314
      %v1487 = vunpack.c.h.b16 %v1240
      %v1488 = vunpack.c.h.b16 %v1314
      %v1489 = vunpack.c.l.b16 %v1146
      %v1490 = vunpack.c.l.b16 %v1370
      %v1491 = vunpack.c.l.b16 %v1241
      %v1492 = vunpack.c.l.b16 %v1319
      %v1493 = vunpack.c.h.b16 %v1241
      %v1494 = vunpack.c.h.b16 %v1319
      %v1495 = vunpack.c.l.b16 %v1161
      %v1496 = vunpack.c.l.b16 %v1371
      %v1497 = vunpack.c.l.b16 %v1242
      %v1498 = vunpack.c.l.b16 %v1324
      %v1499 = vunpack.c.h.b16 %v1242
      %v1500 = vunpack.c.h.b16 %v1324
      %v1501 = vunpack.c.l.b16 %v1176
      %v1502 = vunpack.c.l.b16 %v1372
      %v1503 = vld [vmem:[%s3] sm:$0xf]
      %v1504 = vld [vmem:[%s3 + $0x4] sm:$0xf]
      %v1505 = vld [vmem:[%s3 + $0x8] sm:$0xf]
      %v1506 = vld [vmem:[%s3 + $0xc] sm:$0xf]
      %v1507 = vld [vmem:[%s3 + $0x10] sm:$0xf]
      %v1508 = vld [vmem:[%s3 + $0x14] sm:$0xf]
      %v1509 = vld [vmem:[%s3 + $0x18] sm:$0xf]
      %v1510 = vld [vmem:[%s3 + $0x1c] sm:$0xf]
      %v1511 = vld [vmem:[%s3 + $0x20] sm:$0xf]
      %v1512 = vld [vmem:[%s3 + $0x24] sm:$0xf]
      %v1513 = vld [vmem:[%s3 + $0x28] sm:$0xf]
      %v1514 = vld [vmem:[%s3 + $0x2c] sm:$0xf]
      %v1515 = vld [vmem:[%s3 + $0x30] sm:$0xf]
      %v1516 = vld [vmem:[%s3 + $0x34] sm:$0xf]
      %v1517 = vld [vmem:[%s3 + $0x38] sm:$0xf]
      %v1518 = vld [vmem:[%s3 + $0x3c] sm:$0xf]
      %v1519 = vld [vmem:[%s3 + $0x40] sm:$0xf]
      %v1520 = vld [vmem:[%s3 + $0x44] sm:$0xf]
      %v1521 = vld [vmem:[%s3 + $0x48] sm:$0xf]
      %v1522 = vld [vmem:[%s3 + $0x4c] sm:$0xf]
      %v1523 = vld [vmem:[%s3 + $0x50] sm:$0xf]
      %v1524 = vld [vmem:[%s3 + $0x54] sm:$0xf]
      %v1525 = vld [vmem:[%s3 + $0x58] sm:$0xf]
      %v1526 = vld [vmem:[%s3 + $0x5c] sm:$0xf]
      %v1527 = vld [vmem:[%s3 + $0x60] sm:$0xf]
      %v1528 = vld [vmem:[%s3 + $0x64] sm:$0xf]
      %v1529 = vld [vmem:[%s3 + $0x68] sm:$0xf]
      %v1530 = vld [vmem:[%s3 + $0x6c] sm:$0xf]
      %v1531 = vld [vmem:[%s3 + $0x70] sm:$0xf]
      %v1532 = vld [vmem:[%s3 + $0x74] sm:$0xf]
      %v1533 = vld [vmem:[%s3 + $0x78] sm:$0xf]
      %v1534 = vld [vmem:[%s3 + $0x7c] sm:$0xf]
      %v1535 = vld [vmem:[%s3 + $0x80] sm:$0xf]
      %v1536 = vld [vmem:[%s3 + $0x84] sm:$0xf]
      %v1537 = vld [vmem:[%s3 + $0x88] sm:$0xf]
      %v1538 = vld [vmem:[%s3 + $0x8c] sm:$0xf]
      %v1539 = vld [vmem:[%s3 + $0x90] sm:$0xf]
      %v1540 = vld [vmem:[%s3 + $0x94] sm:$0xf]
      %v1541 = vld [vmem:[%s3 + $0x98] sm:$0xf]
      %v1542 = vld [vmem:[%s3 + $0x9c] sm:$0xf]
      %v1543 = vld [vmem:[%s3 + $0xa0] sm:$0xf]
      %v1544 = vld [vmem:[%s3 + $0xa4] sm:$0xf]
      %v1545 = vld [vmem:[%s3 + $0xa8] sm:$0xf]
      %v1546 = vld [vmem:[%s3 + $0xac] sm:$0xf]
      %v1547 = vld [vmem:[%s3 + $0xb0] sm:$0xf]
      %v1548 = vld [vmem:[%s3 + $0xb4] sm:$0xf]
      %v1549 = vld [vmem:[%s3 + $0xb8] sm:$0xf]
      %v1550 = vld [vmem:[%s3 + $0xbc] sm:$0xf]
      %v1553 = vunpack.c.l.b16 %v1243
      %v1554 = vunpack.c.l.b16 %v1329
      %v1555 = vunpack.c.h.b16 %v1243
      %v1556 = vunpack.c.h.b16 %v1329
      %v1557 = vunpack.c.l.b16 %v1191
      %v1558 = vunpack.c.l.b16 %v1373
      %s1559 = scalar_lea.vmem %s3, 192
      %v1560 = vld [vmem:[%s1559] sm:$0xf]
      %v1561 = vld [vmem:[%s1559 + $0x4] sm:$0xf]
      %v1562 = vld [vmem:[%s1559 + $0x8] sm:$0xf]
      %v1563 = vld [vmem:[%s1559 + $0xc] sm:$0xf]
      %v1564 = vld [vmem:[%s1559 + $0x10] sm:$0xf]
      %v1565 = vld [vmem:[%s1559 + $0x14] sm:$0xf]
      %v1566 = vld [vmem:[%s1559 + $0x18] sm:$0xf]
      %v1567 = vld [vmem:[%s1559 + $0x1c] sm:$0xf]
      %v1568 = vld [vmem:[%s1559 + $0x20] sm:$0xf]
      %v1569 = vld [vmem:[%s1559 + $0x24] sm:$0xf]
      %v1570 = vld [vmem:[%s1559 + $0x28] sm:$0xf]
      %v1571 = vld [vmem:[%s1559 + $0x2c] sm:$0xf]
      %v1572 = vld [vmem:[%s1559 + $0x30] sm:$0xf]
      %v1573 = vld [vmem:[%s1559 + $0x34] sm:$0xf]
      %v1574 = vld [vmem:[%s1559 + $0x38] sm:$0xf]
      %v1575 = vld [vmem:[%s1559 + $0x3c] sm:$0xf]
      %v1576 = vld [vmem:[%s1559 + $0x40] sm:$0xf]
      %v1577 = vld [vmem:[%s1559 + $0x44] sm:$0xf]
      %v1578 = vld [vmem:[%s1559 + $0x48] sm:$0xf]
      %v1579 = vld [vmem:[%s1559 + $0x4c] sm:$0xf]
      %v1580 = vld [vmem:[%s1559 + $0x50] sm:$0xf]
      %v1581 = vld [vmem:[%s1559 + $0x54] sm:$0xf]
      %v1582 = vld [vmem:[%s1559 + $0x58] sm:$0xf]
      %v1583 = vld [vmem:[%s1559 + $0x5c] sm:$0xf]
      %v1584 = vld [vmem:[%s1559 + $0x60] sm:$0xf]
      %v1585 = vld [vmem:[%s1559 + $0x64] sm:$0xf]
      %v1586 = vld [vmem:[%s1559 + $0x68] sm:$0xf]
      %v1587 = vld [vmem:[%s1559 + $0x6c] sm:$0xf]
      %v1588 = vld [vmem:[%s1559 + $0x70] sm:$0xf]
      %v1589 = vld [vmem:[%s1559 + $0x74] sm:$0xf]
      %v1590 = vld [vmem:[%s1559 + $0x78] sm:$0xf]
      %v1591 = vld [vmem:[%s1559 + $0x7c] sm:$0xf]
      %v1592 = vld [vmem:[%s1559 + $0x80] sm:$0xf]
      %v1593 = vld [vmem:[%s1559 + $0x84] sm:$0xf]
      %v1594 = vld [vmem:[%s1559 + $0x88] sm:$0xf]
      %v1595 = vld [vmem:[%s1559 + $0x8c] sm:$0xf]
      %v1596 = vld [vmem:[%s1559 + $0x90] sm:$0xf]
      %v1597 = vld [vmem:[%s1559 + $0x94] sm:$0xf]
      %v1598 = vld [vmem:[%s1559 + $0x98] sm:$0xf]
      %v1599 = vld [vmem:[%s1559 + $0x9c] sm:$0xf]
      %v1600 = vld [vmem:[%s1559 + $0xa0] sm:$0xf]
      %v1601 = vld [vmem:[%s1559 + $0xa4] sm:$0xf]
      %v1602 = vld [vmem:[%s1559 + $0xa8] sm:$0xf]
      %v1603 = vld [vmem:[%s1559 + $0xac] sm:$0xf]
      %v1604 = vld [vmem:[%s1559 + $0xb0] sm:$0xf]
      %v1605 = vld [vmem:[%s1559 + $0xb4] sm:$0xf]
      %v1606 = vld [vmem:[%s1559 + $0xb8] sm:$0xf]
      %v1607 = vld [vmem:[%s1559 + $0xbc] sm:$0xf]
      %v1608 = vpack.c.b16 %v1415, %v1413
      %v1609 = vpack.c.b16 %v1416, %v1414
      %v1610 = vpack.c.b16 %v1419, %v1417
      %v1611 = vpack.c.b16 %v852, %v851
      %v1612 = vpack.c.b16 %v1420, %v1418
      %v1613 = vpack.c.b16 %v1423, %v1421
      %v1614 = vpack.c.b16 %v854, %v853
      %v1615 = vpack.c.b16 %v1424, %v1422
      %v1616 = vpack.c.b16 %v1427, %v1425
      %v1617 = vpack.c.b16 %v1428, %v1426
      %v1618 = vpack.c.b16 %v1431, %v1429
      %v1619 = vpack.c.b16 %v858, %v857
      %v1620 = vpack.c.b16 %v1432, %v1430
      %v1621 = vpack.c.b16 %v1435, %v1433
      %v1622 = vpack.c.b16 %v860, %v859
      %v1623 = vpack.c.b16 %v1436, %v1434
      %v1624 = vpack.c.b16 %v1439, %v1437
      %v1625 = vpack.c.b16 %v1440, %v1438
      %v1626 = vpack.c.b16 %v1443, %v1441
      %v1627 = vpack.c.b16 %v864, %v863
      %v1628 = vpack.c.b16 %v1444, %v1442
      %v1629 = vpack.c.b16 %v1447, %v1445
      %v1630 = vpack.c.b16 %v866, %v865
      %v1631 = vpack.c.b16 %v1448, %v1446
      %v1632 = vpack.c.b16 %v1451, %v1449
      %v1633 = vpack.c.b16 %v1452, %v1450
      %v1634 = vpack.c.b16 %v1455, %v1453
      %v1635 = vpack.c.b16 %v870, %v869
      %v1636 = vpack.c.b16 %v1456, %v1454
      %v1637 = vpack.c.b16 %v1459, %v1457
      %v1638 = vpack.c.b16 %v872, %v871
      %v1639 = vpack.c.b16 %v1460, %v1458
      %v1640 = vpack.c.b16 %v1463, %v1461
      %v1641 = vpack.c.b16 %v1464, %v1462
      %v1642 = vpack.c.b16 %v1467, %v1465
      %v1643 = vpack.c.b16 %v876, %v875
      %v1644 = vpack.c.b16 %v1468, %v1466
      %v1645 = vpack.c.b16 %v1471, %v1469
      %v1646 = vpack.c.b16 %v878, %v877
      %v1647 = vpack.c.b16 %v1472, %v1470
      %v1648 = vpack.c.b16 %v1475, %v1473
      %v1649 = vpack.c.b16 %v1476, %v1474
      %v1650 = vpack.c.b16 %v1479, %v1477
      %v1651 = vpack.c.b16 %v882, %v881
      %v1652 = vpack.c.b16 %v1480, %v1478
      %v1653 = vpack.c.b16 %v1483, %v1481
      %v1654 = vpack.c.b16 %v884, %v883
      %v1655 = vpack.c.b16 %v1484, %v1482
      %v1656 = vpack.c.b16 %v1487, %v1485
      %v1657 = vpack.c.b16 %v1488, %v1486
      %v1658 = vpack.c.b16 %v1491, %v1489
      %v1659 = vpack.c.b16 %v888, %v887
      %v1660 = vpack.c.b16 %v1492, %v1490
      %v1661 = vpack.c.b16 %v1495, %v1493
      %v1662 = vpack.c.b16 %v890, %v889
      %v1663 = vpack.c.b16 %v1496, %v1494
      %v1664 = vpack.c.b16 %v1499, %v1497
      %v1665 = vpack.c.b16 %v1500, %v1498
      %v1666 = vpack.c.b16 %v1553, %v1501
      %v1667 = vpack.c.b16 %v894, %v893
      %v1668 = vpack.c.b16 %v1554, %v1502
      %v1669 = vpack.c.b16 %v1557, %v1555
      %v1670 = vpack.c.b16 %v896, %v895
      %v1671 = vpack.c.b16 %v1558, %v1556
      %v1792 = vunpack.c.l.b16 %v1560
      %v1793 = vunpack.c.l.b16 %v1561
      %v1794 = vunpack.c.l.b16 %v1562
      %v1795 = vunpack.c.l.b16 %v1563
      %v1796 = vunpack.c.l.b16 %v1564
      %v1797 = vunpack.c.l.b16 %v1565
      %v1798 = vunpack.c.l.b16 %v1566
      %v1799 = vunpack.c.l.b16 %v1567
      %v1800 = vunpack.c.l.b16 %v1568
      %v1801 = vunpack.c.l.b16 %v1569
      %v1802 = vunpack.c.l.b16 %v1570
      %v1803 = vunpack.c.l.b16 %v1571
      %v1804 = vunpack.c.l.b16 %v1572
      %v1805 = vunpack.c.l.b16 %v1573
      %v1806 = vunpack.c.l.b16 %v1574
      %v1807 = vunpack.c.l.b16 %v1575
      %v1808 = vunpack.c.l.b16 %v1576
      %v1809 = vunpack.c.l.b16 %v1577
      %v1810 = vunpack.c.l.b16 %v1578
      %v1811 = vunpack.c.l.b16 %v1579
      %v1812 = vunpack.c.l.b16 %v1580
      %v1813 = vunpack.c.l.b16 %v1581
      %v1814 = vunpack.c.l.b16 %v1582
      %v1815 = vunpack.c.l.b16 %v1583
      %v1816 = vunpack.c.l.b16 %v1584
      %v1817 = vunpack.c.l.b16 %v1585
      %v1818 = vunpack.c.l.b16 %v1586
      %v1819 = vunpack.c.l.b16 %v1587
      %v1820 = vunpack.c.l.b16 %v1588
      %v1821 = vunpack.c.l.b16 %v1589
      %v1822 = vunpack.c.l.b16 %v1590
      %v1823 = vunpack.c.l.b16 %v1591
      %v1824 = vunpack.c.l.b16 %v1592
      %v1825 = vunpack.c.l.b16 %v1593
      %v1826 = vunpack.c.l.b16 %v1594
      %v1827 = vunpack.c.l.b16 %v1595
      %v1828 = vunpack.c.l.b16 %v1596
      %v1829 = vunpack.c.l.b16 %v1597
      %v1830 = vunpack.c.l.b16 %v1598
      %v1831 = vunpack.c.l.b16 %v1599
      %v1832 = vunpack.c.l.b16 %v1600
      %v1833 = vunpack.c.l.b16 %v1601
      %v1834 = vunpack.c.l.b16 %v1602
      %v1835 = vunpack.c.l.b16 %v1603
      %v1836 = vunpack.c.l.b16 %v1604
      %v1837 = vunpack.c.l.b16 %v1605
      %v1838 = vunpack.c.l.b16 %v1606
      %v1839 = vunpack.c.l.b16 %v1607
      %v1840 = vpack.c.b16 %v1793, %v1792
      %v1841 = vpack.c.b16 %v1795, %v1794
      %v1842 = vpack.c.b16 %v1797, %v1796
      %v1843 = vpack.c.b16 %v1799, %v1798
      %v1844 = vpack.c.b16 %v1801, %v1800
      %v1845 = vpack.c.b16 %v1803, %v1802
      %v1846 = vpack.c.b16 %v1805, %v1804
      %v1847 = vpack.c.b16 %v1807, %v1806
      %v1848 = vpack.c.b16 %v1809, %v1808
      %v1849 = vpack.c.b16 %v1811, %v1810
      %v1850 = vpack.c.b16 %v1813, %v1812
      %v1851 = vpack.c.b16 %v1815, %v1814
      %v1852 = vpack.c.b16 %v1817, %v1816
      %v1853 = vpack.c.b16 %v1819, %v1818
      %v1854 = vpack.c.b16 %v1821, %v1820
      %v1855 = vpack.c.b16 %v1823, %v1822
      %v1856 = vpack.c.b16 %v1825, %v1824
      %v1857 = vpack.c.b16 %v1827, %v1826
      %v1858 = vpack.c.b16 %v1829, %v1828
      %v1859 = vpack.c.b16 %v1831, %v1830
      %v1860 = vpack.c.b16 %v1833, %v1832
      %v1861 = vpack.c.b16 %v1835, %v1834
      %v1862 = vpack.c.b16 %v1837, %v1836
      %v1863 = vpack.c.b16 %v1839, %v1838
      %1888 = vmatprep.subr.bf16.mxu0 0
      %1889 = vmatpush1.bf16.msra.mxu0 %v1847
      %1890 = vmatprep.subr.bf16.mxu0 0
      %1891 = vmatpush1.bf16.msra.mxu0 %v1846
      %1892 = vmatprep.subr.bf16.mxu0 0
      %1893 = vmatpush1.bf16.msra.mxu0 %v1845
      %1894 = vmatprep.subr.bf16.mxu0 0
      %1895 = vmatpush1.bf16.msra.mxu0 %v1844
      %1896 = vmatprep.subr.bf16.mxu0 0
      %1897 = vmatpush1.bf16.msra.mxu0 %v1843
      %1898 = vmatprep.subr.bf16.mxu0 0
      %1899 = vmatpush1.bf16.msra.mxu0 %v1842
      %1900 = vmatprep.subr.bf16.mxu0 0
      %1901 = vmatpush1.bf16.msra.mxu0 %v1841
      %1902 = vmatprep.subr.bf16.mxu0 0
      %1903 = vmatpush1.bf16.msra.mxu0 %v1840
      %1904 = vmatprep.subr.bf16.mxu0 0
      %1905 = vmatpush2.bf16.msra.mxu0 %v1855
      %1906 = vmatprep.subr.bf16.mxu0 0
      %1907 = vmatpush2.bf16.msra.mxu0 %v1854
      %1908 = vmatprep.subr.bf16.mxu0 0
      %1909 = vmatpush2.bf16.msra.mxu0 %v1853
      %1910 = vmatprep.subr.bf16.mxu0 0
      %1911 = vmatpush2.bf16.msra.mxu0 %v1852
      %1912 = vmatprep.subr.bf16.mxu0 0
      %1913 = vmatpush2.bf16.msra.mxu0 %v1851
      %1914 = vmatprep.subr.bf16.mxu0 0
      %1915 = vmatpush2.bf16.msra.mxu0 %v1850
      %1916 = vmatprep.subr.bf16.mxu0 0
      %1917 = vmatpush2.bf16.msra.mxu0 %v1849
      %1918 = vmatprep.subr.bf16.mxu0 0
      %1919 = vmatpush2.bf16.msra.mxu0 %v1848
      %1920 = vmatprep.mubr.bf16.mxu0 %v902
      %1921 = vmatmul.mubr.bf16.gmra.mxu0 %v1608
      %v1922 = vpop.f32.mrf.mxu0
      %v1923 = vadd.f32 0.0, %v1922
      %v1924 = vpop.f32.mrf.mxu0
      %v1925 = vpop.f32.mrf.mxu0
      %v1926 = vadd.f32 0.0, %v1925
      %v1927 = vpop.f32.mrf.mxu0
      %1928 = vmatprep.mubr.bf16.mxu0 %v1611
      %1929 = vmatmul.mubr.bf16.gmra.mxu0 %v1610
      %v1930 = vpop.f32.mrf.mxu0
      %v1931 = vadd.f32 0.0, %v1930
      %v1932 = vpop.f32.mrf.mxu0
      %v1933 = vpop.f32.mrf.mxu0
      %v1934 = vadd.f32 0.0, %v1933
      %v1935 = vpop.f32.mrf.mxu0
      %1936 = vmatprep.mubr.bf16.mxu0 %v1614
      %1937 = vmatmul.mubr.bf16.gmra.mxu0 %v1613
      %v1938 = vpop.f32.mrf.mxu0
      %v1939 = vadd.f32 0.0, %v1938
      %v1940 = vpop.f32.mrf.mxu0
      %v1941 = vpop.f32.mrf.mxu0
      %v1942 = vadd.f32 0.0, %v1941
      %v1943 = vpop.f32.mrf.mxu0
      %1944 = vmatprep.mubr.bf16.mxu0 %v906
      %1945 = vmatmul.mubr.bf16.gmra.mxu0 %v1616
      %v1946 = vpop.f32.mrf.mxu0
      %v1947 = vadd.f32 0.0, %v1946
      %v1948 = vpop.f32.mrf.mxu0
      %v1949 = vpop.f32.mrf.mxu0
      %v1950 = vadd.f32 0.0, %v1949
      %v1951 = vpop.f32.mrf.mxu0
      %1952 = vmatprep.mubr.bf16.mxu0 %v1619
      %1953 = vmatmul.mubr.bf16.gmra.mxu0 %v1618
      %v1954 = vpop.f32.mrf.mxu0
      %v1955 = vadd.f32 0.0, %v1954
      %v1956 = vpop.f32.mrf.mxu0
      %v1957 = vpop.f32.mrf.mxu0
      %v1958 = vadd.f32 0.0, %v1957
      %v1959 = vpop.f32.mrf.mxu0
      %1960 = vmatprep.mubr.bf16.mxu0 %v1622
      %1961 = vmatmul.mubr.bf16.gmra.mxu0 %v1621
      %v1962 = vpop.f32.mrf.mxu0
      %v1963 = vadd.f32 0.0, %v1962
      %v1964 = vpop.f32.mrf.mxu0
      %v1965 = vpop.f32.mrf.mxu0
      %v1966 = vadd.f32 0.0, %v1965
      %v1967 = vpop.f32.mrf.mxu0
      %1968 = vmatprep.mubr.bf16.mxu0 %v910
      %1969 = vmatmul.mubr.bf16.gmra.mxu0 %v1624
      %v1970 = vpop.f32.mrf.mxu0
      %v1971 = vadd.f32 0.0, %v1970
      %v1972 = vpop.f32.mrf.mxu0
      %v1973 = vpop.f32.mrf.mxu0
      %v1974 = vadd.f32 0.0, %v1973
      %v1975 = vpop.f32.mrf.mxu0
      %1976 = vmatprep.mubr.bf16.mxu0 %v1627
      %1977 = vmatmul.mubr.bf16.gmra.mxu0 %v1626
      %v1978 = vpop.f32.mrf.mxu0
      %v1979 = vadd.f32 0.0, %v1978
      %v1980 = vpop.f32.mrf.mxu0
      %v1981 = vpop.f32.mrf.mxu0
      %v1982 = vadd.f32 0.0, %v1981
      %v1983 = vpop.f32.mrf.mxu0
      %1984 = vmatprep.mubr.bf16.mxu0 %v1630
      %1985 = vmatmul.mubr.bf16.gmra.mxu0 %v1629
      %v1986 = vpop.f32.mrf.mxu0
      %v1987 = vadd.f32 0.0, %v1986
      %v1988 = vpop.f32.mrf.mxu0
      %v1989 = vpop.f32.mrf.mxu0
      %v1990 = vadd.f32 0.0, %v1989
      %v1991 = vpop.f32.mrf.mxu0
      %1992 = vmatprep.mubr.bf16.mxu0 %v914
      %1993 = vmatmul.mubr.bf16.gmra.mxu0 %v1632
      %v1994 = vpop.f32.mrf.mxu0
      %v1995 = vadd.f32 0.0, %v1994
      %v1996 = vpop.f32.mrf.mxu0
      %v1997 = vpop.f32.mrf.mxu0
      %v1998 = vadd.f32 0.0, %v1997
      %v1999 = vpop.f32.mrf.mxu0
      %2000 = vmatprep.mubr.bf16.mxu0 %v1635
      %2001 = vmatmul.mubr.bf16.gmra.mxu0 %v1634
      %v2002 = vpop.f32.mrf.mxu0
      %v2003 = vadd.f32 0.0, %v2002
      %v2004 = vpop.f32.mrf.mxu0
      %v2005 = vpop.f32.mrf.mxu0
      %v2006 = vadd.f32 0.0, %v2005
      %v2007 = vpop.f32.mrf.mxu0
      %2008 = vmatprep.mubr.bf16.mxu0 %v1638
      %2009 = vmatmul.mubr.bf16.gmra.mxu0 %v1637
      %v2010 = vpop.f32.mrf.mxu0
      %v2011 = vadd.f32 0.0, %v2010
      %v2012 = vpop.f32.mrf.mxu0
      %v2013 = vpop.f32.mrf.mxu0
      %v2014 = vadd.f32 0.0, %v2013
      %v2015 = vpop.f32.mrf.mxu0
      %2016 = vmatprep.mubr.bf16.mxu0 %v918
      %2017 = vmatmul.mubr.bf16.gmra.mxu0 %v1640
      %v2018 = vpop.f32.mrf.mxu0
      %v2019 = vadd.f32 0.0, %v2018
      %v2020 = vpop.f32.mrf.mxu0
      %v2021 = vpop.f32.mrf.mxu0
      %v2022 = vadd.f32 0.0, %v2021
      %v2023 = vpop.f32.mrf.mxu0
      %2024 = vmatprep.mubr.bf16.mxu0 %v1643
      %2025 = vmatmul.mubr.bf16.gmra.mxu0 %v1642
      %v2026 = vpop.f32.mrf.mxu0
      %v2027 = vadd.f32 0.0, %v2026
      %v2028 = vpop.f32.mrf.mxu0
      %v2029 = vpop.f32.mrf.mxu0
      %v2030 = vadd.f32 0.0, %v2029
      %v2031 = vpop.f32.mrf.mxu0
      %2032 = vmatprep.mubr.bf16.mxu0 %v1646
      %2033 = vmatmul.mubr.bf16.gmra.mxu0 %v1645
      %v2034 = vpop.f32.mrf.mxu0
      %v2035 = vadd.f32 0.0, %v2034
      %v2036 = vpop.f32.mrf.mxu0
      %v2037 = vpop.f32.mrf.mxu0
      %v2038 = vadd.f32 0.0, %v2037
      %v2039 = vpop.f32.mrf.mxu0
      %2040 = vmatprep.mubr.bf16.mxu0 %v922
      %2041 = vmatmul.mubr.bf16.gmra.mxu0 %v1648
      %v2042 = vpop.f32.mrf.mxu0
      %v2043 = vadd.f32 0.0, %v2042
      %v2044 = vpop.f32.mrf.mxu0
      %v2045 = vpop.f32.mrf.mxu0
      %v2046 = vadd.f32 0.0, %v2045
      %v2047 = vpop.f32.mrf.mxu0
      %2048 = vmatprep.mubr.bf16.mxu0 %v1651
      %2049 = vmatmul.mubr.bf16.gmra.mxu0 %v1650
      %v2050 = vpop.f32.mrf.mxu0
      %v2051 = vadd.f32 0.0, %v2050
      %v2052 = vpop.f32.mrf.mxu0
      %v2053 = vpop.f32.mrf.mxu0
      %v2054 = vadd.f32 0.0, %v2053
      %v2055 = vpop.f32.mrf.mxu0
      %2056 = vmatprep.mubr.bf16.mxu0 %v1654
      %2057 = vmatmul.mubr.bf16.gmra.mxu0 %v1653
      %v2058 = vpop.f32.mrf.mxu0
      %v2059 = vadd.f32 0.0, %v2058
      %v2060 = vpop.f32.mrf.mxu0
      %v2061 = vpop.f32.mrf.mxu0
      %v2062 = vadd.f32 0.0, %v2061
      %v2063 = vpop.f32.mrf.mxu0
      %2064 = vmatprep.mubr.bf16.mxu0 %v926
      %2065 = vmatmul.mubr.bf16.gmra.mxu0 %v1656
      %v2066 = vpop.f32.mrf.mxu0
      %v2067 = vadd.f32 0.0, %v2066
      %v2068 = vpop.f32.mrf.mxu0
      %v2069 = vpop.f32.mrf.mxu0
      %v2070 = vadd.f32 0.0, %v2069
      %v2071 = vpop.f32.mrf.mxu0
      %2072 = vmatprep.mubr.bf16.mxu0 %v1659
      %2073 = vmatmul.mubr.bf16.gmra.mxu0 %v1658
      %v2074 = vpop.f32.mrf.mxu0
      %v2075 = vadd.f32 0.0, %v2074
      %v2076 = vpop.f32.mrf.mxu0
      %v2077 = vpop.f32.mrf.mxu0
      %v2078 = vadd.f32 0.0, %v2077
      %v2079 = vpop.f32.mrf.mxu0
      %2080 = vmatprep.mubr.bf16.mxu0 %v1662
      %2081 = vmatmul.mubr.bf16.gmra.mxu0 %v1661
      %v2082 = vpop.f32.mrf.mxu0
      %v2083 = vadd.f32 0.0, %v2082
      %v2084 = vpop.f32.mrf.mxu0
      %v2085 = vpop.f32.mrf.mxu0
      %v2086 = vadd.f32 0.0, %v2085
      %v2087 = vpop.f32.mrf.mxu0
      %2088 = vmatprep.mubr.bf16.mxu0 %v930
      %2089 = vmatmul.mubr.bf16.gmra.mxu0 %v1664
      %v2090 = vpop.f32.mrf.mxu0
      %v2091 = vadd.f32 0.0, %v2090
      %v2092 = vpop.f32.mrf.mxu0
      %v2093 = vpop.f32.mrf.mxu0
      %v2094 = vadd.f32 0.0, %v2093
      %v2095 = vpop.f32.mrf.mxu0
      %2096 = vmatprep.mubr.bf16.mxu0 %v1667
      %2097 = vmatmul.mubr.bf16.gmra.mxu0 %v1666
      %v2098 = vpop.f32.mrf.mxu0
      %v2099 = vadd.f32 0.0, %v2098
      %v2100 = vpop.f32.mrf.mxu0
      %v2101 = vpop.f32.mrf.mxu0
      %v2102 = vadd.f32 0.0, %v2101
      %v2103 = vpop.f32.mrf.mxu0
      %2104 = vmatprep.mubr.bf16.mxu0 %v1670
      %2105 = vmatmul.mubr.bf16.gmra.mxu0 %v1669
      %v2106 = vpop.f32.mrf.mxu0
      %v2107 = vadd.f32 0.0, %v2106
      %v2108 = vpop.f32.mrf.mxu0
      %v2109 = vpop.f32.mrf.mxu0
      %v2110 = vadd.f32 0.0, %v2109
      %v2111 = vpop.f32.mrf.mxu0
      %2112 = vdwg.mxu0
      %2113 = vmatprep.subr.bf16.mxu0 0
      %2114 = vmatpush1.bf16.msra.mxu0 %v1863
      %2115 = vmatprep.subr.bf16.mxu0 0
      %2116 = vmatpush1.bf16.msra.mxu0 %v1862
      %2117 = vmatprep.subr.bf16.mxu0 0
      %2118 = vmatpush1.bf16.msra.mxu0 %v1861
      %2119 = vmatprep.subr.bf16.mxu0 0
      %2120 = vmatpush1.bf16.msra.mxu0 %v1860
      %2121 = vmatprep.subr.bf16.mxu0 0
      %2122 = vmatpush1.bf16.msra.mxu0 %v1859
      %2123 = vmatprep.subr.bf16.mxu0 0
      %2124 = vmatpush1.bf16.msra.mxu0 %v1858
      %2125 = vmatprep.subr.bf16.mxu0 0
      %2126 = vmatpush1.bf16.msra.mxu0 %v1857
      %2127 = vmatprep.subr.bf16.mxu0 0
      %2128 = vmatpush1.bf16.msra.mxu0 %v1856
      %2129 = vmatprep.subr.bf16.mxu0 0
      %2130 = vmatpush2.bf16.msra.mxu0 0
      %2131 = vmatprep.subr.bf16.mxu0 0
      %2132 = vmatpush2.bf16.msra.mxu0 0
      %2133 = vmatprep.subr.bf16.mxu0 0
      %2134 = vmatpush2.bf16.msra.mxu0 0
      %2135 = vmatprep.subr.bf16.mxu0 0
      %2136 = vmatpush2.bf16.msra.mxu0 0
      %2137 = vmatprep.subr.bf16.mxu0 0
      %2138 = vmatpush2.bf16.msra.mxu0 0
      %2139 = vmatprep.subr.bf16.mxu0 0
      %2140 = vmatpush2.bf16.msra.mxu0 0
      %2141 = vmatprep.subr.bf16.mxu0 0
      %2142 = vmatpush2.bf16.msra.mxu0 0
      %2143 = vmatprep.subr.bf16.mxu0 0
      %2144 = vmatpush2.bf16.msra.mxu0 0
      %2145 = vmatprep.mubr.bf16.mxu0 0
      %2146 = vmatmul.mubr.bf16.gmra.mxu0 %v1609
      %v2147 = vpop.f32.mrf.mxu0
      %v2148 = vadd.f32 %v1923, %v2147
      %v2149 = vpop.f32.mrf.mxu0
      %v2150 = vpop.f32.mrf.mxu0
      %v2151 = vadd.f32 %v1926, %v2150
      %v2152 = vpop.f32.mrf.mxu0
      %2153 = vmatprep.mubr.bf16.mxu0 0
      %2154 = vmatmul.mubr.bf16.gmra.mxu0 %v1612
      %v2155 = vpop.f32.mrf.mxu0
      %v2156 = vadd.f32 %v1931, %v2155
      %v2157 = vpop.f32.mrf.mxu0
      %v2158 = vpop.f32.mrf.mxu0
      %v2159 = vadd.f32 %v1934, %v2158
      %v2160 = vpop.f32.mrf.mxu0
      %2161 = vmatprep.mubr.bf16.mxu0 0
      %2162 = vmatmul.mubr.bf16.gmra.mxu0 %v1615
      %v2163 = vpop.f32.mrf.mxu0
      %v2164 = vadd.f32 %v1939, %v2163
      %v2165 = vpop.f32.mrf.mxu0
      %v2166 = vpop.f32.mrf.mxu0
      %v2167 = vadd.f32 %v1942, %v2166
      %v2168 = vpop.f32.mrf.mxu0
      %2169 = vmatprep.mubr.bf16.mxu0 0
      %2170 = vmatmul.mubr.bf16.gmra.mxu0 %v1617
      %v2171 = vpop.f32.mrf.mxu0
      %v2172 = vadd.f32 %v1947, %v2171
      %v2173 = vpop.f32.mrf.mxu0
      %v2174 = vpop.f32.mrf.mxu0
      %v2175 = vadd.f32 %v1950, %v2174
      %v2176 = vpop.f32.mrf.mxu0
      %2177 = vmatprep.mubr.bf16.mxu0 0
      %2178 = vmatmul.mubr.bf16.gmra.mxu0 %v1620
      %v2179 = vpop.f32.mrf.mxu0
      %v2180 = vadd.f32 %v1955, %v2179
      %v2181 = vpop.f32.mrf.mxu0
      %v2182 = vpop.f32.mrf.mxu0
      %v2183 = vadd.f32 %v1958, %v2182
      %v2184 = vpop.f32.mrf.mxu0
      %2185 = vmatprep.mubr.bf16.mxu0 0
      %2186 = vmatmul.mubr.bf16.gmra.mxu0 %v1623
      %v2187 = vpop.f32.mrf.mxu0
      %v2188 = vadd.f32 %v1963, %v2187
      %v2189 = vpop.f32.mrf.mxu0
      %v2190 = vpop.f32.mrf.mxu0
      %v2191 = vadd.f32 %v1966, %v2190
      %v2192 = vpop.f32.mrf.mxu0
      %2193 = vmatprep.mubr.bf16.mxu0 0
      %2194 = vmatmul.mubr.bf16.gmra.mxu0 %v1625
      %v2195 = vpop.f32.mrf.mxu0
      %v2196 = vadd.f32 %v1971, %v2195
      %v2197 = vpop.f32.mrf.mxu0
      %v2198 = vpop.f32.mrf.mxu0
      %v2199 = vadd.f32 %v1974, %v2198
      %v2200 = vpop.f32.mrf.mxu0
      %2201 = vmatprep.mubr.bf16.mxu0 0
      %2202 = vmatmul.mubr.bf16.gmra.mxu0 %v1628
      %v2203 = vpop.f32.mrf.mxu0
      %v2204 = vadd.f32 %v1979, %v2203
      %v2205 = vpop.f32.mrf.mxu0
      %v2206 = vpop.f32.mrf.mxu0
      %v2207 = vadd.f32 %v1982, %v2206
      %v2208 = vpop.f32.mrf.mxu0
      %2209 = vmatprep.mubr.bf16.mxu0 0
      %2210 = vmatmul.mubr.bf16.gmra.mxu0 %v1631
      %v2211 = vpop.f32.mrf.mxu0
      %v2212 = vadd.f32 %v1987, %v2211
      %v2213 = vpop.f32.mrf.mxu0
      %v2214 = vpop.f32.mrf.mxu0
      %v2215 = vadd.f32 %v1990, %v2214
      %v2216 = vpop.f32.mrf.mxu0
      %2217 = vmatprep.mubr.bf16.mxu0 0
      %2218 = vmatmul.mubr.bf16.gmra.mxu0 %v1633
      %v2219 = vpop.f32.mrf.mxu0
      %v2220 = vadd.f32 %v1995, %v2219
      %v2221 = vpop.f32.mrf.mxu0
      %v2222 = vpop.f32.mrf.mxu0
      %v2223 = vadd.f32 %v1998, %v2222
      %v2224 = vpop.f32.mrf.mxu0
      %2225 = vmatprep.mubr.bf16.mxu0 0
      %2226 = vmatmul.mubr.bf16.gmra.mxu0 %v1636
      %v2227 = vpop.f32.mrf.mxu0
      %v2228 = vadd.f32 %v2003, %v2227
      %v2229 = vpop.f32.mrf.mxu0
      %v2230 = vpop.f32.mrf.mxu0
      %v2231 = vadd.f32 %v2006, %v2230
      %v2232 = vpop.f32.mrf.mxu0
      %2233 = vmatprep.mubr.bf16.mxu0 0
      %2234 = vmatmul.mubr.bf16.gmra.mxu0 %v1639
      %v2235 = vpop.f32.mrf.mxu0
      %v2236 = vadd.f32 %v2011, %v2235
      %v2237 = vpop.f32.mrf.mxu0
      %v2238 = vpop.f32.mrf.mxu0
      %v2239 = vadd.f32 %v2014, %v2238
      %v2240 = vpop.f32.mrf.mxu0
      %2241 = vmatprep.mubr.bf16.mxu0 0
      %2242 = vmatmul.mubr.bf16.gmra.mxu0 %v1641
      %v2243 = vpop.f32.mrf.mxu0
      %v2244 = vadd.f32 %v2019, %v2243
      %v2245 = vpop.f32.mrf.mxu0
      %v2246 = vpop.f32.mrf.mxu0
      %v2247 = vadd.f32 %v2022, %v2246
      %v2248 = vpop.f32.mrf.mxu0
      %2249 = vmatprep.mubr.bf16.mxu0 0
      %2250 = vmatmul.mubr.bf16.gmra.mxu0 %v1644
      %v2251 = vpop.f32.mrf.mxu0
      %v2252 = vadd.f32 %v2027, %v2251
      %v2253 = vpop.f32.mrf.mxu0
      %v2254 = vpop.f32.mrf.mxu0
      %v2255 = vadd.f32 %v2030, %v2254
      %v2256 = vpop.f32.mrf.mxu0
      %2257 = vmatprep.mubr.bf16.mxu0 0
      %2258 = vmatmul.mubr.bf16.gmra.mxu0 %v1647
      %v2259 = vpop.f32.mrf.mxu0
      %v2260 = vadd.f32 %v2035, %v2259
      %v2261 = vpop.f32.mrf.mxu0
      %v2262 = vpop.f32.mrf.mxu0
      %v2263 = vadd.f32 %v2038, %v2262
      %v2264 = vpop.f32.mrf.mxu0
      %2265 = vmatprep.mubr.bf16.mxu0 0
      %2266 = vmatmul.mubr.bf16.gmra.mxu0 %v1649
      %v2267 = vpop.f32.mrf.mxu0
      %v2268 = vadd.f32 %v2043, %v2267
      %v2269 = vpop.f32.mrf.mxu0
      %v2270 = vpop.f32.mrf.mxu0
      %v2271 = vadd.f32 %v2046, %v2270
      %v2272 = vpop.f32.mrf.mxu0
      %2273 = vmatprep.mubr.bf16.mxu0 0
      %2274 = vmatmul.mubr.bf16.gmra.mxu0 %v1652
      %v2275 = vpop.f32.mrf.mxu0
      %v2276 = vadd.f32 %v2051, %v2275
      %v2277 = vpop.f32.mrf.mxu0
      %v2278 = vpop.f32.mrf.mxu0
      %v2279 = vadd.f32 %v2054, %v2278
      %v2280 = vpop.f32.mrf.mxu0
      %2281 = vmatprep.mubr.bf16.mxu0 0
      %2282 = vmatmul.mubr.bf16.gmra.mxu0 %v1655
      %v2283 = vpop.f32.mrf.mxu0
      %v2284 = vadd.f32 %v2059, %v2283
      %v2285 = vpop.f32.mrf.mxu0
      %v2286 = vpop.f32.mrf.mxu0
      %v2287 = vadd.f32 %v2062, %v2286
      %v2288 = vpop.f32.mrf.mxu0
      %2289 = vmatprep.mubr.bf16.mxu0 0
      %2290 = vmatmul.mubr.bf16.gmra.mxu0 %v1657
      %v2291 = vpop.f32.mrf.mxu0
      %v2292 = vadd.f32 %v2067, %v2291
      %v2293 = vpop.f32.mrf.mxu0
      %v2294 = vpop.f32.mrf.mxu0
      %v2295 = vadd.f32 %v2070, %v2294
      %v2296 = vpop.f32.mrf.mxu0
      %2297 = vmatprep.mubr.bf16.mxu0 0
      %2298 = vmatmul.mubr.bf16.gmra.mxu0 %v1660
      %v2299 = vpop.f32.mrf.mxu0
      %v2300 = vadd.f32 %v2075, %v2299
      %v2301 = vpop.f32.mrf.mxu0
      %v2302 = vpop.f32.mrf.mxu0
      %v2303 = vadd.f32 %v2078, %v2302
      %v2304 = vpop.f32.mrf.mxu0
      %2305 = vmatprep.mubr.bf16.mxu0 0
      %2306 = vmatmul.mubr.bf16.gmra.mxu0 %v1663
      %v2307 = vpop.f32.mrf.mxu0
      %v2308 = vadd.f32 %v2083, %v2307
      %v2309 = vpop.f32.mrf.mxu0
      %v2310 = vpop.f32.mrf.mxu0
      %v2311 = vadd.f32 %v2086, %v2310
      %v2312 = vpop.f32.mrf.mxu0
      %2313 = vmatprep.mubr.bf16.mxu0 0
      %2314 = vmatmul.mubr.bf16.gmra.mxu0 %v1665
      %v2315 = vpop.f32.mrf.mxu0
      %v2316 = vadd.f32 %v2091, %v2315
      %v2317 = vpop.f32.mrf.mxu0
      %v2318 = vpop.f32.mrf.mxu0
      %v2319 = vadd.f32 %v2094, %v2318
      %v2320 = vpop.f32.mrf.mxu0
      %2321 = vmatprep.mubr.bf16.mxu0 0
      %2322 = vmatmul.mubr.bf16.gmra.mxu0 %v1668
      %v2323 = vpop.f32.mrf.mxu0
      %v2324 = vadd.f32 %v2099, %v2323
      %v2325 = vpop.f32.mrf.mxu0
      %v2326 = vpop.f32.mrf.mxu0
      %v2327 = vadd.f32 %v2102, %v2326
      %v2328 = vpop.f32.mrf.mxu0
      %2329 = vmatprep.mubr.bf16.mxu0 0
      %2330 = vmatmul.mubr.bf16.gmra.mxu0 %v1671
      %v2331 = vpop.f32.mrf.mxu0
      %v2332 = vadd.f32 %v2107, %v2331
      %v2333 = vpop.f32.mrf.mxu0
      %v2334 = vpop.f32.mrf.mxu0
      %v2335 = vadd.f32 %v2110, %v2334
      %v2336 = vpop.f32.mrf.mxu0
      %2337 = vdwg.mxu0
      %v2338 = vpack.c.b16 %v1409, %v1407
      %v2339 = vpack.c.b16 %v1410, %v1408
      %v2340 = vpack.c.b16 %v1413, %v1411
      %v2341 = vpack.c.b16 %v849, %v848
      %v2342 = vpack.c.b16 %v1414, %v1412
      %v2343 = vpack.c.b16 %v1417, %v1415
      %v2344 = vpack.c.b16 %v851, %v850
      %v2345 = vpack.c.b16 %v1418, %v1416
      %v2346 = vpack.c.b16 %v1421, %v1419
      %v2347 = vpack.c.b16 %v1422, %v1420
      %v2348 = vpack.c.b16 %v1425, %v1423
      %v2349 = vpack.c.b16 %v855, %v854
      %v2350 = vpack.c.b16 %v1426, %v1424
      %v2351 = vpack.c.b16 %v1429, %v1427
      %v2352 = vpack.c.b16 %v857, %v856
      %v2353 = vpack.c.b16 %v1430, %v1428
      %v2354 = vpack.c.b16 %v1433, %v1431
      %v2355 = vpack.c.b16 %v1434, %v1432
      %v2356 = vpack.c.b16 %v1437, %v1435
      %v2357 = vpack.c.b16 %v861, %v860
      %v2358 = vpack.c.b16 %v1438, %v1436
      %v2359 = vpack.c.b16 %v1441, %v1439
      %v2360 = vpack.c.b16 %v863, %v862
      %v2361 = vpack.c.b16 %v1442, %v1440
      %v2362 = vpack.c.b16 %v1445, %v1443
      %v2363 = vpack.c.b16 %v1446, %v1444
      %v2364 = vpack.c.b16 %v1449, %v1447
      %v2365 = vpack.c.b16 %v867, %v866
      %v2366 = vpack.c.b16 %v1450, %v1448
      %v2367 = vpack.c.b16 %v1453, %v1451
      %v2368 = vpack.c.b16 %v869, %v868
      %v2369 = vpack.c.b16 %v1454, %v1452
      %v2370 = vpack.c.b16 %v1457, %v1455
      %v2371 = vpack.c.b16 %v1458, %v1456
      %v2372 = vpack.c.b16 %v1461, %v1459
      %v2373 = vpack.c.b16 %v873, %v872
      %v2374 = vpack.c.b16 %v1462, %v1460
      %v2375 = vpack.c.b16 %v1465, %v1463
      %v2376 = vpack.c.b16 %v875, %v874
      %v2377 = vpack.c.b16 %v1466, %v1464
      %v2378 = vpack.c.b16 %v1469, %v1467
      %v2379 = vpack.c.b16 %v1470, %v1468
      %v2380 = vpack.c.b16 %v1473, %v1471
      %v2381 = vpack.c.b16 %v879, %v878
      %v2382 = vpack.c.b16 %v1474, %v1472
      %v2383 = vpack.c.b16 %v1477, %v1475
      %v2384 = vpack.c.b16 %v881, %v880
      %v2385 = vpack.c.b16 %v1478, %v1476
      %v2386 = vpack.c.b16 %v1481, %v1479
      %v2387 = vpack.c.b16 %v1482, %v1480
      %v2388 = vpack.c.b16 %v1485, %v1483
      %v2389 = vpack.c.b16 %v885, %v884
      %v2390 = vpack.c.b16 %v1486, %v1484
      %v2391 = vpack.c.b16 %v1489, %v1487
      %v2392 = vpack.c.b16 %v887, %v886
      %v2393 = vpack.c.b16 %v1490, %v1488
      %v2394 = vpack.c.b16 %v1493, %v1491
      %v2395 = vpack.c.b16 %v1494, %v1492
      %v2396 = vpack.c.b16 %v1497, %v1495
      %v2397 = vpack.c.b16 %v891, %v890
      %v2398 = vpack.c.b16 %v1498, %v1496
      %v2399 = vpack.c.b16 %v1501, %v1499
      %v2400 = vpack.c.b16 %v893, %v892
      %v2401 = vpack.c.b16 %v1502, %v1500
      %v2522 = vunpack.c.l.b16 %v1503
      %v2523 = vunpack.c.l.b16 %v1504
      %v2524 = vunpack.c.l.b16 %v1505
      %v2525 = vunpack.c.l.b16 %v1506
      %v2526 = vunpack.c.l.b16 %v1507
      %v2527 = vunpack.c.l.b16 %v1508
      %v2528 = vunpack.c.l.b16 %v1509
      %v2529 = vunpack.c.l.b16 %v1510
      %v2530 = vunpack.c.l.b16 %v1511
      %v2531 = vunpack.c.l.b16 %v1512
      %v2532 = vunpack.c.l.b16 %v1513
      %v2533 = vunpack.c.l.b16 %v1514
      %v2534 = vunpack.c.l.b16 %v1515
      %v2535 = vunpack.c.l.b16 %v1516
      %v2536 = vunpack.c.l.b16 %v1517
      %v2537 = vunpack.c.l.b16 %v1518
      %v2538 = vunpack.c.l.b16 %v1519
      %v2539 = vunpack.c.l.b16 %v1520
      %v2540 = vunpack.c.l.b16 %v1521
      %v2541 = vunpack.c.l.b16 %v1522
      %v2542 = vunpack.c.l.b16 %v1523
      %v2543 = vunpack.c.l.b16 %v1524
      %v2544 = vunpack.c.l.b16 %v1525
      %v2545 = vunpack.c.l.b16 %v1526
      %v2546 = vunpack.c.l.b16 %v1527
      %v2547 = vunpack.c.l.b16 %v1528
      %v2548 = vunpack.c.l.b16 %v1529
      %v2549 = vunpack.c.l.b16 %v1530
      %v2550 = vunpack.c.l.b16 %v1531
      %v2551 = vunpack.c.l.b16 %v1532
      %v2552 = vunpack.c.l.b16 %v1533
      %v2553 = vunpack.c.l.b16 %v1534
      %v2554 = vunpack.c.l.b16 %v1535
      %v2555 = vunpack.c.l.b16 %v1536
      %v2556 = vunpack.c.l.b16 %v1537
      %v2557 = vunpack.c.l.b16 %v1538
      %v2558 = vunpack.c.l.b16 %v1539
      %v2559 = vunpack.c.l.b16 %v1540
      %v2560 = vunpack.c.l.b16 %v1541
      %v2561 = vunpack.c.l.b16 %v1542
      %v2562 = vunpack.c.l.b16 %v1543
      %v2563 = vunpack.c.l.b16 %v1544
      %v2564 = vunpack.c.l.b16 %v1545
      %v2565 = vunpack.c.l.b16 %v1546
      %v2566 = vunpack.c.l.b16 %v1547
      %v2567 = vunpack.c.l.b16 %v1548
      %v2568 = vunpack.c.l.b16 %v1549
      %v2569 = vunpack.c.l.b16 %v1550
      %v2570 = vpack.c.b16 %v2523, %v2522
      %v2571 = vpack.c.b16 %v2525, %v2524
      %v2572 = vpack.c.b16 %v2527, %v2526
      %v2573 = vpack.c.b16 %v2529, %v2528
      %v2574 = vpack.c.b16 %v2531, %v2530
      %v2575 = vpack.c.b16 %v2533, %v2532
      %v2576 = vpack.c.b16 %v2535, %v2534
      %v2577 = vpack.c.b16 %v2537, %v2536
      %v2578 = vpack.c.b16 %v2539, %v2538
      %v2579 = vpack.c.b16 %v2541, %v2540
      %v2580 = vpack.c.b16 %v2543, %v2542
      %v2581 = vpack.c.b16 %v2545, %v2544
      %v2582 = vpack.c.b16 %v2547, %v2546
      %v2583 = vpack.c.b16 %v2549, %v2548
      %v2584 = vpack.c.b16 %v2551, %v2550
      %v2585 = vpack.c.b16 %v2553, %v2552
      %v2586 = vpack.c.b16 %v2555, %v2554
      %v2587 = vpack.c.b16 %v2557, %v2556
      %v2588 = vpack.c.b16 %v2559, %v2558
      %v2589 = vpack.c.b16 %v2561, %v2560
      %v2590 = vpack.c.b16 %v2563, %v2562
      %v2591 = vpack.c.b16 %v2565, %v2564
      %v2592 = vpack.c.b16 %v2567, %v2566
      %v2593 = vpack.c.b16 %v2569, %v2568
      %2618 = vmatprep.subr.bf16.mxu0 0
      %2619 = vmatpush1.bf16.msra.mxu0 %v2577
      %2620 = vmatprep.subr.bf16.mxu0 0
      %2621 = vmatpush1.bf16.msra.mxu0 %v2576
      %2622 = vmatprep.subr.bf16.mxu0 0
      %2623 = vmatpush1.bf16.msra.mxu0 %v2575
      %2624 = vmatprep.subr.bf16.mxu0 0
      %2625 = vmatpush1.bf16.msra.mxu0 %v2574
      %2626 = vmatprep.subr.bf16.mxu0 0
      %2627 = vmatpush1.bf16.msra.mxu0 %v2573
      %2628 = vmatprep.subr.bf16.mxu0 0
      %2629 = vmatpush1.bf16.msra.mxu0 %v2572
      %2630 = vmatprep.subr.bf16.mxu0 0
      %2631 = vmatpush1.bf16.msra.mxu0 %v2571
      %2632 = vmatprep.subr.bf16.mxu0 0
      %2633 = vmatpush1.bf16.msra.mxu0 %v2570
      %2634 = vmatprep.subr.bf16.mxu0 0
      %2635 = vmatpush2.bf16.msra.mxu0 %v2585
      %2636 = vmatprep.subr.bf16.mxu0 0
      %2637 = vmatpush2.bf16.msra.mxu0 %v2584
      %2638 = vmatprep.subr.bf16.mxu0 0
      %2639 = vmatpush2.bf16.msra.mxu0 %v2583
      %2640 = vmatprep.subr.bf16.mxu0 0
      %2641 = vmatpush2.bf16.msra.mxu0 %v2582
      %2642 = vmatprep.subr.bf16.mxu0 0
      %2643 = vmatpush2.bf16.msra.mxu0 %v2581
      %2644 = vmatprep.subr.bf16.mxu0 0
      %2645 = vmatpush2.bf16.msra.mxu0 %v2580
      %2646 = vmatprep.subr.bf16.mxu0 0
      %2647 = vmatpush2.bf16.msra.mxu0 %v2579
      %2648 = vmatprep.subr.bf16.mxu0 0
      %2649 = vmatpush2.bf16.msra.mxu0 %v2578
      %2650 = vmatprep.mubr.bf16.mxu0 %v900
      %2651 = vmatmul.mubr.bf16.gmra.mxu0 %v2338
      %v2652 = vpop.f32.mrf.mxu0
      %v2653 = vadd.f32 %v2148, %v2652
      %v2654 = vpop.f32.mrf.mxu0
      %v2655 = vpop.f32.mrf.mxu0
      %v2656 = vadd.f32 %v2151, %v2655
      %v2657 = vpop.f32.mrf.mxu0
      %2658 = vmatprep.mubr.bf16.mxu0 %v2341
      %2659 = vmatmul.mubr.bf16.gmra.mxu0 %v2340
      %v2660 = vpop.f32.mrf.mxu0
      %v2661 = vadd.f32 %v2156, %v2660
      %v2662 = vpop.f32.mrf.mxu0
      %v2663 = vpop.f32.mrf.mxu0
      %v2664 = vadd.f32 %v2159, %v2663
      %v2665 = vpop.f32.mrf.mxu0
      %2666 = vmatprep.mubr.bf16.mxu0 %v2344
      %2667 = vmatmul.mubr.bf16.gmra.mxu0 %v2343
      %v2668 = vpop.f32.mrf.mxu0
      %v2669 = vadd.f32 %v2164, %v2668
      %v2670 = vpop.f32.mrf.mxu0
      %v2671 = vpop.f32.mrf.mxu0
      %v2672 = vadd.f32 %v2167, %v2671
      %v2673 = vpop.f32.mrf.mxu0
      %2674 = vmatprep.mubr.bf16.mxu0 %v904
      %2675 = vmatmul.mubr.bf16.gmra.mxu0 %v2346
      %v2676 = vpop.f32.mrf.mxu0
      %v2677 = vadd.f32 %v2172, %v2676
      %v2678 = vpop.f32.mrf.mxu0
      %v2679 = vpop.f32.mrf.mxu0
      %v2680 = vadd.f32 %v2175, %v2679
      %v2681 = vpop.f32.mrf.mxu0
      %2682 = vmatprep.mubr.bf16.mxu0 %v2349
      %2683 = vmatmul.mubr.bf16.gmra.mxu0 %v2348
      %v2684 = vpop.f32.mrf.mxu0
      %v2685 = vadd.f32 %v2180, %v2684
      %v2686 = vpop.f32.mrf.mxu0
      %v2687 = vpop.f32.mrf.mxu0
      %v2688 = vadd.f32 %v2183, %v2687
      %v2689 = vpop.f32.mrf.mxu0
      %2690 = vmatprep.mubr.bf16.mxu0 %v2352
      %2691 = vmatmul.mubr.bf16.gmra.mxu0 %v2351
      %v2692 = vpop.f32.mrf.mxu0
      %v2693 = vadd.f32 %v2188, %v2692
      %v2694 = vpop.f32.mrf.mxu0
      %v2695 = vpop.f32.mrf.mxu0
      %v2696 = vadd.f32 %v2191, %v2695
      %v2697 = vpop.f32.mrf.mxu0
      %2698 = vmatprep.mubr.bf16.mxu0 %v908
      %2699 = vmatmul.mubr.bf16.gmra.mxu0 %v2354
      %v2700 = vpop.f32.mrf.mxu0
      %v2701 = vadd.f32 %v2196, %v2700
      %v2702 = vpop.f32.mrf.mxu0
      %v2703 = vpop.f32.mrf.mxu0
      %v2704 = vadd.f32 %v2199, %v2703
      %v2705 = vpop.f32.mrf.mxu0
      %2706 = vmatprep.mubr.bf16.mxu0 %v2357
      %2707 = vmatmul.mubr.bf16.gmra.mxu0 %v2356
      %v2708 = vpop.f32.mrf.mxu0
      %v2709 = vadd.f32 %v2204, %v2708
      %v2710 = vpop.f32.mrf.mxu0
      %v2711 = vpop.f32.mrf.mxu0
      %v2712 = vadd.f32 %v2207, %v2711
      %v2713 = vpop.f32.mrf.mxu0
      %2714 = vmatprep.mubr.bf16.mxu0 %v2360
      %2715 = vmatmul.mubr.bf16.gmra.mxu0 %v2359
      %v2716 = vpop.f32.mrf.mxu0
      %v2717 = vadd.f32 %v2212, %v2716
      %v2718 = vpop.f32.mrf.mxu0
      %v2719 = vpop.f32.mrf.mxu0
      %v2720 = vadd.f32 %v2215, %v2719
      %v2721 = vpop.f32.mrf.mxu0
      %2722 = vmatprep.mubr.bf16.mxu0 %v912
      %2723 = vmatmul.mubr.bf16.gmra.mxu0 %v2362
      %v2724 = vpop.f32.mrf.mxu0
      %v2725 = vadd.f32 %v2220, %v2724
      %v2726 = vpop.f32.mrf.mxu0
      %v2727 = vpop.f32.mrf.mxu0
      %v2728 = vadd.f32 %v2223, %v2727
      %v2729 = vpop.f32.mrf.mxu0
      %2730 = vmatprep.mubr.bf16.mxu0 %v2365
      %2731 = vmatmul.mubr.bf16.gmra.mxu0 %v2364
      %v2732 = vpop.f32.mrf.mxu0
      %v2733 = vadd.f32 %v2228, %v2732
      %v2734 = vpop.f32.mrf.mxu0
      %v2735 = vpop.f32.mrf.mxu0
      %v2736 = vadd.f32 %v2231, %v2735
      %v2737 = vpop.f32.mrf.mxu0
      %2738 = vmatprep.mubr.bf16.mxu0 %v2368
      %2739 = vmatmul.mubr.bf16.gmra.mxu0 %v2367
      %v2740 = vpop.f32.mrf.mxu0
      %v2741 = vadd.f32 %v2236, %v2740
      %v2742 = vpop.f32.mrf.mxu0
      %v2743 = vpop.f32.mrf.mxu0
      %v2744 = vadd.f32 %v2239, %v2743
      %v2745 = vpop.f32.mrf.mxu0
      %2746 = vmatprep.mubr.bf16.mxu0 %v916
      %2747 = vmatmul.mubr.bf16.gmra.mxu0 %v2370
      %v2748 = vpop.f32.mrf.mxu0
      %v2749 = vadd.f32 %v2244, %v2748
      %v2750 = vpop.f32.mrf.mxu0
      %v2751 = vpop.f32.mrf.mxu0
      %v2752 = vadd.f32 %v2247, %v2751
      %v2753 = vpop.f32.mrf.mxu0
      %2754 = vmatprep.mubr.bf16.mxu0 %v2373
      %2755 = vmatmul.mubr.bf16.gmra.mxu0 %v2372
      %v2756 = vpop.f32.mrf.mxu0
      %v2757 = vadd.f32 %v2252, %v2756
      %v2758 = vpop.f32.mrf.mxu0
      %v2759 = vpop.f32.mrf.mxu0
      %v2760 = vadd.f32 %v2255, %v2759
      %v2761 = vpop.f32.mrf.mxu0
      %2762 = vmatprep.mubr.bf16.mxu0 %v2376
      %2763 = vmatmul.mubr.bf16.gmra.mxu0 %v2375
      %v2764 = vpop.f32.mrf.mxu0
      %v2765 = vadd.f32 %v2260, %v2764
      %v2766 = vpop.f32.mrf.mxu0
      %v2767 = vpop.f32.mrf.mxu0
      %v2768 = vadd.f32 %v2263, %v2767
      %v2769 = vpop.f32.mrf.mxu0
      %2770 = vmatprep.mubr.bf16.mxu0 %v920
      %2771 = vmatmul.mubr.bf16.gmra.mxu0 %v2378
      %v2772 = vpop.f32.mrf.mxu0
      %v2773 = vadd.f32 %v2268, %v2772
      %v2774 = vpop.f32.mrf.mxu0
      %v2775 = vpop.f32.mrf.mxu0
      %v2776 = vadd.f32 %v2271, %v2775
      %v2777 = vpop.f32.mrf.mxu0
      %2778 = vmatprep.mubr.bf16.mxu0 %v2381
      %2779 = vmatmul.mubr.bf16.gmra.mxu0 %v2380
      %v2780 = vpop.f32.mrf.mxu0
      %v2781 = vadd.f32 %v2276, %v2780
      %v2782 = vpop.f32.mrf.mxu0
      %v2783 = vpop.f32.mrf.mxu0
      %v2784 = vadd.f32 %v2279, %v2783
      %v2785 = vpop.f32.mrf.mxu0
      %2786 = vmatprep.mubr.bf16.mxu0 %v2384
      %2787 = vmatmul.mubr.bf16.gmra.mxu0 %v2383
      %v2788 = vpop.f32.mrf.mxu0
      %v2789 = vadd.f32 %v2284, %v2788
      %v2790 = vpop.f32.mrf.mxu0
      %v2791 = vpop.f32.mrf.mxu0
      %v2792 = vadd.f32 %v2287, %v2791
      %v2793 = vpop.f32.mrf.mxu0
      %2794 = vmatprep.mubr.bf16.mxu0 %v924
      %2795 = vmatmul.mubr.bf16.gmra.mxu0 %v2386
      %v2796 = vpop.f32.mrf.mxu0
      %v2797 = vadd.f32 %v2292, %v2796
      %v2798 = vpop.f32.mrf.mxu0
      %v2799 = vpop.f32.mrf.mxu0
      %v2800 = vadd.f32 %v2295, %v2799
      %v2801 = vpop.f32.mrf.mxu0
      %2802 = vmatprep.mubr.bf16.mxu0 %v2389
      %2803 = vmatmul.mubr.bf16.gmra.mxu0 %v2388
      %v2804 = vpop.f32.mrf.mxu0
      %v2805 = vadd.f32 %v2300, %v2804
      %v2806 = vpop.f32.mrf.mxu0
      %v2807 = vpop.f32.mrf.mxu0
      %v2808 = vadd.f32 %v2303, %v2807
      %v2809 = vpop.f32.mrf.mxu0
      %2810 = vmatprep.mubr.bf16.mxu0 %v2392
      %2811 = vmatmul.mubr.bf16.gmra.mxu0 %v2391
      %v2812 = vpop.f32.mrf.mxu0
      %v2813 = vadd.f32 %v2308, %v2812
      %v2814 = vpop.f32.mrf.mxu0
      %v2815 = vpop.f32.mrf.mxu0
      %v2816 = vadd.f32 %v2311, %v2815
      %v2817 = vpop.f32.mrf.mxu0
      %2818 = vmatprep.mubr.bf16.mxu0 %v928
      %2819 = vmatmul.mubr.bf16.gmra.mxu0 %v2394
      %v2820 = vpop.f32.mrf.mxu0
      %v2821 = vadd.f32 %v2316, %v2820
      %v2822 = vpop.f32.mrf.mxu0
      %v2823 = vpop.f32.mrf.mxu0
      %v2824 = vadd.f32 %v2319, %v2823
      %v2825 = vpop.f32.mrf.mxu0
      %2826 = vmatprep.mubr.bf16.mxu0 %v2397
      %2827 = vmatmul.mubr.bf16.gmra.mxu0 %v2396
      %v2828 = vpop.f32.mrf.mxu0
      %v2829 = vadd.f32 %v2324, %v2828
      %v2830 = vpop.f32.mrf.mxu0
      %v2831 = vpop.f32.mrf.mxu0
      %v2832 = vadd.f32 %v2327, %v2831
      %v2833 = vpop.f32.mrf.mxu0
      %2834 = vmatprep.mubr.bf16.mxu0 %v2400
      %2835 = vmatmul.mubr.bf16.gmra.mxu0 %v2399
      %v2836 = vpop.f32.mrf.mxu0
      %v2837 = vadd.f32 %v2332, %v2836
      %v2838 = vpop.f32.mrf.mxu0
      %v2839 = vpop.f32.mrf.mxu0
      %v2840 = vadd.f32 %v2335, %v2839
      %v2841 = vpop.f32.mrf.mxu0
      %2842 = vdwg.mxu0
      %2843 = vmatprep.subr.bf16.mxu0 0
      %2844 = vmatpush1.bf16.msra.mxu0 %v2593
      %2845 = vmatprep.subr.bf16.mxu0 0
      %2846 = vmatpush1.bf16.msra.mxu0 %v2592
      %2847 = vmatprep.subr.bf16.mxu0 0
      %2848 = vmatpush1.bf16.msra.mxu0 %v2591
      %2849 = vmatprep.subr.bf16.mxu0 0
      %2850 = vmatpush1.bf16.msra.mxu0 %v2590
      %2851 = vmatprep.subr.bf16.mxu0 0
      %2852 = vmatpush1.bf16.msra.mxu0 %v2589
      %2853 = vmatprep.subr.bf16.mxu0 0
      %2854 = vmatpush1.bf16.msra.mxu0 %v2588
      %2855 = vmatprep.subr.bf16.mxu0 0
      %2856 = vmatpush1.bf16.msra.mxu0 %v2587
      %2857 = vmatprep.subr.bf16.mxu0 0
      %2858 = vmatpush1.bf16.msra.mxu0 %v2586
      %2859 = vmatprep.subr.bf16.mxu0 0
      %2860 = vmatpush2.bf16.msra.mxu0 0
      %2861 = vmatprep.subr.bf16.mxu0 0
      %2862 = vmatpush2.bf16.msra.mxu0 0
      %2863 = vmatprep.subr.bf16.mxu0 0
      %2864 = vmatpush2.bf16.msra.mxu0 0
      %2865 = vmatprep.subr.bf16.mxu0 0
      %2866 = vmatpush2.bf16.msra.mxu0 0
      %2867 = vmatprep.subr.bf16.mxu0 0
      %2868 = vmatpush2.bf16.msra.mxu0 0
      %2869 = vmatprep.subr.bf16.mxu0 0
      %2870 = vmatpush2.bf16.msra.mxu0 0
      %2871 = vmatprep.subr.bf16.mxu0 0
      %2872 = vmatpush2.bf16.msra.mxu0 0
      %2873 = vmatprep.subr.bf16.mxu0 0
      %2874 = vmatpush2.bf16.msra.mxu0 0
      %2875 = vmatprep.mubr.bf16.mxu0 0
      %2876 = vmatmul.mubr.bf16.gmra.mxu0 %v2339
      %v2877 = vpop.f32.mrf.mxu0
      %v2878 = vadd.f32 %v2653, %v2877
      %v2879 = vpop.f32.mrf.mxu0
      %v2880 = vpop.f32.mrf.mxu0
      %v2881 = vadd.f32 %v2656, %v2880
      %v2882 = vpop.f32.mrf.mxu0
      %2883 = vmatprep.mubr.bf16.mxu0 0
      %2884 = vmatmul.mubr.bf16.gmra.mxu0 %v2342
      %v2885 = vpop.f32.mrf.mxu0
      %v2886 = vadd.f32 %v2661, %v2885
      %v2887 = vpop.f32.mrf.mxu0
      %v2888 = vpop.f32.mrf.mxu0
      %v2889 = vadd.f32 %v2664, %v2888
      %v2890 = vpop.f32.mrf.mxu0
      %2891 = vmatprep.mubr.bf16.mxu0 0
      %2892 = vmatmul.mubr.bf16.gmra.mxu0 %v2345
      %v2893 = vpop.f32.mrf.mxu0
      %v2894 = vadd.f32 %v2669, %v2893
      %v2895 = vpop.f32.mrf.mxu0
      %v2896 = vpop.f32.mrf.mxu0
      %v2897 = vadd.f32 %v2672, %v2896
      %v2898 = vpop.f32.mrf.mxu0
      %2899 = vmatprep.mubr.bf16.mxu0 0
      %2900 = vmatmul.mubr.bf16.gmra.mxu0 %v2347
      %v2901 = vpop.f32.mrf.mxu0
      %v2902 = vadd.f32 %v2677, %v2901
      %v2903 = vpop.f32.mrf.mxu0
      %v2904 = vpop.f32.mrf.mxu0
      %v2905 = vadd.f32 %v2680, %v2904
      %v2906 = vpop.f32.mrf.mxu0
      %2907 = vmatprep.mubr.bf16.mxu0 0
      %2908 = vmatmul.mubr.bf16.gmra.mxu0 %v2350
      %v2909 = vpop.f32.mrf.mxu0
      %v2910 = vadd.f32 %v2685, %v2909
      %v2911 = vpop.f32.mrf.mxu0
      %v2912 = vpop.f32.mrf.mxu0
      %v2913 = vadd.f32 %v2688, %v2912
      %v2914 = vpop.f32.mrf.mxu0
      %2915 = vmatprep.mubr.bf16.mxu0 0
      %2916 = vmatmul.mubr.bf16.gmra.mxu0 %v2353
      %v2917 = vpop.f32.mrf.mxu0
      %v2918 = vadd.f32 %v2693, %v2917
      %v2919 = vpop.f32.mrf.mxu0
      %v2920 = vpop.f32.mrf.mxu0
      %v2921 = vadd.f32 %v2696, %v2920
      %v2922 = vpop.f32.mrf.mxu0
      %2923 = vmatprep.mubr.bf16.mxu0 0
      %2924 = vmatmul.mubr.bf16.gmra.mxu0 %v2355
      %v2925 = vpop.f32.mrf.mxu0
      %v2926 = vadd.f32 %v2701, %v2925
      %v2927 = vpop.f32.mrf.mxu0
      %v2928 = vpop.f32.mrf.mxu0
      %v2929 = vadd.f32 %v2704, %v2928
      %v2930 = vpop.f32.mrf.mxu0
      %2931 = vmatprep.mubr.bf16.mxu0 0
      %2932 = vmatmul.mubr.bf16.gmra.mxu0 %v2358
      %v2933 = vpop.f32.mrf.mxu0
      %v2934 = vadd.f32 %v2709, %v2933
      %v2935 = vpop.f32.mrf.mxu0
      %v2936 = vpop.f32.mrf.mxu0
      %v2937 = vadd.f32 %v2712, %v2936
      %v2938 = vpop.f32.mrf.mxu0
      %2939 = vmatprep.mubr.bf16.mxu0 0
      %2940 = vmatmul.mubr.bf16.gmra.mxu0 %v2361
      %v2941 = vpop.f32.mrf.mxu0
      %v2942 = vadd.f32 %v2717, %v2941
      %v2943 = vpop.f32.mrf.mxu0
      %v2944 = vpop.f32.mrf.mxu0
      %v2945 = vadd.f32 %v2720, %v2944
      %v2946 = vpop.f32.mrf.mxu0
      %2947 = vmatprep.mubr.bf16.mxu0 0
      %2948 = vmatmul.mubr.bf16.gmra.mxu0 %v2363
      %v2949 = vpop.f32.mrf.mxu0
      %v2950 = vadd.f32 %v2725, %v2949
      %v2951 = vpop.f32.mrf.mxu0
      %v2952 = vpop.f32.mrf.mxu0
      %v2953 = vadd.f32 %v2728, %v2952
      %v2954 = vpop.f32.mrf.mxu0
      %2955 = vmatprep.mubr.bf16.mxu0 0
      %2956 = vmatmul.mubr.bf16.gmra.mxu0 %v2366
      %v2957 = vpop.f32.mrf.mxu0
      %v2958 = vadd.f32 %v2733, %v2957
      %v2959 = vpop.f32.mrf.mxu0
      %v2960 = vpop.f32.mrf.mxu0
      %v2961 = vadd.f32 %v2736, %v2960
      %v2962 = vpop.f32.mrf.mxu0
      %2963 = vmatprep.mubr.bf16.mxu0 0
      %2964 = vmatmul.mubr.bf16.gmra.mxu0 %v2369
      %v2965 = vpop.f32.mrf.mxu0
      %v2966 = vadd.f32 %v2741, %v2965
      %v2967 = vpop.f32.mrf.mxu0
      %v2968 = vpop.f32.mrf.mxu0
      %v2969 = vadd.f32 %v2744, %v2968
      %v2970 = vpop.f32.mrf.mxu0
      %2971 = vmatprep.mubr.bf16.mxu0 0
      %2972 = vmatmul.mubr.bf16.gmra.mxu0 %v2371
      %v2973 = vpop.f32.mrf.mxu0
      %v2974 = vadd.f32 %v2749, %v2973
      %v2975 = vpop.f32.mrf.mxu0
      %v2976 = vpop.f32.mrf.mxu0
      %v2977 = vadd.f32 %v2752, %v2976
      %v2978 = vpop.f32.mrf.mxu0
      %2979 = vmatprep.mubr.bf16.mxu0 0
      %2980 = vmatmul.mubr.bf16.gmra.mxu0 %v2374
      %v2981 = vpop.f32.mrf.mxu0
      %v2982 = vadd.f32 %v2757, %v2981
      %v2983 = vpop.f32.mrf.mxu0
      %v2984 = vpop.f32.mrf.mxu0
      %v2985 = vadd.f32 %v2760, %v2984
      %v2986 = vpop.f32.mrf.mxu0
      %2987 = vmatprep.mubr.bf16.mxu0 0
      %2988 = vmatmul.mubr.bf16.gmra.mxu0 %v2377
      %v2989 = vpop.f32.mrf.mxu0
      %v2990 = vadd.f32 %v2765, %v2989
      %v2991 = vpop.f32.mrf.mxu0
      %v2992 = vpop.f32.mrf.mxu0
      %v2993 = vadd.f32 %v2768, %v2992
      %v2994 = vpop.f32.mrf.mxu0
      %2995 = vmatprep.mubr.bf16.mxu0 0
      %2996 = vmatmul.mubr.bf16.gmra.mxu0 %v2379
      %v2997 = vpop.f32.mrf.mxu0
      %v2998 = vadd.f32 %v2773, %v2997
      %v2999 = vpop.f32.mrf.mxu0
      %v3000 = vpop.f32.mrf.mxu0
      %v3001 = vadd.f32 %v2776, %v3000
      %v3002 = vpop.f32.mrf.mxu0
      %3003 = vmatprep.mubr.bf16.mxu0 0
      %3004 = vmatmul.mubr.bf16.gmra.mxu0 %v2382
      %v3005 = vpop.f32.mrf.mxu0
      %v3006 = vadd.f32 %v2781, %v3005
      %v3007 = vpop.f32.mrf.mxu0
      %v3008 = vpop.f32.mrf.mxu0
      %v3009 = vadd.f32 %v2784, %v3008
      %v3010 = vpop.f32.mrf.mxu0
      %3011 = vmatprep.mubr.bf16.mxu0 0
      %3012 = vmatmul.mubr.bf16.gmra.mxu0 %v2385
      %v3013 = vpop.f32.mrf.mxu0
      %v3014 = vadd.f32 %v2789, %v3013
      %v3015 = vpop.f32.mrf.mxu0
      %v3016 = vpop.f32.mrf.mxu0
      %v3017 = vadd.f32 %v2792, %v3016
      %v3018 = vpop.f32.mrf.mxu0
      %3019 = vmatprep.mubr.bf16.mxu0 0
      %3020 = vmatmul.mubr.bf16.gmra.mxu0 %v2387
      %v3021 = vpop.f32.mrf.mxu0
      %v3022 = vadd.f32 %v2797, %v3021
      %v3023 = vpop.f32.mrf.mxu0
      %v3024 = vpop.f32.mrf.mxu0
      %v3025 = vadd.f32 %v2800, %v3024
      %v3026 = vpop.f32.mrf.mxu0
      %3027 = vmatprep.mubr.bf16.mxu0 0
      %3028 = vmatmul.mubr.bf16.gmra.mxu0 %v2390
      %v3029 = vpop.f32.mrf.mxu0
      %v3030 = vadd.f32 %v2805, %v3029
      %v3031 = vpop.f32.mrf.mxu0
      %v3032 = vpop.f32.mrf.mxu0
      %v3033 = vadd.f32 %v2808, %v3032
      %v3034 = vpop.f32.mrf.mxu0
      %3035 = vmatprep.mubr.bf16.mxu0 0
      %3036 = vmatmul.mubr.bf16.gmra.mxu0 %v2393
      %v3037 = vpop.f32.mrf.mxu0
      %v3038 = vadd.f32 %v2813, %v3037
      %v3039 = vpop.f32.mrf.mxu0
      %v3040 = vpop.f32.mrf.mxu0
      %v3041 = vadd.f32 %v2816, %v3040
      %v3042 = vpop.f32.mrf.mxu0
      %3043 = vmatprep.mubr.bf16.mxu0 0
      %3044 = vmatmul.mubr.bf16.gmra.mxu0 %v2395
      %v3045 = vpop.f32.mrf.mxu0
      %v3046 = vadd.f32 %v2821, %v3045
      %v3047 = vpop.f32.mrf.mxu0
      %v3048 = vpop.f32.mrf.mxu0
      %v3049 = vadd.f32 %v2824, %v3048
      %v3050 = vpop.f32.mrf.mxu0
      %3051 = vmatprep.mubr.bf16.mxu0 0
      %3052 = vmatmul.mubr.bf16.gmra.mxu0 %v2398
      %v3053 = vpop.f32.mrf.mxu0
      %v3054 = vadd.f32 %v2829, %v3053
      %v3055 = vpop.f32.mrf.mxu0
      %v3056 = vpop.f32.mrf.mxu0
      %v3057 = vadd.f32 %v2832, %v3056
      %v3058 = vpop.f32.mrf.mxu0
      %3059 = vmatprep.mubr.bf16.mxu0 0
      %3060 = vmatmul.mubr.bf16.gmra.mxu0 %v2401
      %v3061 = vpop.f32.mrf.mxu0
      %v3062 = vadd.f32 %v2837, %v3061
      %v3063 = vpop.f32.mrf.mxu0
      %v3064 = vpop.f32.mrf.mxu0
      %v3065 = vadd.f32 %v2840, %v3064
      %v3066 = vpop.f32.mrf.mxu0
      %3067 = vdwg.mxu0
      %v3070 = vunpack.c.l.b16 %v1244
      %v3071 = vunpack.c.l.b16 %v1334
      %v3072 = vunpack.c.h.b16 %v1244
      %v3073 = vunpack.c.h.b16 %v1334
      %v3074 = vunpack.c.l.b16 %v1206
      %v3075 = vunpack.c.l.b16 %v1374
      %s3076 = scalar_lea.vmem %s3, 384
      %v3077 = vld [vmem:[%s3076] sm:$0xf]
      %v3078 = vld [vmem:[%s3076 + $0x4] sm:$0xf]
      %v3079 = vld [vmem:[%s3076 + $0x8] sm:$0xf]
      %v3080 = vld [vmem:[%s3076 + $0xc] sm:$0xf]
      %v3081 = vld [vmem:[%s3076 + $0x10] sm:$0xf]
      %v3082 = vld [vmem:[%s3076 + $0x14] sm:$0xf]
      %v3083 = vld [vmem:[%s3076 + $0x18] sm:$0xf]
      %v3084 = vld [vmem:[%s3076 + $0x1c] sm:$0xf]
      %v3085 = vld [vmem:[%s3076 + $0x20] sm:$0xf]
      %v3086 = vld [vmem:[%s3076 + $0x24] sm:$0xf]
      %v3087 = vld [vmem:[%s3076 + $0x28] sm:$0xf]
      %v3088 = vld [vmem:[%s3076 + $0x2c] sm:$0xf]
      %v3089 = vld [vmem:[%s3076 + $0x30] sm:$0xf]
      %v3090 = vld [vmem:[%s3076 + $0x34] sm:$0xf]
      %v3091 = vld [vmem:[%s3076 + $0x38] sm:$0xf]
      %v3092 = vld [vmem:[%s3076 + $0x3c] sm:$0xf]
      %v3093 = vld [vmem:[%s3076 + $0x40] sm:$0xf]
      %v3094 = vld [vmem:[%s3076 + $0x44] sm:$0xf]
      %v3095 = vld [vmem:[%s3076 + $0x48] sm:$0xf]
      %v3096 = vld [vmem:[%s3076 + $0x4c] sm:$0xf]
      %v3097 = vld [vmem:[%s3076 + $0x50] sm:$0xf]
      %v3098 = vld [vmem:[%s3076 + $0x54] sm:$0xf]
      %v3099 = vld [vmem:[%s3076 + $0x58] sm:$0xf]
      %v3100 = vld [vmem:[%s3076 + $0x5c] sm:$0xf]
      %v3101 = vld [vmem:[%s3076 + $0x60] sm:$0xf]
      %v3102 = vld [vmem:[%s3076 + $0x64] sm:$0xf]
      %v3103 = vld [vmem:[%s3076 + $0x68] sm:$0xf]
      %v3104 = vld [vmem:[%s3076 + $0x6c] sm:$0xf]
      %v3105 = vld [vmem:[%s3076 + $0x70] sm:$0xf]
      %v3106 = vld [vmem:[%s3076 + $0x74] sm:$0xf]
      %v3107 = vld [vmem:[%s3076 + $0x78] sm:$0xf]
      %v3108 = vld [vmem:[%s3076 + $0x7c] sm:$0xf]
      %v3109 = vld [vmem:[%s3076 + $0x80] sm:$0xf]
      %v3110 = vld [vmem:[%s3076 + $0x84] sm:$0xf]
      %v3111 = vld [vmem:[%s3076 + $0x88] sm:$0xf]
      %v3112 = vld [vmem:[%s3076 + $0x8c] sm:$0xf]
      %v3113 = vld [vmem:[%s3076 + $0x90] sm:$0xf]
      %v3114 = vld [vmem:[%s3076 + $0x94] sm:$0xf]
      %v3115 = vld [vmem:[%s3076 + $0x98] sm:$0xf]
      %v3116 = vld [vmem:[%s3076 + $0x9c] sm:$0xf]
      %v3117 = vld [vmem:[%s3076 + $0xa0] sm:$0xf]
      %v3118 = vld [vmem:[%s3076 + $0xa4] sm:$0xf]
      %v3119 = vld [vmem:[%s3076 + $0xa8] sm:$0xf]
      %v3120 = vld [vmem:[%s3076 + $0xac] sm:$0xf]
      %v3121 = vld [vmem:[%s3076 + $0xb0] sm:$0xf]
      %v3122 = vld [vmem:[%s3076 + $0xb4] sm:$0xf]
      %v3123 = vld [vmem:[%s3076 + $0xb8] sm:$0xf]
      %v3124 = vld [vmem:[%s3076 + $0xbc] sm:$0xf]
      %v3125 = vpack.c.b16 %v1555, %v1553
      %v3126 = vpack.c.b16 %v1556, %v1554
      %v3127 = vpack.c.b16 %v3070, %v1557
      %v3128 = vpack.c.b16 %v897, %v896
      %v3129 = vpack.c.b16 %v3071, %v1558
      %v3130 = vpack.c.b16 %v3074, %v3072
      %v3131 = vpack.c.b16 %v899, %v898
      %v3132 = vpack.c.b16 %v3075, %v3073
      %v3190 = vunpack.c.l.b16 %v3077
      %v3191 = vunpack.c.l.b16 %v3078
      %v3192 = vunpack.c.l.b16 %v3079
      %v3193 = vunpack.c.l.b16 %v3080
      %v3194 = vunpack.c.l.b16 %v3081
      %v3195 = vunpack.c.l.b16 %v3082
      %v3196 = vunpack.c.l.b16 %v3083
      %v3197 = vunpack.c.l.b16 %v3084
      %v3198 = vunpack.c.l.b16 %v3085
      %v3199 = vunpack.c.l.b16 %v3086
      %v3200 = vunpack.c.l.b16 %v3087
      %v3201 = vunpack.c.l.b16 %v3088
      %v3202 = vunpack.c.l.b16 %v3089
      %v3203 = vunpack.c.l.b16 %v3090
      %v3204 = vunpack.c.l.b16 %v3091
      %v3205 = vunpack.c.l.b16 %v3092
      %v3206 = vunpack.c.l.b16 %v3093
      %v3207 = vunpack.c.l.b16 %v3094
      %v3208 = vunpack.c.l.b16 %v3095
      %v3209 = vunpack.c.l.b16 %v3096
      %v3210 = vunpack.c.l.b16 %v3097
      %v3211 = vunpack.c.l.b16 %v3098
      %v3212 = vunpack.c.l.b16 %v3099
      %v3213 = vunpack.c.l.b16 %v3100
      %v3214 = vunpack.c.l.b16 %v3101
      %v3215 = vunpack.c.l.b16 %v3102
      %v3216 = vunpack.c.l.b16 %v3103
      %v3217 = vunpack.c.l.b16 %v3104
      %v3218 = vunpack.c.l.b16 %v3105
      %v3219 = vunpack.c.l.b16 %v3106
      %v3220 = vunpack.c.l.b16 %v3107
      %v3221 = vunpack.c.l.b16 %v3108
      %v3222 = vunpack.c.l.b16 %v3109
      %v3223 = vunpack.c.l.b16 %v3110
      %v3224 = vunpack.c.l.b16 %v3111
      %v3225 = vunpack.c.l.b16 %v3112
      %v3226 = vunpack.c.l.b16 %v3113
      %v3227 = vunpack.c.l.b16 %v3114
      %v3228 = vunpack.c.l.b16 %v3115
      %v3229 = vunpack.c.l.b16 %v3116
      %v3230 = vunpack.c.l.b16 %v3117
      %v3231 = vunpack.c.l.b16 %v3118
      %v3232 = vunpack.c.l.b16 %v3119
      %v3233 = vunpack.c.l.b16 %v3120
      %v3234 = vunpack.c.l.b16 %v3121
      %v3235 = vunpack.c.l.b16 %v3122
      %v3236 = vunpack.c.l.b16 %v3123
      %v3237 = vunpack.c.l.b16 %v3124
      %v3238 = vpack.c.b16 %v3191, %v3190
      %v3239 = vpack.c.b16 %v3193, %v3192
      %v3240 = vpack.c.b16 %v3195, %v3194
      %v3241 = vpack.c.b16 %v3197, %v3196
      %v3242 = vpack.c.b16 %v3199, %v3198
      %v3243 = vpack.c.b16 %v3201, %v3200
      %v3244 = vpack.c.b16 %v3203, %v3202
      %v3245 = vpack.c.b16 %v3205, %v3204
      %v3246 = vpack.c.b16 %v3207, %v3206
      %v3247 = vpack.c.b16 %v3209, %v3208
      %v3248 = vpack.c.b16 %v3211, %v3210
      %v3249 = vpack.c.b16 %v3213, %v3212
      %v3250 = vpack.c.b16 %v3215, %v3214
      %v3251 = vpack.c.b16 %v3217, %v3216
      %v3252 = vpack.c.b16 %v3219, %v3218
      %v3253 = vpack.c.b16 %v3221, %v3220
      %v3254 = vpack.c.b16 %v3223, %v3222
      %v3255 = vpack.c.b16 %v3225, %v3224
      %v3256 = vpack.c.b16 %v3227, %v3226
      %v3257 = vpack.c.b16 %v3229, %v3228
      %v3258 = vpack.c.b16 %v3231, %v3230
      %v3259 = vpack.c.b16 %v3233, %v3232
      %v3260 = vpack.c.b16 %v3235, %v3234
      %v3261 = vpack.c.b16 %v3237, %v3236
      %3286 = vmatprep.subr.bf16.mxu0 0
      %3287 = vmatpush1.bf16.msra.mxu0 %v3245
      %3288 = vmatprep.subr.bf16.mxu0 0
      %3289 = vmatpush1.bf16.msra.mxu0 %v3244
      %3290 = vmatprep.subr.bf16.mxu0 0
      %3291 = vmatpush1.bf16.msra.mxu0 %v3243
      %3292 = vmatprep.subr.bf16.mxu0 0
      %3293 = vmatpush1.bf16.msra.mxu0 %v3242
      %3294 = vmatprep.subr.bf16.mxu0 0
      %3295 = vmatpush1.bf16.msra.mxu0 %v3241
      %3296 = vmatprep.subr.bf16.mxu0 0
      %3297 = vmatpush1.bf16.msra.mxu0 %v3240
      %3298 = vmatprep.subr.bf16.mxu0 0
      %3299 = vmatpush1.bf16.msra.mxu0 %v3239
      %3300 = vmatprep.subr.bf16.mxu0 0
      %3301 = vmatpush1.bf16.msra.mxu0 %v3238
      %3302 = vmatprep.subr.bf16.mxu0 0
      %3303 = vmatpush2.bf16.msra.mxu0 %v3253
      %3304 = vmatprep.subr.bf16.mxu0 0
      %3305 = vmatpush2.bf16.msra.mxu0 %v3252
      %3306 = vmatprep.subr.bf16.mxu0 0
      %3307 = vmatpush2.bf16.msra.mxu0 %v3251
      %3308 = vmatprep.subr.bf16.mxu0 0
      %3309 = vmatpush2.bf16.msra.mxu0 %v3250
      %3310 = vmatprep.subr.bf16.mxu0 0
      %3311 = vmatpush2.bf16.msra.mxu0 %v3249
      %3312 = vmatprep.subr.bf16.mxu0 0
      %3313 = vmatpush2.bf16.msra.mxu0 %v3248
      %3314 = vmatprep.subr.bf16.mxu0 0
      %3315 = vmatpush2.bf16.msra.mxu0 %v3247
      %3316 = vmatprep.subr.bf16.mxu0 0
      %3317 = vmatpush2.bf16.msra.mxu0 %v3246
      %3318 = vmatprep.mubr.bf16.mxu0 %v904
      %3319 = vmatmul.mubr.bf16.gmra.mxu0 %v2346
      %v3320 = vpop.f32.mrf.mxu0
      %v3321 = vadd.f32 0.0, %v3320
      %v3322 = vpop.f32.mrf.mxu0
      %v3323 = vpop.f32.mrf.mxu0
      %v3324 = vadd.f32 0.0, %v3323
      %v3325 = vpop.f32.mrf.mxu0
      %3326 = vmatprep.mubr.bf16.mxu0 %v2349
      %3327 = vmatmul.mubr.bf16.gmra.mxu0 %v2348
      %v3328 = vpop.f32.mrf.mxu0
      %v3329 = vadd.f32 0.0, %v3328
      %v3330 = vpop.f32.mrf.mxu0
      %v3331 = vpop.f32.mrf.mxu0
      %v3332 = vadd.f32 0.0, %v3331
      %v3333 = vpop.f32.mrf.mxu0
      %3334 = vmatprep.mubr.bf16.mxu0 %v2352
      %3335 = vmatmul.mubr.bf16.gmra.mxu0 %v2351
      %v3336 = vpop.f32.mrf.mxu0
      %v3337 = vadd.f32 0.0, %v3336
      %v3338 = vpop.f32.mrf.mxu0
      %v3339 = vpop.f32.mrf.mxu0
      %v3340 = vadd.f32 0.0, %v3339
      %v3341 = vpop.f32.mrf.mxu0
      %3342 = vmatprep.mubr.bf16.mxu0 %v908
      %3343 = vmatmul.mubr.bf16.gmra.mxu0 %v2354
      %v3344 = vpop.f32.mrf.mxu0
      %v3345 = vadd.f32 0.0, %v3344
      %v3346 = vpop.f32.mrf.mxu0
      %v3347 = vpop.f32.mrf.mxu0
      %v3348 = vadd.f32 0.0, %v3347
      %v3349 = vpop.f32.mrf.mxu0
      %3350 = vmatprep.mubr.bf16.mxu0 %v2357
      %3351 = vmatmul.mubr.bf16.gmra.mxu0 %v2356
      %v3352 = vpop.f32.mrf.mxu0
      %v3353 = vadd.f32 0.0, %v3352
      %v3354 = vpop.f32.mrf.mxu0
      %v3355 = vpop.f32.mrf.mxu0
      %v3356 = vadd.f32 0.0, %v3355
      %v3357 = vpop.f32.mrf.mxu0
      %3358 = vmatprep.mubr.bf16.mxu0 %v2360
      %3359 = vmatmul.mubr.bf16.gmra.mxu0 %v2359
      %v3360 = vpop.f32.mrf.mxu0
      %v3361 = vadd.f32 0.0, %v3360
      %v3362 = vpop.f32.mrf.mxu0
      %v3363 = vpop.f32.mrf.mxu0
      %v3364 = vadd.f32 0.0, %v3363
      %v3365 = vpop.f32.mrf.mxu0
      %3366 = vmatprep.mubr.bf16.mxu0 %v912
      %3367 = vmatmul.mubr.bf16.gmra.mxu0 %v2362
      %v3368 = vpop.f32.mrf.mxu0
      %v3369 = vadd.f32 0.0, %v3368
      %v3370 = vpop.f32.mrf.mxu0
      %v3371 = vpop.f32.mrf.mxu0
      %v3372 = vadd.f32 0.0, %v3371
      %v3373 = vpop.f32.mrf.mxu0
      %3374 = vmatprep.mubr.bf16.mxu0 %v2365
      %3375 = vmatmul.mubr.bf16.gmra.mxu0 %v2364
      %v3376 = vpop.f32.mrf.mxu0
      %v3377 = vadd.f32 0.0, %v3376
      %v3378 = vpop.f32.mrf.mxu0
      %v3379 = vpop.f32.mrf.mxu0
      %v3380 = vadd.f32 0.0, %v3379
      %v3381 = vpop.f32.mrf.mxu0
      %3382 = vmatprep.mubr.bf16.mxu0 %v2368
      %3383 = vmatmul.mubr.bf16.gmra.mxu0 %v2367
      %v3384 = vpop.f32.mrf.mxu0
      %v3385 = vadd.f32 0.0, %v3384
      %v3386 = vpop.f32.mrf.mxu0
      %v3387 = vpop.f32.mrf.mxu0
      %v3388 = vadd.f32 0.0, %v3387
      %v3389 = vpop.f32.mrf.mxu0
      %3390 = vmatprep.mubr.bf16.mxu0 %v916
      %3391 = vmatmul.mubr.bf16.gmra.mxu0 %v2370
      %v3392 = vpop.f32.mrf.mxu0
      %v3393 = vadd.f32 0.0, %v3392
      %v3394 = vpop.f32.mrf.mxu0
      %v3395 = vpop.f32.mrf.mxu0
      %v3396 = vadd.f32 0.0, %v3395
      %v3397 = vpop.f32.mrf.mxu0
      %3398 = vmatprep.mubr.bf16.mxu0 %v2373
      %3399 = vmatmul.mubr.bf16.gmra.mxu0 %v2372
      %v3400 = vpop.f32.mrf.mxu0
      %v3401 = vadd.f32 0.0, %v3400
      %v3402 = vpop.f32.mrf.mxu0
      %v3403 = vpop.f32.mrf.mxu0
      %v3404 = vadd.f32 0.0, %v3403
      %v3405 = vpop.f32.mrf.mxu0
      %3406 = vmatprep.mubr.bf16.mxu0 %v2376
      %3407 = vmatmul.mubr.bf16.gmra.mxu0 %v2375
      %v3408 = vpop.f32.mrf.mxu0
      %v3409 = vadd.f32 0.0, %v3408
      %v3410 = vpop.f32.mrf.mxu0
      %v3411 = vpop.f32.mrf.mxu0
      %v3412 = vadd.f32 0.0, %v3411
      %v3413 = vpop.f32.mrf.mxu0
      %3414 = vmatprep.mubr.bf16.mxu0 %v920
      %3415 = vmatmul.mubr.bf16.gmra.mxu0 %v2378
      %v3416 = vpop.f32.mrf.mxu0
      %v3417 = vadd.f32 0.0, %v3416
      %v3418 = vpop.f32.mrf.mxu0
      %v3419 = vpop.f32.mrf.mxu0
      %v3420 = vadd.f32 0.0, %v3419
      %v3421 = vpop.f32.mrf.mxu0
      %3422 = vmatprep.mubr.bf16.mxu0 %v2381
      %3423 = vmatmul.mubr.bf16.gmra.mxu0 %v2380
      %v3424 = vpop.f32.mrf.mxu0
      %v3425 = vadd.f32 0.0, %v3424
      %v3426 = vpop.f32.mrf.mxu0
      %v3427 = vpop.f32.mrf.mxu0
      %v3428 = vadd.f32 0.0, %v3427
      %v3429 = vpop.f32.mrf.mxu0
      %3430 = vmatprep.mubr.bf16.mxu0 %v2384
      %3431 = vmatmul.mubr.bf16.gmra.mxu0 %v2383
      %v3432 = vpop.f32.mrf.mxu0
      %v3433 = vadd.f32 0.0, %v3432
      %v3434 = vpop.f32.mrf.mxu0
      %v3435 = vpop.f32.mrf.mxu0
      %v3436 = vadd.f32 0.0, %v3435
      %v3437 = vpop.f32.mrf.mxu0
      %3438 = vmatprep.mubr.bf16.mxu0 %v924
      %3439 = vmatmul.mubr.bf16.gmra.mxu0 %v2386
      %v3440 = vpop.f32.mrf.mxu0
      %v3441 = vadd.f32 0.0, %v3440
      %v3442 = vpop.f32.mrf.mxu0
      %v3443 = vpop.f32.mrf.mxu0
      %v3444 = vadd.f32 0.0, %v3443
      %v3445 = vpop.f32.mrf.mxu0
      %3446 = vmatprep.mubr.bf16.mxu0 %v2389
      %3447 = vmatmul.mubr.bf16.gmra.mxu0 %v2388
      %v3448 = vpop.f32.mrf.mxu0
      %v3449 = vadd.f32 0.0, %v3448
      %v3450 = vpop.f32.mrf.mxu0
      %v3451 = vpop.f32.mrf.mxu0
      %v3452 = vadd.f32 0.0, %v3451
      %v3453 = vpop.f32.mrf.mxu0
      %3454 = vmatprep.mubr.bf16.mxu0 %v2392
      %3455 = vmatmul.mubr.bf16.gmra.mxu0 %v2391
      %v3456 = vpop.f32.mrf.mxu0
      %v3457 = vadd.f32 0.0, %v3456
      %v3458 = vpop.f32.mrf.mxu0
      %v3459 = vpop.f32.mrf.mxu0
      %v3460 = vadd.f32 0.0, %v3459
      %v3461 = vpop.f32.mrf.mxu0
      %3462 = vmatprep.mubr.bf16.mxu0 %v928
      %3463 = vmatmul.mubr.bf16.gmra.mxu0 %v2394
      %v3464 = vpop.f32.mrf.mxu0
      %v3465 = vadd.f32 0.0, %v3464
      %v3466 = vpop.f32.mrf.mxu0
      %v3467 = vpop.f32.mrf.mxu0
      %v3468 = vadd.f32 0.0, %v3467
      %v3469 = vpop.f32.mrf.mxu0
      %3470 = vmatprep.mubr.bf16.mxu0 %v2397
      %3471 = vmatmul.mubr.bf16.gmra.mxu0 %v2396
      %v3472 = vpop.f32.mrf.mxu0
      %v3473 = vadd.f32 0.0, %v3472
      %v3474 = vpop.f32.mrf.mxu0
      %v3475 = vpop.f32.mrf.mxu0
      %v3476 = vadd.f32 0.0, %v3475
      %v3477 = vpop.f32.mrf.mxu0
      %3478 = vmatprep.mubr.bf16.mxu0 %v2400
      %3479 = vmatmul.mubr.bf16.gmra.mxu0 %v2399
      %v3480 = vpop.f32.mrf.mxu0
      %v3481 = vadd.f32 0.0, %v3480
      %v3482 = vpop.f32.mrf.mxu0
      %v3483 = vpop.f32.mrf.mxu0
      %v3484 = vadd.f32 0.0, %v3483
      %v3485 = vpop.f32.mrf.mxu0
      %3486 = vmatprep.mubr.bf16.mxu0 %v932
      %3487 = vmatmul.mubr.bf16.gmra.mxu0 %v3125
      %v3488 = vpop.f32.mrf.mxu0
      %v3489 = vadd.f32 0.0, %v3488
      %v3490 = vpop.f32.mrf.mxu0
      %v3491 = vpop.f32.mrf.mxu0
      %v3492 = vadd.f32 0.0, %v3491
      %v3493 = vpop.f32.mrf.mxu0
      %3494 = vmatprep.mubr.bf16.mxu0 %v3128
      %3495 = vmatmul.mubr.bf16.gmra.mxu0 %v3127
      %v3496 = vpop.f32.mrf.mxu0
      %v3497 = vadd.f32 0.0, %v3496
      %v3498 = vpop.f32.mrf.mxu0
      %v3499 = vpop.f32.mrf.mxu0
      %v3500 = vadd.f32 0.0, %v3499
      %v3501 = vpop.f32.mrf.mxu0
      %3502 = vmatprep.mubr.bf16.mxu0 %v3131
      %3503 = vmatmul.mubr.bf16.gmra.mxu0 %v3130
      %v3504 = vpop.f32.mrf.mxu0
      %v3505 = vadd.f32 0.0, %v3504
      %v3506 = vpop.f32.mrf.mxu0
      %v3507 = vpop.f32.mrf.mxu0
      %v3508 = vadd.f32 0.0, %v3507
      %v3509 = vpop.f32.mrf.mxu0
      %3510 = vdwg.mxu0
      %3511 = vmatprep.subr.bf16.mxu0 0
      %3512 = vmatpush1.bf16.msra.mxu0 %v3261
      %3513 = vmatprep.subr.bf16.mxu0 0
      %3514 = vmatpush1.bf16.msra.mxu0 %v3260
      %3515 = vmatprep.subr.bf16.mxu0 0
      %3516 = vmatpush1.bf16.msra.mxu0 %v3259
      %3517 = vmatprep.subr.bf16.mxu0 0
      %3518 = vmatpush1.bf16.msra.mxu0 %v3258
      %3519 = vmatprep.subr.bf16.mxu0 0
      %3520 = vmatpush1.bf16.msra.mxu0 %v3257
      %3521 = vmatprep.subr.bf16.mxu0 0
      %3522 = vmatpush1.bf16.msra.mxu0 %v3256
      %3523 = vmatprep.subr.bf16.mxu0 0
      %3524 = vmatpush1.bf16.msra.mxu0 %v3255
      %3525 = vmatprep.subr.bf16.mxu0 0
      %3526 = vmatpush1.bf16.msra.mxu0 %v3254
      %3527 = vmatprep.subr.bf16.mxu0 0
      %3528 = vmatpush2.bf16.msra.mxu0 0
      %3529 = vmatprep.subr.bf16.mxu0 0
      %3530 = vmatpush2.bf16.msra.mxu0 0
      %3531 = vmatprep.subr.bf16.mxu0 0
      %3532 = vmatpush2.bf16.msra.mxu0 0
      %3533 = vmatprep.subr.bf16.mxu0 0
      %3534 = vmatpush2.bf16.msra.mxu0 0
      %3535 = vmatprep.subr.bf16.mxu0 0
      %3536 = vmatpush2.bf16.msra.mxu0 0
      %3537 = vmatprep.subr.bf16.mxu0 0
      %3538 = vmatpush2.bf16.msra.mxu0 0
      %3539 = vmatprep.subr.bf16.mxu0 0
      %3540 = vmatpush2.bf16.msra.mxu0 0
      %3541 = vmatprep.subr.bf16.mxu0 0
      %3542 = vmatpush2.bf16.msra.mxu0 0
      %3543 = vmatprep.mubr.bf16.mxu0 0
      %3544 = vmatmul.mubr.bf16.gmra.mxu0 %v2347
      %v3545 = vpop.f32.mrf.mxu0
      %v3546 = vadd.f32 %v3321, %v3545
      %v3547 = vpop.f32.mrf.mxu0
      %v3548 = vpop.f32.mrf.mxu0
      %v3549 = vadd.f32 %v3324, %v3548
      %v3550 = vpop.f32.mrf.mxu0
      %3551 = vmatprep.mubr.bf16.mxu0 0
      %3552 = vmatmul.mubr.bf16.gmra.mxu0 %v2350
      %v3553 = vpop.f32.mrf.mxu0
      %v3554 = vadd.f32 %v3329, %v3553
      %v3555 = vpop.f32.mrf.mxu0
      %v3556 = vpop.f32.mrf.mxu0
      %v3557 = vadd.f32 %v3332, %v3556
      %v3558 = vpop.f32.mrf.mxu0
      %3559 = vmatprep.mubr.bf16.mxu0 0
      %3560 = vmatmul.mubr.bf16.gmra.mxu0 %v2353
      %v3561 = vpop.f32.mrf.mxu0
      %v3562 = vadd.f32 %v3337, %v3561
      %v3563 = vpop.f32.mrf.mxu0
      %v3564 = vpop.f32.mrf.mxu0
      %v3565 = vadd.f32 %v3340, %v3564
      %v3566 = vpop.f32.mrf.mxu0
      %3567 = vmatprep.mubr.bf16.mxu0 0
      %3568 = vmatmul.mubr.bf16.gmra.mxu0 %v2355
      %v3569 = vpop.f32.mrf.mxu0
      %v3570 = vadd.f32 %v3345, %v3569
      %v3571 = vpop.f32.mrf.mxu0
      %v3572 = vpop.f32.mrf.mxu0
      %v3573 = vadd.f32 %v3348, %v3572
      %v3574 = vpop.f32.mrf.mxu0
      %3575 = vmatprep.mubr.bf16.mxu0 0
      %3576 = vmatmul.mubr.bf16.gmra.mxu0 %v2358
      %v3577 = vpop.f32.mrf.mxu0
      %v3578 = vadd.f32 %v3353, %v3577
      %v3579 = vpop.f32.mrf.mxu0
      %v3580 = vpop.f32.mrf.mxu0
      %v3581 = vadd.f32 %v3356, %v3580
      %v3582 = vpop.f32.mrf.mxu0
      %3583 = vmatprep.mubr.bf16.mxu0 0
      %3584 = vmatmul.mubr.bf16.gmra.mxu0 %v2361
      %v3585 = vpop.f32.mrf.mxu0
      %v3586 = vadd.f32 %v3361, %v3585
      %v3587 = vpop.f32.mrf.mxu0
      %v3588 = vpop.f32.mrf.mxu0
      %v3589 = vadd.f32 %v3364, %v3588
      %v3590 = vpop.f32.mrf.mxu0
      %3591 = vmatprep.mubr.bf16.mxu0 0
      %3592 = vmatmul.mubr.bf16.gmra.mxu0 %v2363
      %v3593 = vpop.f32.mrf.mxu0
      %v3594 = vadd.f32 %v3369, %v3593
      %v3595 = vpop.f32.mrf.mxu0
      %v3596 = vpop.f32.mrf.mxu0
      %v3597 = vadd.f32 %v3372, %v3596
      %v3598 = vpop.f32.mrf.mxu0
      %3599 = vmatprep.mubr.bf16.mxu0 0
      %3600 = vmatmul.mubr.bf16.gmra.mxu0 %v2366
      %v3601 = vpop.f32.mrf.mxu0
      %v3602 = vadd.f32 %v3377, %v3601
      %v3603 = vpop.f32.mrf.mxu0
      %v3604 = vpop.f32.mrf.mxu0
      %v3605 = vadd.f32 %v3380, %v3604
      %v3606 = vpop.f32.mrf.mxu0
      %3607 = vmatprep.mubr.bf16.mxu0 0
      %3608 = vmatmul.mubr.bf16.gmra.mxu0 %v2369
      %v3609 = vpop.f32.mrf.mxu0
      %v3610 = vadd.f32 %v3385, %v3609
      %v3611 = vpop.f32.mrf.mxu0
      %v3612 = vpop.f32.mrf.mxu0
      %v3613 = vadd.f32 %v3388, %v3612
      %v3614 = vpop.f32.mrf.mxu0
      %3615 = vmatprep.mubr.bf16.mxu0 0
      %3616 = vmatmul.mubr.bf16.gmra.mxu0 %v2371
      %v3617 = vpop.f32.mrf.mxu0
      %v3618 = vadd.f32 %v3393, %v3617
      %v3619 = vpop.f32.mrf.mxu0
      %v3620 = vpop.f32.mrf.mxu0
      %v3621 = vadd.f32 %v3396, %v3620
      %v3622 = vpop.f32.mrf.mxu0
      %3623 = vmatprep.mubr.bf16.mxu0 0
      %3624 = vmatmul.mubr.bf16.gmra.mxu0 %v2374
      %v3625 = vpop.f32.mrf.mxu0
      %v3626 = vadd.f32 %v3401, %v3625
      %v3627 = vpop.f32.mrf.mxu0
      %v3628 = vpop.f32.mrf.mxu0
      %v3629 = vadd.f32 %v3404, %v3628
      %v3630 = vpop.f32.mrf.mxu0
      %3631 = vmatprep.mubr.bf16.mxu0 0
      %3632 = vmatmul.mubr.bf16.gmra.mxu0 %v2377
      %v3633 = vpop.f32.mrf.mxu0
      %v3634 = vadd.f32 %v3409, %v3633
      %v3635 = vpop.f32.mrf.mxu0
      %v3636 = vpop.f32.mrf.mxu0
      %v3637 = vadd.f32 %v3412, %v3636
      %v3638 = vpop.f32.mrf.mxu0
      %3639 = vmatprep.mubr.bf16.mxu0 0
      %3640 = vmatmul.mubr.bf16.gmra.mxu0 %v2379
      %v3641 = vpop.f32.mrf.mxu0
      %v3642 = vadd.f32 %v3417, %v3641
      %v3643 = vpop.f32.mrf.mxu0
      %v3644 = vpop.f32.mrf.mxu0
      %v3645 = vadd.f32 %v3420, %v3644
      %v3646 = vpop.f32.mrf.mxu0
      %3647 = vmatprep.mubr.bf16.mxu0 0
      %3648 = vmatmul.mubr.bf16.gmra.mxu0 %v2382
      %v3649 = vpop.f32.mrf.mxu0
      %v3650 = vadd.f32 %v3425, %v3649
      %v3651 = vpop.f32.mrf.mxu0
      %v3652 = vpop.f32.mrf.mxu0
      %v3653 = vadd.f32 %v3428, %v3652
      %v3654 = vpop.f32.mrf.mxu0
      %3655 = vmatprep.mubr.bf16.mxu0 0
      %3656 = vmatmul.mubr.bf16.gmra.mxu0 %v2385
      %v3657 = vpop.f32.mrf.mxu0
      %v3658 = vadd.f32 %v3433, %v3657
      %v3659 = vpop.f32.mrf.mxu0
      %v3660 = vpop.f32.mrf.mxu0
      %v3661 = vadd.f32 %v3436, %v3660
      %v3662 = vpop.f32.mrf.mxu0
      %3663 = vmatprep.mubr.bf16.mxu0 0
      %3664 = vmatmul.mubr.bf16.gmra.mxu0 %v2387
      %v3665 = vpop.f32.mrf.mxu0
      %v3666 = vadd.f32 %v3441, %v3665
      %v3667 = vpop.f32.mrf.mxu0
      %v3668 = vpop.f32.mrf.mxu0
      %v3669 = vadd.f32 %v3444, %v3668
      %v3670 = vpop.f32.mrf.mxu0
      %3671 = vmatprep.mubr.bf16.mxu0 0
      %3672 = vmatmul.mubr.bf16.gmra.mxu0 %v2390
      %v3673 = vpop.f32.mrf.mxu0
      %v3674 = vadd.f32 %v3449, %v3673
      %v3675 = vpop.f32.mrf.mxu0
      %v3676 = vpop.f32.mrf.mxu0
      %v3677 = vadd.f32 %v3452, %v3676
      %v3678 = vpop.f32.mrf.mxu0
      %3679 = vmatprep.mubr.bf16.mxu0 0
      %3680 = vmatmul.mubr.bf16.gmra.mxu0 %v2393
      %v3681 = vpop.f32.mrf.mxu0
      %v3682 = vadd.f32 %v3457, %v3681
      %v3683 = vpop.f32.mrf.mxu0
      %v3684 = vpop.f32.mrf.mxu0
      %v3685 = vadd.f32 %v3460, %v3684
      %v3686 = vpop.f32.mrf.mxu0
      %3687 = vmatprep.mubr.bf16.mxu0 0
      %3688 = vmatmul.mubr.bf16.gmra.mxu0 %v2395
      %v3689 = vpop.f32.mrf.mxu0
      %v3690 = vadd.f32 %v3465, %v3689
      %v3691 = vpop.f32.mrf.mxu0
      %v3692 = vpop.f32.mrf.mxu0
      %v3693 = vadd.f32 %v3468, %v3692
      %v3694 = vpop.f32.mrf.mxu0
      %3695 = vmatprep.mubr.bf16.mxu0 0
      %3696 = vmatmul.mubr.bf16.gmra.mxu0 %v2398
      %v3697 = vpop.f32.mrf.mxu0
      %v3698 = vadd.f32 %v3473, %v3697
      %v3699 = vpop.f32.mrf.mxu0
      %v3700 = vpop.f32.mrf.mxu0
      %v3701 = vadd.f32 %v3476, %v3700
      %v3702 = vpop.f32.mrf.mxu0
      %3703 = vmatprep.mubr.bf16.mxu0 0
      %3704 = vmatmul.mubr.bf16.gmra.mxu0 %v2401
      %v3705 = vpop.f32.mrf.mxu0
      %v3706 = vadd.f32 %v3481, %v3705
      %v3707 = vpop.f32.mrf.mxu0
      %v3708 = vpop.f32.mrf.mxu0
      %v3709 = vadd.f32 %v3484, %v3708
      %v3710 = vpop.f32.mrf.mxu0
      %3711 = vmatprep.mubr.bf16.mxu0 0
      %3712 = vmatmul.mubr.bf16.gmra.mxu0 %v3126
      %v3713 = vpop.f32.mrf.mxu0
      %v3714 = vadd.f32 %v3489, %v3713
      %v3715 = vpop.f32.mrf.mxu0
      %v3716 = vpop.f32.mrf.mxu0
      %v3717 = vadd.f32 %v3492, %v3716
      %v3718 = vpop.f32.mrf.mxu0
      %3719 = vmatprep.mubr.bf16.mxu0 0
      %3720 = vmatmul.mubr.bf16.gmra.mxu0 %v3129
      %v3721 = vpop.f32.mrf.mxu0
      %v3722 = vadd.f32 %v3497, %v3721
      %v3723 = vpop.f32.mrf.mxu0
      %v3724 = vpop.f32.mrf.mxu0
      %v3725 = vadd.f32 %v3500, %v3724
      %v3726 = vpop.f32.mrf.mxu0
      %3727 = vmatprep.mubr.bf16.mxu0 0
      %3728 = vmatmul.mubr.bf16.gmra.mxu0 %v3132
      %v3729 = vpop.f32.mrf.mxu0
      %v3730 = vadd.f32 %v3505, %v3729
      %v3731 = vpop.f32.mrf.mxu0
      %v3732 = vpop.f32.mrf.mxu0
      %v3733 = vadd.f32 %v3508, %v3732
      %v3734 = vpop.f32.mrf.mxu0
      %3735 = vdwg.mxu0
      %v3736 = vadd.f32 %v2878, %v3546
      %v3737 = vadd.f32 %v2881, %v3549
      %v3738 = vadd.f32 %v2886, %v3554
      %v3739 = vadd.f32 %v2889, %v3557
      %v3740 = vadd.f32 %v2894, %v3562
      %v3741 = vadd.f32 %v2897, %v3565
      %v3742 = vadd.f32 %v2902, %v3570
      %v3743 = vadd.f32 %v2905, %v3573
      %v3744 = vadd.f32 %v2910, %v3578
      %v3745 = vadd.f32 %v2913, %v3581
      %v3746 = vadd.f32 %v2918, %v3586
      %v3747 = vadd.f32 %v2921, %v3589
      %v3748 = vadd.f32 %v2926, %v3594
      %v3749 = vadd.f32 %v2929, %v3597
      %v3750 = vadd.f32 %v2934, %v3602
      %v3751 = vadd.f32 %v2937, %v3605
      %v3752 = vadd.f32 %v2942, %v3610
      %v3753 = vadd.f32 %v2945, %v3613
      %v3754 = vadd.f32 %v2950, %v3618
      %v3755 = vadd.f32 %v2953, %v3621
      %v3756 = vadd.f32 %v2958, %v3626
      %v3757 = vadd.f32 %v2961, %v3629
      %v3758 = vadd.f32 %v2966, %v3634
      %v3759 = vadd.f32 %v2969, %v3637
      %v3760 = vadd.f32 %v2974, %v3642
      %v3761 = vadd.f32 %v2977, %v3645
      %v3762 = vadd.f32 %v2982, %v3650
      %v3763 = vadd.f32 %v2985, %v3653
      %v3764 = vadd.f32 %v2990, %v3658
      %v3765 = vadd.f32 %v2993, %v3661
      %v3766 = vadd.f32 %v2998, %v3666
      %v3767 = vadd.f32 %v3001, %v3669
      %v3768 = vadd.f32 %v3006, %v3674
      %v3769 = vadd.f32 %v3009, %v3677
      %v3770 = vadd.f32 %v3014, %v3682
      %v3771 = vadd.f32 %v3017, %v3685
      %v3772 = vadd.f32 %v3022, %v3690
      %v3773 = vadd.f32 %v3025, %v3693
      %v3774 = vadd.f32 %v3030, %v3698
      %v3775 = vadd.f32 %v3033, %v3701
      %v3776 = vadd.f32 %v3038, %v3706
      %v3777 = vadd.f32 %v3041, %v3709
      %v3778 = vadd.f32 %v3046, %v3714
      %v3779 = vadd.f32 %v3049, %v3717
      %v3780 = vadd.f32 %v3054, %v3722
      %v3781 = vadd.f32 %v3057, %v3725
      %v3782 = vadd.f32 %v3062, %v3730
      %v3783 = vadd.f32 %v3065, %v3733
      %v3784 = vsel %vm699, %v3736, 0.0
      %v3785 = vsel %vm700, %v3737, 0.0
      %v3786 = vsel %vm701, %v3738, 0.0
      %v3787 = vsel %vm699, %v3739, 0.0
      %v3788 = vsel %vm700, %v3740, 0.0
      %v3789 = vsel %vm701, %v3741, 0.0
      %v3790 = vsel %vm699, %v3742, 0.0
      %v3791 = vsel %vm700, %v3743, 0.0
      %v3792 = vsel %vm701, %v3744, 0.0
      %v3793 = vsel %vm699, %v3745, 0.0
      %v3794 = vsel %vm700, %v3746, 0.0
      %v3795 = vsel %vm701, %v3747, 0.0
      %v3796 = vsel %vm699, %v3748, 0.0
      %v3797 = vsel %vm700, %v3749, 0.0
      %v3798 = vsel %vm701, %v3750, 0.0
      %v3799 = vsel %vm699, %v3751, 0.0
      %v3800 = vsel %vm700, %v3752, 0.0
      %v3801 = vsel %vm701, %v3753, 0.0
      %v3802 = vsel %vm699, %v3754, 0.0
      %v3803 = vsel %vm700, %v3755, 0.0
      %v3804 = vsel %vm701, %v3756, 0.0
      %v3805 = vsel %vm699, %v3757, 0.0
      %v3806 = vsel %vm700, %v3758, 0.0
      %v3807 = vsel %vm701, %v3759, 0.0
      %v3808 = vsel %vm699, %v3760, 0.0
      %v3809 = vsel %vm700, %v3761, 0.0
      %v3810 = vsel %vm701, %v3762, 0.0
      %v3811 = vsel %vm699, %v3763, 0.0
      %v3812 = vsel %vm700, %v3764, 0.0
      %v3813 = vsel %vm701, %v3765, 0.0
      %v3814 = vsel %vm699, %v3766, 0.0
      %v3815 = vsel %vm700, %v3767, 0.0
      %v3816 = vsel %vm701, %v3768, 0.0
      %v3817 = vsel %vm699, %v3769, 0.0
      %v3818 = vsel %vm700, %v3770, 0.0
      %v3819 = vsel %vm701, %v3771, 0.0
      %v3820 = vsel %vm699, %v3772, 0.0
      %v3821 = vsel %vm700, %v3773, 0.0
      %v3822 = vsel %vm701, %v3774, 0.0
      %v3823 = vsel %vm699, %v3775, 0.0
      %v3824 = vsel %vm700, %v3776, 0.0
      %v3825 = vsel %vm701, %v3777, 0.0
      %v3826 = vsel %vm699, %v3778, 0.0
      %v3827 = vsel %vm700, %v3779, 0.0
      %v3828 = vsel %vm701, %v3780, 0.0
      %v3829 = vsel %vm699, %v3781, 0.0
      %v3830 = vsel %vm700, %v3782, 0.0
      %v3831 = vsel %vm701, %v3783, 0.0
      %v3832 = vadd.f32 %v3784, %v3785
      %v3833 = vadd.f32 %v3832, %v3786
      %v3834 = vadd.f32 %v3833, %v3787
      %v3835 = vadd.f32 %v3834, %v3788
      %v3836 = vadd.f32 %v3835, %v3789
      %v3837 = vadd.f32 %v3836, %v3790
      %v3838 = vadd.f32 %v3837, %v3791
      %v3839 = vadd.f32 %v3838, %v3792
      %v3840 = vadd.f32 %v3839, %v3793
      %v3841 = vadd.f32 %v3840, %v3794
      %v3842 = vadd.f32 %v3841, %v3795
      %v3843 = vadd.f32 %v3842, %v3796
      %v3844 = vadd.f32 %v3843, %v3797
      %v3845 = vadd.f32 %v3844, %v3798
      %v3846 = vadd.f32 %v3845, %v3799
      %v3847 = vadd.f32 %v3846, %v3800
      %v3848 = vadd.f32 %v3847, %v3801
      %v3849 = vadd.f32 %v3848, %v3802
      %v3850 = vadd.f32 %v3849, %v3803
      %v3851 = vadd.f32 %v3850, %v3804
      %v3852 = vadd.f32 %v3851, %v3805
      %v3853 = vadd.f32 %v3852, %v3806
      %v3854 = vadd.f32 %v3853, %v3807
      %v3855 = vadd.f32 %v3854, %v3808
      %v3856 = vadd.f32 %v3855, %v3809
      %v3857 = vadd.f32 %v3856, %v3810
      %v3858 = vadd.f32 %v3857, %v3811
      %v3859 = vadd.f32 %v3858, %v3812
      %v3860 = vadd.f32 %v3859, %v3813
      %v3861 = vadd.f32 %v3860, %v3814
      %v3862 = vadd.f32 %v3861, %v3815
      %v3863 = vadd.f32 %v3862, %v3816
      %v3864 = vadd.f32 %v3863, %v3817
      %v3865 = vadd.f32 %v3864, %v3818
      %v3866 = vadd.f32 %v3865, %v3819
      %v3867 = vadd.f32 %v3866, %v3820
      %v3868 = vadd.f32 %v3867, %v3821
      %v3869 = vadd.f32 %v3868, %v3822
      %v3870 = vadd.f32 %v3869, %v3823
      %v3871 = vadd.f32 %v3870, %v3824
      %v3872 = vadd.f32 %v3871, %v3825
      %v3873 = vadd.f32 %v3872, %v3826
      %v3874 = vadd.f32 %v3873, %v3827
      %v3875 = vadd.f32 %v3874, %v3828
      %v3876 = vadd.f32 %v3875, %v3829
      %v3877 = vadd.f32 %v3876, %v3830
      %v3878 = vadd.f32 %v3877, %v3831
      %v3879 = vrot.slane %v3878, 4
      %v3880 = vadd.f32 %v3878, %v3879
      %v3881 = vrot.slane %v3880, 2
      %v3882 = vadd.f32 %v3880, %v3881
      %v3883 = vrot.slane %v3882, 1
      %v3884 = vadd.f32 %v3882, %v3883
      %v3885 = vmul.f32 %v3784, %v3784
      %v3886 = vmul.f32 %v3785, %v3785
      %v3887 = vmul.f32 %v3786, %v3786
      %v3888 = vmul.f32 %v3787, %v3787
      %v3889 = vmul.f32 %v3788, %v3788
      %v3890 = vmul.f32 %v3789, %v3789
      %v3891 = vmul.f32 %v3790, %v3790
      %v3892 = vmul.f32 %v3791, %v3791
      %v3893 = vmul.f32 %v3792, %v3792
      %v3894 = vmul.f32 %v3793, %v3793
      %v3895 = vmul.f32 %v3794, %v3794
      %v3896 = vmul.f32 %v3795, %v3795
      %v3897 = vmul.f32 %v3796, %v3796
      %v3898 = vmul.f32 %v3797, %v3797
      %v3899 = vmul.f32 %v3798, %v3798
      %v3900 = vmul.f32 %v3799, %v3799
      %v3901 = vmul.f32 %v3800, %v3800
      %v3902 = vmul.f32 %v3801, %v3801
      %v3903 = vmul.f32 %v3802, %v3802
      %v3904 = vmul.f32 %v3803, %v3803
      %v3905 = vmul.f32 %v3804, %v3804
      %v3906 = vmul.f32 %v3805, %v3805
      %v3907 = vmul.f32 %v3806, %v3806
      %v3908 = vmul.f32 %v3807, %v3807
      %v3909 = vmul.f32 %v3808, %v3808
      %v3910 = vmul.f32 %v3809, %v3809
      %v3911 = vmul.f32 %v3810, %v3810
      %v3912 = vmul.f32 %v3811, %v3811
      %v3913 = vmul.f32 %v3812, %v3812
      %v3914 = vmul.f32 %v3813, %v3813
      %v3915 = vmul.f32 %v3814, %v3814
      %v3916 = vmul.f32 %v3815, %v3815
      %v3917 = vmul.f32 %v3816, %v3816
      %v3918 = vmul.f32 %v3817, %v3817
      %v3919 = vmul.f32 %v3818, %v3818
      %v3920 = vmul.f32 %v3819, %v3819
      %v3921 = vmul.f32 %v3820, %v3820
      %v3922 = vmul.f32 %v3821, %v3821
      %v3923 = vmul.f32 %v3822, %v3822
      %v3924 = vmul.f32 %v3823, %v3823
      %v3925 = vmul.f32 %v3824, %v3824
      %v3926 = vmul.f32 %v3825, %v3825
      %v3927 = vmul.f32 %v3826, %v3826
      %v3928 = vmul.f32 %v3827, %v3827
      %v3929 = vmul.f32 %v3828, %v3828
      %v3930 = vmul.f32 %v3829, %v3829
      %v3931 = vmul.f32 %v3830, %v3830
      %v3932 = vmul.f32 %v3831, %v3831
      %v3933 = vadd.f32 %v3885, %v3886
      %v3934 = vadd.f32 %v3933, %v3887
      %v3935 = vadd.f32 %v3934, %v3888
      %v3936 = vadd.f32 %v3935, %v3889
      %v3937 = vadd.f32 %v3936, %v3890
      %v3938 = vadd.f32 %v3937, %v3891
      %v3939 = vadd.f32 %v3938, %v3892
      %v3940 = vadd.f32 %v3939, %v3893
      %v3941 = vadd.f32 %v3940, %v3894
      %v3942 = vadd.f32 %v3941, %v3895
      %v3943 = vadd.f32 %v3942, %v3896
      %v3944 = vadd.f32 %v3943, %v3897
      %v3945 = vadd.f32 %v3944, %v3898
      %v3946 = vadd.f32 %v3945, %v3899
      %v3947 = vadd.f32 %v3946, %v3900
      %v3948 = vadd.f32 %v3947, %v3901
      %v3949 = vadd.f32 %v3948, %v3902
      %v3950 = vadd.f32 %v3949, %v3903
      %v3951 = vadd.f32 %v3950, %v3904
      %v3952 = vadd.f32 %v3951, %v3905
      %v3953 = vadd.f32 %v3952, %v3906
      %v3954 = vadd.f32 %v3953, %v3907
      %v3955 = vadd.f32 %v3954, %v3908
      %v3956 = vadd.f32 %v3955, %v3909
      %v3957 = vadd.f32 %v3956, %v3910
      %v3958 = vadd.f32 %v3957, %v3911
      %v3959 = vadd.f32 %v3958, %v3912
      %v3960 = vadd.f32 %v3959, %v3913
      %v3961 = vadd.f32 %v3960, %v3914
      %v3962 = vadd.f32 %v3961, %v3915
      %v3963 = vadd.f32 %v3962, %v3916
      %v3964 = vadd.f32 %v3963, %v3917
      %v3965 = vadd.f32 %v3964, %v3918
      %v3966 = vadd.f32 %v3965, %v3919
      %v3967 = vadd.f32 %v3966, %v3920
      %v3968 = vadd.f32 %v3967, %v3921
      %v3969 = vadd.f32 %v3968, %v3922
      %v3970 = vadd.f32 %v3969, %v3923
      %v3971 = vadd.f32 %v3970, %v3924
      %v3972 = vadd.f32 %v3971, %v3925
      %v3973 = vadd.f32 %v3972, %v3926
      %v3974 = vadd.f32 %v3973, %v3927
      %v3975 = vadd.f32 %v3974, %v3928
      %v3976 = vadd.f32 %v3975, %v3929
      %v3977 = vadd.f32 %v3976, %v3930
      %v3978 = vadd.f32 %v3977, %v3931
      %v3979 = vadd.f32 %v3978, %v3932
      %v3980 = vrot.slane %v3979, 4
      %v3981 = vadd.f32 %v3979, %v3980
      %v3982 = vrot.slane %v3981, 2
      %v3983 = vadd.f32 %v3981, %v3982
      %v3984 = vrot.slane %v3983, 1
      %v3985 = vadd.f32 %v3983, %v3984
      %vm3986 = vcmask 1040384
      %v3987 = vsel %vm3986, %v3884, %v3985
      %3988 = vst [vmem:[%s465] sm:$0x3] %v3987
      %v3989 = vpack.c.bf16 %v3785, %v3784
      %v3990 = vpack.c.bf16 %v3786, %v3786
      %v3991 = vpack.c.bf16 %v3788, %v3787
      %v3992 = vpack.c.bf16 %v3789, %v3789
      %v3993 = vpack.c.bf16 %v3791, %v3790
      %v3994 = vpack.c.bf16 %v3792, %v3792
      %v3995 = vpack.c.bf16 %v3794, %v3793
      %v3996 = vpack.c.bf16 %v3795, %v3795
      %v3997 = vpack.c.bf16 %v3797, %v3796
      %v3998 = vpack.c.bf16 %v3798, %v3798
      %v3999 = vpack.c.bf16 %v3800, %v3799
      %v4000 = vpack.c.bf16 %v3801, %v3801
      %v4001 = vpack.c.bf16 %v3803, %v3802
      %v4002 = vpack.c.bf16 %v3804, %v3804
      %v4003 = vpack.c.bf16 %v3806, %v3805
      %v4004 = vpack.c.bf16 %v3807, %v3807
      %v4005 = vpack.c.bf16 %v3809, %v3808
      %v4006 = vpack.c.bf16 %v3810, %v3810
      %v4007 = vpack.c.bf16 %v3812, %v3811
      %v4008 = vpack.c.bf16 %v3813, %v3813
      %v4009 = vpack.c.bf16 %v3815, %v3814
      %v4010 = vpack.c.bf16 %v3816, %v3816
      %v4011 = vpack.c.bf16 %v3818, %v3817
      %v4012 = vpack.c.bf16 %v3819, %v3819
      %v4013 = vpack.c.bf16 %v3821, %v3820
      %v4014 = vpack.c.bf16 %v3822, %v3822
      %v4015 = vpack.c.bf16 %v3824, %v3823
      %v4016 = vpack.c.bf16 %v3825, %v3825
      %v4017 = vpack.c.bf16 %v3827, %v3826
      %v4018 = vpack.c.bf16 %v3828, %v3828
      %v4019 = vpack.c.bf16 %v3830, %v3829
      %v4020 = vpack.c.bf16 %v3831, %v3831
      %v4053 = vunpack.c.l.b16 %v3989
      %v4054 = vunpack.c.h.b16 %v3989
      %v4055 = vunpack.c.l.b16 %v3990
      %v4056 = vunpack.c.l.b16 %v3991
      %v4057 = vunpack.c.h.b16 %v3991
      %v4058 = vunpack.c.l.b16 %v3992
      %v4059 = vunpack.c.l.b16 %v3993
      %v4060 = vunpack.c.h.b16 %v3993
      %v4061 = vunpack.c.l.b16 %v3994
      %v4062 = vunpack.c.l.b16 %v3995
      %v4063 = vunpack.c.h.b16 %v3995
      %v4064 = vunpack.c.l.b16 %v3996
      %v4065 = vunpack.c.l.b16 %v3997
      %v4066 = vunpack.c.h.b16 %v3997
      %v4067 = vunpack.c.l.b16 %v3998
      %v4068 = vunpack.c.l.b16 %v3999
      %v4069 = vunpack.c.h.b16 %v3999
      %v4070 = vunpack.c.l.b16 %v4000
      %v4071 = vunpack.c.l.b16 %v4001
      %v4072 = vunpack.c.h.b16 %v4001
      %v4073 = vunpack.c.l.b16 %v4002
      %v4074 = vunpack.c.l.b16 %v4003
      %v4075 = vunpack.c.h.b16 %v4003
      %v4076 = vunpack.c.l.b16 %v4004
      %v4077 = vunpack.c.l.b16 %v4005
      %v4078 = vunpack.c.h.b16 %v4005
      %v4079 = vunpack.c.l.b16 %v4006
      %v4080 = vunpack.c.l.b16 %v4007
      %v4081 = vunpack.c.h.b16 %v4007
      %v4082 = vunpack.c.l.b16 %v4008
      %v4083 = vunpack.c.l.b16 %v4009
      %v4084 = vunpack.c.h.b16 %v4009
      %v4085 = vunpack.c.l.b16 %v4010
      %v4086 = vunpack.c.l.b16 %v4011
      %v4087 = vunpack.c.h.b16 %v4011
      %v4088 = vunpack.c.l.b16 %v4012
      %v4089 = vunpack.c.l.b16 %v4013
      %v4090 = vunpack.c.h.b16 %v4013
      %v4091 = vunpack.c.l.b16 %v4014
      %v4092 = vunpack.c.l.b16 %v4015
      %v4093 = vunpack.c.h.b16 %v4015
      %v4094 = vunpack.c.l.b16 %v4016
      %v4095 = vunpack.c.l.b16 %v4017
      %v4096 = vunpack.c.h.b16 %v4017
      %v4097 = vunpack.c.l.b16 %v4018
      %v4098 = vunpack.c.l.b16 %v4019
      %v4099 = vunpack.c.h.b16 %v4019
      %v4100 = vunpack.c.l.b16 %v4020
      %v4101 = vpack.c.b16 %v4053, %v4053
      %v4102 = vpack.c.b16 %v4054, %v4054
      %v4103 = vpack.c.b16 %v4055, %v4055
      %v4104 = vpack.c.b16 %v4056, %v4056
      %v4105 = vpack.c.b16 %v4057, %v4057
      %v4106 = vpack.c.b16 %v4058, %v4058
      %v4107 = vpack.c.b16 %v4059, %v4059
      %v4108 = vpack.c.b16 %v4060, %v4060
      %v4109 = vpack.c.b16 %v4061, %v4061
      %v4110 = vpack.c.b16 %v4062, %v4062
      %v4111 = vpack.c.b16 %v4063, %v4063
      %v4112 = vpack.c.b16 %v4064, %v4064
      %v4113 = vpack.c.b16 %v4065, %v4065
      %v4114 = vpack.c.b16 %v4066, %v4066
      %v4115 = vpack.c.b16 %v4067, %v4067
      %v4116 = vpack.c.b16 %v4068, %v4068
      %v4117 = vpack.c.b16 %v4069, %v4069
      %v4118 = vpack.c.b16 %v4070, %v4070
      %v4119 = vpack.c.b16 %v4071, %v4071
      %v4120 = vpack.c.b16 %v4072, %v4072
      %v4121 = vpack.c.b16 %v4073, %v4073
      %v4122 = vpack.c.b16 %v4074, %v4074
      %v4123 = vpack.c.b16 %v4075, %v4075
      %v4124 = vpack.c.b16 %v4076, %v4076
      %v4125 = vpack.c.b16 %v4077, %v4077
      %v4126 = vpack.c.b16 %v4078, %v4078
      %v4127 = vpack.c.b16 %v4079, %v4079
      %v4128 = vpack.c.b16 %v4080, %v4080
      %v4129 = vpack.c.b16 %v4081, %v4081
      %v4130 = vpack.c.b16 %v4082, %v4082
      %v4131 = vpack.c.b16 %v4083, %v4083
      %v4132 = vpack.c.b16 %v4084, %v4084
      %v4133 = vpack.c.b16 %v4085, %v4085
      %v4134 = vpack.c.b16 %v4086, %v4086
      %v4135 = vpack.c.b16 %v4087, %v4087
      %v4136 = vpack.c.b16 %v4088, %v4088
      %v4137 = vpack.c.b16 %v4089, %v4089
      %v4138 = vpack.c.b16 %v4090, %v4090
      %v4139 = vpack.c.b16 %v4091, %v4091
      %v4140 = vpack.c.b16 %v4092, %v4092
      %v4141 = vpack.c.b16 %v4093, %v4093
      %v4142 = vpack.c.b16 %v4094, %v4094
      %v4143 = vpack.c.b16 %v4095, %v4095
      %v4144 = vpack.c.b16 %v4096, %v4096
      %v4145 = vpack.c.b16 %v4097, %v4097
      %v4146 = vpack.c.b16 %v4098, %v4098
      %v4147 = vpack.c.b16 %v4099, %v4099
      %v4148 = vpack.c.b16 %v4100, %v4100
      %4197 = vst [vmem:[%s457] sm:$0xf] %v4101
      %4198 = vst [vmem:[%s457 + $0x4] sm:$0xf] %v4102
      %4199 = vst [vmem:[%s457 + $0x8] sm:$0xf] %v4103
      %4200 = vst [vmem:[%s457 + $0xc] sm:$0xf] %v4104
      %4201 = vst [vmem:[%s457 + $0x10] sm:$0xf] %v4105
      %4202 = vst [vmem:[%s457 + $0x14] sm:$0xf] %v4106
      %4203 = vst [vmem:[%s457 + $0x18] sm:$0xf] %v4107
      %4204 = vst [vmem:[%s457 + $0x1c] sm:$0xf] %v4108
      %4205 = vst [vmem:[%s457 + $0x20] sm:$0xf] %v4109
      %4206 = vst [vmem:[%s457 + $0x24] sm:$0xf] %v4110
      %4207 = vst [vmem:[%s457 + $0x28] sm:$0xf] %v4111
      %4208 = vst [vmem:[%s457 + $0x2c] sm:$0xf] %v4112
      %4209 = vst [vmem:[%s457 + $0x30] sm:$0xf] %v4113
      %4210 = vst [vmem:[%s457 + $0x34] sm:$0xf] %v4114
      %4211 = vst [vmem:[%s457 + $0x38] sm:$0xf] %v4115
      %4212 = vst [vmem:[%s457 + $0x3c] sm:$0xf] %v4116
      %4213 = vst [vmem:[%s457 + $0x40] sm:$0xf] %v4117
      %4214 = vst [vmem:[%s457 + $0x44] sm:$0xf] %v4118
      %4215 = vst [vmem:[%s457 + $0x48] sm:$0xf] %v4119
      %4216 = vst [vmem:[%s457 + $0x4c] sm:$0xf] %v4120
      %4217 = vst [vmem:[%s457 + $0x50] sm:$0xf] %v4121
      %4218 = vst [vmem:[%s457 + $0x54] sm:$0xf] %v4122
      %4219 = vst [vmem:[%s457 + $0x58] sm:$0xf] %v4123
      %4220 = vst [vmem:[%s457 + $0x5c] sm:$0xf] %v4124
      %4221 = vst [vmem:[%s457 + $0x60] sm:$0xf] %v4125
      %4222 = vst [vmem:[%s457 + $0x64] sm:$0xf] %v4126
      %4223 = vst [vmem:[%s457 + $0x68] sm:$0xf] %v4127
      %4224 = vst [vmem:[%s457 + $0x6c] sm:$0xf] %v4128
      %4225 = vst [vmem:[%s457 + $0x70] sm:$0xf] %v4129
      %4226 = vst [vmem:[%s457 + $0x74] sm:$0xf] %v4130
      %4227 = vst [vmem:[%s457 + $0x78] sm:$0xf] %v4131
      %4228 = vst [vmem:[%s457 + $0x7c] sm:$0xf] %v4132
      %4229 = vst [vmem:[%s457 + $0x80] sm:$0xf] %v4133
      %4230 = vst [vmem:[%s457 + $0x84] sm:$0xf] %v4134
      %4231 = vst [vmem:[%s457 + $0x88] sm:$0xf] %v4135
      %4232 = vst [vmem:[%s457 + $0x8c] sm:$0xf] %v4136
      %4233 = vst [vmem:[%s457 + $0x90] sm:$0xf] %v4137
      %4234 = vst [vmem:[%s457 + $0x94] sm:$0xf] %v4138
      %4235 = vst [vmem:[%s457 + $0x98] sm:$0xf] %v4139
      %4236 = vst [vmem:[%s457 + $0x9c] sm:$0xf] %v4140
      %4237 = vst [vmem:[%s457 + $0xa0] sm:$0xf] %v4141
      %4238 = vst [vmem:[%s457 + $0xa4] sm:$0xf] %v4142
      %4239 = vst [vmem:[%s457 + $0xa8] sm:$0xf] %v4143
      %4240 = vst [vmem:[%s457 + $0xac] sm:$0xf] %v4144
      %4241 = vst [vmem:[%s457 + $0xb0] sm:$0xf] %v4145
      %4242 = vst [vmem:[%s457 + $0xb4] sm:$0xf] %v4146
      %4243 = vst [vmem:[%s457 + $0xb8] sm:$0xf] %v4147
      %4244 = vst [vmem:[%s457 + $0xbc] sm:$0xf] %v4148
      %s4245 = smul.u32 16, %s24
      %p4246 = scmp.lt.s32.totalorder %s23, 1
      %s4247 = scalar_select %p4246, %s23, 1
      %p4248 = scmp.lt.s32.totalorder %s4245, 15
      %s4249 = scalar_select %p4248, %s4245, 15
      %s4250 = smul.addr %s4249, 3
      %s4251 = smul.addr %s4247, 48
      %s4252 = sadd.s32 %s4250, %s4251
      %s4253 = smul.addr %s4252, 4
      %s4254 = scalar_lea.vmem %s6, %s4253
      %p4255 = scmp.lt.s32.totalorder %s23, 1
      %s4256 = scalar_select %p4255, %s23, 1
      %p4257 = scmp.lt.s32.totalorder %s24, 0
      %s4258 = scalar_select %p4257, %s24, 0
      %s4259 = sadd.s32 %s4258, %s4256
      %s4260 = smul.addr %s4259, 2
      %s4261 = scalar_lea.vmem %s7, %s4260
      // Predicated region
      $region45: #{double_conv.4} parent=43 // pred_check
        %p4262 = pneg %p214
      $region46: #{double_conv.4} parent=43 // pred_check_branch
        %4264 = sbr.rel (%p4262) target = $region48
      $region47: #{double_conv.4} parent=43 // pred_region
        %s4265 = smul.u32 16, %s24
      $region48: #{double_conv.4} parent=43 // pred_fallthru
        _
      // Predicated region
      $region49: #{double_conv.4} parent=43 // pred_check
        %p4266 = pneg %p242
      $region50: #{double_conv.4} parent=43 // pred_check_branch
        %4268 = sbr.rel (%p4266) target = $region52
      $region51: #{double_conv.4} parent=43 // pred_region
        _
      $region52: #{double_conv.4} parent=43 // pred_fallthru
        _
    $region44: #{double_conv.4} parent=5 // pred_fallthru
      _
    %p4269 = scmp.le.s32.totalorder 2, %s14
    // Predicated region
    $region53: #{double_conv.4} parent=5 // pred_check
      %p4270 = pneg %p4269
    $region54: #{double_conv.4} parent=5 // pred_check_branch
      %4272 = sbr.rel (%p4270) target = $region56
    $region55: #{double_conv.4} parent=5 // pred_region
      %s4273 = ssub.s32 %s14, 2
      // Predicated region
      $region57: #{double_conv.4} parent=55 // pred_check
        %p4274 = pneg %p220
      $region58: #{double_conv.4} parent=55 // pred_check_branch
        %4276 = sbr.rel (%p4274) target = $region60
      $region59: #{double_conv.4} parent=55 // pred_region
        %s4277 = smul.u32 16, %s26
        %p4278 = scmp.lt.s32.totalorder %s25, 1
        %s4279 = scalar_select %p4278, %s25, 1
        %p4280 = scmp.lt.s32.totalorder %s4277, 15
        %s4281 = scalar_select %p4280, %s4277, 15
        %s4282 = smul.addr %s4281, 3
        %s4283 = smul.addr %s4279, 48
        %s4284 = sadd.s32 %s4282, %s4283
        %s4285 = smul.addr %s4284, 4
        %s4286 = scalar_lea.vmem %s6, %s4285
      $region60: #{double_conv.4} parent=55 // pred_fallthru
        _
      // Predicated region
      $region61: #{double_conv.4} parent=55 // pred_check
        %p4287 = pneg %p248
      $region62: #{double_conv.4} parent=55 // pred_check_branch
        %4289 = sbr.rel (%p4287) target = $region64
      $region63: #{double_conv.4} parent=55 // pred_region
        %p4290 = scmp.lt.s32.totalorder %s25, 1
        %s4291 = scalar_select %p4290, %s25, 1
        %p4292 = scmp.lt.s32.totalorder %s26, 0
        %s4293 = scalar_select %p4292, %s26, 0
        %s4294 = sadd.s32 %s4293, %s4291
        %s4295 = smul.addr %s4294, 2
        %s4296 = scalar_lea.vmem %s7, %s4295
      $region64: #{double_conv.4} parent=55 // pred_fallthru
        _
    $region56: #{double_conv.4} parent=5 // pred_fallthru
      _
  $region6: #{double_conv.4} parent=0 // loop_footer
    %s18 = sadd.s32 1, %s14
  $region7: #{double_conv.4} parent=0 // loop_footer_branch
    %13 = sbr.rel target = $region3
  $region8: #{double_conv.4} parent=0 // loop_exit
    _

</llo_original>
